<compile_context>
chip_gen: v5e
topology: v5e:2x2
jax: 0.10.0
libtpu: 0.0.40
codegen_flags: <defaults>
</compile_context>

<pallas_src>
import numpy as np
import jax
import jax.numpy as jnp
from jax import lax
from jax.experimental import pallas as pl
from jax.experimental.pallas import tpu as pltpu


# --------------------------------------------------------------------------- #
# Model configuration (PyTorch module with latent=8, channels=64, image_size=32)
# --------------------------------------------------------------------------- #
LATENT = 8
HALF = LATENT // 2            # 4
CH = 64                       # channels
IMG = 32                      # image_size
LEAKY = 0.01

H1, H2, H3 = 15, 6, 3                              # encoder spatial sizes
P1, P2, P3 = H1 * H1, H2 * H2, H3 * H3             # 225, 36, 9
D1P, D1S = H3 + 1, 2 * H3 + 1                      # 4, 7   (d1 per-phase grid / output)
D2P, D2S = D1S + 1, 2 * D1S + 2                    # 8, 16
D3P, D3S = D2S + 1, 2 * D2S + 2                    # 17, 34


# --------------------------------------------------------------------------- #
# Host-side construction of 0/1 gather / scatter constants (one-time)          #
# --------------------------------------------------------------------------- #
def _conv_gather(h_in, w_in, k, stride, pad):
    """[k*k taps, h_in*w_in, h_out*w_out] selection matrices for a strided conv."""
    h_out = (h_in + 2 * pad - k) // stride + 1
    w_out = (w_in + 2 * pad - k) // stride + 1
    g = np.zeros((k * k, h_in * w_in, h_out * w_out), np.float32)
    for a in range(k):
        for b in range(k):
            t = a * k + b
            for u in range(h_out):
                for v in range(w_out):
                    r = u * stride + a - pad
                    c = v * stride + b - pad
                    if 0 <= r < h_in and 0 <= c < w_in:
                        g[t, r * w_in + c, u * w_out + v] = 1.0
    return g


def _phase_scatter(hp, wp, h_out, w_out):
    """[4 phases, hp*wp, h_out*w_out]: per-phase position -> output pixel (with crop)."""
    s = np.zeros((4, hp * wp, h_out * w_out), np.float32)
    for r in range(2):
        for q in range(2):
            ph = 2 * r + q
            for u in range(hp):
                for v in range(wp):
                    i, j = 2 * u + r, 2 * v + q
                    if i < h_out and j < w_out:
                        s[ph, u * wp + v, i * w_out + j] = 1.0
    return s


# --------------------------------------------------------------------------- #
# One-time weight packing (hoisted out of the forward pass)                    #
# --------------------------------------------------------------------------- #
def _pack_conv_tapmajor(w):
    """torch Conv2d weight [Cout, Cin, kh, kw] -> [Cout, kh*kw*Cin], columns (tap, ci)."""
    cout, cin, kh, kw = w.shape
    return jnp.transpose(w, (0, 2, 3, 1)).reshape(cout, kh * kw * cin)


def _pack_deconv_phase_tapmajor(w):
    """torch ConvTranspose2d weight [Cin, Cout, kh, kw] (stride 2) ->
    [4*Cout, 4*Cin]: rows (phase, cout), cols (tap, cin), per-phase 2x2 sub-kernels."""
    cin, cout, kh, kw = w.shape
    wp = jnp.pad(w, ((0, 0), (0, 0), (0, 4 - kh), (0, 4 - kw)))
    rows = []
    for r in range(2):
        for q in range(2):
            cols = []
            for tu in range(2):
                for tv in range(2):
                    cols.append(wp[:, :, r + 2 * (1 - tu), q + 2 * (1 - tv)].T)  # [cout, cin]
            rows.append(jnp.concatenate(cols, axis=1))                           # [cout, 4*cin]
    return jnp.concatenate(rows, axis=0)                                         # [4*cout, 4*cin]


def prepare_params(p):
    bf = jnp.bfloat16
    prep = {
        "e1_w": p["e1_w"].reshape(CH, 16).astype(bf),
        "e1_b": p["e1_b"].reshape(-1, 1),
        "e2_w": _pack_conv_tapmajor(p["e2_w"]).astype(bf),            # [64, 1024]
        "e2_b": p["e2_b"].reshape(-1, 1),
        "e3_w": _pack_conv_tapmajor(p["e3_w"]).astype(bf),            # [8, 576] (mu rows 0..3)
        "e3_b": p["e3_b"].reshape(-1, 1),
        "d1_b": jnp.tile(p["d1_b"], 4).reshape(-1, 1),
        "d2_w": _pack_deconv_phase_tapmajor(p["d2_w"]).astype(bf),    # [256, 256]
        "d2_b": jnp.tile(p["d2_b"], 4).reshape(-1, 1),
        "d3_w": _pack_deconv_phase_tapmajor(p["d3_w"]).astype(bf),    # [4, 256]
        "d3_b": jnp.tile(p["d3_b"], 4).reshape(-1, 1),
    }
    d1p = _pack_deconv_phase_tapmajor(p["d1_w"])                      # [256, 16]
    prep["d1_w"] = jnp.transpose(d1p.reshape(4 * CH, 4, HALF), (1, 0, 2)).astype(bf)  # [4,256,4]
    # gather / scatter constants (0/1, exact in bf16)
    prep["ge2"] = jnp.asarray(_conv_gather(H1, H1, 4, 2, 0), bf)      # [16, 225, 36]
    prep["ge3"] = jnp.asarray(_conv_gather(H2, H2, 3, 2, 1), bf)      # [9, 36, 9]
    prep["gd1"] = jnp.asarray(_conv_gather(H3, H3, 2, 1, 1), bf)      # [4, 9, 16]
    prep["sc1"] = jnp.asarray(_phase_scatter(D1P, D1P, D1S, D1S), bf) # [4, 16, 49]
    prep["gd2"] = jnp.asarray(_conv_gather(D1S, D1S, 2, 1, 1), bf)    # [4, 49, 64]
    prep["sc2"] = jnp.asarray(_phase_scatter(D2P, D2P, D2S, D2S), bf) # [4, 64, 256]
    prep["gd3"] = jnp.asarray(_conv_gather(D2S, D2S, 2, 1, 1), bf)    # [4, 256, 289]
    return prep


def init_params(key):
    def uinit(k, shape, fan_in):
        bound = 1.0 / np.sqrt(fan_in)
        return jax.random.uniform(k, shape, jnp.float32, -bound, bound)

    ks = jax.random.split(key, 12)
    p = {}
    # encoder (torch Conv2d layout [Cout, Cin, kh, kw])
    p["e1_w"] = uinit(ks[0], (CH, 1, 4, 4), 16)
    p["e1_b"] = uinit(ks[1], (CH,), 16)
    p["e2_w"] = uinit(ks[2], (CH, CH, 4, 4), CH * 16)
    p["e2_b"] = uinit(ks[3], (CH,), CH * 16)
    p["e3_w"] = uinit(ks[4], (LATENT, CH, 3, 3), CH * 9)
    p["e3_b"] = uinit(ks[5], (LATENT,), CH * 9)
    # decoder (torch ConvTranspose2d layout [Cin, Cout, kh, kw])
    p["d1_w"] = uinit(ks[6], (HALF, CH, 3, 3), HALF * 9)
    p["d1_b"] = uinit(ks[7], (CH,), HALF * 9)
    p["d2_w"] = uinit(ks[8], (CH, CH, 4, 4), CH * 16)
    p["d2_b"] = uinit(ks[9], (CH,), CH * 16)
    p["d3_w"] = uinit(ks[10], (CH, 1, 4, 4), CH * 16)
    p["d3_b"] = uinit(ks[11], (1,), CH * 16)
    return p


# --------------------------------------------------------------------------- #
# The fused Pallas kernel: whole VAE forward for one batch element             #
# --------------------------------------------------------------------------- #
def _vae_kernel(a1_ref, eps_ref,
                e1w_ref, e1b_ref,
                e2w_ref, e2b_ref, ge2_ref,
                e3w_ref, e3b_ref, ge3_ref,
                d1w_ref, d1b_ref, gd1_ref, sc1_ref,
                d2w_ref, d2b_ref, gd2_ref, sc2_ref,
                d3w_ref, d3b_ref, gd3_ref,
                mu_ref, lv_ref, dec_ref):
    f32, bf16 = jnp.float32, jnp.bfloat16

    def leaky(v):
        return jnp.where(v >= 0, v, LEAKY * v)

    def conv(x_bf16, w_ref, b_ref, g_ref, taps):
        """Strided conv: in-kernel im2col via 0/1 gather matmuls + one weight matmul."""
        slabs = [jnp.dot(x_bf16, g_ref[t], preferred_element_type=f32).astype(bf16)
                 for t in range(taps)]
        a = jnp.concatenate(slabs, axis=0)
        return jnp.dot(w_ref[...], a, preferred_element_type=f32) + b_ref[...]

    def interleave(y_bf16, sc_ref, cout):
        """Fold the 4 deconv phases back onto the pixel grid (incl. crop)."""
        acc = None
        for ph in range(4):
            part = jnp.dot(y_bf16[ph * cout:(ph + 1) * cout, :], sc_ref[ph],
                           preferred_element_type=f32)
            acc = part if acc is None else acc + part
        return acc

    # ---------------- encoder ---------------- #
    h1 = jnp.dot(e1w_ref[...], a1_ref[...], preferred_element_type=f32) + e1b_ref[...]
    h1 = leaky(h1).astype(bf16)                                        # [64, 225]
    # TODO(synk): `block(channels, dropout=0.2)` is an injected, undefined module in the
    # reference source; it is treated as identity here (and after e2 / d1 / d2 below).
    h2 = leaky(conv(h1, e2w_ref, e2b_ref, ge2_ref, 16)).astype(bf16)   # [64, 36]

    # merged mu/logvar conv + fused reparametrization
    ml = conv(h2, e3w_ref, e3b_ref, ge3_ref, 9)                        # [8, 9]
    mu, lv = ml[:HALF, :], ml[HALF:, :]
    mu_ref[...] = mu
    lv_ref[...] = lv
    z = (mu + eps_ref[...] * jnp.exp(0.5 * lv)).astype(bf16)           # [4, 9]

    # ---------------- decoder (phase-decomposed transposed convs) ---------------- #
    # d1: ConvTranspose 3x3 stride 2, 3x3 -> 7x7  (per-tap weight accumulation)
    y1 = d1b_ref[...]
    for t in range(4):
        slab = jnp.dot(z, gd1_ref[t], preferred_element_type=f32).astype(bf16)   # [4, 16]
        y1 = y1 + jnp.dot(d1w_ref[t], slab, preferred_element_type=f32)          # [256, 16]
    x1 = interleave(leaky(y1).astype(bf16), sc1_ref, CH).astype(bf16)            # [64, 49]

    # d2: ConvTranspose 4x4 stride 2, 7x7 -> 16x16
    y2 = conv(x1, d2w_ref, d2b_ref, gd2_ref, 4)                                  # [256, 64]
    x2 = interleave(leaky(y2).astype(bf16), sc2_ref, CH).astype(bf16)            # [64, 256]

    # d3: ConvTranspose 4x4 stride 2, 16x16 -> 34x34 (phases interleaved outside)
    y3 = conv(x2, d3w_ref, d3b_ref, gd3_ref, 4)                                  # [4, 289]
    dec_ref[...] = jax.nn.sigmoid(y3)


# --------------------------------------------------------------------------- #
# pallas_call wrapper                                                          #
# --------------------------------------------------------------------------- #
def _batch_spec(shape):
    nd = len(shape)
    return pl.BlockSpec((None,) + shape, lambda i, _nd=nd: (i,) + (0,) * _nd)


def _const_spec(shape):
    nd = len(shape)
    return pl.BlockSpec(shape, lambda i, _nd=nd: (0,) * _nd)


def vae_forward(prep, x, eps_key):
    """Full Norm_3d_Conv_15 forward. Returns (reconstruction, mu, logvar)."""
    bsz = x.shape[0]

    # im2col of the raw input for the first conv (the only XLA-side patch op)
    a1 = lax.conv_general_dilated_patches(
        x, (4, 4), (2, 2), ((0, 0), (0, 0)),
        dimension_numbers=("NCHW", "OIHW", "NCHW"))
    a1 = a1.reshape(bsz, 16, P1).astype(jnp.bfloat16)                  # [B, 16, 225]

    eps = jax.random.normal(eps_key, (bsz, HALF, P3), jnp.float32)

    mu, logvar, dec_ph = pl.pallas_call(
        _vae_kernel,
        out_shape=(
            jax.ShapeDtypeStruct((bsz, HALF, P3), jnp.float32),        # mu
            jax.ShapeDtypeStruct((bsz, HALF, P3), jnp.float32),        # logvar
            jax.ShapeDtypeStruct((bsz, 4, D3P * D3P), jnp.float32),    # d3 phase output
        ),
        grid=(bsz,),
        in_specs=[
            _batch_spec((16, P1)),                   # a1
            _batch_spec((HALF, P3)),                 # eps
            _const_spec((CH, 16)),                   # e1_w
            _const_spec((CH, 1)),                    # e1_b
            _const_spec((CH, 16 * CH)),              # e2_w
            _const_spec((CH, 1)),                    # e2_b
            _const_spec((16, P1, P2)),               # ge2
            _const_spec((LATENT, 9 * CH)),           # e3_w
            _const_spec((LATENT, 1)),                # e3_b
            _const_spec((9, P2, P3)),                # ge3
            _const_spec((4, 4 * CH, HALF)),          # d1_w (per-tap)
            _const_spec((4 * CH, 1)),                # d1_b
            _const_spec((4, P3, D1P * D1P)),         # gd1
            _const_spec((4, D1P * D1P, D1S * D1S)),  # sc1
            _const_spec((4 * CH, 4 * CH)),           # d2_w
            _const_spec((4 * CH, 1)),                # d2_b
            _const_spec((4, D1S * D1S, D2P * D2P)),  # gd2
            _const_spec((4, D2P * D2P, D2S * D2S)),  # sc2
            _const_spec((4, 4 * CH)),                # d3_w
            _const_spec((4, 1)),                     # d3_b
            _const_spec((4, D2S * D2S, D3P * D3P)),  # gd3
        ],
        out_specs=(
            _batch_spec((HALF, P3)),
            _batch_spec((HALF, P3)),
            _batch_spec((4, D3P * D3P)),
        ),
        compiler_params=pltpu.CompilerParams(dimension_semantics=("parallel",)),
    )(a1, eps,
      prep["e1_w"], prep["e1_b"],
      prep["e2_w"], prep["e2_b"], prep["ge2"],
      prep["e3_w"], prep["e3_b"], prep["ge3"],
      prep["d1_w"], prep["d1_b"], prep["gd1"], prep["sc1"],
      prep["d2_w"], prep["d2_b"], prep["gd2"], prep["sc2"],
      prep["d3_w"], prep["d3_b"], prep["gd3"])

    # tiny XLA epilogue: interleave the 4 d3 phases onto the 34x34 grid and crop.
    # TODO(synk): CropImage is not defined in the reference file; assumed top-left crop
    # to (image_size, image_size). Sigmoid (elementwise) commutes with the crop.
    ph = dec_ph.reshape(bsz, 2, 2, D3P, D3P)
    img = jnp.transpose(ph, (0, 3, 1, 4, 2)).reshape(bsz, D3S, D3S)
    res = img[:, :IMG, :IMG].reshape(bsz, 1, IMG, IMG)
    return res, mu.reshape(bsz, HALF, H3, H3), logvar.reshape(bsz, HALF, H3, H3)


# --------------------------------------------------------------------------- #
# Pure-XLA f32 reference (PyTorch Conv2d / ConvTranspose2d semantics)          #
# --------------------------------------------------------------------------- #
def reference_forward(p, x, eps):
    dn = ("NCHW", "OIHW", "NCHW")

    def conv(h, w, b, stride, pad):
        y = lax.conv_general_dilated(h, w, (stride, stride),
                                     ((pad, pad), (pad, pad)), dimension_numbers=dn)
        return y + b.reshape(1, -1, 1, 1)

    def deconv(h, w, b, stride):
        k = w.shape[-1]
        w_f = jnp.flip(jnp.transpose(w, (1, 0, 2, 3)), (2, 3))
        y = lax.conv_general_dilated(h, w_f, (1, 1), ((k - 1, k - 1), (k - 1, k - 1)),
                                     lhs_dilation=(stride, stride), dimension_numbers=dn)
        return y + b.reshape(1, -1, 1, 1)

    def leaky(v):
        return jnp.where(v >= 0, v, LEAKY * v)

    h = leaky(conv(x, p["e1_w"], p["e1_b"], 2, 0))
    h = leaky(conv(h, p["e2_w"], p["e2_b"], 2, 0))
    h = conv(h, p["e3_w"], p["e3_b"], 2, 1)
    mu, logvar = h[:, :HALF], h[:, HALF:]
    z = mu + eps.reshape(mu.shape) * jnp.exp(0.5 * logvar)
    d = leaky(deconv(z, p["d1_w"], p["d1_b"], 2))
    d = leaky(deconv(d, p["d2_w"], p["d2_b"], 2))
    d = deconv(d, p["d3_w"], p["d3_b"], 2)
    return jax.nn.sigmoid(d[:, :, :IMG, :IMG]), mu, logvar


if __name__ == "__main__":
    root = jax.random.PRNGKey(0)
    k_param, k_x, k_eps = jax.random.split(root, 3)

    params = init_params(k_param)
    prep = prepare_params(params)          # one-time packing (hoisted out of forward)
    x = jax.random.normal(k_x, (2, 1, IMG, IMG), jnp.float32)

    fwd = jax.jit(vae_forward)
    res, mu, logvar = fwd(prep, x, k_eps)
    jax.block_until_ready((res, mu, logvar))

    assert res.shape == (2, 1, IMG, IMG)
    assert mu.shape == (2, HALF, H3, H3)
    assert logvar.shape == (2, HALF, H3, H3)
    assert bool(jnp.all(jnp.isfinite(res)))

    # numerical check vs. a pure-XLA f32 reference (same eps draw); tolerance covers
    # the bf16 MXU operands used inside the kernel.
    eps = jax.random.normal(k_eps, (2, HALF, P3), jnp.float32)
    ref_res, ref_mu, ref_lv = reference_forward(params, x, eps)
    assert float(jnp.max(jnp.abs(res - ref_res))) < 6e-2
    assert float(jnp.max(jnp.abs(mu - ref_mu))) < 6e-2
    assert float(jnp.max(jnp.abs(logvar - ref_lv))) < 6e-2

    print("KERNEL_OK")
</pallas_src>

<mosaic_0001>
module attributes {stable_mosaic.version = 11 : i64} {
  func.func @_vae_kernel(%arg0: i32, %arg1: memref<1x16x225xbf16, #tpu.memory_space<vmem>>, %arg2: memref<1x4x9xf32, #tpu.memory_space<vmem>>, %arg3: memref<64x16xbf16, #tpu.memory_space<vmem>>, %arg4: memref<64x1xf32, #tpu.memory_space<vmem>>, %arg5: memref<64x1024xbf16, #tpu.memory_space<vmem>>, %arg6: memref<64x1xf32, #tpu.memory_space<vmem>>, %arg7: memref<16x225x36xbf16, #tpu.memory_space<vmem>>, %arg8: memref<8x576xbf16, #tpu.memory_space<vmem>>, %arg9: memref<8x1xf32, #tpu.memory_space<vmem>>, %arg10: memref<9x36x9xbf16, #tpu.memory_space<vmem>>, %arg11: memref<4x256x4xbf16, #tpu.memory_space<vmem>>, %arg12: memref<256x1xf32, #tpu.memory_space<vmem>>, %arg13: memref<4x9x16xbf16, #tpu.memory_space<vmem>>, %arg14: memref<4x16x49xbf16, #tpu.memory_space<vmem>>, %arg15: memref<256x256xbf16, #tpu.memory_space<vmem>>, %arg16: memref<256x1xf32, #tpu.memory_space<vmem>>, %arg17: memref<4x49x64xbf16, #tpu.memory_space<vmem>>, %arg18: memref<4x64x256xbf16, #tpu.memory_space<vmem>>, %arg19: memref<4x256xbf16, #tpu.memory_space<vmem>>, %arg20: memref<4x1xf32, #tpu.memory_space<vmem>>, %arg21: memref<4x256x289xbf16, #tpu.memory_space<vmem>>, %arg22: memref<1x4x9xf32, #tpu.memory_space<vmem>>, %arg23: memref<1x4x9xf32, #tpu.memory_space<vmem>>, %arg24: memref<1x4x289xf32, #tpu.memory_space<vmem>>) attributes {dimension_semantics = [#tpu.dimension_semantics<parallel>], iteration_bounds = array<i64: 2>, scalar_prefetch = 0 : i64, scratch_operands = 0 : i64, tpu.core_type = #tpu.core_type<tc>, window_params = [{transform_indices = @transform_0, window_bounds = array<i64: 1, 16, 225>}, {transform_indices = @transform_1, window_bounds = array<i64: 1, 4, 9>}, {pipeline_mode = #tpu.pipeline_mode<synchronous>, transform_indices = @transform_2, window_bounds = array<i64: 64, 16>}, {pipeline_mode = #tpu.pipeline_mode<synchronous>, transform_indices = @transform_3, window_bounds = array<i64: 64, 1>}, {pipeline_mode = #tpu.pipeline_mode<synchronous>, transform_indices = @transform_4, window_bounds = array<i64: 64, 1024>}, {pipeline_mode = #tpu.pipeline_mode<synchronous>, transform_indices = @transform_5, window_bounds = array<i64: 64, 1>}, {pipeline_mode = #tpu.pipeline_mode<synchronous>, transform_indices = @transform_6, window_bounds = array<i64: 16, 225, 36>}, {pipeline_mode = #tpu.pipeline_mode<synchronous>, transform_indices = @transform_7, window_bounds = array<i64: 8, 576>}, {pipeline_mode = #tpu.pipeline_mode<synchronous>, transform_indices = @transform_8, window_bounds = array<i64: 8, 1>}, {pipeline_mode = #tpu.pipeline_mode<synchronous>, transform_indices = @transform_9, window_bounds = array<i64: 9, 36, 9>}, {pipeline_mode = #tpu.pipeline_mode<synchronous>, transform_indices = @transform_10, window_bounds = array<i64: 4, 256, 4>}, {pipeline_mode = #tpu.pipeline_mode<synchronous>, transform_indices = @transform_11, window_bounds = array<i64: 256, 1>}, {pipeline_mode = #tpu.pipeline_mode<synchronous>, transform_indices = @transform_12, window_bounds = array<i64: 4, 9, 16>}, {pipeline_mode = #tpu.pipeline_mode<synchronous>, transform_indices = @transform_13, window_bounds = array<i64: 4, 16, 49>}, {pipeline_mode = #tpu.pipeline_mode<synchronous>, transform_indices = @transform_14, window_bounds = array<i64: 256, 256>}, {pipeline_mode = #tpu.pipeline_mode<synchronous>, transform_indices = @transform_15, window_bounds = array<i64: 256, 1>}, {pipeline_mode = #tpu.pipeline_mode<synchronous>, transform_indices = @transform_16, window_bounds = array<i64: 4, 49, 64>}, {pipeline_mode = #tpu.pipeline_mode<synchronous>, transform_indices = @transform_17, window_bounds = array<i64: 4, 64, 256>}, {pipeline_mode = #tpu.pipeline_mode<synchronous>, transform_indices = @transform_18, window_bounds = array<i64: 4, 256>}, {pipeline_mode = #tpu.pipeline_mode<synchronous>, transform_indices = @transform_19, window_bounds = array<i64: 4, 1>}, {pipeline_mode = #tpu.pipeline_mode<synchronous>, transform_indices = @transform_20, window_bounds = array<i64: 4, 256, 289>}, {transform_indices = @transform_21, window_bounds = array<i64: 1, 4, 9>}, {transform_indices = @transform_22, window_bounds = array<i64: 1, 4, 9>}, {transform_indices = @transform_23, window_bounds = array<i64: 1, 4, 289>}]} {
    %c0 = arith.constant 0 : index
    %c0_0 = arith.constant 0 : index
    %0 = vector.load %arg3[%c0, %c0_0] : memref<64x16xbf16, #tpu.memory_space<vmem>>, vector<64x16xbf16>
    %c0_1 = arith.constant 0 : index
    %c0_2 = arith.constant 0 : index
    %c0_3 = arith.constant 0 : index
    %1 = vector.load %arg1[%c0_1, %c0_2, %c0_3] : memref<1x16x225xbf16, #tpu.memory_space<vmem>>, vector<1x16x225xbf16>
    %2 = vector.shape_cast %1 : vector<1x16x225xbf16> to vector<16x225xbf16>
    %cst = arith.constant dense<0.000000e+00> : vector<64x225xf32>
    %3 = tpu.matmul %0, %2, %cst {dimension_numbers = #tpu.dot_dimension_numbers<[1], [0], [0], [1], [0, 0, 1, 1], [], []>} : vector<64x16xbf16>, vector<16x225xbf16>, vector<64x225xf32> -> vector<64x225xf32>
    %c0_4 = arith.constant 0 : index
    %c0_5 = arith.constant 0 : index
    %4 = vector.load %arg4[%c0_4, %c0_5] : memref<64x1xf32, #tpu.memory_space<vmem>>, vector<64x1xf32>
    %5 = vector.broadcast %4 : vector<64x1xf32> to vector<64x225xf32>
    %6 = arith.addf %3, %5 : vector<64x225xf32>
    %cst_6 = arith.constant 0.000000e+00 : f32
    %7 = vector.broadcast %cst_6 : f32 to vector<64x225xf32>
    %8 = arith.cmpf oge, %6, %7 : vector<64x225xf32>
    %cst_7 = arith.constant 0.00999999977 : f32
    %9 = vector.broadcast %cst_7 : f32 to vector<64x225xf32>
    %10 = arith.mulf %9, %6 : vector<64x225xf32>
    %11 = arith.select %8, %6, %10 : vector<64x225xi1>, vector<64x225xf32>
    %12 = arith.truncf %11 : vector<64x225xf32> to vector<64x225xbf16>
    %c0_8 = arith.constant 0 : index
    %c0_9 = arith.constant 0 : index
    %c0_10 = arith.constant 0 : index
    %13 = vector.load %arg7[%c0_8, %c0_9, %c0_10] : memref<16x225x36xbf16, #tpu.memory_space<vmem>>, vector<1x225x36xbf16>
    %14 = vector.shape_cast %13 : vector<1x225x36xbf16> to vector<225x36xbf16>
    %cst_11 = arith.constant dense<0.000000e+00> : vector<64x36xf32>
    %15 = tpu.matmul %12, %14, %cst_11 {dimension_numbers = #tpu.dot_dimension_numbers<[1], [0], [0], [1], [0, 0, 1, 1], [], []>} : vector<64x225xbf16>, vector<225x36xbf16>, vector<64x36xf32> -> vector<64x36xf32>
    %16 = arith.truncf %15 : vector<64x36xf32> to vector<64x36xbf16>
    %c1 = arith.constant 1 : index
    %c0_12 = arith.constant 0 : index
    %c0_13 = arith.constant 0 : index
    %17 = vector.load %arg7[%c1, %c0_12, %c0_13] : memref<16x225x36xbf16, #tpu.memory_space<vmem>>, vector<1x225x36xbf16>
    %18 = vector.shape_cast %17 : vector<1x225x36xbf16> to vector<225x36xbf16>
    %cst_14 = arith.constant dense<0.000000e+00> : vector<64x36xf32>
    %19 = tpu.matmul %12, %18, %cst_14 {dimension_numbers = #tpu.dot_dimension_numbers<[1], [0], [0], [1], [0, 0, 1, 1], [], []>} : vector<64x225xbf16>, vector<225x36xbf16>, vector<64x36xf32> -> vector<64x36xf32>
    %20 = arith.truncf %19 : vector<64x36xf32> to vector<64x36xbf16>
    %c2 = arith.constant 2 : index
    %c0_15 = arith.constant 0 : index
    %c0_16 = arith.constant 0 : index
    %21 = vector.load %arg7[%c2, %c0_15, %c0_16] : memref<16x225x36xbf16, #tpu.memory_space<vmem>>, vector<1x225x36xbf16>
    %22 = vector.shape_cast %21 : vector<1x225x36xbf16> to vector<225x36xbf16>
    %cst_17 = arith.constant dense<0.000000e+00> : vector<64x36xf32>
    %23 = tpu.matmul %12, %22, %cst_17 {dimension_numbers = #tpu.dot_dimension_numbers<[1], [0], [0], [1], [0, 0, 1, 1], [], []>} : vector<64x225xbf16>, vector<225x36xbf16>, vector<64x36xf32> -> vector<64x36xf32>
    %24 = arith.truncf %23 : vector<64x36xf32> to vector<64x36xbf16>
    %c3 = arith.constant 3 : index
    %c0_18 = arith.constant 0 : index
    %c0_19 = arith.constant 0 : index
    %25 = vector.load %arg7[%c3, %c0_18, %c0_19] : memref<16x225x36xbf16, #tpu.memory_space<vmem>>, vector<1x225x36xbf16>
    %26 = vector.shape_cast %25 : vector<1x225x36xbf16> to vector<225x36xbf16>
    %cst_20 = arith.constant dense<0.000000e+00> : vector<64x36xf32>
    %27 = tpu.matmul %12, %26, %cst_20 {dimension_numbers = #tpu.dot_dimension_numbers<[1], [0], [0], [1], [0, 0, 1, 1], [], []>} : vector<64x225xbf16>, vector<225x36xbf16>, vector<64x36xf32> -> vector<64x36xf32>
    %28 = arith.truncf %27 : vector<64x36xf32> to vector<64x36xbf16>
    %c4 = arith.constant 4 : index
    %c0_21 = arith.constant 0 : index
    %c0_22 = arith.constant 0 : index
    %29 = vector.load %arg7[%c4, %c0_21, %c0_22] : memref<16x225x36xbf16, #tpu.memory_space<vmem>>, vector<1x225x36xbf16>
    %30 = vector.shape_cast %29 : vector<1x225x36xbf16> to vector<225x36xbf16>
    %cst_23 = arith.constant dense<0.000000e+00> : vector<64x36xf32>
    %31 = tpu.matmul %12, %30, %cst_23 {dimension_numbers = #tpu.dot_dimension_numbers<[1], [0], [0], [1], [0, 0, 1, 1], [], []>} : vector<64x225xbf16>, vector<225x36xbf16>, vector<64x36xf32> -> vector<64x36xf32>
    %32 = arith.truncf %31 : vector<64x36xf32> to vector<64x36xbf16>
    %c5 = arith.constant 5 : index
    %c0_24 = arith.constant 0 : index
    %c0_25 = arith.constant 0 : index
    %33 = vector.load %arg7[%c5, %c0_24, %c0_25] : memref<16x225x36xbf16, #tpu.memory_space<vmem>>, vector<1x225x36xbf16>
    %34 = vector.shape_cast %33 : vector<1x225x36xbf16> to vector<225x36xbf16>
    %cst_26 = arith.constant dense<0.000000e+00> : vector<64x36xf32>
    %35 = tpu.matmul %12, %34, %cst_26 {dimension_numbers = #tpu.dot_dimension_numbers<[1], [0], [0], [1], [0, 0, 1, 1], [], []>} : vector<64x225xbf16>, vector<225x36xbf16>, vector<64x36xf32> -> vector<64x36xf32>
    %36 = arith.truncf %35 : vector<64x36xf32> to vector<64x36xbf16>
    %c6 = arith.constant 6 : index
    %c0_27 = arith.constant 0 : index
    %c0_28 = arith.constant 0 : index
    %37 = vector.load %arg7[%c6, %c0_27, %c0_28] : memref<16x225x36xbf16, #tpu.memory_space<vmem>>, vector<1x225x36xbf16>
    %38 = vector.shape_cast %37 : vector<1x225x36xbf16> to vector<225x36xbf16>
    %cst_29 = arith.constant dense<0.000000e+00> : vector<64x36xf32>
    %39 = tpu.matmul %12, %38, %cst_29 {dimension_numbers = #tpu.dot_dimension_numbers<[1], [0], [0], [1], [0, 0, 1, 1], [], []>} : vector<64x225xbf16>, vector<225x36xbf16>, vector<64x36xf32> -> vector<64x36xf32>
    %40 = arith.truncf %39 : vector<64x36xf32> to vector<64x36xbf16>
    %c7 = arith.constant 7 : index
    %c0_30 = arith.constant 0 : index
    %c0_31 = arith.constant 0 : index
    %41 = vector.load %arg7[%c7, %c0_30, %c0_31] : memref<16x225x36xbf16, #tpu.memory_space<vmem>>, vector<1x225x36xbf16>
    %42 = vector.shape_cast %41 : vector<1x225x36xbf16> to vector<225x36xbf16>
    %cst_32 = arith.constant dense<0.000000e+00> : vector<64x36xf32>
    %43 = tpu.matmul %12, %42, %cst_32 {dimension_numbers = #tpu.dot_dimension_numbers<[1], [0], [0], [1], [0, 0, 1, 1], [], []>} : vector<64x225xbf16>, vector<225x36xbf16>, vector<64x36xf32> -> vector<64x36xf32>
    %44 = arith.truncf %43 : vector<64x36xf32> to vector<64x36xbf16>
    %c8 = arith.constant 8 : index
    %c0_33 = arith.constant 0 : index
    %c0_34 = arith.constant 0 : index
    %45 = vector.load %arg7[%c8, %c0_33, %c0_34] : memref<16x225x36xbf16, #tpu.memory_space<vmem>>, vector<1x225x36xbf16>
    %46 = vector.shape_cast %45 : vector<1x225x36xbf16> to vector<225x36xbf16>
    %cst_35 = arith.constant dense<0.000000e+00> : vector<64x36xf32>
    %47 = tpu.matmul %12, %46, %cst_35 {dimension_numbers = #tpu.dot_dimension_numbers<[1], [0], [0], [1], [0, 0, 1, 1], [], []>} : vector<64x225xbf16>, vector<225x36xbf16>, vector<64x36xf32> -> vector<64x36xf32>
    %48 = arith.truncf %47 : vector<64x36xf32> to vector<64x36xbf16>
    %c9 = arith.constant 9 : index
    %c0_36 = arith.constant 0 : index
    %c0_37 = arith.constant 0 : index
    %49 = vector.load %arg7[%c9, %c0_36, %c0_37] : memref<16x225x36xbf16, #tpu.memory_space<vmem>>, vector<1x225x36xbf16>
    %50 = vector.shape_cast %49 : vector<1x225x36xbf16> to vector<225x36xbf16>
    %cst_38 = arith.constant dense<0.000000e+00> : vector<64x36xf32>
    %51 = tpu.matmul %12, %50, %cst_38 {dimension_numbers = #tpu.dot_dimension_numbers<[1], [0], [0], [1], [0, 0, 1, 1], [], []>} : vector<64x225xbf16>, vector<225x36xbf16>, vector<64x36xf32> -> vector<64x36xf32>
    %52 = arith.truncf %51 : vector<64x36xf32> to vector<64x36xbf16>
    %c10 = arith.constant 10 : index
    %c0_39 = arith.constant 0 : index
    %c0_40 = arith.constant 0 : index
    %53 = vector.load %arg7[%c10, %c0_39, %c0_40] : memref<16x225x36xbf16, #tpu.memory_space<vmem>>, vector<1x225x36xbf16>
    %54 = vector.shape_cast %53 : vector<1x225x36xbf16> to vector<225x36xbf16>
    %cst_41 = arith.constant dense<0.000000e+00> : vector<64x36xf32>
    %55 = tpu.matmul %12, %54, %cst_41 {dimension_numbers = #tpu.dot_dimension_numbers<[1], [0], [0], [1], [0, 0, 1, 1], [], []>} : vector<64x225xbf16>, vector<225x36xbf16>, vector<64x36xf32> -> vector<64x36xf32>
    %56 = arith.truncf %55 : vector<64x36xf32> to vector<64x36xbf16>
    %c11 = arith.constant 11 : index
    %c0_42 = arith.constant 0 : index
    %c0_43 = arith.constant 0 : index
    %57 = vector.load %arg7[%c11, %c0_42, %c0_43] : memref<16x225x36xbf16, #tpu.memory_space<vmem>>, vector<1x225x36xbf16>
    %58 = vector.shape_cast %57 : vector<1x225x36xbf16> to vector<225x36xbf16>
    %cst_44 = arith.constant dense<0.000000e+00> : vector<64x36xf32>
    %59 = tpu.matmul %12, %58, %cst_44 {dimension_numbers = #tpu.dot_dimension_numbers<[1], [0], [0], [1], [0, 0, 1, 1], [], []>} : vector<64x225xbf16>, vector<225x36xbf16>, vector<64x36xf32> -> vector<64x36xf32>
    %60 = arith.truncf %59 : vector<64x36xf32> to vector<64x36xbf16>
    %c12 = arith.constant 12 : index
    %c0_45 = arith.constant 0 : index
    %c0_46 = arith.constant 0 : index
    %61 = vector.load %arg7[%c12, %c0_45, %c0_46] : memref<16x225x36xbf16, #tpu.memory_space<vmem>>, vector<1x225x36xbf16>
    %62 = vector.shape_cast %61 : vector<1x225x36xbf16> to vector<225x36xbf16>
    %cst_47 = arith.constant dense<0.000000e+00> : vector<64x36xf32>
    %63 = tpu.matmul %12, %62, %cst_47 {dimension_numbers = #tpu.dot_dimension_numbers<[1], [0], [0], [1], [0, 0, 1, 1], [], []>} : vector<64x225xbf16>, vector<225x36xbf16>, vector<64x36xf32> -> vector<64x36xf32>
    %64 = arith.truncf %63 : vector<64x36xf32> to vector<64x36xbf16>
    %c13 = arith.constant 13 : index
    %c0_48 = arith.constant 0 : index
    %c0_49 = arith.constant 0 : index
    %65 = vector.load %arg7[%c13, %c0_48, %c0_49] : memref<16x225x36xbf16, #tpu.memory_space<vmem>>, vector<1x225x36xbf16>
    %66 = vector.shape_cast %65 : vector<1x225x36xbf16> to vector<225x36xbf16>
    %cst_50 = arith.constant dense<0.000000e+00> : vector<64x36xf32>
    %67 = tpu.matmul %12, %66, %cst_50 {dimension_numbers = #tpu.dot_dimension_numbers<[1], [0], [0], [1], [0, 0, 1, 1], [], []>} : vector<64x225xbf16>, vector<225x36xbf16>, vector<64x36xf32> -> vector<64x36xf32>
    %68 = arith.truncf %67 : vector<64x36xf32> to vector<64x36xbf16>
    %c14 = arith.constant 14 : index
    %c0_51 = arith.constant 0 : index
    %c0_52 = arith.constant 0 : index
    %69 = vector.load %arg7[%c14, %c0_51, %c0_52] : memref<16x225x36xbf16, #tpu.memory_space<vmem>>, vector<1x225x36xbf16>
    %70 = vector.shape_cast %69 : vector<1x225x36xbf16> to vector<225x36xbf16>
    %cst_53 = arith.constant dense<0.000000e+00> : vector<64x36xf32>
    %71 = tpu.matmul %12, %70, %cst_53 {dimension_numbers = #tpu.dot_dimension_numbers<[1], [0], [0], [1], [0, 0, 1, 1], [], []>} : vector<64x225xbf16>, vector<225x36xbf16>, vector<64x36xf32> -> vector<64x36xf32>
    %72 = arith.truncf %71 : vector<64x36xf32> to vector<64x36xbf16>
    %c15 = arith.constant 15 : index
    %c0_54 = arith.constant 0 : index
    %c0_55 = arith.constant 0 : index
    %73 = vector.load %arg7[%c15, %c0_54, %c0_55] : memref<16x225x36xbf16, #tpu.memory_space<vmem>>, vector<1x225x36xbf16>
    %74 = vector.shape_cast %73 : vector<1x225x36xbf16> to vector<225x36xbf16>
    %cst_56 = arith.constant dense<0.000000e+00> : vector<64x36xf32>
    %75 = tpu.matmul %12, %74, %cst_56 {dimension_numbers = #tpu.dot_dimension_numbers<[1], [0], [0], [1], [0, 0, 1, 1], [], []>} : vector<64x225xbf16>, vector<225x36xbf16>, vector<64x36xf32> -> vector<64x36xf32>
    %76 = arith.truncf %75 : vector<64x36xf32> to vector<64x36xbf16>
    %77 = tpu.concatenate %16, %20, %24, %28, %32, %36, %40, %44, %48, %52, %56, %60, %64, %68, %72, %76 in 0 : vector<64x36xbf16>, vector<64x36xbf16>, vector<64x36xbf16>, vector<64x36xbf16>, vector<64x36xbf16>, vector<64x36xbf16>, vector<64x36xbf16>, vector<64x36xbf16>, vector<64x36xbf16>, vector<64x36xbf16>, vector<64x36xbf16>, vector<64x36xbf16>, vector<64x36xbf16>, vector<64x36xbf16>, vector<64x36xbf16>, vector<64x36xbf16> -> vector<1024x36xbf16>
    %c0_57 = arith.constant 0 : index
    %c0_58 = arith.constant 0 : index
    %78 = vector.load %arg5[%c0_57, %c0_58] : memref<64x1024xbf16, #tpu.memory_space<vmem>>, vector<64x1024xbf16>
    %cst_59 = arith.constant dense<0.000000e+00> : vector<64x36xf32>
    %79 = tpu.matmul %78, %77, %cst_59 {dimension_numbers = #tpu.dot_dimension_numbers<[1], [0], [0], [1], [0, 0, 1, 1], [], []>} : vector<64x1024xbf16>, vector<1024x36xbf16>, vector<64x36xf32> -> vector<64x36xf32>
    %c0_60 = arith.constant 0 : index
    %c0_61 = arith.constant 0 : index
    %80 = vector.load %arg6[%c0_60, %c0_61] : memref<64x1xf32, #tpu.memory_space<vmem>>, vector<64x1xf32>
    %81 = vector.broadcast %80 : vector<64x1xf32> to vector<64x36xf32>
    %82 = arith.addf %79, %81 : vector<64x36xf32>
    %cst_62 = arith.constant 0.000000e+00 : f32
    %83 = vector.broadcast %cst_62 : f32 to vector<64x36xf32>
    %84 = arith.cmpf oge, %82, %83 : vector<64x36xf32>
    %cst_63 = arith.constant 0.00999999977 : f32
    %85 = vector.broadcast %cst_63 : f32 to vector<64x36xf32>
    %86 = arith.mulf %85, %82 : vector<64x36xf32>
    %87 = arith.select %84, %82, %86 : vector<64x36xi1>, vector<64x36xf32>
    %88 = arith.truncf %87 : vector<64x36xf32> to vector<64x36xbf16>
    %c0_64 = arith.constant 0 : index
    %c0_65 = arith.constant 0 : index
    %c0_66 = arith.constant 0 : index
    %89 = vector.load %arg10[%c0_64, %c0_65, %c0_66] : memref<9x36x9xbf16, #tpu.memory_space<vmem>>, vector<1x36x9xbf16>
    %90 = vector.shape_cast %89 : vector<1x36x9xbf16> to vector<36x9xbf16>
    %cst_67 = arith.constant dense<0.000000e+00> : vector<64x9xf32>
    %91 = tpu.matmul %88, %90, %cst_67 {dimension_numbers = #tpu.dot_dimension_numbers<[1], [0], [0], [1], [0, 0, 1, 1], [], []>} : vector<64x36xbf16>, vector<36x9xbf16>, vector<64x9xf32> -> vector<64x9xf32>
    %92 = arith.truncf %91 : vector<64x9xf32> to vector<64x9xbf16>
    %c1_68 = arith.constant 1 : index
    %c0_69 = arith.constant 0 : index
    %c0_70 = arith.constant 0 : index
    %93 = vector.load %arg10[%c1_68, %c0_69, %c0_70] : memref<9x36x9xbf16, #tpu.memory_space<vmem>>, vector<1x36x9xbf16>
    %94 = vector.shape_cast %93 : vector<1x36x9xbf16> to vector<36x9xbf16>
    %cst_71 = arith.constant dense<0.000000e+00> : vector<64x9xf32>
    %95 = tpu.matmul %88, %94, %cst_71 {dimension_numbers = #tpu.dot_dimension_numbers<[1], [0], [0], [1], [0, 0, 1, 1], [], []>} : vector<64x36xbf16>, vector<36x9xbf16>, vector<64x9xf32> -> vector<64x9xf32>
    %96 = arith.truncf %95 : vector<64x9xf32> to vector<64x9xbf16>
    %c2_72 = arith.constant 2 : index
    %c0_73 = arith.constant 0 : index
    %c0_74 = arith.constant 0 : index
    %97 = vector.load %arg10[%c2_72, %c0_73, %c0_74] : memref<9x36x9xbf16, #tpu.memory_space<vmem>>, vector<1x36x9xbf16>
    %98 = vector.shape_cast %97 : vector<1x36x9xbf16> to vector<36x9xbf16>
    %cst_75 = arith.constant dense<0.000000e+00> : vector<64x9xf32>
    %99 = tpu.matmul %88, %98, %cst_75 {dimension_numbers = #tpu.dot_dimension_numbers<[1], [0], [0], [1], [0, 0, 1, 1], [], []>} : vector<64x36xbf16>, vector<36x9xbf16>, vector<64x9xf32> -> vector<64x9xf32>
    %100 = arith.truncf %99 : vector<64x9xf32> to vector<64x9xbf16>
    %c3_76 = arith.constant 3 : index
    %c0_77 = arith.constant 0 : index
    %c0_78 = arith.constant 0 : index
    %101 = vector.load %arg10[%c3_76, %c0_77, %c0_78] : memref<9x36x9xbf16, #tpu.memory_space<vmem>>, vector<1x36x9xbf16>
    %102 = vector.shape_cast %101 : vector<1x36x9xbf16> to vector<36x9xbf16>
    %cst_79 = arith.constant dense<0.000000e+00> : vector<64x9xf32>
    %103 = tpu.matmul %88, %102, %cst_79 {dimension_numbers = #tpu.dot_dimension_numbers<[1], [0], [0], [1], [0, 0, 1, 1], [], []>} : vector<64x36xbf16>, vector<36x9xbf16>, vector<64x9xf32> -> vector<64x9xf32>
    %104 = arith.truncf %103 : vector<64x9xf32> to vector<64x9xbf16>
    %c4_80 = arith.constant 4 : index
    %c0_81 = arith.constant 0 : index
    %c0_82 = arith.constant 0 : index
    %105 = vector.load %arg10[%c4_80, %c0_81, %c0_82] : memref<9x36x9xbf16, #tpu.memory_space<vmem>>, vector<1x36x9xbf16>
    %106 = vector.shape_cast %105 : vector<1x36x9xbf16> to vector<36x9xbf16>
    %cst_83 = arith.constant dense<0.000000e+00> : vector<64x9xf32>
    %107 = tpu.matmul %88, %106, %cst_83 {dimension_numbers = #tpu.dot_dimension_numbers<[1], [0], [0], [1], [0, 0, 1, 1], [], []>} : vector<64x36xbf16>, vector<36x9xbf16>, vector<64x9xf32> -> vector<64x9xf32>
    %108 = arith.truncf %107 : vector<64x9xf32> to vector<64x9xbf16>
    %c5_84 = arith.constant 5 : index
    %c0_85 = arith.constant 0 : index
    %c0_86 = arith.constant 0 : index
    %109 = vector.load %arg10[%c5_84, %c0_85, %c0_86] : memref<9x36x9xbf16, #tpu.memory_space<vmem>>, vector<1x36x9xbf16>
    %110 = vector.shape_cast %109 : vector<1x36x9xbf16> to vector<36x9xbf16>
    %cst_87 = arith.constant dense<0.000000e+00> : vector<64x9xf32>
    %111 = tpu.matmul %88, %110, %cst_87 {dimension_numbers = #tpu.dot_dimension_numbers<[1], [0], [0], [1], [0, 0, 1, 1], [], []>} : vector<64x36xbf16>, vector<36x9xbf16>, vector<64x9xf32> -> vector<64x9xf32>
    %112 = arith.truncf %111 : vector<64x9xf32> to vector<64x9xbf16>
    %c6_88 = arith.constant 6 : index
    %c0_89 = arith.constant 0 : index
    %c0_90 = arith.constant 0 : index
    %113 = vector.load %arg10[%c6_88, %c0_89, %c0_90] : memref<9x36x9xbf16, #tpu.memory_space<vmem>>, vector<1x36x9xbf16>
    %114 = vector.shape_cast %113 : vector<1x36x9xbf16> to vector<36x9xbf16>
    %cst_91 = arith.constant dense<0.000000e+00> : vector<64x9xf32>
    %115 = tpu.matmul %88, %114, %cst_91 {dimension_numbers = #tpu.dot_dimension_numbers<[1], [0], [0], [1], [0, 0, 1, 1], [], []>} : vector<64x36xbf16>, vector<36x9xbf16>, vector<64x9xf32> -> vector<64x9xf32>
    %116 = arith.truncf %115 : vector<64x9xf32> to vector<64x9xbf16>
    %c7_92 = arith.constant 7 : index
    %c0_93 = arith.constant 0 : index
    %c0_94 = arith.constant 0 : index
    %117 = vector.load %arg10[%c7_92, %c0_93, %c0_94] : memref<9x36x9xbf16, #tpu.memory_space<vmem>>, vector<1x36x9xbf16>
    %118 = vector.shape_cast %117 : vector<1x36x9xbf16> to vector<36x9xbf16>
    %cst_95 = arith.constant dense<0.000000e+00> : vector<64x9xf32>
    %119 = tpu.matmul %88, %118, %cst_95 {dimension_numbers = #tpu.dot_dimension_numbers<[1], [0], [0], [1], [0, 0, 1, 1], [], []>} : vector<64x36xbf16>, vector<36x9xbf16>, vector<64x9xf32> -> vector<64x9xf32>
    %120 = arith.truncf %119 : vector<64x9xf32> to vector<64x9xbf16>
    %c8_96 = arith.constant 8 : index
    %c0_97 = arith.constant 0 : index
    %c0_98 = arith.constant 0 : index
    %121 = vector.load %arg10[%c8_96, %c0_97, %c0_98] : memref<9x36x9xbf16, #tpu.memory_space<vmem>>, vector<1x36x9xbf16>
    %122 = vector.shape_cast %121 : vector<1x36x9xbf16> to vector<36x9xbf16>
    %cst_99 = arith.constant dense<0.000000e+00> : vector<64x9xf32>
    %123 = tpu.matmul %88, %122, %cst_99 {dimension_numbers = #tpu.dot_dimension_numbers<[1], [0], [0], [1], [0, 0, 1, 1], [], []>} : vector<64x36xbf16>, vector<36x9xbf16>, vector<64x9xf32> -> vector<64x9xf32>
    %124 = arith.truncf %123 : vector<64x9xf32> to vector<64x9xbf16>
    %125 = tpu.concatenate %92, %96, %100, %104, %108, %112, %116, %120, %124 in 0 : vector<64x9xbf16>, vector<64x9xbf16>, vector<64x9xbf16>, vector<64x9xbf16>, vector<64x9xbf16>, vector<64x9xbf16>, vector<64x9xbf16>, vector<64x9xbf16>, vector<64x9xbf16> -> vector<576x9xbf16>
    %c0_100 = arith.constant 0 : index
    %c0_101 = arith.constant 0 : index
    %126 = vector.load %arg8[%c0_100, %c0_101] : memref<8x576xbf16, #tpu.memory_space<vmem>>, vector<8x576xbf16>
    %cst_102 = arith.constant dense<0.000000e+00> : vector<8x9xf32>
    %127 = tpu.matmul %126, %125, %cst_102 {dimension_numbers = #tpu.dot_dimension_numbers<[1], [0], [0], [1], [0, 0, 1, 1], [], []>} : vector<8x576xbf16>, vector<576x9xbf16>, vector<8x9xf32> -> vector<8x9xf32>
    %c0_103 = arith.constant 0 : index
    %c0_104 = arith.constant 0 : index
    %128 = vector.load %arg9[%c0_103, %c0_104] : memref<8x1xf32, #tpu.memory_space<vmem>>, vector<8x1xf32>
    %129 = vector.broadcast %128 : vector<8x1xf32> to vector<8x9xf32>
    %130 = arith.addf %127, %129 : vector<8x9xf32>
    %131 = vector.extract_strided_slice %130 {offsets = [0, 0], sizes = [4, 9], strides = [1, 1]} : vector<8x9xf32> to vector<4x9xf32>
    %132 = vector.extract_strided_slice %130 {offsets = [4, 0], sizes = [4, 9], strides = [1, 1]} : vector<8x9xf32> to vector<4x9xf32>
    %c0_105 = arith.constant 0 : index
    %c0_106 = arith.constant 0 : index
    %c0_107 = arith.constant 0 : index
    %133 = vector.load %arg22[%c0_105, %c0_106, %c0_107] : memref<1x4x9xf32, #tpu.memory_space<vmem>>, vector<1x4x9xf32>
    %134 = vector.shape_cast %133 : vector<1x4x9xf32> to vector<4x9xf32>
    %135 = vector.shape_cast %131 : vector<4x9xf32> to vector<1x4x9xf32>
    tpu.vector_store %arg22[%c0_105, %c0_106, %c0_107], %135 {strides = array<i32>} : memref<1x4x9xf32, #tpu.memory_space<vmem>>, vector<1x4x9xf32>,
    %c0_108 = arith.constant 0 : index
    %c0_109 = arith.constant 0 : index
    %c0_110 = arith.constant 0 : index
    %136 = vector.load %arg23[%c0_108, %c0_109, %c0_110] : memref<1x4x9xf32, #tpu.memory_space<vmem>>, vector<1x4x9xf32>
    %137 = vector.shape_cast %136 : vector<1x4x9xf32> to vector<4x9xf32>
    %138 = vector.shape_cast %132 : vector<4x9xf32> to vector<1x4x9xf32>
    tpu.vector_store %arg23[%c0_108, %c0_109, %c0_110], %138 {strides = array<i32>} : memref<1x4x9xf32, #tpu.memory_space<vmem>>, vector<1x4x9xf32>,
    %c0_111 = arith.constant 0 : index
    %c0_112 = arith.constant 0 : index
    %c0_113 = arith.constant 0 : index
    %139 = vector.load %arg2[%c0_111, %c0_112, %c0_113] : memref<1x4x9xf32, #tpu.memory_space<vmem>>, vector<1x4x9xf32>
    %140 = vector.shape_cast %139 : vector<1x4x9xf32> to vector<4x9xf32>
    %cst_114 = arith.constant 5.000000e-01 : f32
    %141 = vector.broadcast %cst_114 : f32 to vector<4x9xf32>
    %142 = arith.mulf %141, %132 : vector<4x9xf32>
    %143 = math.exp %142 : vector<4x9xf32>
    %144 = arith.mulf %140, %143 : vector<4x9xf32>
    %145 = arith.addf %131, %144 : vector<4x9xf32>
    %146 = arith.truncf %145 : vector<4x9xf32> to vector<4x9xbf16>
    %c0_115 = arith.constant 0 : index
    %c0_116 = arith.constant 0 : index
    %147 = vector.load %arg12[%c0_115, %c0_116] : memref<256x1xf32, #tpu.memory_space<vmem>>, vector<256x1xf32>
    %c0_117 = arith.constant 0 : index
    %c0_118 = arith.constant 0 : index
    %c0_119 = arith.constant 0 : index
    %148 = vector.load %arg13[%c0_117, %c0_118, %c0_119] : memref<4x9x16xbf16, #tpu.memory_space<vmem>>, vector<1x9x16xbf16>
    %149 = vector.shape_cast %148 : vector<1x9x16xbf16> to vector<9x16xbf16>
    %cst_120 = arith.constant dense<0.000000e+00> : vector<4x16xf32>
    %150 = tpu.matmul %146, %149, %cst_120 {dimension_numbers = #tpu.dot_dimension_numbers<[1], [0], [0], [1], [0, 0, 1, 1], [], []>} : vector<4x9xbf16>, vector<9x16xbf16>, vector<4x16xf32> -> vector<4x16xf32>
    %151 = arith.truncf %150 : vector<4x16xf32> to vector<4x16xbf16>
    %c0_121 = arith.constant 0 : index
    %c0_122 = arith.constant 0 : index
    %c0_123 = arith.constant 0 : index
    %152 = vector.load %arg11[%c0_121, %c0_122, %c0_123] : memref<4x256x4xbf16, #tpu.memory_space<vmem>>, vector<1x256x4xbf16>
    %153 = vector.shape_cast %152 : vector<1x256x4xbf16> to vector<256x4xbf16>
    %cst_124 = arith.constant dense<0.000000e+00> : vector<256x16xf32>
    %154 = tpu.matmul %153, %151, %cst_124 {dimension_numbers = #tpu.dot_dimension_numbers<[1], [0], [0], [1], [0, 0, 1, 1], [], []>} : vector<256x4xbf16>, vector<4x16xbf16>, vector<256x16xf32> -> vector<256x16xf32>
    %155 = vector.broadcast %147 : vector<256x1xf32> to vector<256x16xf32>
    %156 = arith.addf %155, %154 : vector<256x16xf32>
    %c1_125 = arith.constant 1 : index
    %c0_126 = arith.constant 0 : index
    %c0_127 = arith.constant 0 : index
    %157 = vector.load %arg13[%c1_125, %c0_126, %c0_127] : memref<4x9x16xbf16, #tpu.memory_space<vmem>>, vector<1x9x16xbf16>
    %158 = vector.shape_cast %157 : vector<1x9x16xbf16> to vector<9x16xbf16>
    %cst_128 = arith.constant dense<0.000000e+00> : vector<4x16xf32>
    %159 = tpu.matmul %146, %158, %cst_128 {dimension_numbers = #tpu.dot_dimension_numbers<[1], [0], [0], [1], [0, 0, 1, 1], [], []>} : vector<4x9xbf16>, vector<9x16xbf16>, vector<4x16xf32> -> vector<4x16xf32>
    %160 = arith.truncf %159 : vector<4x16xf32> to vector<4x16xbf16>
    %c1_129 = arith.constant 1 : index
    %c0_130 = arith.constant 0 : index
    %c0_131 = arith.constant 0 : index
    %161 = vector.load %arg11[%c1_129, %c0_130, %c0_131] : memref<4x256x4xbf16, #tpu.memory_space<vmem>>, vector<1x256x4xbf16>
    %162 = vector.shape_cast %161 : vector<1x256x4xbf16> to vector<256x4xbf16>
    %cst_132 = arith.constant dense<0.000000e+00> : vector<256x16xf32>
    %163 = tpu.matmul %162, %160, %cst_132 {dimension_numbers = #tpu.dot_dimension_numbers<[1], [0], [0], [1], [0, 0, 1, 1], [], []>} : vector<256x4xbf16>, vector<4x16xbf16>, vector<256x16xf32> -> vector<256x16xf32>
    %164 = arith.addf %156, %163 : vector<256x16xf32>
    %c2_133 = arith.constant 2 : index
    %c0_134 = arith.constant 0 : index
    %c0_135 = arith.constant 0 : index
    %165 = vector.load %arg13[%c2_133, %c0_134, %c0_135] : memref<4x9x16xbf16, #tpu.memory_space<vmem>>, vector<1x9x16xbf16>
    %166 = vector.shape_cast %165 : vector<1x9x16xbf16> to vector<9x16xbf16>
    %cst_136 = arith.constant dense<0.000000e+00> : vector<4x16xf32>
    %167 = tpu.matmul %146, %166, %cst_136 {dimension_numbers = #tpu.dot_dimension_numbers<[1], [0], [0], [1], [0, 0, 1, 1], [], []>} : vector<4x9xbf16>, vector<9x16xbf16>, vector<4x16xf32> -> vector<4x16xf32>
    %168 = arith.truncf %167 : vector<4x16xf32> to vector<4x16xbf16>
    %c2_137 = arith.constant 2 : index
    %c0_138 = arith.constant 0 : index
    %c0_139 = arith.constant 0 : index
    %169 = vector.load %arg11[%c2_137, %c0_138, %c0_139] : memref<4x256x4xbf16, #tpu.memory_space<vmem>>, vector<1x256x4xbf16>
    %170 = vector.shape_cast %169 : vector<1x256x4xbf16> to vector<256x4xbf16>
    %cst_140 = arith.constant dense<0.000000e+00> : vector<256x16xf32>
    %171 = tpu.matmul %170, %168, %cst_140 {dimension_numbers = #tpu.dot_dimension_numbers<[1], [0], [0], [1], [0, 0, 1, 1], [], []>} : vector<256x4xbf16>, vector<4x16xbf16>, vector<256x16xf32> -> vector<256x16xf32>
    %172 = arith.addf %164, %171 : vector<256x16xf32>
    %c3_141 = arith.constant 3 : index
    %c0_142 = arith.constant 0 : index
    %c0_143 = arith.constant 0 : index
    %173 = vector.load %arg13[%c3_141, %c0_142, %c0_143] : memref<4x9x16xbf16, #tpu.memory_space<vmem>>, vector<1x9x16xbf16>
    %174 = vector.shape_cast %173 : vector<1x9x16xbf16> to vector<9x16xbf16>
    %cst_144 = arith.constant dense<0.000000e+00> : vector<4x16xf32>
    %175 = tpu.matmul %146, %174, %cst_144 {dimension_numbers = #tpu.dot_dimension_numbers<[1], [0], [0], [1], [0, 0, 1, 1], [], []>} : vector<4x9xbf16>, vector<9x16xbf16>, vector<4x16xf32> -> vector<4x16xf32>
    %176 = arith.truncf %175 : vector<4x16xf32> to vector<4x16xbf16>
    %c3_145 = arith.constant 3 : index
    %c0_146 = arith.constant 0 : index
    %c0_147 = arith.constant 0 : index
    %177 = vector.load %arg11[%c3_145, %c0_146, %c0_147] : memref<4x256x4xbf16, #tpu.memory_space<vmem>>, vector<1x256x4xbf16>
    %178 = vector.shape_cast %177 : vector<1x256x4xbf16> to vector<256x4xbf16>
    %cst_148 = arith.constant dense<0.000000e+00> : vector<256x16xf32>
    %179 = tpu.matmul %178, %176, %cst_148 {dimension_numbers = #tpu.dot_dimension_numbers<[1], [0], [0], [1], [0, 0, 1, 1], [], []>} : vector<256x4xbf16>, vector<4x16xbf16>, vector<256x16xf32> -> vector<256x16xf32>
    %180 = arith.addf %172, %179 : vector<256x16xf32>
    %cst_149 = arith.constant 0.000000e+00 : f32
    %181 = vector.broadcast %cst_149 : f32 to vector<256x16xf32>
    %182 = arith.cmpf oge, %180, %181 : vector<256x16xf32>
    %cst_150 = arith.constant 0.00999999977 : f32
    %183 = vector.broadcast %cst_150 : f32 to vector<256x16xf32>
    %184 = arith.mulf %183, %180 : vector<256x16xf32>
    %185 = arith.select %182, %180, %184 : vector<256x16xi1>, vector<256x16xf32>
    %186 = arith.truncf %185 : vector<256x16xf32> to vector<256x16xbf16>
    %187 = vector.extract_strided_slice %186 {offsets = [0, 0], sizes = [64, 16], strides = [1, 1]} : vector<256x16xbf16> to vector<64x16xbf16>
    %c0_151 = arith.constant 0 : index
    %c0_152 = arith.constant 0 : index
    %c0_153 = arith.constant 0 : index
    %188 = vector.load %arg14[%c0_151, %c0_152, %c0_153] : memref<4x16x49xbf16, #tpu.memory_space<vmem>>, vector<1x16x49xbf16>
    %189 = vector.shape_cast %188 : vector<1x16x49xbf16> to vector<16x49xbf16>
    %cst_154 = arith.constant dense<0.000000e+00> : vector<64x49xf32>
    %190 = tpu.matmul %187, %189, %cst_154 {dimension_numbers = #tpu.dot_dimension_numbers<[1], [0], [0], [1], [0, 0, 1, 1], [], []>} : vector<64x16xbf16>, vector<16x49xbf16>, vector<64x49xf32> -> vector<64x49xf32>
    %191 = vector.extract_strided_slice %186 {offsets = [64, 0], sizes = [64, 16], strides = [1, 1]} : vector<256x16xbf16> to vector<64x16xbf16>
    %c1_155 = arith.constant 1 : index
    %c0_156 = arith.constant 0 : index
    %c0_157 = arith.constant 0 : index
    %192 = vector.load %arg14[%c1_155, %c0_156, %c0_157] : memref<4x16x49xbf16, #tpu.memory_space<vmem>>, vector<1x16x49xbf16>
    %193 = vector.shape_cast %192 : vector<1x16x49xbf16> to vector<16x49xbf16>
    %cst_158 = arith.constant dense<0.000000e+00> : vector<64x49xf32>
    %194 = tpu.matmul %191, %193, %cst_158 {dimension_numbers = #tpu.dot_dimension_numbers<[1], [0], [0], [1], [0, 0, 1, 1], [], []>} : vector<64x16xbf16>, vector<16x49xbf16>, vector<64x49xf32> -> vector<64x49xf32>
    %195 = arith.addf %190, %194 : vector<64x49xf32>
    %196 = vector.extract_strided_slice %186 {offsets = [128, 0], sizes = [64, 16], strides = [1, 1]} : vector<256x16xbf16> to vector<64x16xbf16>
    %c2_159 = arith.constant 2 : index
    %c0_160 = arith.constant 0 : index
    %c0_161 = arith.constant 0 : index
    %197 = vector.load %arg14[%c2_159, %c0_160, %c0_161] : memref<4x16x49xbf16, #tpu.memory_space<vmem>>, vector<1x16x49xbf16>
    %198 = vector.shape_cast %197 : vector<1x16x49xbf16> to vector<16x49xbf16>
    %cst_162 = arith.constant dense<0.000000e+00> : vector<64x49xf32>
    %199 = tpu.matmul %196, %198, %cst_162 {dimension_numbers = #tpu.dot_dimension_numbers<[1], [0], [0], [1], [0, 0, 1, 1], [], []>} : vector<64x16xbf16>, vector<16x49xbf16>, vector<64x49xf32> -> vector<64x49xf32>
    %200 = arith.addf %195, %199 : vector<64x49xf32>
    %201 = vector.extract_strided_slice %186 {offsets = [192, 0], sizes = [64, 16], strides = [1, 1]} : vector<256x16xbf16> to vector<64x16xbf16>
    %c3_163 = arith.constant 3 : index
    %c0_164 = arith.constant 0 : index
    %c0_165 = arith.constant 0 : index
    %202 = vector.load %arg14[%c3_163, %c0_164, %c0_165] : memref<4x16x49xbf16, #tpu.memory_space<vmem>>, vector<1x16x49xbf16>
    %203 = vector.shape_cast %202 : vector<1x16x49xbf16> to vector<16x49xbf16>
    %cst_166 = arith.constant dense<0.000000e+00> : vector<64x49xf32>
    %204 = tpu.matmul %201, %203, %cst_166 {dimension_numbers = #tpu.dot_dimension_numbers<[1], [0], [0], [1], [0, 0, 1, 1], [], []>} : vector<64x16xbf16>, vector<16x49xbf16>, vector<64x49xf32> -> vector<64x49xf32>
    %205 = arith.addf %200, %204 : vector<64x49xf32>
    %206 = arith.truncf %205 : vector<64x49xf32> to vector<64x49xbf16>
    %c0_167 = arith.constant 0 : index
    %c0_168 = arith.constant 0 : index
    %c0_169 = arith.constant 0 : index
    %207 = vector.load %arg17[%c0_167, %c0_168, %c0_169] : memref<4x49x64xbf16, #tpu.memory_space<vmem>>, vector<1x49x64xbf16>
    %208 = vector.shape_cast %207 : vector<1x49x64xbf16> to vector<49x64xbf16>
    %cst_170 = arith.constant dense<0.000000e+00> : vector<64x64xf32>
    %209 = tpu.matmul %206, %208, %cst_170 {dimension_numbers = #tpu.dot_dimension_numbers<[1], [0], [0], [1], [0, 0, 1, 1], [], []>} : vector<64x49xbf16>, vector<49x64xbf16>, vector<64x64xf32> -> vector<64x64xf32>
    %210 = arith.truncf %209 : vector<64x64xf32> to vector<64x64xbf16>
    %c1_171 = arith.constant 1 : index
    %c0_172 = arith.constant 0 : index
    %c0_173 = arith.constant 0 : index
    %211 = vector.load %arg17[%c1_171, %c0_172, %c0_173] : memref<4x49x64xbf16, #tpu.memory_space<vmem>>, vector<1x49x64xbf16>
    %212 = vector.shape_cast %211 : vector<1x49x64xbf16> to vector<49x64xbf16>
    %cst_174 = arith.constant dense<0.000000e+00> : vector<64x64xf32>
    %213 = tpu.matmul %206, %212, %cst_174 {dimension_numbers = #tpu.dot_dimension_numbers<[1], [0], [0], [1], [0, 0, 1, 1], [], []>} : vector<64x49xbf16>, vector<49x64xbf16>, vector<64x64xf32> -> vector<64x64xf32>
    %214 = arith.truncf %213 : vector<64x64xf32> to vector<64x64xbf16>
    %c2_175 = arith.constant 2 : index
    %c0_176 = arith.constant 0 : index
    %c0_177 = arith.constant 0 : index
    %215 = vector.load %arg17[%c2_175, %c0_176, %c0_177] : memref<4x49x64xbf16, #tpu.memory_space<vmem>>, vector<1x49x64xbf16>
    %216 = vector.shape_cast %215 : vector<1x49x64xbf16> to vector<49x64xbf16>
    %cst_178 = arith.constant dense<0.000000e+00> : vector<64x64xf32>
    %217 = tpu.matmul %206, %216, %cst_178 {dimension_numbers = #tpu.dot_dimension_numbers<[1], [0], [0], [1], [0, 0, 1, 1], [], []>} : vector<64x49xbf16>, vector<49x64xbf16>, vector<64x64xf32> -> vector<64x64xf32>
    %218 = arith.truncf %217 : vector<64x64xf32> to vector<64x64xbf16>
    %c3_179 = arith.constant 3 : index
    %c0_180 = arith.constant 0 : index
    %c0_181 = arith.constant 0 : index
    %219 = vector.load %arg17[%c3_179, %c0_180, %c0_181] : memref<4x49x64xbf16, #tpu.memory_space<vmem>>, vector<1x49x64xbf16>
    %220 = vector.shape_cast %219 : vector<1x49x64xbf16> to vector<49x64xbf16>
    %cst_182 = arith.constant dense<0.000000e+00> : vector<64x64xf32>
    %221 = tpu.matmul %206, %220, %cst_182 {dimension_numbers = #tpu.dot_dimension_numbers<[1], [0], [0], [1], [0, 0, 1, 1], [], []>} : vector<64x49xbf16>, vector<49x64xbf16>, vector<64x64xf32> -> vector<64x64xf32>
    %222 = arith.truncf %221 : vector<64x64xf32> to vector<64x64xbf16>
    %223 = tpu.concatenate %210, %214, %218, %222 in 0 : vector<64x64xbf16>, vector<64x64xbf16>, vector<64x64xbf16>, vector<64x64xbf16> -> vector<256x64xbf16>
    %c0_183 = arith.constant 0 : index
    %c0_184 = arith.constant 0 : index
    %224 = vector.load %arg15[%c0_183, %c0_184] : memref<256x256xbf16, #tpu.memory_space<vmem>>, vector<256x256xbf16>
    %cst_185 = arith.constant dense<0.000000e+00> : vector<256x64xf32>
    %225 = tpu.matmul %224, %223, %cst_185 {dimension_numbers = #tpu.dot_dimension_numbers<[1], [0], [0], [1], [0, 0, 1, 1], [], []>} : vector<256x256xbf16>, vector<256x64xbf16>, vector<256x64xf32> -> vector<256x64xf32>
    %c0_186 = arith.constant 0 : index
    %c0_187 = arith.constant 0 : index
    %226 = vector.load %arg16[%c0_186, %c0_187] : memref<256x1xf32, #tpu.memory_space<vmem>>, vector<256x1xf32>
    %227 = vector.broadcast %226 : vector<256x1xf32> to vector<256x64xf32>
    %228 = arith.addf %225, %227 : vector<256x64xf32>
    %cst_188 = arith.constant 0.000000e+00 : f32
    %229 = vector.broadcast %cst_188 : f32 to vector<256x64xf32>
    %230 = arith.cmpf oge, %228, %229 : vector<256x64xf32>
    %cst_189 = arith.constant 0.00999999977 : f32
    %231 = vector.broadcast %cst_189 : f32 to vector<256x64xf32>
    %232 = arith.mulf %231, %228 : vector<256x64xf32>
    %233 = arith.select %230, %228, %232 : vector<256x64xi1>, vector<256x64xf32>
    %234 = arith.truncf %233 : vector<256x64xf32> to vector<256x64xbf16>
    %235 = vector.extract_strided_slice %234 {offsets = [0, 0], sizes = [64, 64], strides = [1, 1]} : vector<256x64xbf16> to vector<64x64xbf16>
    %c0_190 = arith.constant 0 : index
    %c0_191 = arith.constant 0 : index
    %c0_192 = arith.constant 0 : index
    %236 = vector.load %arg18[%c0_190, %c0_191, %c0_192] : memref<4x64x256xbf16, #tpu.memory_space<vmem>>, vector<1x64x256xbf16>
    %237 = vector.shape_cast %236 : vector<1x64x256xbf16> to vector<64x256xbf16>
    %cst_193 = arith.constant dense<0.000000e+00> : vector<64x256xf32>
    %238 = tpu.matmul %235, %237, %cst_193 {dimension_numbers = #tpu.dot_dimension_numbers<[1], [0], [0], [1], [0, 0, 1, 1], [], []>} : vector<64x64xbf16>, vector<64x256xbf16>, vector<64x256xf32> -> vector<64x256xf32>
    %239 = vector.extract_strided_slice %234 {offsets = [64, 0], sizes = [64, 64], strides = [1, 1]} : vector<256x64xbf16> to vector<64x64xbf16>
    %c1_194 = arith.constant 1 : index
    %c0_195 = arith.constant 0 : index
    %c0_196 = arith.constant 0 : index
    %240 = vector.load %arg18[%c1_194, %c0_195, %c0_196] : memref<4x64x256xbf16, #tpu.memory_space<vmem>>, vector<1x64x256xbf16>
    %241 = vector.shape_cast %240 : vector<1x64x256xbf16> to vector<64x256xbf16>
    %cst_197 = arith.constant dense<0.000000e+00> : vector<64x256xf32>
    %242 = tpu.matmul %239, %241, %cst_197 {dimension_numbers = #tpu.dot_dimension_numbers<[1], [0], [0], [1], [0, 0, 1, 1], [], []>} : vector<64x64xbf16>, vector<64x256xbf16>, vector<64x256xf32> -> vector<64x256xf32>
    %243 = arith.addf %238, %242 : vector<64x256xf32>
    %244 = vector.extract_strided_slice %234 {offsets = [128, 0], sizes = [64, 64], strides = [1, 1]} : vector<256x64xbf16> to vector<64x64xbf16>
    %c2_198 = arith.constant 2 : index
    %c0_199 = arith.constant 0 : index
    %c0_200 = arith.constant 0 : index
    %245 = vector.load %arg18[%c2_198, %c0_199, %c0_200] : memref<4x64x256xbf16, #tpu.memory_space<vmem>>, vector<1x64x256xbf16>
    %246 = vector.shape_cast %245 : vector<1x64x256xbf16> to vector<64x256xbf16>
    %cst_201 = arith.constant dense<0.000000e+00> : vector<64x256xf32>
    %247 = tpu.matmul %244, %246, %cst_201 {dimension_numbers = #tpu.dot_dimension_numbers<[1], [0], [0], [1], [0, 0, 1, 1], [], []>} : vector<64x64xbf16>, vector<64x256xbf16>, vector<64x256xf32> -> vector<64x256xf32>
    %248 = arith.addf %243, %247 : vector<64x256xf32>
    %249 = vector.extract_strided_slice %234 {offsets = [192, 0], sizes = [64, 64], strides = [1, 1]} : vector<256x64xbf16> to vector<64x64xbf16>
    %c3_202 = arith.constant 3 : index
    %c0_203 = arith.constant 0 : index
    %c0_204 = arith.constant 0 : index
    %250 = vector.load %arg18[%c3_202, %c0_203, %c0_204] : memref<4x64x256xbf16, #tpu.memory_space<vmem>>, vector<1x64x256xbf16>
    %251 = vector.shape_cast %250 : vector<1x64x256xbf16> to vector<64x256xbf16>
    %cst_205 = arith.constant dense<0.000000e+00> : vector<64x256xf32>
    %252 = tpu.matmul %249, %251, %cst_205 {dimension_numbers = #tpu.dot_dimension_numbers<[1], [0], [0], [1], [0, 0, 1, 1], [], []>} : vector<64x64xbf16>, vector<64x256xbf16>, vector<64x256xf32> -> vector<64x256xf32>
    %253 = arith.addf %248, %252 : vector<64x256xf32>
    %254 = arith.truncf %253 : vector<64x256xf32> to vector<64x256xbf16>
    %c0_206 = arith.constant 0 : index
    %c0_207 = arith.constant 0 : index
    %c0_208 = arith.constant 0 : index
    %255 = vector.load %arg21[%c0_206, %c0_207, %c0_208] : memref<4x256x289xbf16, #tpu.memory_space<vmem>>, vector<1x256x289xbf16>
    %256 = vector.shape_cast %255 : vector<1x256x289xbf16> to vector<256x289xbf16>
    %cst_209 = arith.constant dense<0.000000e+00> : vector<64x289xf32>
    %257 = tpu.matmul %254, %256, %cst_209 {dimension_numbers = #tpu.dot_dimension_numbers<[1], [0], [0], [1], [0, 0, 1, 1], [], []>} : vector<64x256xbf16>, vector<256x289xbf16>, vector<64x289xf32> -> vector<64x289xf32>
    %258 = arith.truncf %257 : vector<64x289xf32> to vector<64x289xbf16>
    %c1_210 = arith.constant 1 : index
    %c0_211 = arith.constant 0 : index
    %c0_212 = arith.constant 0 : index
    %259 = vector.load %arg21[%c1_210, %c0_211, %c0_212] : memref<4x256x289xbf16, #tpu.memory_space<vmem>>, vector<1x256x289xbf16>
    %260 = vector.shape_cast %259 : vector<1x256x289xbf16> to vector<256x289xbf16>
    %cst_213 = arith.constant dense<0.000000e+00> : vector<64x289xf32>
    %261 = tpu.matmul %254, %260, %cst_213 {dimension_numbers = #tpu.dot_dimension_numbers<[1], [0], [0], [1], [0, 0, 1, 1], [], []>} : vector<64x256xbf16>, vector<256x289xbf16>, vector<64x289xf32> -> vector<64x289xf32>
    %262 = arith.truncf %261 : vector<64x289xf32> to vector<64x289xbf16>
    %c2_214 = arith.constant 2 : index
    %c0_215 = arith.constant 0 : index
    %c0_216 = arith.constant 0 : index
    %263 = vector.load %arg21[%c2_214, %c0_215, %c0_216] : memref<4x256x289xbf16, #tpu.memory_space<vmem>>, vector<1x256x289xbf16>
    %264 = vector.shape_cast %263 : vector<1x256x289xbf16> to vector<256x289xbf16>
    %cst_217 = arith.constant dense<0.000000e+00> : vector<64x289xf32>
    %265 = tpu.matmul %254, %264, %cst_217 {dimension_numbers = #tpu.dot_dimension_numbers<[1], [0], [0], [1], [0, 0, 1, 1], [], []>} : vector<64x256xbf16>, vector<256x289xbf16>, vector<64x289xf32> -> vector<64x289xf32>
    %266 = arith.truncf %265 : vector<64x289xf32> to vector<64x289xbf16>
    %c3_218 = arith.constant 3 : index
    %c0_219 = arith.constant 0 : index
    %c0_220 = arith.constant 0 : index
    %267 = vector.load %arg21[%c3_218, %c0_219, %c0_220] : memref<4x256x289xbf16, #tpu.memory_space<vmem>>, vector<1x256x289xbf16>
    %268 = vector.shape_cast %267 : vector<1x256x289xbf16> to vector<256x289xbf16>
    %cst_221 = arith.constant dense<0.000000e+00> : vector<64x289xf32>
    %269 = tpu.matmul %254, %268, %cst_221 {dimension_numbers = #tpu.dot_dimension_numbers<[1], [0], [0], [1], [0, 0, 1, 1], [], []>} : vector<64x256xbf16>, vector<256x289xbf16>, vector<64x289xf32> -> vector<64x289xf32>
    %270 = arith.truncf %269 : vector<64x289xf32> to vector<64x289xbf16>
    %271 = tpu.concatenate %258, %262, %266, %270 in 0 : vector<64x289xbf16>, vector<64x289xbf16>, vector<64x289xbf16>, vector<64x289xbf16> -> vector<256x289xbf16>
    %c0_222 = arith.constant 0 : index
    %c0_223 = arith.constant 0 : index
    %272 = vector.load %arg19[%c0_222, %c0_223] : memref<4x256xbf16, #tpu.memory_space<vmem>>, vector<4x256xbf16>
    %cst_224 = arith.constant dense<0.000000e+00> : vector<4x289xf32>
    %273 = tpu.matmul %272, %271, %cst_224 {dimension_numbers = #tpu.dot_dimension_numbers<[1], [0], [0], [1], [0, 0, 1, 1], [], []>} : vector<4x256xbf16>, vector<256x289xbf16>, vector<4x289xf32> -> vector<4x289xf32>
    %c0_225 = arith.constant 0 : index
    %c0_226 = arith.constant 0 : index
    %274 = vector.load %arg20[%c0_225, %c0_226] : memref<4x1xf32, #tpu.memory_space<vmem>>, vector<4x1xf32>
    %275 = vector.broadcast %274 : vector<4x1xf32> to vector<4x289xf32>
    %276 = arith.addf %273, %275 : vector<4x289xf32>
    %277 = arith.negf %276 : vector<4x289xf32>
    %278 = math.exp %277 : vector<4x289xf32>
    %cst_227 = arith.constant 1.000000e+00 : f32
    %279 = vector.broadcast %cst_227 : f32 to vector<4x289xf32>
    %280 = arith.addf %279, %278 : vector<4x289xf32>
    %281 = arith.divf %279, %280 : vector<4x289xf32>
    %c0_228 = arith.constant 0 : index
    %c0_229 = arith.constant 0 : index
    %c0_230 = arith.constant 0 : index
    %282 = vector.load %arg24[%c0_228, %c0_229, %c0_230] : memref<1x4x289xf32, #tpu.memory_space<vmem>>, vector<1x4x289xf32>
    %283 = vector.shape_cast %282 : vector<1x4x289xf32> to vector<4x289xf32>
    %284 = vector.shape_cast %281 : vector<4x289xf32> to vector<1x4x289xf32>
    tpu.vector_store %arg24[%c0_228, %c0_229, %c0_230], %284 {strides = array<i32>} : memref<1x4x289xf32, #tpu.memory_space<vmem>>, vector<1x4x289xf32>,
    return
  }
  func.func @transform_0(%arg0: i32) -> (i32, i32, i32) {
    %c0_i32 = arith.constant 0 : i32
    %c0_i32_0 = arith.constant 0 : i32
    %c0_i32_1 = arith.constant 0 : i32
    return %arg0, %c0_i32, %c0_i32_0 : i32, i32, i32
  }
  func.func @transform_1(%arg0: i32) -> (i32, i32, i32) {
    %c0_i32 = arith.constant 0 : i32
    %c0_i32_0 = arith.constant 0 : i32
    %c0_i32_1 = arith.constant 0 : i32
    return %arg0, %c0_i32, %c0_i32_0 : i32, i32, i32
  }
  func.func @transform_2(%arg0: i32) -> (i32, i32) {
    %c0_i32 = arith.constant 0 : i32
    %c0_i32_0 = arith.constant 0 : i32
    %c0_i32_1 = arith.constant 0 : i32
    return %c0_i32, %c0_i32_0 : i32, i32
  }
  func.func @transform_3(%arg0: i32) -> (i32, i32) {
    %c0_i32 = arith.constant 0 : i32
    %c0_i32_0 = arith.constant 0 : i32
    %c0_i32_1 = arith.constant 0 : i32
    return %c0_i32, %c0_i32_0 : i32, i32
  }
  func.func @transform_4(%arg0: i32) -> (i32, i32) {
    %c0_i32 = arith.constant 0 : i32
    %c0_i32_0 = arith.constant 0 : i32
    %c0_i32_1 = arith.constant 0 : i32
    return %c0_i32, %c0_i32_0 : i32, i32
  }
  func.func @transform_5(%arg0: i32) -> (i32, i32) {
    %c0_i32 = arith.constant 0 : i32
    %c0_i32_0 = arith.constant 0 : i32
    %c0_i32_1 = arith.constant 0 : i32
    return %c0_i32, %c0_i32_0 : i32, i32
  }
  func.func @transform_6(%arg0: i32) -> (i32, i32, i32) {
    %c0_i32 = arith.constant 0 : i32
    %c0_i32_0 = arith.constant 0 : i32
    %c0_i32_1 = arith.constant 0 : i32
    %c0_i32_2 = arith.constant 0 : i32
    return %c0_i32, %c0_i32_0, %c0_i32_1 : i32, i32, i32
  }
  func.func @transform_7(%arg0: i32) -> (i32, i32) {
    %c0_i32 = arith.constant 0 : i32
    %c0_i32_0 = arith.constant 0 : i32
    %c0_i32_1 = arith.constant 0 : i32
    return %c0_i32, %c0_i32_0 : i32, i32
  }
  func.func @transform_8(%arg0: i32) -> (i32, i32) {
    %c0_i32 = arith.constant 0 : i32
    %c0_i32_0 = arith.constant 0 : i32
    %c0_i32_1 = arith.constant 0 : i32
    return %c0_i32, %c0_i32_0 : i32, i32
  }
  func.func @transform_9(%arg0: i32) -> (i32, i32, i32) {
    %c0_i32 = arith.constant 0 : i32
    %c0_i32_0 = arith.constant 0 : i32
    %c0_i32_1 = arith.constant 0 : i32
    %c0_i32_2 = arith.constant 0 : i32
    return %c0_i32, %c0_i32_0, %c0_i32_1 : i32, i32, i32
  }
  func.func @transform_10(%arg0: i32) -> (i32, i32, i32) {
    %c0_i32 = arith.constant 0 : i32
    %c0_i32_0 = arith.constant 0 : i32
    %c0_i32_1 = arith.constant 0 : i32
    %c0_i32_2 = arith.constant 0 : i32
    return %c0_i32, %c0_i32_0, %c0_i32_1 : i32, i32, i32
  }
  func.func @transform_11(%arg0: i32) -> (i32, i32) {
    %c0_i32 = arith.constant 0 : i32
    %c0_i32_0 = arith.constant 0 : i32
    %c0_i32_1 = arith.constant 0 : i32
    return %c0_i32, %c0_i32_0 : i32, i32
  }
  func.func @transform_12(%arg0: i32) -> (i32, i32, i32) {
    %c0_i32 = arith.constant 0 : i32
    %c0_i32_0 = arith.constant 0 : i32
    %c0_i32_1 = arith.constant 0 : i32
    %c0_i32_2 = arith.constant 0 : i32
    return %c0_i32, %c0_i32_0, %c0_i32_1 : i32, i32, i32
  }
  func.func @transform_13(%arg0: i32) -> (i32, i32, i32) {
    %c0_i32 = arith.constant 0 : i32
    %c0_i32_0 = arith.constant 0 : i32
    %c0_i32_1 = arith.constant 0 : i32
    %c0_i32_2 = arith.constant 0 : i32
    return %c0_i32, %c0_i32_0, %c0_i32_1 : i32, i32, i32
  }
  func.func @transform_14(%arg0: i32) -> (i32, i32) {
    %c0_i32 = arith.constant 0 : i32
    %c0_i32_0 = arith.constant 0 : i32
    %c0_i32_1 = arith.constant 0 : i32
    return %c0_i32, %c0_i32_0 : i32, i32
  }
  func.func @transform_15(%arg0: i32) -> (i32, i32) {
    %c0_i32 = arith.constant 0 : i32
    %c0_i32_0 = arith.constant 0 : i32
    %c0_i32_1 = arith.constant 0 : i32
    return %c0_i32, %c0_i32_0 : i32, i32
  }
  func.func @transform_16(%arg0: i32) -> (i32, i32, i32) {
    %c0_i32 = arith.constant 0 : i32
    %c0_i32_0 = arith.constant 0 : i32
    %c0_i32_1 = arith.constant 0 : i32
    %c0_i32_2 = arith.constant 0 : i32
    return %c0_i32, %c0_i32_0, %c0_i32_1 : i32, i32, i32
  }
  func.func @transform_17(%arg0: i32) -> (i32, i32, i32) {
    %c0_i32 = arith.constant 0 : i32
    %c0_i32_0 = arith.constant 0 : i32
    %c0_i32_1 = arith.constant 0 : i32
    %c0_i32_2 = arith.constant 0 : i32
    return %c0_i32, %c0_i32_0, %c0_i32_1 : i32, i32, i32
  }
  func.func @transform_18(%arg0: i32) -> (i32, i32) {
    %c0_i32 = arith.constant 0 : i32
    %c0_i32_0 = arith.constant 0 : i32
    %c0_i32_1 = arith.constant 0 : i32
    return %c0_i32, %c0_i32_0 : i32, i32
  }
  func.func @transform_19(%arg0: i32) -> (i32, i32) {
    %c0_i32 = arith.constant 0 : i32
    %c0_i32_0 = arith.constant 0 : i32
    %c0_i32_1 = arith.constant 0 : i32
    return %c0_i32, %c0_i32_0 : i32, i32
  }
  func.func @transform_20(%arg0: i32) -> (i32, i32, i32) {
    %c0_i32 = arith.constant 0 : i32
    %c0_i32_0 = arith.constant 0 : i32
    %c0_i32_1 = arith.constant 0 : i32
    %c0_i32_2 = arith.constant 0 : i32
    return %c0_i32, %c0_i32_0, %c0_i32_1 : i32, i32, i32
  }
  func.func @transform_21(%arg0: i32) -> (i32, i32, i32) {
    %c0_i32 = arith.constant 0 : i32
    %c0_i32_0 = arith.constant 0 : i32
    %c0_i32_1 = arith.constant 0 : i32
    return %arg0, %c0_i32, %c0_i32_0 : i32, i32, i32
  }
  func.func @transform_22(%arg0: i32) -> (i32, i32, i32) {
    %c0_i32 = arith.constant 0 : i32
    %c0_i32_0 = arith.constant 0 : i32
    %c0_i32_1 = arith.constant 0 : i32
    return %arg0, %c0_i32, %c0_i32_0 : i32, i32, i32
  }
  func.func @transform_23(%arg0: i32) -> (i32, i32, i32) {
    %c0_i32 = arith.constant 0 : i32
    %c0_i32_0 = arith.constant 0 : i32
    %c0_i32_1 = arith.constant 0 : i32
    return %arg0, %c0_i32, %c0_i32_0 : i32, i32, i32
  }
}

</mosaic_0001>

<llo_original>
// kernel: vae_forward.1
$region0: #{vae_forward.1}
  #allocation0 [shape = 'u32[]', space=smem, size = 0x4, offset = 0x4, fixed_abs, tag = 'smem constant byte address 0x4 - core index']
  #allocation1 [shape = 'u32[72,128]{1,0:T(1,128)}', space=vmem, size = 0x9000, scoped, tag = 'internal scratch']
  %s0 = inlined_call_operand.vmem [shape: bf16[2,16,225], index: 0, kind: input, shape index: {}]
  %s1 = inlined_call_operand.vmem [shape: f32[2,4,9], index: 1, kind: input, shape index: {}]
  %s2 = inlined_call_operand.vmem [shape: bf16[64,16], index: 2, kind: input, shape index: {}]
  %s3 = inlined_call_operand.vmem [shape: f32[64,1], index: 3, kind: input, shape index: {}]
  %s4 = inlined_call_operand.vmem [shape: bf16[64,1024], index: 4, kind: input, shape index: {}]
  %s5 = inlined_call_operand.vmem [shape: f32[64,1], index: 5, kind: input, shape index: {}]
  %s6 = inlined_call_operand.vmem [shape: bf16[16,225,36], index: 6, kind: input, shape index: {}]
  %s7 = inlined_call_operand.vmem [shape: bf16[8,576], index: 7, kind: input, shape index: {}]
  %s8 = inlined_call_operand.vmem [shape: f32[8,1], index: 8, kind: input, shape index: {}]
  %s9 = inlined_call_operand.vmem [shape: bf16[9,36,9], index: 9, kind: input, shape index: {}]
  %s10 = inlined_call_operand.vmem [shape: bf16[4,256,4], index: 10, kind: input, shape index: {}]
  %s11 = inlined_call_operand.vmem [shape: f32[256,1], index: 11, kind: input, shape index: {}]
  %s12 = inlined_call_operand.vmem [shape: bf16[4,9,16], index: 12, kind: input, shape index: {}]
  %s13 = inlined_call_operand.vmem [shape: bf16[4,16,49], index: 13, kind: input, shape index: {}]
  %s14 = inlined_call_operand.vmem [shape: bf16[256,256], index: 14, kind: input, shape index: {}]
  %s15 = inlined_call_operand.vmem [shape: f32[256,1], index: 15, kind: input, shape index: {}]
  %s16 = inlined_call_operand.vmem [shape: bf16[4,49,64], index: 16, kind: input, shape index: {}]
  %s17 = inlined_call_operand.vmem [shape: bf16[4,64,256], index: 17, kind: input, shape index: {}]
  %s18 = inlined_call_operand.vmem [shape: bf16[4,256], index: 18, kind: input, shape index: {}]
  %s19 = inlined_call_operand.vmem [shape: f32[4,1], index: 19, kind: input, shape index: {}]
  %s20 = inlined_call_operand.vmem [shape: bf16[4,256,289], index: 20, kind: input, shape index: {}]
  %s21 = inlined_call_operand.vmem [shape: f32[2,4,9], index: 21, kind: output, shape index: {0}]
  %s22 = inlined_call_operand.vmem [shape: f32[2,4,9], index: 22, kind: output, shape index: {1}]
  %s23 = inlined_call_operand.vmem [shape: f32[2,4,289], index: 23, kind: output, shape index: {2}]
  %24 = xla_tuple %s21, %s22, %s23
  %s25 = sld [smem:[#allocation0]]
  $region133: #{vae_forward.1} parent=0
    _
  %s27 = ssub.s32 1, %s25
  %s28 = scalar_select 0, %s27, %s25
  loop: start=0, step=1, limit=4
  $region2: #{vae_forward.1} parent=0 // loop_pre_header
    _
  $region3: #{vae_forward.1} parent=0 // loop_header
    %s30 = sphi 0, %s34
    %p31 = scmp.ge.s32.totalorder %s30, 4
    %s40 = sphi 0, %s42
    %s43 = sphi 0, %s40
    %s44 = sphi 0, %s43
    %s60 = sphi 0, %s44
    %s66 = sphi 0, %s68
    %s69 = sphi 0, %s66
    %s70 = sphi 0, %s69
    %s86 = sphi 0, %s70
    %s90 = sphi 0, %s90
    %s92 = sphi 0, %s90
    %s93 = sphi 0, %s92
    %s107 = sphi 0, %s93
    %s111 = sphi 0, %s111
    %s113 = sphi 0, %s111
    %s114 = sphi 0, %s113
    %s128 = sphi 0, %s114
    %s132 = sphi 0, %s132
    %s134 = sphi 0, %s132
    %s135 = sphi 0, %s134
    %s149 = sphi 0, %s135
    %s153 = sphi 0, %s153
    %s155 = sphi 0, %s153
    %s156 = sphi 0, %s155
    %s170 = sphi 0, %s156
    %s174 = sphi 0, %s174
    %s176 = sphi 0, %s174
    %s177 = sphi 0, %s176
    %s191 = sphi 0, %s177
    %s195 = sphi 0, %s195
    %s197 = sphi 0, %s195
    %s198 = sphi 0, %s197
    %s212 = sphi 0, %s198
    %s216 = sphi 0, %s216
    %s218 = sphi 0, %s216
    %s219 = sphi 0, %s218
    %s233 = sphi 0, %s219
    %s237 = sphi 0, %s237
    %s239 = sphi 0, %s237
    %s240 = sphi 0, %s239
    %s254 = sphi 0, %s240
    %s258 = sphi 0, %s258
    %s260 = sphi 0, %s258
    %s261 = sphi 0, %s260
    %s275 = sphi 0, %s261
    %s279 = sphi 0, %s279
    %s281 = sphi 0, %s279
    %s282 = sphi 0, %s281
    %s296 = sphi 0, %s282
    %s300 = sphi 0, %s300
    %s302 = sphi 0, %s300
    %s303 = sphi 0, %s302
    %s317 = sphi 0, %s303
    %s321 = sphi 0, %s321
    %s323 = sphi 0, %s321
    %s324 = sphi 0, %s323
    %s338 = sphi 0, %s324
    %s342 = sphi 0, %s342
    %s344 = sphi 0, %s342
    %s345 = sphi 0, %s344
    %s359 = sphi 0, %s345
    %s363 = sphi 0, %s363
    %s365 = sphi 0, %s363
    %s366 = sphi 0, %s365
    %s380 = sphi 0, %s366
    %s384 = sphi 0, %s384
    %s386 = sphi 0, %s384
    %s387 = sphi 0, %s386
    %s401 = sphi 0, %s387
    %s405 = sphi 0, %s405
    %s407 = sphi 0, %s405
    %s408 = sphi 0, %s407
    %s422 = sphi 0, %s408
    %s426 = sphi 0, %s426
    %s428 = sphi 0, %s426
    %s429 = sphi 0, %s428
    %s443 = sphi 0, %s429
    %s447 = sphi 0, %s447
    %s449 = sphi 0, %s447
    %s450 = sphi 0, %s449
    %s464 = sphi 0, %s450
    %s468 = sphi 0, %s468
    %s470 = sphi 0, %s468
    %s471 = sphi 0, %s470
    %s485 = sphi 0, %s471
    %s491 = sphi 0, %s493
    %s494 = sphi 0, %s491
    %s495 = sphi 0, %s494
    %s511 = sphi 0, %s495
    %s517 = sphi 0, %s519
    %s520 = sphi 0, %s517
    %s521 = sphi 0, %s520
    %s537 = sphi 0, %s521
    %s543 = sphi 0, %s545
    %s546 = sphi 0, %s543
    %s547 = sphi 0, %s546
    %s563 = sphi 0, %s547
  $region4: #{vae_forward.1} parent=0 // loop_header_branch
    %33 = sbr.rel (%p31) target = $region8
  $region5: #{vae_forward.1} parent=0 // loop_body
    %s35 = ssub.s32 %s30, 1
    %s36 = ssub.s32 %s30, 2
    %s37 = sadd.s32 %s30, 1
    %s38 = ssub.s32 %s30, %s37
    %p39 = scmp.eq.s32.totalorder %s38, 0
    %s41 = sadd.s32 %s40, 1
    %s42 = scalar_select %p39, %s40, %s41
    %p45 = pneg %p39
    %p46 = scmp.eq.s32.totalorder %s30, 1
    %p47 = por %p45, %p46
    %p48 = scmp.ne.s32.totalorder %s40, %s43
    %p49 = scmp.eq.s32.totalorder %s30, 0
    %p50 = por %p48, %p49
    %p51 = scmp.ne.s32.totalorder %s40, %s43
    %p52 = scmp.eq.s32.totalorder %s35, 1
    %p53 = por %p51, %p52
    %p54 = scmp.ne.s32.totalorder %s43, %s44
    %p55 = scmp.eq.s32.totalorder %s35, 0
    %p56 = por %p54, %p55
    %p57 = scmp.ne.s32.totalorder %s43, %s44
    %p58 = scmp.eq.s32.totalorder %s36, 1
    %p59 = por %p57, %p58
    %p61 = scmp.ne.s32.totalorder %s44, %s60
    %p62 = scmp.eq.s32.totalorder %s36, 0
    %p63 = por %p61, %p62
    %s64 = ssub.s32 %s30, %s37
    %p65 = scmp.eq.s32.totalorder %s64, 0
    %s67 = sadd.s32 %s66, 1
    %s68 = scalar_select %p65, %s66, %s67
    %p71 = pneg %p65
    %p72 = scmp.eq.s32.totalorder %s30, 1
    %p73 = por %p71, %p72
    %p74 = scmp.ne.s32.totalorder %s66, %s69
    %p75 = scmp.eq.s32.totalorder %s30, 0
    %p76 = por %p74, %p75
    %p77 = scmp.ne.s32.totalorder %s66, %s69
    %p78 = scmp.eq.s32.totalorder %s35, 1
    %p79 = por %p77, %p78
    %p80 = scmp.ne.s32.totalorder %s69, %s70
    %p81 = scmp.eq.s32.totalorder %s35, 0
    %p82 = por %p80, %p81
    %p83 = scmp.ne.s32.totalorder %s69, %s70
    %p84 = scmp.eq.s32.totalorder %s36, 1
    %p85 = por %p83, %p84
    %p87 = scmp.ne.s32.totalorder %s70, %s86
    %p88 = scmp.eq.s32.totalorder %s36, 0
    %p89 = por %p87, %p88
    %s91 = sadd.s32 %s90, 1
    %p94 = scmp.eq.s32.totalorder %s30, 1
    %p95 = scmp.ne.s32.totalorder %s90, %s92
    %p96 = scmp.eq.s32.totalorder %s30, 0
    %p97 = por %p95, %p96
    %p98 = scmp.ne.s32.totalorder %s90, %s92
    %p99 = scmp.eq.s32.totalorder %s35, 1
    %p100 = por %p98, %p99
    %p101 = scmp.ne.s32.totalorder %s92, %s93
    %p102 = scmp.eq.s32.totalorder %s35, 0
    %p103 = por %p101, %p102
    %p104 = scmp.ne.s32.totalorder %s92, %s93
    %p105 = scmp.eq.s32.totalorder %s36, 1
    %p106 = por %p104, %p105
    %p108 = scmp.ne.s32.totalorder %s93, %s107
    %p109 = scmp.eq.s32.totalorder %s36, 0
    %p110 = por %p108, %p109
    %s112 = sadd.s32 %s111, 1
    %p115 = scmp.eq.s32.totalorder %s30, 1
    %p116 = scmp.ne.s32.totalorder %s111, %s113
    %p117 = scmp.eq.s32.totalorder %s30, 0
    %p118 = por %p116, %p117
    %p119 = scmp.ne.s32.totalorder %s111, %s113
    %p120 = scmp.eq.s32.totalorder %s35, 1
    %p121 = por %p119, %p120
    %p122 = scmp.ne.s32.totalorder %s113, %s114
    %p123 = scmp.eq.s32.totalorder %s35, 0
    %p124 = por %p122, %p123
    %p125 = scmp.ne.s32.totalorder %s113, %s114
    %p126 = scmp.eq.s32.totalorder %s36, 1
    %p127 = por %p125, %p126
    %p129 = scmp.ne.s32.totalorder %s114, %s128
    %p130 = scmp.eq.s32.totalorder %s36, 0
    %p131 = por %p129, %p130
    %s133 = sadd.s32 %s132, 1
    %p136 = scmp.eq.s32.totalorder %s30, 1
    %p137 = scmp.ne.s32.totalorder %s132, %s134
    %p138 = scmp.eq.s32.totalorder %s30, 0
    %p139 = por %p137, %p138
    %p140 = scmp.ne.s32.totalorder %s132, %s134
    %p141 = scmp.eq.s32.totalorder %s35, 1
    %p142 = por %p140, %p141
    %p143 = scmp.ne.s32.totalorder %s134, %s135
    %p144 = scmp.eq.s32.totalorder %s35, 0
    %p145 = por %p143, %p144
    %p146 = scmp.ne.s32.totalorder %s134, %s135
    %p147 = scmp.eq.s32.totalorder %s36, 1
    %p148 = por %p146, %p147
    %p150 = scmp.ne.s32.totalorder %s135, %s149
    %p151 = scmp.eq.s32.totalorder %s36, 0
    %p152 = por %p150, %p151
    %s154 = sadd.s32 %s153, 1
    %p157 = scmp.eq.s32.totalorder %s30, 1
    %p158 = scmp.ne.s32.totalorder %s153, %s155
    %p159 = scmp.eq.s32.totalorder %s30, 0
    %p160 = por %p158, %p159
    %p161 = scmp.ne.s32.totalorder %s153, %s155
    %p162 = scmp.eq.s32.totalorder %s35, 1
    %p163 = por %p161, %p162
    %p164 = scmp.ne.s32.totalorder %s155, %s156
    %p165 = scmp.eq.s32.totalorder %s35, 0
    %p166 = por %p164, %p165
    %p167 = scmp.ne.s32.totalorder %s155, %s156
    %p168 = scmp.eq.s32.totalorder %s36, 1
    %p169 = por %p167, %p168
    %p171 = scmp.ne.s32.totalorder %s156, %s170
    %p172 = scmp.eq.s32.totalorder %s36, 0
    %p173 = por %p171, %p172
    %s175 = sadd.s32 %s174, 1
    %p178 = scmp.eq.s32.totalorder %s30, 1
    %p179 = scmp.ne.s32.totalorder %s174, %s176
    %p180 = scmp.eq.s32.totalorder %s30, 0
    %p181 = por %p179, %p180
    %p182 = scmp.ne.s32.totalorder %s174, %s176
    %p183 = scmp.eq.s32.totalorder %s35, 1
    %p184 = por %p182, %p183
    %p185 = scmp.ne.s32.totalorder %s176, %s177
    %p186 = scmp.eq.s32.totalorder %s35, 0
    %p187 = por %p185, %p186
    %p188 = scmp.ne.s32.totalorder %s176, %s177
    %p189 = scmp.eq.s32.totalorder %s36, 1
    %p190 = por %p188, %p189
    %p192 = scmp.ne.s32.totalorder %s177, %s191
    %p193 = scmp.eq.s32.totalorder %s36, 0
    %p194 = por %p192, %p193
    %s196 = sadd.s32 %s195, 1
    %p199 = scmp.eq.s32.totalorder %s30, 1
    %p200 = scmp.ne.s32.totalorder %s195, %s197
    %p201 = scmp.eq.s32.totalorder %s30, 0
    %p202 = por %p200, %p201
    %p203 = scmp.ne.s32.totalorder %s195, %s197
    %p204 = scmp.eq.s32.totalorder %s35, 1
    %p205 = por %p203, %p204
    %p206 = scmp.ne.s32.totalorder %s197, %s198
    %p207 = scmp.eq.s32.totalorder %s35, 0
    %p208 = por %p206, %p207
    %p209 = scmp.ne.s32.totalorder %s197, %s198
    %p210 = scmp.eq.s32.totalorder %s36, 1
    %p211 = por %p209, %p210
    %p213 = scmp.ne.s32.totalorder %s198, %s212
    %p214 = scmp.eq.s32.totalorder %s36, 0
    %p215 = por %p213, %p214
    %s217 = sadd.s32 %s216, 1
    %p220 = scmp.eq.s32.totalorder %s30, 1
    %p221 = scmp.ne.s32.totalorder %s216, %s218
    %p222 = scmp.eq.s32.totalorder %s30, 0
    %p223 = por %p221, %p222
    %p224 = scmp.ne.s32.totalorder %s216, %s218
    %p225 = scmp.eq.s32.totalorder %s35, 1
    %p226 = por %p224, %p225
    %p227 = scmp.ne.s32.totalorder %s218, %s219
    %p228 = scmp.eq.s32.totalorder %s35, 0
    %p229 = por %p227, %p228
    %p230 = scmp.ne.s32.totalorder %s218, %s219
    %p231 = scmp.eq.s32.totalorder %s36, 1
    %p232 = por %p230, %p231
    %p234 = scmp.ne.s32.totalorder %s219, %s233
    %p235 = scmp.eq.s32.totalorder %s36, 0
    %p236 = por %p234, %p235
    %s238 = sadd.s32 %s237, 1
    %p241 = scmp.eq.s32.totalorder %s30, 1
    %p242 = scmp.ne.s32.totalorder %s237, %s239
    %p243 = scmp.eq.s32.totalorder %s30, 0
    %p244 = por %p242, %p243
    %p245 = scmp.ne.s32.totalorder %s237, %s239
    %p246 = scmp.eq.s32.totalorder %s35, 1
    %p247 = por %p245, %p246
    %p248 = scmp.ne.s32.totalorder %s239, %s240
    %p249 = scmp.eq.s32.totalorder %s35, 0
    %p250 = por %p248, %p249
    %p251 = scmp.ne.s32.totalorder %s239, %s240
    %p252 = scmp.eq.s32.totalorder %s36, 1
    %p253 = por %p251, %p252
    %p255 = scmp.ne.s32.totalorder %s240, %s254
    %p256 = scmp.eq.s32.totalorder %s36, 0
    %p257 = por %p255, %p256
    %s259 = sadd.s32 %s258, 1
    %p262 = scmp.eq.s32.totalorder %s30, 1
    %p263 = scmp.ne.s32.totalorder %s258, %s260
    %p264 = scmp.eq.s32.totalorder %s30, 0
    %p265 = por %p263, %p264
    %p266 = scmp.ne.s32.totalorder %s258, %s260
    %p267 = scmp.eq.s32.totalorder %s35, 1
    %p268 = por %p266, %p267
    %p269 = scmp.ne.s32.totalorder %s260, %s261
    %p270 = scmp.eq.s32.totalorder %s35, 0
    %p271 = por %p269, %p270
    %p272 = scmp.ne.s32.totalorder %s260, %s261
    %p273 = scmp.eq.s32.totalorder %s36, 1
    %p274 = por %p272, %p273
    %p276 = scmp.ne.s32.totalorder %s261, %s275
    %p277 = scmp.eq.s32.totalorder %s36, 0
    %p278 = por %p276, %p277
    %s280 = sadd.s32 %s279, 1
    %p283 = scmp.eq.s32.totalorder %s30, 1
    %p284 = scmp.ne.s32.totalorder %s279, %s281
    %p285 = scmp.eq.s32.totalorder %s30, 0
    %p286 = por %p284, %p285
    %p287 = scmp.ne.s32.totalorder %s279, %s281
    %p288 = scmp.eq.s32.totalorder %s35, 1
    %p289 = por %p287, %p288
    %p290 = scmp.ne.s32.totalorder %s281, %s282
    %p291 = scmp.eq.s32.totalorder %s35, 0
    %p292 = por %p290, %p291
    %p293 = scmp.ne.s32.totalorder %s281, %s282
    %p294 = scmp.eq.s32.totalorder %s36, 1
    %p295 = por %p293, %p294
    %p297 = scmp.ne.s32.totalorder %s282, %s296
    %p298 = scmp.eq.s32.totalorder %s36, 0
    %p299 = por %p297, %p298
    %s301 = sadd.s32 %s300, 1
    %p304 = scmp.eq.s32.totalorder %s30, 1
    %p305 = scmp.ne.s32.totalorder %s300, %s302
    %p306 = scmp.eq.s32.totalorder %s30, 0
    %p307 = por %p305, %p306
    %p308 = scmp.ne.s32.totalorder %s300, %s302
    %p309 = scmp.eq.s32.totalorder %s35, 1
    %p310 = por %p308, %p309
    %p311 = scmp.ne.s32.totalorder %s302, %s303
    %p312 = scmp.eq.s32.totalorder %s35, 0
    %p313 = por %p311, %p312
    %p314 = scmp.ne.s32.totalorder %s302, %s303
    %p315 = scmp.eq.s32.totalorder %s36, 1
    %p316 = por %p314, %p315
    %p318 = scmp.ne.s32.totalorder %s303, %s317
    %p319 = scmp.eq.s32.totalorder %s36, 0
    %p320 = por %p318, %p319
    %s322 = sadd.s32 %s321, 1
    %p325 = scmp.eq.s32.totalorder %s30, 1
    %p326 = scmp.ne.s32.totalorder %s321, %s323
    %p327 = scmp.eq.s32.totalorder %s30, 0
    %p328 = por %p326, %p327
    %p329 = scmp.ne.s32.totalorder %s321, %s323
    %p330 = scmp.eq.s32.totalorder %s35, 1
    %p331 = por %p329, %p330
    %p332 = scmp.ne.s32.totalorder %s323, %s324
    %p333 = scmp.eq.s32.totalorder %s35, 0
    %p334 = por %p332, %p333
    %p335 = scmp.ne.s32.totalorder %s323, %s324
    %p336 = scmp.eq.s32.totalorder %s36, 1
    %p337 = por %p335, %p336
    %p339 = scmp.ne.s32.totalorder %s324, %s338
    %p340 = scmp.eq.s32.totalorder %s36, 0
    %p341 = por %p339, %p340
    %s343 = sadd.s32 %s342, 1
    %p346 = scmp.eq.s32.totalorder %s30, 1
    %p347 = scmp.ne.s32.totalorder %s342, %s344
    %p348 = scmp.eq.s32.totalorder %s30, 0
    %p349 = por %p347, %p348
    %p350 = scmp.ne.s32.totalorder %s342, %s344
    %p351 = scmp.eq.s32.totalorder %s35, 1
    %p352 = por %p350, %p351
    %p353 = scmp.ne.s32.totalorder %s344, %s345
    %p354 = scmp.eq.s32.totalorder %s35, 0
    %p355 = por %p353, %p354
    %p356 = scmp.ne.s32.totalorder %s344, %s345
    %p357 = scmp.eq.s32.totalorder %s36, 1
    %p358 = por %p356, %p357
    %p360 = scmp.ne.s32.totalorder %s345, %s359
    %p361 = scmp.eq.s32.totalorder %s36, 0
    %p362 = por %p360, %p361
    %s364 = sadd.s32 %s363, 1
    %p367 = scmp.eq.s32.totalorder %s30, 1
    %p368 = scmp.ne.s32.totalorder %s363, %s365
    %p369 = scmp.eq.s32.totalorder %s30, 0
    %p370 = por %p368, %p369
    %p371 = scmp.ne.s32.totalorder %s363, %s365
    %p372 = scmp.eq.s32.totalorder %s35, 1
    %p373 = por %p371, %p372
    %p374 = scmp.ne.s32.totalorder %s365, %s366
    %p375 = scmp.eq.s32.totalorder %s35, 0
    %p376 = por %p374, %p375
    %p377 = scmp.ne.s32.totalorder %s365, %s366
    %p378 = scmp.eq.s32.totalorder %s36, 1
    %p379 = por %p377, %p378
    %p381 = scmp.ne.s32.totalorder %s366, %s380
    %p382 = scmp.eq.s32.totalorder %s36, 0
    %p383 = por %p381, %p382
    %s385 = sadd.s32 %s384, 1
    %p388 = scmp.eq.s32.totalorder %s30, 1
    %p389 = scmp.ne.s32.totalorder %s384, %s386
    %p390 = scmp.eq.s32.totalorder %s30, 0
    %p391 = por %p389, %p390
    %p392 = scmp.ne.s32.totalorder %s384, %s386
    %p393 = scmp.eq.s32.totalorder %s35, 1
    %p394 = por %p392, %p393
    %p395 = scmp.ne.s32.totalorder %s386, %s387
    %p396 = scmp.eq.s32.totalorder %s35, 0
    %p397 = por %p395, %p396
    %p398 = scmp.ne.s32.totalorder %s386, %s387
    %p399 = scmp.eq.s32.totalorder %s36, 1
    %p400 = por %p398, %p399
    %p402 = scmp.ne.s32.totalorder %s387, %s401
    %p403 = scmp.eq.s32.totalorder %s36, 0
    %p404 = por %p402, %p403
    %s406 = sadd.s32 %s405, 1
    %p409 = scmp.eq.s32.totalorder %s30, 1
    %p410 = scmp.ne.s32.totalorder %s405, %s407
    %p411 = scmp.eq.s32.totalorder %s30, 0
    %p412 = por %p410, %p411
    %p413 = scmp.ne.s32.totalorder %s405, %s407
    %p414 = scmp.eq.s32.totalorder %s35, 1
    %p415 = por %p413, %p414
    %p416 = scmp.ne.s32.totalorder %s407, %s408
    %p417 = scmp.eq.s32.totalorder %s35, 0
    %p418 = por %p416, %p417
    %p419 = scmp.ne.s32.totalorder %s407, %s408
    %p420 = scmp.eq.s32.totalorder %s36, 1
    %p421 = por %p419, %p420
    %p423 = scmp.ne.s32.totalorder %s408, %s422
    %p424 = scmp.eq.s32.totalorder %s36, 0
    %p425 = por %p423, %p424
    %s427 = sadd.s32 %s426, 1
    %p430 = scmp.eq.s32.totalorder %s30, 1
    %p431 = scmp.ne.s32.totalorder %s426, %s428
    %p432 = scmp.eq.s32.totalorder %s30, 0
    %p433 = por %p431, %p432
    %p434 = scmp.ne.s32.totalorder %s426, %s428
    %p435 = scmp.eq.s32.totalorder %s35, 1
    %p436 = por %p434, %p435
    %p437 = scmp.ne.s32.totalorder %s428, %s429
    %p438 = scmp.eq.s32.totalorder %s35, 0
    %p439 = por %p437, %p438
    %p440 = scmp.ne.s32.totalorder %s428, %s429
    %p441 = scmp.eq.s32.totalorder %s36, 1
    %p442 = por %p440, %p441
    %p444 = scmp.ne.s32.totalorder %s429, %s443
    %p445 = scmp.eq.s32.totalorder %s36, 0
    %p446 = por %p444, %p445
    %s448 = sadd.s32 %s447, 1
    %p451 = scmp.eq.s32.totalorder %s30, 1
    %p452 = scmp.ne.s32.totalorder %s447, %s449
    %p453 = scmp.eq.s32.totalorder %s30, 0
    %p454 = por %p452, %p453
    %p455 = scmp.ne.s32.totalorder %s447, %s449
    %p456 = scmp.eq.s32.totalorder %s35, 1
    %p457 = por %p455, %p456
    %p458 = scmp.ne.s32.totalorder %s449, %s450
    %p459 = scmp.eq.s32.totalorder %s35, 0
    %p460 = por %p458, %p459
    %p461 = scmp.ne.s32.totalorder %s449, %s450
    %p462 = scmp.eq.s32.totalorder %s36, 1
    %p463 = por %p461, %p462
    %p465 = scmp.ne.s32.totalorder %s450, %s464
    %p466 = scmp.eq.s32.totalorder %s36, 0
    %p467 = por %p465, %p466
    %s469 = sadd.s32 %s468, 1
    %p472 = scmp.eq.s32.totalorder %s30, 1
    %p473 = scmp.ne.s32.totalorder %s468, %s470
    %p474 = scmp.eq.s32.totalorder %s30, 0
    %p475 = por %p473, %p474
    %p476 = scmp.ne.s32.totalorder %s468, %s470
    %p477 = scmp.eq.s32.totalorder %s35, 1
    %p478 = por %p476, %p477
    %p479 = scmp.ne.s32.totalorder %s470, %s471
    %p480 = scmp.eq.s32.totalorder %s35, 0
    %p481 = por %p479, %p480
    %p482 = scmp.ne.s32.totalorder %s470, %s471
    %p483 = scmp.eq.s32.totalorder %s36, 1
    %p484 = por %p482, %p483
    %p486 = scmp.ne.s32.totalorder %s471, %s485
    %p487 = scmp.eq.s32.totalorder %s36, 0
    %p488 = por %p486, %p487
    %s489 = ssub.s32 %s30, %s37
    %p490 = scmp.eq.s32.totalorder %s489, 0
    %s492 = sadd.s32 %s491, 1
    %s493 = scalar_select %p490, %s491, %s492
    %p496 = pneg %p490
    %p497 = scmp.eq.s32.totalorder %s30, 1
    %p498 = por %p496, %p497
    %p499 = scmp.ne.s32.totalorder %s491, %s494
    %p500 = scmp.eq.s32.totalorder %s30, 0
    %p501 = por %p499, %p500
    %p502 = scmp.ne.s32.totalorder %s491, %s494
    %p503 = scmp.eq.s32.totalorder %s35, 1
    %p504 = por %p502, %p503
    %p505 = scmp.ne.s32.totalorder %s494, %s495
    %p506 = scmp.eq.s32.totalorder %s35, 0
    %p507 = por %p505, %p506
    %p508 = scmp.ne.s32.totalorder %s494, %s495
    %p509 = scmp.eq.s32.totalorder %s36, 1
    %p510 = por %p508, %p509
    %p512 = scmp.ne.s32.totalorder %s495, %s511
    %p513 = scmp.eq.s32.totalorder %s36, 0
    %p514 = por %p512, %p513
    %s515 = ssub.s32 %s30, %s37
    %p516 = scmp.eq.s32.totalorder %s515, 0
    %s518 = sadd.s32 %s517, 1
    %s519 = scalar_select %p516, %s517, %s518
    %p522 = pneg %p516
    %p523 = scmp.eq.s32.totalorder %s30, 1
    %p524 = por %p522, %p523
    %p525 = scmp.ne.s32.totalorder %s517, %s520
    %p526 = scmp.eq.s32.totalorder %s30, 0
    %p527 = por %p525, %p526
    %p528 = scmp.ne.s32.totalorder %s517, %s520
    %p529 = scmp.eq.s32.totalorder %s35, 1
    %p530 = por %p528, %p529
    %p531 = scmp.ne.s32.totalorder %s520, %s521
    %p532 = scmp.eq.s32.totalorder %s35, 0
    %p533 = por %p531, %p532
    %p534 = scmp.ne.s32.totalorder %s520, %s521
    %p535 = scmp.eq.s32.totalorder %s36, 1
    %p536 = por %p534, %p535
    %p538 = scmp.ne.s32.totalorder %s521, %s537
    %p539 = scmp.eq.s32.totalorder %s36, 0
    %p540 = por %p538, %p539
    %s541 = ssub.s32 %s30, %s37
    %p542 = scmp.eq.s32.totalorder %s541, 0
    %s544 = sadd.s32 %s543, 1
    %s545 = scalar_select %p542, %s543, %s544
    %p548 = pneg %p542
    %p549 = scmp.eq.s32.totalorder %s30, 1
    %p550 = por %p548, %p549
    %p551 = scmp.ne.s32.totalorder %s543, %s546
    %p552 = scmp.eq.s32.totalorder %s30, 0
    %p553 = por %p551, %p552
    %p554 = scmp.ne.s32.totalorder %s543, %s546
    %p555 = scmp.eq.s32.totalorder %s35, 1
    %p556 = por %p554, %p555
    %p557 = scmp.ne.s32.totalorder %s546, %s547
    %p558 = scmp.eq.s32.totalorder %s35, 0
    %p559 = por %p557, %p558
    %p560 = scmp.ne.s32.totalorder %s546, %s547
    %p561 = scmp.eq.s32.totalorder %s36, 1
    %p562 = por %p560, %p561
    %p564 = scmp.ne.s32.totalorder %s547, %s563
    %p565 = scmp.eq.s32.totalorder %s36, 0
    %p566 = por %p564, %p565
    %p567 = scmp.le.s32.totalorder 1, %s30
    %p568 = scmp.lt.s32.totalorder %s30, 3
    %p569 = pnand %p567, %p568
    %p570 = pneg %p569
    // Predicated region
    $region9: #{vae_forward.1} parent=5 // pred_check
      _
    $region10: #{vae_forward.1} parent=5 // pred_check_branch
      %572 = sbr.rel (%p569) target = $region12
    $region11: #{vae_forward.1} parent=5 // pred_region
      %s573 = ssub.s32 %s30, 1
      // Predicated region
      $region13: #{vae_forward.1} parent=11 // pred_check
        %p574 = pneg %p103
      $region14: #{vae_forward.1} parent=11 // pred_check_branch
        %576 = sbr.rel (%p574) target = $region16
      $region15: #{vae_forward.1} parent=11 // pred_region
        _
      $region16: #{vae_forward.1} parent=11 // pred_fallthru
        _
      // Predicated region
      $region17: #{vae_forward.1} parent=11 // pred_check
        %p577 = pneg %p124
      $region18: #{vae_forward.1} parent=11 // pred_check_branch
        %579 = sbr.rel (%p577) target = $region20
      $region19: #{vae_forward.1} parent=11 // pred_region
        _
      $region20: #{vae_forward.1} parent=11 // pred_fallthru
        _
      // Predicated region
      $region21: #{vae_forward.1} parent=11 // pred_check
        %p580 = pneg %p145
      $region22: #{vae_forward.1} parent=11 // pred_check_branch
        %582 = sbr.rel (%p580) target = $region24
      $region23: #{vae_forward.1} parent=11 // pred_region
        _
      $region24: #{vae_forward.1} parent=11 // pred_fallthru
        _
      // Predicated region
      $region25: #{vae_forward.1} parent=11 // pred_check
        %p583 = pneg %p166
      $region26: #{vae_forward.1} parent=11 // pred_check_branch
        %585 = sbr.rel (%p583) target = $region28
      $region27: #{vae_forward.1} parent=11 // pred_region
        _
      $region28: #{vae_forward.1} parent=11 // pred_fallthru
        _
      // Predicated region
      $region29: #{vae_forward.1} parent=11 // pred_check
        %p586 = pneg %p187
      $region30: #{vae_forward.1} parent=11 // pred_check_branch
        %588 = sbr.rel (%p586) target = $region32
      $region31: #{vae_forward.1} parent=11 // pred_region
        _
      $region32: #{vae_forward.1} parent=11 // pred_fallthru
        _
      // Predicated region
      $region33: #{vae_forward.1} parent=11 // pred_check
        %p589 = pneg %p208
      $region34: #{vae_forward.1} parent=11 // pred_check_branch
        %591 = sbr.rel (%p589) target = $region36
      $region35: #{vae_forward.1} parent=11 // pred_region
        _
      $region36: #{vae_forward.1} parent=11 // pred_fallthru
        _
      // Predicated region
      $region37: #{vae_forward.1} parent=11 // pred_check
        %p592 = pneg %p229
      $region38: #{vae_forward.1} parent=11 // pred_check_branch
        %594 = sbr.rel (%p592) target = $region40
      $region39: #{vae_forward.1} parent=11 // pred_region
        _
      $region40: #{vae_forward.1} parent=11 // pred_fallthru
        _
      // Predicated region
      $region41: #{vae_forward.1} parent=11 // pred_check
        %p595 = pneg %p250
      $region42: #{vae_forward.1} parent=11 // pred_check_branch
        %597 = sbr.rel (%p595) target = $region44
      $region43: #{vae_forward.1} parent=11 // pred_region
        _
      $region44: #{vae_forward.1} parent=11 // pred_fallthru
        _
      // Predicated region
      $region45: #{vae_forward.1} parent=11 // pred_check
        %p598 = pneg %p271
      $region46: #{vae_forward.1} parent=11 // pred_check_branch
        %600 = sbr.rel (%p598) target = $region48
      $region47: #{vae_forward.1} parent=11 // pred_region
        _
      $region48: #{vae_forward.1} parent=11 // pred_fallthru
        _
      // Predicated region
      $region49: #{vae_forward.1} parent=11 // pred_check
        %p601 = pneg %p292
      $region50: #{vae_forward.1} parent=11 // pred_check_branch
        %603 = sbr.rel (%p601) target = $region52
      $region51: #{vae_forward.1} parent=11 // pred_region
        _
      $region52: #{vae_forward.1} parent=11 // pred_fallthru
        _
      // Predicated region
      $region53: #{vae_forward.1} parent=11 // pred_check
        %p604 = pneg %p313
      $region54: #{vae_forward.1} parent=11 // pred_check_branch
        %606 = sbr.rel (%p604) target = $region56
      $region55: #{vae_forward.1} parent=11 // pred_region
        _
      $region56: #{vae_forward.1} parent=11 // pred_fallthru
        _
      // Predicated region
      $region57: #{vae_forward.1} parent=11 // pred_check
        %p607 = pneg %p334
      $region58: #{vae_forward.1} parent=11 // pred_check_branch
        %609 = sbr.rel (%p607) target = $region60
      $region59: #{vae_forward.1} parent=11 // pred_region
        _
      $region60: #{vae_forward.1} parent=11 // pred_fallthru
        _
      // Predicated region
      $region61: #{vae_forward.1} parent=11 // pred_check
        %p610 = pneg %p355
      $region62: #{vae_forward.1} parent=11 // pred_check_branch
        %612 = sbr.rel (%p610) target = $region64
      $region63: #{vae_forward.1} parent=11 // pred_region
        _
      $region64: #{vae_forward.1} parent=11 // pred_fallthru
        _
      // Predicated region
      $region65: #{vae_forward.1} parent=11 // pred_check
        %p613 = pneg %p376
      $region66: #{vae_forward.1} parent=11 // pred_check_branch
        %615 = sbr.rel (%p613) target = $region68
      $region67: #{vae_forward.1} parent=11 // pred_region
        _
      $region68: #{vae_forward.1} parent=11 // pred_fallthru
        _
      // Predicated region
      $region69: #{vae_forward.1} parent=11 // pred_check
        %p616 = pneg %p397
      $region70: #{vae_forward.1} parent=11 // pred_check_branch
        %618 = sbr.rel (%p616) target = $region72
      $region71: #{vae_forward.1} parent=11 // pred_region
        _
      $region72: #{vae_forward.1} parent=11 // pred_fallthru
        _
      // Predicated region
      $region73: #{vae_forward.1} parent=11 // pred_check
        %p619 = pneg %p418
      $region74: #{vae_forward.1} parent=11 // pred_check_branch
        %621 = sbr.rel (%p619) target = $region76
      $region75: #{vae_forward.1} parent=11 // pred_region
        _
      $region76: #{vae_forward.1} parent=11 // pred_fallthru
        _
      // Predicated region
      $region77: #{vae_forward.1} parent=11 // pred_check
        %p622 = pneg %p439
      $region78: #{vae_forward.1} parent=11 // pred_check_branch
        %624 = sbr.rel (%p622) target = $region80
      $region79: #{vae_forward.1} parent=11 // pred_region
        _
      $region80: #{vae_forward.1} parent=11 // pred_fallthru
        _
      // Predicated region
      $region81: #{vae_forward.1} parent=11 // pred_check
        %p625 = pneg %p460
      $region82: #{vae_forward.1} parent=11 // pred_check_branch
        %627 = sbr.rel (%p625) target = $region84
      $region83: #{vae_forward.1} parent=11 // pred_region
        _
      $region84: #{vae_forward.1} parent=11 // pred_fallthru
        _
      // Predicated region
      $region85: #{vae_forward.1} parent=11 // pred_check
        %p628 = pneg %p481
      $region86: #{vae_forward.1} parent=11 // pred_check_branch
        %630 = sbr.rel (%p628) target = $region88
      $region87: #{vae_forward.1} parent=11 // pred_region
        _
      $region88: #{vae_forward.1} parent=11 // pred_fallthru
        _
    $region12: #{vae_forward.1} parent=5 // pred_fallthru
      _
    %p631 = scmp.lt.s32.totalorder %s30, 2
    // Predicated region
    $region89: #{vae_forward.1} parent=5 // pred_check
      %p632 = pneg %p631
    $region90: #{vae_forward.1} parent=5 // pred_check_branch
      %634 = sbr.rel (%p632) target = $region92
    $region91: #{vae_forward.1} parent=5 // pred_region
      // Predicated region
      $region93: #{vae_forward.1} parent=91 // pred_check
        %p635 = pneg %p50
      $region94: #{vae_forward.1} parent=91 // pred_check_branch
        %637 = sbr.rel (%p635) target = $region96
      $region95: #{vae_forward.1} parent=91 // pred_region
        %p638 = scmp.lt.s32.totalorder %s30, 1
        %s639 = scalar_select %p638, %s30, 1
        %s640 = smul.addr %s639, 4
        %s641 = smul.addr %s640, 4
        %s642 = scalar_lea.vmem %s0, %s641
      $region96: #{vae_forward.1} parent=91 // pred_fallthru
        _
      // Predicated region
      $region97: #{vae_forward.1} parent=91 // pred_check
        %p643 = pneg %p76
      $region98: #{vae_forward.1} parent=91 // pred_check_branch
        %645 = sbr.rel (%p643) target = $region100
      $region99: #{vae_forward.1} parent=91 // pred_region
        %p646 = scmp.lt.s32.totalorder %s30, 1
        %s647 = scalar_select %p646, %s30, 1
        %s648 = smul.addr %s647, 4
        %s649 = scalar_lea.vmem %s1, %s648
      $region100: #{vae_forward.1} parent=91 // pred_fallthru
        _
    $region92: #{vae_forward.1} parent=5 // pred_fallthru
      _
    %p650 = scmp.le.s32.totalorder 1, %s30
    %p651 = scmp.lt.s32.totalorder %s30, 3
    %p652 = pnand %p650, %p651
    %p653 = pneg %p652
    // Predicated region
    $region101: #{vae_forward.1} parent=5 // pred_check
      _
    $region102: #{vae_forward.1} parent=5 // pred_check_branch
      %655 = sbr.rel (%p652) target = $region104
    $region103: #{vae_forward.1} parent=5 // pred_region
      %s656 = ssub.s32 %s30, 1
      %p657 = scmp.lt.s32.totalorder %s35, 1
      %s658 = scalar_select %p657, %s35, 1
      %s659 = smul.addr %s658, 4
      %s660 = smul.addr %s659, 4
      %s661 = scalar_lea.vmem %s0, %s660
      %p662 = pneg %p56
      %p663 = pneg %p53
      %p664 = scmp.lt.s32.totalorder %s35, 1
      %s665 = scalar_select %p664, %s35, 1
      %s666 = smul.addr %s665, 4
      %s667 = scalar_lea.vmem %s1, %s666
      %p668 = pneg %p82
      %p669 = pneg %p79
      %p670 = pneg %p103
      %p671 = pneg %p100
      %p672 = pneg %p124
      %p673 = pneg %p121
      %p674 = pneg %p145
      %p675 = pneg %p142
      %p676 = pneg %p166
      %p677 = pneg %p163
      %p678 = pneg %p187
      %p679 = pneg %p184
      %p680 = pneg %p208
      %p681 = pneg %p205
      %p682 = pneg %p229
      %p683 = pneg %p226
      %p684 = pneg %p250
      %p685 = pneg %p247
      %p686 = pneg %p271
      %p687 = pneg %p268
      %p688 = pneg %p292
      %p689 = pneg %p289
      %p690 = pneg %p313
      %p691 = pneg %p310
      %p692 = pneg %p334
      %p693 = pneg %p331
      %p694 = pneg %p355
      %p695 = pneg %p352
      %p696 = pneg %p376
      %p697 = pneg %p373
      %p698 = pneg %p397
      %p699 = pneg %p394
      %p700 = pneg %p418
      %p701 = pneg %p415
      %p702 = pneg %p439
      %p703 = pneg %p436
      %p704 = pneg %p460
      %p705 = pneg %p457
      %p706 = pneg %p481
      %p707 = pneg %p478
      %p708 = pneg %p507
      %p709 = pneg %p504
      %p710 = scmp.lt.s32.totalorder %s35, 1
      %s711 = scalar_select %p710, %s35, 1
      %s712 = smul.addr %s711, 4
      %s713 = scalar_lea.vmem %s21, %s712
      %p714 = pneg %p533
      %p715 = pneg %p530
      %p716 = scmp.lt.s32.totalorder %s35, 1
      %s717 = scalar_select %p716, %s35, 1
      %s718 = smul.addr %s717, 4
      %s719 = scalar_lea.vmem %s22, %s718
      %p720 = pneg %p559
      %p721 = pneg %p556
      %p722 = scmp.lt.s32.totalorder %s35, 1
      %s723 = scalar_select %p722, %s35, 1
      %s724 = smul.addr %s723, 3
      %s725 = smul.addr %s724, 4
      %s726 = scalar_lea.vmem %s23, %s725
      %p727 = scmp.lt.s32.totalorder %s35, 1
      %s728 = scalar_select %p727, %s35, 1
      %s729 = smul.addr %s728, 4
      %s730 = smul.addr %s729, 4
      %s731 = scalar_lea.vmem %s0, %s730
      %p732 = scmp.lt.s32.totalorder %s35, 1
      %s733 = scalar_select %p732, %s35, 1
      %s734 = smul.addr %s733, 4
      %s735 = scalar_lea.vmem %s1, %s734
      %p736 = scmp.lt.s32.totalorder %s35, 1
      %s737 = scalar_select %p736, %s35, 1
      %s738 = smul.addr %s737, 4
      %s739 = scalar_lea.vmem %s21, %s738
      %p740 = scmp.lt.s32.totalorder %s35, 1
      %s741 = scalar_select %p740, %s35, 1
      %s742 = smul.addr %s741, 4
      %s743 = scalar_lea.vmem %s22, %s742
      %p744 = scmp.lt.s32.totalorder %s35, 1
      %s745 = scalar_select %p744, %s35, 1
      %s746 = smul.addr %s745, 3
      %s747 = smul.addr %s746, 4
      %s748 = scalar_lea.vmem %s23, %s747
      %v750 = vld [vmem:[%s2] sm:$0xf]
      %v751 = vld [vmem:[%s2 + $0x4] sm:$0xf]
      %v752 = vld [vmem:[%s2 + $0x8] sm:$0xf]
      %v753 = vld [vmem:[%s2 + $0xc] sm:$0xf]
      %v754 = vld [vmem:[%s2 + $0x10] sm:$0xf]
      %v755 = vld [vmem:[%s2 + $0x14] sm:$0xf]
      %v756 = vld [vmem:[%s2 + $0x18] sm:$0xf]
      %v757 = vld [vmem:[%s2 + $0x1c] sm:$0xf]
      %v758 = vld [vmem:[%s731] sm:$0xff]
      %v759 = vld [vmem:[%s731 + $0x8] sm:$0xff]
      %v760 = vld [vmem:[%s3] sm:$0xff]
      %v761 = vld [vmem:[%s3 + $0x8] sm:$0xff]
      %v762 = vld [vmem:[%s3 + $0x10] sm:$0xff]
      %v763 = vld [vmem:[%s3 + $0x18] sm:$0xff]
      %v764 = vld [vmem:[%s3 + $0x20] sm:$0xff]
      %v765 = vld [vmem:[%s3 + $0x28] sm:$0xff]
      %v766 = vld [vmem:[%s3 + $0x30] sm:$0xff]
      %v767 = vld [vmem:[%s3 + $0x38] sm:$0xff]
      %769 = vset.pattern.permute.xlu0 0
      %770 = vperm.xlu0 %769, %v760
      %v771 = vpop.permute.xlu0 %770
      %774 = vset.pattern.permute.xlu0 0
      %775 = vperm.xlu0 %774, %v761
      %v776 = vpop.permute.xlu0 %775
      %779 = vset.pattern.permute.xlu0 0
      %780 = vperm.xlu0 %779, %v762
      %v781 = vpop.permute.xlu0 %780
      %784 = vset.pattern.permute.xlu0 0
      %785 = vperm.xlu0 %784, %v763
      %v786 = vpop.permute.xlu0 %785
      %789 = vset.pattern.permute.xlu0 0
      %790 = vperm.xlu0 %789, %v764
      %v791 = vpop.permute.xlu0 %790
      %794 = vset.pattern.permute.xlu0 0
      %795 = vperm.xlu0 %794, %v765
      %v796 = vpop.permute.xlu0 %795
      %799 = vset.pattern.permute.xlu0 0
      %800 = vperm.xlu0 %799, %v766
      %v801 = vpop.permute.xlu0 %800
      %804 = vset.pattern.permute.xlu0 0
      %805 = vperm.xlu0 %804, %v767
      %v806 = vpop.permute.xlu0 %805
      %v816 = vunpack.c.l.b16 %v750
      %v817 = vunpack.c.l.b16 %v751
      %v818 = vunpack.c.l.b16 %v752
      %v819 = vunpack.c.l.b16 %v753
      %v820 = vunpack.c.l.b16 %v754
      %v821 = vunpack.c.l.b16 %v755
      %v822 = vunpack.c.l.b16 %v756
      %v823 = vunpack.c.l.b16 %v757
      %v824 = vpack.c.b16 %v817, %v816
      %v825 = vpack.c.b16 %v819, %v818
      %v826 = vpack.c.b16 %v821, %v820
      %v827 = vpack.c.b16 %v823, %v822
      %v830 = vunpack.c.l.b16 %v758
      %v831 = vunpack.c.h.b16 %v758
      %v832 = vunpack.c.l.b16 %v759
      %v833 = vunpack.c.h.b16 %v759
      %v834 = vpack.c.b16 %v832, %v830
      %v835 = vpack.c.b16 %v833, %v831
      %vm838 = vcmask 130048
      %v840 = vsel %vm838, %v824, 0
      %v843 = vsel %vm838, %v825, 0
      %v846 = vsel %vm838, %v826, 0
      %v849 = vsel %vm838, %v827, 0
      %851 = vmatpush.bf16.msra.mxu0 0
      %852 = vmatpush.bf16.msra.mxu0 0
      %853 = vmatpush.bf16.msra.mxu0 0
      %854 = vmatpush.bf16.msra.mxu0 0
      %855 = vmatpush.bf16.msra.mxu0 0
      %856 = vmatpush.bf16.msra.mxu0 0
      %857 = vmatpush.bf16.msra.mxu0 0
      %858 = vmatpush.bf16.msra.mxu0 %v834
      %859 = vmatmul.bf16.gmra.mxu0 %v840
      %v860 = vpop.f32.mrf.mxu0
      %v861 = vadd.f32 %v771, %v860
      %v862 = vpop.f32.mrf.mxu0
      %v863 = vadd.f32 %v776, %v862
      %864 = vmatmul.bf16.gmra.mxu0 %v843
      %v865 = vpop.f32.mrf.mxu0
      %v866 = vadd.f32 %v781, %v865
      %v867 = vpop.f32.mrf.mxu0
      %v868 = vadd.f32 %v786, %v867
      %869 = vmatmul.bf16.gmra.mxu0 %v846
      %v870 = vpop.f32.mrf.mxu0
      %v871 = vadd.f32 %v791, %v870
      %v872 = vpop.f32.mrf.mxu0
      %v873 = vadd.f32 %v796, %v872
      %874 = vmatmul.bf16.gmra.mxu0 %v849
      %v875 = vpop.f32.mrf.mxu0
      %v876 = vadd.f32 %v801, %v875
      %v877 = vpop.f32.mrf.mxu0
      %v878 = vadd.f32 %v806, %v877
      %879 = vdwg.mxu0
      %880 = vmatpush.bf16.msra.mxu0 0
      %881 = vmatpush.bf16.msra.mxu0 0
      %882 = vmatpush.bf16.msra.mxu0 0
      %883 = vmatpush.bf16.msra.mxu0 0
      %884 = vmatpush.bf16.msra.mxu0 0
      %885 = vmatpush.bf16.msra.mxu0 0
      %886 = vmatpush.bf16.msra.mxu0 0
      %887 = vmatpush.bf16.msra.mxu0 %v835
      %888 = vmatmul.bf16.gmra.mxu0 %v840
      %v889 = vpop.f32.mrf.mxu0
      %v890 = vadd.f32 %v771, %v889
      %v891 = vpop.f32.mrf.mxu0
      %v892 = vadd.f32 %v776, %v891
      %893 = vmatmul.bf16.gmra.mxu0 %v843
      %v894 = vpop.f32.mrf.mxu0
      %v895 = vadd.f32 %v781, %v894
      %v896 = vpop.f32.mrf.mxu0
      %v897 = vadd.f32 %v786, %v896
      %898 = vmatmul.bf16.gmra.mxu0 %v846
      %v899 = vpop.f32.mrf.mxu0
      %v900 = vadd.f32 %v791, %v899
      %v901 = vpop.f32.mrf.mxu0
      %v902 = vadd.f32 %v796, %v901
      %903 = vmatmul.bf16.gmra.mxu0 %v849
      %v904 = vpop.f32.mrf.mxu0
      %v905 = vadd.f32 %v801, %v904
      %v906 = vpop.f32.mrf.mxu0
      %v907 = vadd.f32 %v806, %v906
      %908 = vdwg.mxu0
      %vm909 = vcmp.ge.f32.partialorder %v861, 0.0
      %vm910 = vcmp.ge.f32.partialorder %v890, 0.0
      %vm911 = vcmp.ge.f32.partialorder %v863, 0.0
      %vm912 = vcmp.ge.f32.partialorder %v892, 0.0
      %vm913 = vcmp.ge.f32.partialorder %v866, 0.0
      %vm914 = vcmp.ge.f32.partialorder %v895, 0.0
      %vm915 = vcmp.ge.f32.partialorder %v868, 0.0
      %vm916 = vcmp.ge.f32.partialorder %v897, 0.0
      %vm917 = vcmp.ge.f32.partialorder %v871, 0.0
      %vm918 = vcmp.ge.f32.partialorder %v900, 0.0
      %vm919 = vcmp.ge.f32.partialorder %v873, 0.0
      %vm920 = vcmp.ge.f32.partialorder %v902, 0.0
      %vm921 = vcmp.ge.f32.partialorder %v876, 0.0
      %vm922 = vcmp.ge.f32.partialorder %v905, 0.0
      %vm923 = vcmp.ge.f32.partialorder %v878, 0.0
      %vm924 = vcmp.ge.f32.partialorder %v907, 0.0
      %v925 = vmul.f32 %v861, 0.01
      %v926 = vmul.f32 %v890, 0.01
      %v927 = vmul.f32 %v863, 0.01
      %v928 = vmul.f32 %v892, 0.01
      %v929 = vmul.f32 %v866, 0.01
      %v930 = vmul.f32 %v895, 0.01
      %v931 = vmul.f32 %v868, 0.01
      %v932 = vmul.f32 %v897, 0.01
      %v933 = vmul.f32 %v871, 0.01
      %v934 = vmul.f32 %v900, 0.01
      %v935 = vmul.f32 %v873, 0.01
      %v936 = vmul.f32 %v902, 0.01
      %v937 = vmul.f32 %v876, 0.01
      %v938 = vmul.f32 %v905, 0.01
      %v939 = vmul.f32 %v878, 0.01
      %v940 = vmul.f32 %v907, 0.01
      %v941 = vsel %vm909, %v861, %v925
      %v942 = vsel %vm910, %v890, %v926
      %v943 = vsel %vm911, %v863, %v927
      %v944 = vsel %vm912, %v892, %v928
      %v945 = vsel %vm913, %v866, %v929
      %v946 = vsel %vm914, %v895, %v930
      %v947 = vsel %vm915, %v868, %v931
      %v948 = vsel %vm916, %v897, %v932
      %v949 = vsel %vm917, %v871, %v933
      %v950 = vsel %vm918, %v900, %v934
      %v951 = vsel %vm919, %v873, %v935
      %v952 = vsel %vm920, %v902, %v936
      %v953 = vsel %vm921, %v876, %v937
      %v954 = vsel %vm922, %v905, %v938
      %v955 = vsel %vm923, %v878, %v939
      %v956 = vsel %vm924, %v907, %v940
      %v957 = vpack.c.bf16 %v943, %v941
      %v958 = vpack.c.bf16 %v944, %v942
      %v959 = vpack.c.bf16 %v947, %v945
      %v960 = vpack.c.bf16 %v948, %v946
      %v961 = vpack.c.bf16 %v951, %v949
      %v962 = vpack.c.bf16 %v952, %v950
      %v963 = vpack.c.bf16 %v955, %v953
      %v964 = vpack.c.bf16 %v956, %v954
      %v965 = vld [vmem:[%s6] sm:$0xf]
      %v966 = vld [vmem:[%s6 + $0x4] sm:$0xf]
      %v967 = vld [vmem:[%s6 + $0x8] sm:$0xf]
      %v968 = vld [vmem:[%s6 + $0xc] sm:$0xf]
      %v969 = vld [vmem:[%s6 + $0x10] sm:$0xf]
      %v970 = vld [vmem:[%s6 + $0x14] sm:$0xf]
      %v971 = vld [vmem:[%s6 + $0x18] sm:$0xf]
      %v972 = vld [vmem:[%s6 + $0x1c] sm:$0xf]
      %v973 = vld [vmem:[%s6 + $0x20] sm:$0xf]
      %v974 = vld [vmem:[%s6 + $0x24] sm:$0xf]
      %v975 = vld [vmem:[%s6 + $0x28] sm:$0xf]
      %v976 = vld [vmem:[%s6 + $0x2c] sm:$0xf]
      %v977 = vld [vmem:[%s6 + $0x30] sm:$0xf]
      %v978 = vld [vmem:[%s6 + $0x34] sm:$0xf]
      %v979 = vld [vmem:[%s6 + $0x38] sm:$0xf]
      %v980 = vld [vmem:[%s6 + $0x3c] sm:$0xf]
      %v981 = vld [vmem:[%s6 + $0x40] sm:$0xf]
      %v982 = vld [vmem:[%s6 + $0x44] sm:$0xf]
      %v983 = vld [vmem:[%s6 + $0x48] sm:$0xf]
      %v984 = vld [vmem:[%s6 + $0x4c] sm:$0xf]
      %v985 = vld [vmem:[%s6 + $0x50] sm:$0xf]
      %v986 = vld [vmem:[%s6 + $0x54] sm:$0xf]
      %v987 = vld [vmem:[%s6 + $0x58] sm:$0xf]
      %v988 = vld [vmem:[%s6 + $0x5c] sm:$0xf]
      %v989 = vld [vmem:[%s6 + $0x60] sm:$0xf]
      %v990 = vld [vmem:[%s6 + $0x64] sm:$0xf]
      %v991 = vld [vmem:[%s6 + $0x68] sm:$0xf]
      %v992 = vld [vmem:[%s6 + $0x6c] sm:$0xf]
      %v993 = vld [vmem:[%s6 + $0x70] sm:$0x1]
      %v1023 = vunpack.c.l.b16 %v965
      %v1024 = vunpack.c.l.b16 %v966
      %v1025 = vunpack.c.l.b16 %v967
      %v1026 = vunpack.c.l.b16 %v968
      %v1027 = vunpack.c.l.b16 %v969
      %v1028 = vunpack.c.l.b16 %v970
      %v1029 = vunpack.c.l.b16 %v971
      %v1030 = vunpack.c.l.b16 %v972
      %v1031 = vunpack.c.l.b16 %v973
      %v1032 = vunpack.c.l.b16 %v974
      %v1033 = vunpack.c.l.b16 %v975
      %v1034 = vunpack.c.l.b16 %v976
      %v1035 = vunpack.c.l.b16 %v977
      %v1036 = vunpack.c.l.b16 %v978
      %v1037 = vunpack.c.l.b16 %v979
      %v1038 = vunpack.c.l.b16 %v980
      %v1039 = vunpack.c.l.b16 %v981
      %v1040 = vunpack.c.l.b16 %v982
      %v1041 = vunpack.c.l.b16 %v983
      %v1042 = vunpack.c.l.b16 %v984
      %v1043 = vunpack.c.l.b16 %v985
      %v1044 = vunpack.c.l.b16 %v986
      %v1045 = vunpack.c.l.b16 %v987
      %v1046 = vunpack.c.l.b16 %v988
      %v1047 = vunpack.c.l.b16 %v989
      %v1048 = vunpack.c.l.b16 %v990
      %v1049 = vunpack.c.l.b16 %v991
      %v1050 = vunpack.c.l.b16 %v992
      %v1051 = vunpack.c.l.b16 %v993
      %v1052 = vpack.c.b16 %v1024, %v1023
      %v1053 = vpack.c.b16 %v1026, %v1025
      %v1054 = vpack.c.b16 %v1028, %v1027
      %v1055 = vpack.c.b16 %v1030, %v1029
      %v1056 = vpack.c.b16 %v1032, %v1031
      %v1057 = vpack.c.b16 %v1034, %v1033
      %v1058 = vpack.c.b16 %v1036, %v1035
      %v1059 = vpack.c.b16 %v1038, %v1037
      %v1060 = vpack.c.b16 %v1040, %v1039
      %v1061 = vpack.c.b16 %v1042, %v1041
      %v1062 = vpack.c.b16 %v1044, %v1043
      %v1063 = vpack.c.b16 %v1046, %v1045
      %v1064 = vpack.c.b16 %v1048, %v1047
      %v1065 = vpack.c.b16 %v1050, %v1049
      %v1066 = vpack.c.b16 %v1051, %v1051
      %vm1081 = vcmask 793600
      %v1083 = vsel %vm1081, %v958, 0
      %v1086 = vsel %vm1081, %v960, 0
      %v1089 = vsel %vm1081, %v962, 0
      %v1092 = vsel %vm1081, %v964, 0
      %vm1094 = vcmask 1040384
      %v1095 = vsel 0, 4294967295, 65535
      %v1096 = vsel %vm1094, %v1095, 0
      %v1098 = vand.u32 %v1066, %v1096
      %1100 = vmatpush.bf16.msra.mxu0 %v1059
      %1101 = vmatpush.bf16.msra.mxu0 %v1058
      %1102 = vmatpush.bf16.msra.mxu0 %v1057
      %1103 = vmatpush.bf16.msra.mxu0 %v1056
      %1104 = vmatpush.bf16.msra.mxu0 %v1055
      %1105 = vmatpush.bf16.msra.mxu0 %v1054
      %1106 = vmatpush.bf16.msra.mxu0 %v1053
      %1107 = vmatpush.bf16.msra.mxu0 %v1052
      %1108 = vmatmul.bf16.gmra.mxu0 %v957
      %v1109 = vpop.f32.mrf.mxu0
      %v1110 = vadd.f32 0.0, %v1109
      %v1111 = vpop.f32.mrf.mxu0
      %v1112 = vadd.f32 0.0, %v1111
      %1113 = vmatmul.bf16.gmra.mxu0 %v959
      %v1114 = vpop.f32.mrf.mxu0
      %v1115 = vadd.f32 0.0, %v1114
      %v1116 = vpop.f32.mrf.mxu0
      %v1117 = vadd.f32 0.0, %v1116
      %1118 = vmatmul.bf16.gmra.mxu0 %v961
      %v1119 = vpop.f32.mrf.mxu0
      %v1120 = vadd.f32 0.0, %v1119
      %v1121 = vpop.f32.mrf.mxu0
      %v1122 = vadd.f32 0.0, %v1121
      %1123 = vmatmul.bf16.gmra.mxu0 %v963
      %v1124 = vpop.f32.mrf.mxu0
      %v1125 = vadd.f32 0.0, %v1124
      %v1126 = vpop.f32.mrf.mxu0
      %v1127 = vadd.f32 0.0, %v1126
      %1128 = vdwg.mxu0
      %1129 = vmatpush.bf16.msra.mxu0 0
      %1130 = vmatpush.bf16.msra.mxu0 %v1098
      %1131 = vmatpush.bf16.msra.mxu0 %v1065
      %1132 = vmatpush.bf16.msra.mxu0 %v1064
      %1133 = vmatpush.bf16.msra.mxu0 %v1063
      %1134 = vmatpush.bf16.msra.mxu0 %v1062
      %1135 = vmatpush.bf16.msra.mxu0 %v1061
      %1136 = vmatpush.bf16.msra.mxu0 %v1060
      %1137 = vmatmul.bf16.gmra.mxu0 %v1083
      %v1138 = vpop.f32.mrf.mxu0
      %v1139 = vadd.f32 %v1110, %v1138
      %v1140 = vpop.f32.mrf.mxu0
      %v1141 = vadd.f32 %v1112, %v1140
      %1142 = vmatmul.bf16.gmra.mxu0 %v1086
      %v1143 = vpop.f32.mrf.mxu0
      %v1144 = vadd.f32 %v1115, %v1143
      %v1145 = vpop.f32.mrf.mxu0
      %v1146 = vadd.f32 %v1117, %v1145
      %1147 = vmatmul.bf16.gmra.mxu0 %v1089
      %v1148 = vpop.f32.mrf.mxu0
      %v1149 = vadd.f32 %v1120, %v1148
      %v1150 = vpop.f32.mrf.mxu0
      %v1151 = vadd.f32 %v1122, %v1150
      %1152 = vmatmul.bf16.gmra.mxu0 %v1092
      %v1153 = vpop.f32.mrf.mxu0
      %v1154 = vadd.f32 %v1125, %v1153
      %v1155 = vpop.f32.mrf.mxu0
      %v1156 = vadd.f32 %v1127, %v1155
      %1157 = vdwg.mxu0
      %v1158 = vpack.c.bf16 %v1139, %v1139
      %v1159 = vpack.c.bf16 %v1141, %v1141
      %v1160 = vpack.c.bf16 %v1144, %v1144
      %v1161 = vpack.c.bf16 %v1146, %v1146
      %v1162 = vpack.c.bf16 %v1149, %v1149
      %v1163 = vpack.c.bf16 %v1151, %v1151
      %v1164 = vpack.c.bf16 %v1154, %v1154
      %v1165 = vpack.c.bf16 %v1156, %v1156
      %s1166 = scalar_lea.vmem %s6, 116
      %v1167 = vld [vmem:[%s1166] sm:$0xf]
      %v1168 = vld [vmem:[%s1166 + $0x4] sm:$0xf]
      %v1169 = vld [vmem:[%s1166 + $0x8] sm:$0xf]
      %v1170 = vld [vmem:[%s1166 + $0xc] sm:$0xf]
      %v1171 = vld [vmem:[%s1166 + $0x10] sm:$0xf]
      %v1172 = vld [vmem:[%s1166 + $0x14] sm:$0xf]
      %v1173 = vld [vmem:[%s1166 + $0x18] sm:$0xf]
      %v1174 = vld [vmem:[%s1166 + $0x1c] sm:$0xf]
      %v1175 = vld [vmem:[%s1166 + $0x20] sm:$0xf]
      %v1176 = vld [vmem:[%s1166 + $0x24] sm:$0xf]
      %v1177 = vld [vmem:[%s1166 + $0x28] sm:$0xf]
      %v1178 = vld [vmem:[%s1166 + $0x2c] sm:$0xf]
      %v1179 = vld [vmem:[%s1166 + $0x30] sm:$0xf]
      %v1180 = vld [vmem:[%s1166 + $0x34] sm:$0xf]
      %v1181 = vld [vmem:[%s1166 + $0x38] sm:$0xf]
      %v1182 = vld [vmem:[%s1166 + $0x3c] sm:$0xf]
      %v1183 = vld [vmem:[%s1166 + $0x40] sm:$0xf]
      %v1184 = vld [vmem:[%s1166 + $0x44] sm:$0xf]
      %v1185 = vld [vmem:[%s1166 + $0x48] sm:$0xf]
      %v1186 = vld [vmem:[%s1166 + $0x4c] sm:$0xf]
      %v1187 = vld [vmem:[%s1166 + $0x50] sm:$0xf]
      %v1188 = vld [vmem:[%s1166 + $0x54] sm:$0xf]
      %v1189 = vld [vmem:[%s1166 + $0x58] sm:$0xf]
      %v1190 = vld [vmem:[%s1166 + $0x5c] sm:$0xf]
      %v1191 = vld [vmem:[%s1166 + $0x60] sm:$0xf]
      %v1192 = vld [vmem:[%s1166 + $0x64] sm:$0xf]
      %v1193 = vld [vmem:[%s1166 + $0x68] sm:$0xf]
      %v1194 = vld [vmem:[%s1166 + $0x6c] sm:$0xf]
      %v1195 = vld [vmem:[%s1166 + $0x70] sm:$0x1]
      %v1225 = vunpack.c.l.b16 %v1167
      %v1226 = vunpack.c.l.b16 %v1168
      %v1227 = vunpack.c.l.b16 %v1169
      %v1228 = vunpack.c.l.b16 %v1170
      %v1229 = vunpack.c.l.b16 %v1171
      %v1230 = vunpack.c.l.b16 %v1172
      %v1231 = vunpack.c.l.b16 %v1173
      %v1232 = vunpack.c.l.b16 %v1174
      %v1233 = vunpack.c.l.b16 %v1175
      %v1234 = vunpack.c.l.b16 %v1176
      %v1235 = vunpack.c.l.b16 %v1177
      %v1236 = vunpack.c.l.b16 %v1178
      %v1237 = vunpack.c.l.b16 %v1179
      %v1238 = vunpack.c.l.b16 %v1180
      %v1239 = vunpack.c.l.b16 %v1181
      %v1240 = vunpack.c.l.b16 %v1182
      %v1241 = vunpack.c.l.b16 %v1183
      %v1242 = vunpack.c.l.b16 %v1184
      %v1243 = vunpack.c.l.b16 %v1185
      %v1244 = vunpack.c.l.b16 %v1186
      %v1245 = vunpack.c.l.b16 %v1187
      %v1246 = vunpack.c.l.b16 %v1188
      %v1247 = vunpack.c.l.b16 %v1189
      %v1248 = vunpack.c.l.b16 %v1190
      %v1249 = vunpack.c.l.b16 %v1191
      %v1250 = vunpack.c.l.b16 %v1192
      %v1251 = vunpack.c.l.b16 %v1193
      %v1252 = vunpack.c.l.b16 %v1194
      %v1253 = vunpack.c.l.b16 %v1195
      %v1254 = vpack.c.b16 %v1226, %v1225
      %v1255 = vpack.c.b16 %v1228, %v1227
      %v1256 = vpack.c.b16 %v1230, %v1229
      %v1257 = vpack.c.b16 %v1232, %v1231
      %v1258 = vpack.c.b16 %v1234, %v1233
      %v1259 = vpack.c.b16 %v1236, %v1235
      %v1260 = vpack.c.b16 %v1238, %v1237
      %v1261 = vpack.c.b16 %v1240, %v1239
      %v1262 = vpack.c.b16 %v1242, %v1241
      %v1263 = vpack.c.b16 %v1244, %v1243
      %v1264 = vpack.c.b16 %v1246, %v1245
      %v1265 = vpack.c.b16 %v1248, %v1247
      %v1266 = vpack.c.b16 %v1250, %v1249
      %v1267 = vpack.c.b16 %v1252, %v1251
      %v1268 = vpack.c.b16 %v1253, %v1253
      %v1284 = vand.u32 %v1268, %v1096
      %1286 = vmatpush.bf16.msra.mxu0 %v1261
      %1287 = vmatpush.bf16.msra.mxu0 %v1260
      %1288 = vmatpush.bf16.msra.mxu0 %v1259
      %1289 = vmatpush.bf16.msra.mxu0 %v1258
      %1290 = vmatpush.bf16.msra.mxu0 %v1257
      %1291 = vmatpush.bf16.msra.mxu0 %v1256
      %1292 = vmatpush.bf16.msra.mxu0 %v1255
      %1293 = vmatpush.bf16.msra.mxu0 %v1254
      %1294 = vmatmul.bf16.gmra.mxu0 %v957
      %v1295 = vpop.f32.mrf.mxu0
      %v1296 = vadd.f32 0.0, %v1295
      %v1297 = vpop.f32.mrf.mxu0
      %v1298 = vadd.f32 0.0, %v1297
      %1299 = vmatmul.bf16.gmra.mxu0 %v959
      %v1300 = vpop.f32.mrf.mxu0
      %v1301 = vadd.f32 0.0, %v1300
      %v1302 = vpop.f32.mrf.mxu0
      %v1303 = vadd.f32 0.0, %v1302
      %1304 = vmatmul.bf16.gmra.mxu0 %v961
      %v1305 = vpop.f32.mrf.mxu0
      %v1306 = vadd.f32 0.0, %v1305
      %v1307 = vpop.f32.mrf.mxu0
      %v1308 = vadd.f32 0.0, %v1307
      %1309 = vmatmul.bf16.gmra.mxu0 %v963
      %v1310 = vpop.f32.mrf.mxu0
      %v1311 = vadd.f32 0.0, %v1310
      %v1312 = vpop.f32.mrf.mxu0
      %v1313 = vadd.f32 0.0, %v1312
      %1314 = vdwg.mxu0
      %1315 = vmatpush.bf16.msra.mxu0 0
      %1316 = vmatpush.bf16.msra.mxu0 %v1284
      %1317 = vmatpush.bf16.msra.mxu0 %v1267
      %1318 = vmatpush.bf16.msra.mxu0 %v1266
      %1319 = vmatpush.bf16.msra.mxu0 %v1265
      %1320 = vmatpush.bf16.msra.mxu0 %v1264
      %1321 = vmatpush.bf16.msra.mxu0 %v1263
      %1322 = vmatpush.bf16.msra.mxu0 %v1262
      %1323 = vmatmul.bf16.gmra.mxu0 %v1083
      %v1324 = vpop.f32.mrf.mxu0
      %v1325 = vadd.f32 %v1296, %v1324
      %v1326 = vpop.f32.mrf.mxu0
      %v1327 = vadd.f32 %v1298, %v1326
      %1328 = vmatmul.bf16.gmra.mxu0 %v1086
      %v1329 = vpop.f32.mrf.mxu0
      %v1330 = vadd.f32 %v1301, %v1329
      %v1331 = vpop.f32.mrf.mxu0
      %v1332 = vadd.f32 %v1303, %v1331
      %1333 = vmatmul.bf16.gmra.mxu0 %v1089
      %v1334 = vpop.f32.mrf.mxu0
      %v1335 = vadd.f32 %v1306, %v1334
      %v1336 = vpop.f32.mrf.mxu0
      %v1337 = vadd.f32 %v1308, %v1336
      %1338 = vmatmul.bf16.gmra.mxu0 %v1092
      %v1339 = vpop.f32.mrf.mxu0
      %v1340 = vadd.f32 %v1311, %v1339
      %v1341 = vpop.f32.mrf.mxu0
      %v1342 = vadd.f32 %v1313, %v1341
      %1343 = vdwg.mxu0
      %v1344 = vpack.c.bf16 %v1325, %v1325
      %v1345 = vpack.c.bf16 %v1327, %v1327
      %v1346 = vpack.c.bf16 %v1330, %v1330
      %v1347 = vpack.c.bf16 %v1332, %v1332
      %v1348 = vpack.c.bf16 %v1335, %v1335
      %v1349 = vpack.c.bf16 %v1337, %v1337
      %v1350 = vpack.c.bf16 %v1340, %v1340
      %v1351 = vpack.c.bf16 %v1342, %v1342
      %s1352 = scalar_lea.vmem %s6, 232
      %v1353 = vld [vmem:[%s1352] sm:$0xf]
      %v1354 = vld [vmem:[%s1352 + $0x4] sm:$0xf]
      %v1355 = vld [vmem:[%s1352 + $0x8] sm:$0xf]
      %v1356 = vld [vmem:[%s1352 + $0xc] sm:$0xf]
      %v1357 = vld [vmem:[%s1352 + $0x10] sm:$0xf]
      %v1358 = vld [vmem:[%s1352 + $0x14] sm:$0xf]
      %v1359 = vld [vmem:[%s1352 + $0x18] sm:$0xf]
      %v1360 = vld [vmem:[%s1352 + $0x1c] sm:$0xf]
      %v1361 = vld [vmem:[%s1352 + $0x20] sm:$0xf]
      %v1362 = vld [vmem:[%s1352 + $0x24] sm:$0xf]
      %v1363 = vld [vmem:[%s1352 + $0x28] sm:$0xf]
      %v1364 = vld [vmem:[%s1352 + $0x2c] sm:$0xf]
      %v1365 = vld [vmem:[%s1352 + $0x30] sm:$0xf]
      %v1366 = vld [vmem:[%s1352 + $0x34] sm:$0xf]
      %v1367 = vld [vmem:[%s1352 + $0x38] sm:$0xf]
      %v1368 = vld [vmem:[%s1352 + $0x3c] sm:$0xf]
      %v1369 = vld [vmem:[%s1352 + $0x40] sm:$0xf]
      %v1370 = vld [vmem:[%s1352 + $0x44] sm:$0xf]
      %v1371 = vld [vmem:[%s1352 + $0x48] sm:$0xf]
      %v1372 = vld [vmem:[%s1352 + $0x4c] sm:$0xf]
      %v1373 = vld [vmem:[%s1352 + $0x50] sm:$0xf]
      %v1374 = vld [vmem:[%s1352 + $0x54] sm:$0xf]
      %v1375 = vld [vmem:[%s1352 + $0x58] sm:$0xf]
      %v1376 = vld [vmem:[%s1352 + $0x5c] sm:$0xf]
      %v1377 = vld [vmem:[%s1352 + $0x60] sm:$0xf]
      %v1378 = vld [vmem:[%s1352 + $0x64] sm:$0xf]
      %v1379 = vld [vmem:[%s1352 + $0x68] sm:$0xf]
      %v1380 = vld [vmem:[%s1352 + $0x6c] sm:$0xf]
      %v1381 = vld [vmem:[%s1352 + $0x70] sm:$0x1]
      %v1411 = vunpack.c.l.b16 %v1353
      %v1412 = vunpack.c.l.b16 %v1354
      %v1413 = vunpack.c.l.b16 %v1355
      %v1414 = vunpack.c.l.b16 %v1356
      %v1415 = vunpack.c.l.b16 %v1357
      %v1416 = vunpack.c.l.b16 %v1358
      %v1417 = vunpack.c.l.b16 %v1359
      %v1418 = vunpack.c.l.b16 %v1360
      %v1419 = vunpack.c.l.b16 %v1361
      %v1420 = vunpack.c.l.b16 %v1362
      %v1421 = vunpack.c.l.b16 %v1363
      %v1422 = vunpack.c.l.b16 %v1364
      %v1423 = vunpack.c.l.b16 %v1365
      %v1424 = vunpack.c.l.b16 %v1366
      %v1425 = vunpack.c.l.b16 %v1367
      %v1426 = vunpack.c.l.b16 %v1368
      %v1427 = vunpack.c.l.b16 %v1369
      %v1428 = vunpack.c.l.b16 %v1370
      %v1429 = vunpack.c.l.b16 %v1371
      %v1430 = vunpack.c.l.b16 %v1372
      %v1431 = vunpack.c.l.b16 %v1373
      %v1432 = vunpack.c.l.b16 %v1374
      %v1433 = vunpack.c.l.b16 %v1375
      %v1434 = vunpack.c.l.b16 %v1376
      %v1435 = vunpack.c.l.b16 %v1377
      %v1436 = vunpack.c.l.b16 %v1378
      %v1437 = vunpack.c.l.b16 %v1379
      %v1438 = vunpack.c.l.b16 %v1380
      %v1439 = vunpack.c.l.b16 %v1381
      %v1440 = vpack.c.b16 %v1412, %v1411
      %v1441 = vpack.c.b16 %v1414, %v1413
      %v1442 = vpack.c.b16 %v1416, %v1415
      %v1443 = vpack.c.b16 %v1418, %v1417
      %v1444 = vpack.c.b16 %v1420, %v1419
      %v1445 = vpack.c.b16 %v1422, %v1421
      %v1446 = vpack.c.b16 %v1424, %v1423
      %v1447 = vpack.c.b16 %v1426, %v1425
      %v1448 = vpack.c.b16 %v1428, %v1427
      %v1449 = vpack.c.b16 %v1430, %v1429
      %v1450 = vpack.c.b16 %v1432, %v1431
      %v1451 = vpack.c.b16 %v1434, %v1433
      %v1452 = vpack.c.b16 %v1436, %v1435
      %v1453 = vpack.c.b16 %v1438, %v1437
      %v1454 = vpack.c.b16 %v1439, %v1439
      %v1470 = vand.u32 %v1454, %v1096
      %1472 = vmatpush.bf16.msra.mxu0 %v1447
      %1473 = vmatpush.bf16.msra.mxu0 %v1446
      %1474 = vmatpush.bf16.msra.mxu0 %v1445
      %1475 = vmatpush.bf16.msra.mxu0 %v1444
      %1476 = vmatpush.bf16.msra.mxu0 %v1443
      %1477 = vmatpush.bf16.msra.mxu0 %v1442
      %1478 = vmatpush.bf16.msra.mxu0 %v1441
      %1479 = vmatpush.bf16.msra.mxu0 %v1440
      %1480 = vmatmul.bf16.gmra.mxu0 %v957
      %v1481 = vpop.f32.mrf.mxu0
      %v1482 = vadd.f32 0.0, %v1481
      %v1483 = vpop.f32.mrf.mxu0
      %v1484 = vadd.f32 0.0, %v1483
      %1485 = vmatmul.bf16.gmra.mxu0 %v959
      %v1486 = vpop.f32.mrf.mxu0
      %v1487 = vadd.f32 0.0, %v1486
      %v1488 = vpop.f32.mrf.mxu0
      %v1489 = vadd.f32 0.0, %v1488
      %1490 = vmatmul.bf16.gmra.mxu0 %v961
      %v1491 = vpop.f32.mrf.mxu0
      %v1492 = vadd.f32 0.0, %v1491
      %v1493 = vpop.f32.mrf.mxu0
      %v1494 = vadd.f32 0.0, %v1493
      %1495 = vmatmul.bf16.gmra.mxu0 %v963
      %v1496 = vpop.f32.mrf.mxu0
      %v1497 = vadd.f32 0.0, %v1496
      %v1498 = vpop.f32.mrf.mxu0
      %v1499 = vadd.f32 0.0, %v1498
      %1500 = vdwg.mxu0
      %1501 = vmatpush.bf16.msra.mxu0 0
      %1502 = vmatpush.bf16.msra.mxu0 %v1470
      %1503 = vmatpush.bf16.msra.mxu0 %v1453
      %1504 = vmatpush.bf16.msra.mxu0 %v1452
      %1505 = vmatpush.bf16.msra.mxu0 %v1451
      %1506 = vmatpush.bf16.msra.mxu0 %v1450
      %1507 = vmatpush.bf16.msra.mxu0 %v1449
      %1508 = vmatpush.bf16.msra.mxu0 %v1448
      %1509 = vmatmul.bf16.gmra.mxu0 %v1083
      %v1510 = vpop.f32.mrf.mxu0
      %v1511 = vadd.f32 %v1482, %v1510
      %v1512 = vpop.f32.mrf.mxu0
      %v1513 = vadd.f32 %v1484, %v1512
      %1514 = vmatmul.bf16.gmra.mxu0 %v1086
      %v1515 = vpop.f32.mrf.mxu0
      %v1516 = vadd.f32 %v1487, %v1515
      %v1517 = vpop.f32.mrf.mxu0
      %v1518 = vadd.f32 %v1489, %v1517
      %1519 = vmatmul.bf16.gmra.mxu0 %v1089
      %v1520 = vpop.f32.mrf.mxu0
      %v1521 = vadd.f32 %v1492, %v1520
      %v1522 = vpop.f32.mrf.mxu0
      %v1523 = vadd.f32 %v1494, %v1522
      %1524 = vmatmul.bf16.gmra.mxu0 %v1092
      %v1525 = vpop.f32.mrf.mxu0
      %v1526 = vadd.f32 %v1497, %v1525
      %v1527 = vpop.f32.mrf.mxu0
      %v1528 = vadd.f32 %v1499, %v1527
      %1529 = vdwg.mxu0
      %v1530 = vpack.c.bf16 %v1511, %v1511
      %v1531 = vpack.c.bf16 %v1513, %v1513
      %v1532 = vpack.c.bf16 %v1516, %v1516
      %v1533 = vpack.c.bf16 %v1518, %v1518
      %v1534 = vpack.c.bf16 %v1521, %v1521
      %v1535 = vpack.c.bf16 %v1523, %v1523
      %v1536 = vpack.c.bf16 %v1526, %v1526
      %v1537 = vpack.c.bf16 %v1528, %v1528
      %s1538 = scalar_lea.vmem %s6, 348
      %v1539 = vld [vmem:[%s1538] sm:$0xf]
      %v1540 = vld [vmem:[%s1538 + $0x4] sm:$0xf]
      %v1541 = vld [vmem:[%s1538 + $0x8] sm:$0xf]
      %v1542 = vld [vmem:[%s1538 + $0xc] sm:$0xf]
      %v1543 = vld [vmem:[%s1538 + $0x10] sm:$0xf]
      %v1544 = vld [vmem:[%s1538 + $0x14] sm:$0xf]
      %v1545 = vld [vmem:[%s1538 + $0x18] sm:$0xf]
      %v1546 = vld [vmem:[%s1538 + $0x1c] sm:$0xf]
      %v1547 = vld [vmem:[%s1538 + $0x20] sm:$0xf]
      %v1548 = vld [vmem:[%s1538 + $0x24] sm:$0xf]
      %v1549 = vld [vmem:[%s1538 + $0x28] sm:$0xf]
      %v1550 = vld [vmem:[%s1538 + $0x2c] sm:$0xf]
      %v1551 = vld [vmem:[%s1538 + $0x30] sm:$0xf]
      %v1552 = vld [vmem:[%s1538 + $0x34] sm:$0xf]
      %v1553 = vld [vmem:[%s1538 + $0x38] sm:$0xf]
      %v1554 = vld [vmem:[%s1538 + $0x3c] sm:$0xf]
      %v1555 = vld [vmem:[%s1538 + $0x40] sm:$0xf]
      %v1556 = vld [vmem:[%s1538 + $0x44] sm:$0xf]
      %v1557 = vld [vmem:[%s1538 + $0x48] sm:$0xf]
      %v1558 = vld [vmem:[%s1538 + $0x4c] sm:$0xf]
      %v1559 = vld [vmem:[%s1538 + $0x50] sm:$0xf]
      %v1560 = vld [vmem:[%s1538 + $0x54] sm:$0xf]
      %v1561 = vld [vmem:[%s1538 + $0x58] sm:$0xf]
      %v1562 = vld [vmem:[%s1538 + $0x5c] sm:$0xf]
      %v1563 = vld [vmem:[%s1538 + $0x60] sm:$0xf]
      %v1564 = vld [vmem:[%s1538 + $0x64] sm:$0xf]
      %v1565 = vld [vmem:[%s1538 + $0x68] sm:$0xf]
      %v1566 = vld [vmem:[%s1538 + $0x6c] sm:$0xf]
      %v1567 = vld [vmem:[%s1538 + $0x70] sm:$0x1]
      %v1597 = vunpack.c.l.b16 %v1539
      %v1598 = vunpack.c.l.b16 %v1540
      %v1599 = vunpack.c.l.b16 %v1541
      %v1600 = vunpack.c.l.b16 %v1542
      %v1601 = vunpack.c.l.b16 %v1543
      %v1602 = vunpack.c.l.b16 %v1544
      %v1603 = vunpack.c.l.b16 %v1545
      %v1604 = vunpack.c.l.b16 %v1546
      %v1605 = vunpack.c.l.b16 %v1547
      %v1606 = vunpack.c.l.b16 %v1548
      %v1607 = vunpack.c.l.b16 %v1549
      %v1608 = vunpack.c.l.b16 %v1550
      %v1609 = vunpack.c.l.b16 %v1551
      %v1610 = vunpack.c.l.b16 %v1552
      %v1611 = vunpack.c.l.b16 %v1553
      %v1612 = vunpack.c.l.b16 %v1554
      %v1613 = vunpack.c.l.b16 %v1555
      %v1614 = vunpack.c.l.b16 %v1556
      %v1615 = vunpack.c.l.b16 %v1557
      %v1616 = vunpack.c.l.b16 %v1558
      %v1617 = vunpack.c.l.b16 %v1559
      %v1618 = vunpack.c.l.b16 %v1560
      %v1619 = vunpack.c.l.b16 %v1561
      %v1620 = vunpack.c.l.b16 %v1562
      %v1621 = vunpack.c.l.b16 %v1563
      %v1622 = vunpack.c.l.b16 %v1564
      %v1623 = vunpack.c.l.b16 %v1565
      %v1624 = vunpack.c.l.b16 %v1566
      %v1625 = vunpack.c.l.b16 %v1567
      %v1626 = vpack.c.b16 %v1598, %v1597
      %v1627 = vpack.c.b16 %v1600, %v1599
      %v1628 = vpack.c.b16 %v1602, %v1601
      %v1629 = vpack.c.b16 %v1604, %v1603
      %v1630 = vpack.c.b16 %v1606, %v1605
      %v1631 = vpack.c.b16 %v1608, %v1607
      %v1632 = vpack.c.b16 %v1610, %v1609
      %v1633 = vpack.c.b16 %v1612, %v1611
      %v1634 = vpack.c.b16 %v1614, %v1613
      %v1635 = vpack.c.b16 %v1616, %v1615
      %v1636 = vpack.c.b16 %v1618, %v1617
      %v1637 = vpack.c.b16 %v1620, %v1619
      %v1638 = vpack.c.b16 %v1622, %v1621
      %v1639 = vpack.c.b16 %v1624, %v1623
      %v1640 = vpack.c.b16 %v1625, %v1625
      %v1656 = vand.u32 %v1640, %v1096
      %1658 = vmatpush.bf16.msra.mxu0 %v1633
      %1659 = vmatpush.bf16.msra.mxu0 %v1632
      %1660 = vmatpush.bf16.msra.mxu0 %v1631
      %1661 = vmatpush.bf16.msra.mxu0 %v1630
      %1662 = vmatpush.bf16.msra.mxu0 %v1629
      %1663 = vmatpush.bf16.msra.mxu0 %v1628
      %1664 = vmatpush.bf16.msra.mxu0 %v1627
      %1665 = vmatpush.bf16.msra.mxu0 %v1626
      %1666 = vmatmul.bf16.gmra.mxu0 %v957
      %v1667 = vpop.f32.mrf.mxu0
      %v1668 = vadd.f32 0.0, %v1667
      %v1669 = vpop.f32.mrf.mxu0
      %v1670 = vadd.f32 0.0, %v1669
      %1671 = vmatmul.bf16.gmra.mxu0 %v959
      %v1672 = vpop.f32.mrf.mxu0
      %v1673 = vadd.f32 0.0, %v1672
      %v1674 = vpop.f32.mrf.mxu0
      %v1675 = vadd.f32 0.0, %v1674
      %1676 = vmatmul.bf16.gmra.mxu0 %v961
      %v1677 = vpop.f32.mrf.mxu0
      %v1678 = vadd.f32 0.0, %v1677
      %v1679 = vpop.f32.mrf.mxu0
      %v1680 = vadd.f32 0.0, %v1679
      %1681 = vmatmul.bf16.gmra.mxu0 %v963
      %v1682 = vpop.f32.mrf.mxu0
      %v1683 = vadd.f32 0.0, %v1682
      %v1684 = vpop.f32.mrf.mxu0
      %v1685 = vadd.f32 0.0, %v1684
      %1686 = vdwg.mxu0
      %1687 = vmatpush.bf16.msra.mxu0 0
      %1688 = vmatpush.bf16.msra.mxu0 %v1656
      %1689 = vmatpush.bf16.msra.mxu0 %v1639
      %1690 = vmatpush.bf16.msra.mxu0 %v1638
      %1691 = vmatpush.bf16.msra.mxu0 %v1637
      %1692 = vmatpush.bf16.msra.mxu0 %v1636
      %1693 = vmatpush.bf16.msra.mxu0 %v1635
      %1694 = vmatpush.bf16.msra.mxu0 %v1634
      %1695 = vmatmul.bf16.gmra.mxu0 %v1083
      %v1696 = vpop.f32.mrf.mxu0
      %v1697 = vadd.f32 %v1668, %v1696
      %v1698 = vpop.f32.mrf.mxu0
      %v1699 = vadd.f32 %v1670, %v1698
      %1700 = vmatmul.bf16.gmra.mxu0 %v1086
      %v1701 = vpop.f32.mrf.mxu0
      %v1702 = vadd.f32 %v1673, %v1701
      %v1703 = vpop.f32.mrf.mxu0
      %v1704 = vadd.f32 %v1675, %v1703
      %1705 = vmatmul.bf16.gmra.mxu0 %v1089
      %v1706 = vpop.f32.mrf.mxu0
      %v1707 = vadd.f32 %v1678, %v1706
      %v1708 = vpop.f32.mrf.mxu0
      %v1709 = vadd.f32 %v1680, %v1708
      %1710 = vmatmul.bf16.gmra.mxu0 %v1092
      %v1711 = vpop.f32.mrf.mxu0
      %v1712 = vadd.f32 %v1683, %v1711
      %v1713 = vpop.f32.mrf.mxu0
      %v1714 = vadd.f32 %v1685, %v1713
      %1715 = vdwg.mxu0
      %v1716 = vpack.c.bf16 %v1697, %v1697
      %v1717 = vpack.c.bf16 %v1699, %v1699
      %v1718 = vpack.c.bf16 %v1702, %v1702
      %v1719 = vpack.c.bf16 %v1704, %v1704
      %v1720 = vpack.c.bf16 %v1707, %v1707
      %v1721 = vpack.c.bf16 %v1709, %v1709
      %v1722 = vpack.c.bf16 %v1712, %v1712
      %v1723 = vpack.c.bf16 %v1714, %v1714
      %s1724 = scalar_lea.vmem %s6, 464
      %v1725 = vld [vmem:[%s1724] sm:$0xf]
      %v1726 = vld [vmem:[%s1724 + $0x4] sm:$0xf]
      %v1727 = vld [vmem:[%s1724 + $0x8] sm:$0xf]
      %v1728 = vld [vmem:[%s1724 + $0xc] sm:$0xf]
      %v1729 = vld [vmem:[%s1724 + $0x10] sm:$0xf]
      %v1730 = vld [vmem:[%s1724 + $0x14] sm:$0xf]
      %v1731 = vld [vmem:[%s1724 + $0x18] sm:$0xf]
      %v1732 = vld [vmem:[%s1724 + $0x1c] sm:$0xf]
      %v1733 = vld [vmem:[%s1724 + $0x20] sm:$0xf]
      %v1734 = vld [vmem:[%s1724 + $0x24] sm:$0xf]
      %v1735 = vld [vmem:[%s1724 + $0x28] sm:$0xf]
      %v1736 = vld [vmem:[%s1724 + $0x2c] sm:$0xf]
      %v1737 = vld [vmem:[%s1724 + $0x30] sm:$0xf]
      %v1738 = vld [vmem:[%s1724 + $0x34] sm:$0xf]
      %v1739 = vld [vmem:[%s1724 + $0x38] sm:$0xf]
      %v1740 = vld [vmem:[%s1724 + $0x3c] sm:$0xf]
      %v1741 = vld [vmem:[%s1724 + $0x40] sm:$0xf]
      %v1742 = vld [vmem:[%s1724 + $0x44] sm:$0xf]
      %v1743 = vld [vmem:[%s1724 + $0x48] sm:$0xf]
      %v1744 = vld [vmem:[%s1724 + $0x4c] sm:$0xf]
      %v1745 = vld [vmem:[%s1724 + $0x50] sm:$0xf]
      %v1746 = vld [vmem:[%s1724 + $0x54] sm:$0xf]
      %v1747 = vld [vmem:[%s1724 + $0x58] sm:$0xf]
      %v1748 = vld [vmem:[%s1724 + $0x5c] sm:$0xf]
      %v1749 = vld [vmem:[%s1724 + $0x60] sm:$0xf]
      %v1750 = vld [vmem:[%s1724 + $0x64] sm:$0xf]
      %v1751 = vld [vmem:[%s1724 + $0x68] sm:$0xf]
      %v1752 = vld [vmem:[%s1724 + $0x6c] sm:$0xf]
      %v1753 = vld [vmem:[%s1724 + $0x70] sm:$0x1]
      %v1783 = vunpack.c.l.b16 %v1725
      %v1784 = vunpack.c.l.b16 %v1726
      %v1785 = vunpack.c.l.b16 %v1727
      %v1786 = vunpack.c.l.b16 %v1728
      %v1787 = vunpack.c.l.b16 %v1729
      %v1788 = vunpack.c.l.b16 %v1730
      %v1789 = vunpack.c.l.b16 %v1731
      %v1790 = vunpack.c.l.b16 %v1732
      %v1791 = vunpack.c.l.b16 %v1733
      %v1792 = vunpack.c.l.b16 %v1734
      %v1793 = vunpack.c.l.b16 %v1735
      %v1794 = vunpack.c.l.b16 %v1736
      %v1795 = vunpack.c.l.b16 %v1737
      %v1796 = vunpack.c.l.b16 %v1738
      %v1797 = vunpack.c.l.b16 %v1739
      %v1798 = vunpack.c.l.b16 %v1740
      %v1799 = vunpack.c.l.b16 %v1741
      %v1800 = vunpack.c.l.b16 %v1742
      %v1801 = vunpack.c.l.b16 %v1743
      %v1802 = vunpack.c.l.b16 %v1744
      %v1803 = vunpack.c.l.b16 %v1745
      %v1804 = vunpack.c.l.b16 %v1746
      %v1805 = vunpack.c.l.b16 %v1747
      %v1806 = vunpack.c.l.b16 %v1748
      %v1807 = vunpack.c.l.b16 %v1749
      %v1808 = vunpack.c.l.b16 %v1750
      %v1809 = vunpack.c.l.b16 %v1751
      %v1810 = vunpack.c.l.b16 %v1752
      %v1811 = vunpack.c.l.b16 %v1753
      %v1812 = vpack.c.b16 %v1784, %v1783
      %v1813 = vpack.c.b16 %v1786, %v1785
      %v1814 = vpack.c.b16 %v1788, %v1787
      %v1815 = vpack.c.b16 %v1790, %v1789
      %v1816 = vpack.c.b16 %v1792, %v1791
      %v1817 = vpack.c.b16 %v1794, %v1793
      %v1818 = vpack.c.b16 %v1796, %v1795
      %v1819 = vpack.c.b16 %v1798, %v1797
      %v1820 = vpack.c.b16 %v1800, %v1799
      %v1821 = vpack.c.b16 %v1802, %v1801
      %v1822 = vpack.c.b16 %v1804, %v1803
      %v1823 = vpack.c.b16 %v1806, %v1805
      %v1824 = vpack.c.b16 %v1808, %v1807
      %v1825 = vpack.c.b16 %v1810, %v1809
      %v1826 = vpack.c.b16 %v1811, %v1811
      %v1842 = vand.u32 %v1826, %v1096
      %1844 = vmatpush.bf16.msra.mxu0 %v1819
      %1845 = vmatpush.bf16.msra.mxu0 %v1818
      %1846 = vmatpush.bf16.msra.mxu0 %v1817
      %1847 = vmatpush.bf16.msra.mxu0 %v1816
      %1848 = vmatpush.bf16.msra.mxu0 %v1815
      %1849 = vmatpush.bf16.msra.mxu0 %v1814
      %1850 = vmatpush.bf16.msra.mxu0 %v1813
      %1851 = vmatpush.bf16.msra.mxu0 %v1812
      %1852 = vmatmul.bf16.gmra.mxu0 %v957
      %v1853 = vpop.f32.mrf.mxu0
      %v1854 = vadd.f32 0.0, %v1853
      %v1855 = vpop.f32.mrf.mxu0
      %v1856 = vadd.f32 0.0, %v1855
      %1857 = vmatmul.bf16.gmra.mxu0 %v959
      %v1858 = vpop.f32.mrf.mxu0
      %v1859 = vadd.f32 0.0, %v1858
      %v1860 = vpop.f32.mrf.mxu0
      %v1861 = vadd.f32 0.0, %v1860
      %1862 = vmatmul.bf16.gmra.mxu0 %v961
      %v1863 = vpop.f32.mrf.mxu0
      %v1864 = vadd.f32 0.0, %v1863
      %v1865 = vpop.f32.mrf.mxu0
      %v1866 = vadd.f32 0.0, %v1865
      %1867 = vmatmul.bf16.gmra.mxu0 %v963
      %v1868 = vpop.f32.mrf.mxu0
      %v1869 = vadd.f32 0.0, %v1868
      %v1870 = vpop.f32.mrf.mxu0
      %v1871 = vadd.f32 0.0, %v1870
      %1872 = vdwg.mxu0
      %1873 = vmatpush.bf16.msra.mxu0 0
      %1874 = vmatpush.bf16.msra.mxu0 %v1842
      %1875 = vmatpush.bf16.msra.mxu0 %v1825
      %1876 = vmatpush.bf16.msra.mxu0 %v1824
      %1877 = vmatpush.bf16.msra.mxu0 %v1823
      %1878 = vmatpush.bf16.msra.mxu0 %v1822
      %1879 = vmatpush.bf16.msra.mxu0 %v1821
      %1880 = vmatpush.bf16.msra.mxu0 %v1820
      %1881 = vmatmul.bf16.gmra.mxu0 %v1083
      %v1882 = vpop.f32.mrf.mxu0
      %v1883 = vadd.f32 %v1854, %v1882
      %v1884 = vpop.f32.mrf.mxu0
      %v1885 = vadd.f32 %v1856, %v1884
      %1886 = vmatmul.bf16.gmra.mxu0 %v1086
      %v1887 = vpop.f32.mrf.mxu0
      %v1888 = vadd.f32 %v1859, %v1887
      %v1889 = vpop.f32.mrf.mxu0
      %v1890 = vadd.f32 %v1861, %v1889
      %1891 = vmatmul.bf16.gmra.mxu0 %v1089
      %v1892 = vpop.f32.mrf.mxu0
      %v1893 = vadd.f32 %v1864, %v1892
      %v1894 = vpop.f32.mrf.mxu0
      %v1895 = vadd.f32 %v1866, %v1894
      %1896 = vmatmul.bf16.gmra.mxu0 %v1092
      %v1897 = vpop.f32.mrf.mxu0
      %v1898 = vadd.f32 %v1869, %v1897
      %v1899 = vpop.f32.mrf.mxu0
      %v1900 = vadd.f32 %v1871, %v1899
      %1901 = vdwg.mxu0
      %v1902 = vpack.c.bf16 %v1883, %v1883
      %v1903 = vpack.c.bf16 %v1885, %v1885
      %v1904 = vpack.c.bf16 %v1888, %v1888
      %v1905 = vpack.c.bf16 %v1890, %v1890
      %v1906 = vpack.c.bf16 %v1893, %v1893
      %v1907 = vpack.c.bf16 %v1895, %v1895
      %v1908 = vpack.c.bf16 %v1898, %v1898
      %v1909 = vpack.c.bf16 %v1900, %v1900
      %s1910 = scalar_lea.vmem %s6, 580
      %v1911 = vld [vmem:[%s1910] sm:$0xf]
      %v1912 = vld [vmem:[%s1910 + $0x4] sm:$0xf]
      %v1913 = vld [vmem:[%s1910 + $0x8] sm:$0xf]
      %v1914 = vld [vmem:[%s1910 + $0xc] sm:$0xf]
      %v1915 = vld [vmem:[%s1910 + $0x10] sm:$0xf]
      %v1916 = vld [vmem:[%s1910 + $0x14] sm:$0xf]
      %v1917 = vld [vmem:[%s1910 + $0x18] sm:$0xf]
      %v1918 = vld [vmem:[%s1910 + $0x1c] sm:$0xf]
      %v1919 = vld [vmem:[%s1910 + $0x20] sm:$0xf]
      %v1920 = vld [vmem:[%s1910 + $0x24] sm:$0xf]
      %v1921 = vld [vmem:[%s1910 + $0x28] sm:$0xf]
      %v1922 = vld [vmem:[%s1910 + $0x2c] sm:$0xf]
      %v1923 = vld [vmem:[%s1910 + $0x30] sm:$0xf]
      %v1924 = vld [vmem:[%s1910 + $0x34] sm:$0xf]
      %v1925 = vld [vmem:[%s1910 + $0x38] sm:$0xf]
      %v1926 = vld [vmem:[%s1910 + $0x3c] sm:$0xf]
      %v1927 = vld [vmem:[%s1910 + $0x40] sm:$0xf]
      %v1928 = vld [vmem:[%s1910 + $0x44] sm:$0xf]
      %v1929 = vld [vmem:[%s1910 + $0x48] sm:$0xf]
      %v1930 = vld [vmem:[%s1910 + $0x4c] sm:$0xf]
      %v1931 = vld [vmem:[%s1910 + $0x50] sm:$0xf]
      %v1932 = vld [vmem:[%s1910 + $0x54] sm:$0xf]
      %v1933 = vld [vmem:[%s1910 + $0x58] sm:$0xf]
      %v1934 = vld [vmem:[%s1910 + $0x5c] sm:$0xf]
      %v1935 = vld [vmem:[%s1910 + $0x60] sm:$0xf]
      %v1936 = vld [vmem:[%s1910 + $0x64] sm:$0xf]
      %v1937 = vld [vmem:[%s1910 + $0x68] sm:$0xf]
      %v1938 = vld [vmem:[%s1910 + $0x6c] sm:$0xf]
      %v1939 = vld [vmem:[%s1910 + $0x70] sm:$0x1]
      %v1969 = vunpack.c.l.b16 %v1911
      %v1970 = vunpack.c.l.b16 %v1912
      %v1971 = vunpack.c.l.b16 %v1913
      %v1972 = vunpack.c.l.b16 %v1914
      %v1973 = vunpack.c.l.b16 %v1915
      %v1974 = vunpack.c.l.b16 %v1916
      %v1975 = vunpack.c.l.b16 %v1917
      %v1976 = vunpack.c.l.b16 %v1918
      %v1977 = vunpack.c.l.b16 %v1919
      %v1978 = vunpack.c.l.b16 %v1920
      %v1979 = vunpack.c.l.b16 %v1921
      %v1980 = vunpack.c.l.b16 %v1922
      %v1981 = vunpack.c.l.b16 %v1923
      %v1982 = vunpack.c.l.b16 %v1924
      %v1983 = vunpack.c.l.b16 %v1925
      %v1984 = vunpack.c.l.b16 %v1926
      %v1985 = vunpack.c.l.b16 %v1927
      %v1986 = vunpack.c.l.b16 %v1928
      %v1987 = vunpack.c.l.b16 %v1929
      %v1988 = vunpack.c.l.b16 %v1930
      %v1989 = vunpack.c.l.b16 %v1931
      %v1990 = vunpack.c.l.b16 %v1932
      %v1991 = vunpack.c.l.b16 %v1933
      %v1992 = vunpack.c.l.b16 %v1934
      %v1993 = vunpack.c.l.b16 %v1935
      %v1994 = vunpack.c.l.b16 %v1936
      %v1995 = vunpack.c.l.b16 %v1937
      %v1996 = vunpack.c.l.b16 %v1938
      %v1997 = vunpack.c.l.b16 %v1939
      %v1998 = vpack.c.b16 %v1970, %v1969
      %v1999 = vpack.c.b16 %v1972, %v1971
      %v2000 = vpack.c.b16 %v1974, %v1973
      %v2001 = vpack.c.b16 %v1976, %v1975
      %v2002 = vpack.c.b16 %v1978, %v1977
      %v2003 = vpack.c.b16 %v1980, %v1979
      %v2004 = vpack.c.b16 %v1982, %v1981
      %v2005 = vpack.c.b16 %v1984, %v1983
      %v2006 = vpack.c.b16 %v1986, %v1985
      %v2007 = vpack.c.b16 %v1988, %v1987
      %v2008 = vpack.c.b16 %v1990, %v1989
      %v2009 = vpack.c.b16 %v1992, %v1991
      %v2010 = vpack.c.b16 %v1994, %v1993
      %v2011 = vpack.c.b16 %v1996, %v1995
      %v2012 = vpack.c.b16 %v1997, %v1997
      %v2028 = vand.u32 %v2012, %v1096
      %2030 = vmatpush.bf16.msra.mxu0 %v2005
      %2031 = vmatpush.bf16.msra.mxu0 %v2004
      %2032 = vmatpush.bf16.msra.mxu0 %v2003
      %2033 = vmatpush.bf16.msra.mxu0 %v2002
      %2034 = vmatpush.bf16.msra.mxu0 %v2001
      %2035 = vmatpush.bf16.msra.mxu0 %v2000
      %2036 = vmatpush.bf16.msra.mxu0 %v1999
      %2037 = vmatpush.bf16.msra.mxu0 %v1998
      %2038 = vmatmul.bf16.gmra.mxu0 %v957
      %v2039 = vpop.f32.mrf.mxu0
      %v2040 = vadd.f32 0.0, %v2039
      %v2041 = vpop.f32.mrf.mxu0
      %v2042 = vadd.f32 0.0, %v2041
      %2043 = vmatmul.bf16.gmra.mxu0 %v959
      %v2044 = vpop.f32.mrf.mxu0
      %v2045 = vadd.f32 0.0, %v2044
      %v2046 = vpop.f32.mrf.mxu0
      %v2047 = vadd.f32 0.0, %v2046
      %2048 = vmatmul.bf16.gmra.mxu0 %v961
      %v2049 = vpop.f32.mrf.mxu0
      %v2050 = vadd.f32 0.0, %v2049
      %v2051 = vpop.f32.mrf.mxu0
      %v2052 = vadd.f32 0.0, %v2051
      %2053 = vmatmul.bf16.gmra.mxu0 %v963
      %v2054 = vpop.f32.mrf.mxu0
      %v2055 = vadd.f32 0.0, %v2054
      %v2056 = vpop.f32.mrf.mxu0
      %v2057 = vadd.f32 0.0, %v2056
      %2058 = vdwg.mxu0
      %2059 = vmatpush.bf16.msra.mxu0 0
      %2060 = vmatpush.bf16.msra.mxu0 %v2028
      %2061 = vmatpush.bf16.msra.mxu0 %v2011
      %2062 = vmatpush.bf16.msra.mxu0 %v2010
      %2063 = vmatpush.bf16.msra.mxu0 %v2009
      %2064 = vmatpush.bf16.msra.mxu0 %v2008
      %2065 = vmatpush.bf16.msra.mxu0 %v2007
      %2066 = vmatpush.bf16.msra.mxu0 %v2006
      %2067 = vmatmul.bf16.gmra.mxu0 %v1083
      %v2068 = vpop.f32.mrf.mxu0
      %v2069 = vadd.f32 %v2040, %v2068
      %v2070 = vpop.f32.mrf.mxu0
      %v2071 = vadd.f32 %v2042, %v2070
      %2072 = vmatmul.bf16.gmra.mxu0 %v1086
      %v2073 = vpop.f32.mrf.mxu0
      %v2074 = vadd.f32 %v2045, %v2073
      %v2075 = vpop.f32.mrf.mxu0
      %v2076 = vadd.f32 %v2047, %v2075
      %2077 = vmatmul.bf16.gmra.mxu0 %v1089
      %v2078 = vpop.f32.mrf.mxu0
      %v2079 = vadd.f32 %v2050, %v2078
      %v2080 = vpop.f32.mrf.mxu0
      %v2081 = vadd.f32 %v2052, %v2080
      %2082 = vmatmul.bf16.gmra.mxu0 %v1092
      %v2083 = vpop.f32.mrf.mxu0
      %v2084 = vadd.f32 %v2055, %v2083
      %v2085 = vpop.f32.mrf.mxu0
      %v2086 = vadd.f32 %v2057, %v2085
      %2087 = vdwg.mxu0
      %v2088 = vpack.c.bf16 %v2069, %v2069
      %v2089 = vpack.c.bf16 %v2071, %v2071
      %v2090 = vpack.c.bf16 %v2074, %v2074
      %v2091 = vpack.c.bf16 %v2076, %v2076
      %v2092 = vpack.c.bf16 %v2079, %v2079
      %v2093 = vpack.c.bf16 %v2081, %v2081
      %v2094 = vpack.c.bf16 %v2084, %v2084
      %v2095 = vpack.c.bf16 %v2086, %v2086
      %s2096 = scalar_lea.vmem %s6, 696
      %v2097 = vld [vmem:[%s2096] sm:$0xf]
      %v2098 = vld [vmem:[%s2096 + $0x4] sm:$0xf]
      %v2099 = vld [vmem:[%s2096 + $0x8] sm:$0xf]
      %v2100 = vld [vmem:[%s2096 + $0xc] sm:$0xf]
      %v2101 = vld [vmem:[%s2096 + $0x10] sm:$0xf]
      %v2102 = vld [vmem:[%s2096 + $0x14] sm:$0xf]
      %v2103 = vld [vmem:[%s2096 + $0x18] sm:$0xf]
      %v2104 = vld [vmem:[%s2096 + $0x1c] sm:$0xf]
      %v2105 = vld [vmem:[%s2096 + $0x20] sm:$0xf]
      %v2106 = vld [vmem:[%s2096 + $0x24] sm:$0xf]
      %v2107 = vld [vmem:[%s2096 + $0x28] sm:$0xf]
      %v2108 = vld [vmem:[%s2096 + $0x2c] sm:$0xf]
      %v2109 = vld [vmem:[%s2096 + $0x30] sm:$0xf]
      %v2110 = vld [vmem:[%s2096 + $0x34] sm:$0xf]
      %v2111 = vld [vmem:[%s2096 + $0x38] sm:$0xf]
      %v2112 = vld [vmem:[%s2096 + $0x3c] sm:$0xf]
      %v2113 = vld [vmem:[%s2096 + $0x40] sm:$0xf]
      %v2114 = vld [vmem:[%s2096 + $0x44] sm:$0xf]
      %v2115 = vld [vmem:[%s2096 + $0x48] sm:$0xf]
      %v2116 = vld [vmem:[%s2096 + $0x4c] sm:$0xf]
      %v2117 = vld [vmem:[%s2096 + $0x50] sm:$0xf]
      %v2118 = vld [vmem:[%s2096 + $0x54] sm:$0xf]
      %v2119 = vld [vmem:[%s2096 + $0x58] sm:$0xf]
      %v2120 = vld [vmem:[%s2096 + $0x5c] sm:$0xf]
      %v2121 = vld [vmem:[%s2096 + $0x60] sm:$0xf]
      %v2122 = vld [vmem:[%s2096 + $0x64] sm:$0xf]
      %v2123 = vld [vmem:[%s2096 + $0x68] sm:$0xf]
      %v2124 = vld [vmem:[%s2096 + $0x6c] sm:$0xf]
      %v2125 = vld [vmem:[%s2096 + $0x70] sm:$0x1]
      %v2155 = vunpack.c.l.b16 %v2097
      %v2156 = vunpack.c.l.b16 %v2098
      %v2157 = vunpack.c.l.b16 %v2099
      %v2158 = vunpack.c.l.b16 %v2100
      %v2159 = vunpack.c.l.b16 %v2101
      %v2160 = vunpack.c.l.b16 %v2102
      %v2161 = vunpack.c.l.b16 %v2103
      %v2162 = vunpack.c.l.b16 %v2104
      %v2163 = vunpack.c.l.b16 %v2105
      %v2164 = vunpack.c.l.b16 %v2106
      %v2165 = vunpack.c.l.b16 %v2107
      %v2166 = vunpack.c.l.b16 %v2108
      %v2167 = vunpack.c.l.b16 %v2109
      %v2168 = vunpack.c.l.b16 %v2110
      %v2169 = vunpack.c.l.b16 %v2111
      %v2170 = vunpack.c.l.b16 %v2112
      %v2171 = vunpack.c.l.b16 %v2113
      %v2172 = vunpack.c.l.b16 %v2114
      %v2173 = vunpack.c.l.b16 %v2115
      %v2174 = vunpack.c.l.b16 %v2116
      %v2175 = vunpack.c.l.b16 %v2117
      %v2176 = vunpack.c.l.b16 %v2118
      %v2177 = vunpack.c.l.b16 %v2119
      %v2178 = vunpack.c.l.b16 %v2120
      %v2179 = vunpack.c.l.b16 %v2121
      %v2180 = vunpack.c.l.b16 %v2122
      %v2181 = vunpack.c.l.b16 %v2123
      %v2182 = vunpack.c.l.b16 %v2124
      %v2183 = vunpack.c.l.b16 %v2125
      %v2184 = vpack.c.b16 %v2156, %v2155
      %v2185 = vpack.c.b16 %v2158, %v2157
      %v2186 = vpack.c.b16 %v2160, %v2159
      %v2187 = vpack.c.b16 %v2162, %v2161
      %v2188 = vpack.c.b16 %v2164, %v2163
      %v2189 = vpack.c.b16 %v2166, %v2165
      %v2190 = vpack.c.b16 %v2168, %v2167
      %v2191 = vpack.c.b16 %v2170, %v2169
      %v2192 = vpack.c.b16 %v2172, %v2171
      %v2193 = vpack.c.b16 %v2174, %v2173
      %v2194 = vpack.c.b16 %v2176, %v2175
      %v2195 = vpack.c.b16 %v2178, %v2177
      %v2196 = vpack.c.b16 %v2180, %v2179
      %v2197 = vpack.c.b16 %v2182, %v2181
      %v2198 = vpack.c.b16 %v2183, %v2183
      %v2214 = vand.u32 %v2198, %v1096
      %2216 = vmatpush.bf16.msra.mxu0 %v2191
      %2217 = vmatpush.bf16.msra.mxu0 %v2190
      %2218 = vmatpush.bf16.msra.mxu0 %v2189
      %2219 = vmatpush.bf16.msra.mxu0 %v2188
      %2220 = vmatpush.bf16.msra.mxu0 %v2187
      %2221 = vmatpush.bf16.msra.mxu0 %v2186
      %2222 = vmatpush.bf16.msra.mxu0 %v2185
      %2223 = vmatpush.bf16.msra.mxu0 %v2184
      %2224 = vmatmul.bf16.gmra.mxu0 %v957
      %v2225 = vpop.f32.mrf.mxu0
      %v2226 = vadd.f32 0.0, %v2225
      %v2227 = vpop.f32.mrf.mxu0
      %v2228 = vadd.f32 0.0, %v2227
      %2229 = vmatmul.bf16.gmra.mxu0 %v959
      %v2230 = vpop.f32.mrf.mxu0
      %v2231 = vadd.f32 0.0, %v2230
      %v2232 = vpop.f32.mrf.mxu0
      %v2233 = vadd.f32 0.0, %v2232
      %2234 = vmatmul.bf16.gmra.mxu0 %v961
      %v2235 = vpop.f32.mrf.mxu0
      %v2236 = vadd.f32 0.0, %v2235
      %v2237 = vpop.f32.mrf.mxu0
      %v2238 = vadd.f32 0.0, %v2237
      %2239 = vmatmul.bf16.gmra.mxu0 %v963
      %v2240 = vpop.f32.mrf.mxu0
      %v2241 = vadd.f32 0.0, %v2240
      %v2242 = vpop.f32.mrf.mxu0
      %v2243 = vadd.f32 0.0, %v2242
      %2244 = vdwg.mxu0
      %2245 = vmatpush.bf16.msra.mxu0 0
      %2246 = vmatpush.bf16.msra.mxu0 %v2214
      %2247 = vmatpush.bf16.msra.mxu0 %v2197
      %2248 = vmatpush.bf16.msra.mxu0 %v2196
      %2249 = vmatpush.bf16.msra.mxu0 %v2195
      %2250 = vmatpush.bf16.msra.mxu0 %v2194
      %2251 = vmatpush.bf16.msra.mxu0 %v2193
      %2252 = vmatpush.bf16.msra.mxu0 %v2192
      %2253 = vmatmul.bf16.gmra.mxu0 %v1083
      %v2254 = vpop.f32.mrf.mxu0
      %v2255 = vadd.f32 %v2226, %v2254
      %v2256 = vpop.f32.mrf.mxu0
      %v2257 = vadd.f32 %v2228, %v2256
      %2258 = vmatmul.bf16.gmra.mxu0 %v1086
      %v2259 = vpop.f32.mrf.mxu0
      %v2260 = vadd.f32 %v2231, %v2259
      %v2261 = vpop.f32.mrf.mxu0
      %v2262 = vadd.f32 %v2233, %v2261
      %2263 = vmatmul.bf16.gmra.mxu0 %v1089
      %v2264 = vpop.f32.mrf.mxu0
      %v2265 = vadd.f32 %v2236, %v2264
      %v2266 = vpop.f32.mrf.mxu0
      %v2267 = vadd.f32 %v2238, %v2266
      %2268 = vmatmul.bf16.gmra.mxu0 %v1092
      %v2269 = vpop.f32.mrf.mxu0
      %v2270 = vadd.f32 %v2241, %v2269
      %v2271 = vpop.f32.mrf.mxu0
      %v2272 = vadd.f32 %v2243, %v2271
      %2273 = vdwg.mxu0
      %v2274 = vpack.c.bf16 %v2255, %v2255
      %v2275 = vpack.c.bf16 %v2257, %v2257
      %v2276 = vpack.c.bf16 %v2260, %v2260
      %v2277 = vpack.c.bf16 %v2262, %v2262
      %v2278 = vpack.c.bf16 %v2265, %v2265
      %v2279 = vpack.c.bf16 %v2267, %v2267
      %v2280 = vpack.c.bf16 %v2270, %v2270
      %v2281 = vpack.c.bf16 %v2272, %v2272
      %s2282 = scalar_lea.vmem %s6, 812
      %v2283 = vld [vmem:[%s2282] sm:$0xf]
      %v2284 = vld [vmem:[%s2282 + $0x4] sm:$0xf]
      %v2285 = vld [vmem:[%s2282 + $0x8] sm:$0xf]
      %v2286 = vld [vmem:[%s2282 + $0xc] sm:$0xf]
      %v2287 = vld [vmem:[%s2282 + $0x10] sm:$0xf]
      %v2288 = vld [vmem:[%s2282 + $0x14] sm:$0xf]
      %v2289 = vld [vmem:[%s2282 + $0x18] sm:$0xf]
      %v2290 = vld [vmem:[%s2282 + $0x1c] sm:$0xf]
      %v2291 = vld [vmem:[%s2282 + $0x20] sm:$0xf]
      %v2292 = vld [vmem:[%s2282 + $0x24] sm:$0xf]
      %v2293 = vld [vmem:[%s2282 + $0x28] sm:$0xf]
      %v2294 = vld [vmem:[%s2282 + $0x2c] sm:$0xf]
      %v2295 = vld [vmem:[%s2282 + $0x30] sm:$0xf]
      %v2296 = vld [vmem:[%s2282 + $0x34] sm:$0xf]
      %v2297 = vld [vmem:[%s2282 + $0x38] sm:$0xf]
      %v2298 = vld [vmem:[%s2282 + $0x3c] sm:$0xf]
      %v2299 = vld [vmem:[%s2282 + $0x40] sm:$0xf]
      %v2300 = vld [vmem:[%s2282 + $0x44] sm:$0xf]
      %v2301 = vld [vmem:[%s2282 + $0x48] sm:$0xf]
      %v2302 = vld [vmem:[%s2282 + $0x4c] sm:$0xf]
      %v2303 = vld [vmem:[%s2282 + $0x50] sm:$0xf]
      %v2304 = vld [vmem:[%s2282 + $0x54] sm:$0xf]
      %v2305 = vld [vmem:[%s2282 + $0x58] sm:$0xf]
      %v2306 = vld [vmem:[%s2282 + $0x5c] sm:$0xf]
      %v2307 = vld [vmem:[%s2282 + $0x60] sm:$0xf]
      %v2308 = vld [vmem:[%s2282 + $0x64] sm:$0xf]
      %v2309 = vld [vmem:[%s2282 + $0x68] sm:$0xf]
      %v2310 = vld [vmem:[%s2282 + $0x6c] sm:$0xf]
      %v2311 = vld [vmem:[%s2282 + $0x70] sm:$0x1]
      %v2341 = vunpack.c.l.b16 %v2283
      %v2342 = vunpack.c.l.b16 %v2284
      %v2343 = vunpack.c.l.b16 %v2285
      %v2344 = vunpack.c.l.b16 %v2286
      %v2345 = vunpack.c.l.b16 %v2287
      %v2346 = vunpack.c.l.b16 %v2288
      %v2347 = vunpack.c.l.b16 %v2289
      %v2348 = vunpack.c.l.b16 %v2290
      %v2349 = vunpack.c.l.b16 %v2291
      %v2350 = vunpack.c.l.b16 %v2292
      %v2351 = vunpack.c.l.b16 %v2293
      %v2352 = vunpack.c.l.b16 %v2294
      %v2353 = vunpack.c.l.b16 %v2295
      %v2354 = vunpack.c.l.b16 %v2296
      %v2355 = vunpack.c.l.b16 %v2297
      %v2356 = vunpack.c.l.b16 %v2298
      %v2357 = vunpack.c.l.b16 %v2299
      %v2358 = vunpack.c.l.b16 %v2300
      %v2359 = vunpack.c.l.b16 %v2301
      %v2360 = vunpack.c.l.b16 %v2302
      %v2361 = vunpack.c.l.b16 %v2303
      %v2362 = vunpack.c.l.b16 %v2304
      %v2363 = vunpack.c.l.b16 %v2305
      %v2364 = vunpack.c.l.b16 %v2306
      %v2365 = vunpack.c.l.b16 %v2307
      %v2366 = vunpack.c.l.b16 %v2308
      %v2367 = vunpack.c.l.b16 %v2309
      %v2368 = vunpack.c.l.b16 %v2310
      %v2369 = vunpack.c.l.b16 %v2311
      %v2370 = vpack.c.b16 %v2342, %v2341
      %v2371 = vpack.c.b16 %v2344, %v2343
      %v2372 = vpack.c.b16 %v2346, %v2345
      %v2373 = vpack.c.b16 %v2348, %v2347
      %v2374 = vpack.c.b16 %v2350, %v2349
      %v2375 = vpack.c.b16 %v2352, %v2351
      %v2376 = vpack.c.b16 %v2354, %v2353
      %v2377 = vpack.c.b16 %v2356, %v2355
      %v2378 = vpack.c.b16 %v2358, %v2357
      %v2379 = vpack.c.b16 %v2360, %v2359
      %v2380 = vpack.c.b16 %v2362, %v2361
      %v2381 = vpack.c.b16 %v2364, %v2363
      %v2382 = vpack.c.b16 %v2366, %v2365
      %v2383 = vpack.c.b16 %v2368, %v2367
      %v2384 = vpack.c.b16 %v2369, %v2369
      %v2400 = vand.u32 %v2384, %v1096
      %2402 = vmatpush.bf16.msra.mxu0 %v2377
      %2403 = vmatpush.bf16.msra.mxu0 %v2376
      %2404 = vmatpush.bf16.msra.mxu0 %v2375
      %2405 = vmatpush.bf16.msra.mxu0 %v2374
      %2406 = vmatpush.bf16.msra.mxu0 %v2373
      %2407 = vmatpush.bf16.msra.mxu0 %v2372
      %2408 = vmatpush.bf16.msra.mxu0 %v2371
      %2409 = vmatpush.bf16.msra.mxu0 %v2370
      %2410 = vmatmul.bf16.gmra.mxu0 %v957
      %v2411 = vpop.f32.mrf.mxu0
      %v2412 = vadd.f32 0.0, %v2411
      %v2413 = vpop.f32.mrf.mxu0
      %v2414 = vadd.f32 0.0, %v2413
      %2415 = vmatmul.bf16.gmra.mxu0 %v959
      %v2416 = vpop.f32.mrf.mxu0
      %v2417 = vadd.f32 0.0, %v2416
      %v2418 = vpop.f32.mrf.mxu0
      %v2419 = vadd.f32 0.0, %v2418
      %2420 = vmatmul.bf16.gmra.mxu0 %v961
      %v2421 = vpop.f32.mrf.mxu0
      %v2422 = vadd.f32 0.0, %v2421
      %v2423 = vpop.f32.mrf.mxu0
      %v2424 = vadd.f32 0.0, %v2423
      %2425 = vmatmul.bf16.gmra.mxu0 %v963
      %v2426 = vpop.f32.mrf.mxu0
      %v2427 = vadd.f32 0.0, %v2426
      %v2428 = vpop.f32.mrf.mxu0
      %v2429 = vadd.f32 0.0, %v2428
      %2430 = vdwg.mxu0
      %2431 = vmatpush.bf16.msra.mxu0 0
      %2432 = vmatpush.bf16.msra.mxu0 %v2400
      %2433 = vmatpush.bf16.msra.mxu0 %v2383
      %2434 = vmatpush.bf16.msra.mxu0 %v2382
      %2435 = vmatpush.bf16.msra.mxu0 %v2381
      %2436 = vmatpush.bf16.msra.mxu0 %v2380
      %2437 = vmatpush.bf16.msra.mxu0 %v2379
      %2438 = vmatpush.bf16.msra.mxu0 %v2378
      %2439 = vmatmul.bf16.gmra.mxu0 %v1083
      %v2440 = vpop.f32.mrf.mxu0
      %v2441 = vadd.f32 %v2412, %v2440
      %v2442 = vpop.f32.mrf.mxu0
      %v2443 = vadd.f32 %v2414, %v2442
      %2444 = vmatmul.bf16.gmra.mxu0 %v1086
      %v2445 = vpop.f32.mrf.mxu0
      %v2446 = vadd.f32 %v2417, %v2445
      %v2447 = vpop.f32.mrf.mxu0
      %v2448 = vadd.f32 %v2419, %v2447
      %2449 = vmatmul.bf16.gmra.mxu0 %v1089
      %v2450 = vpop.f32.mrf.mxu0
      %v2451 = vadd.f32 %v2422, %v2450
      %v2452 = vpop.f32.mrf.mxu0
      %v2453 = vadd.f32 %v2424, %v2452
      %2454 = vmatmul.bf16.gmra.mxu0 %v1092
      %v2455 = vpop.f32.mrf.mxu0
      %v2456 = vadd.f32 %v2427, %v2455
      %v2457 = vpop.f32.mrf.mxu0
      %v2458 = vadd.f32 %v2429, %v2457
      %2459 = vdwg.mxu0
      %v2460 = vpack.c.bf16 %v2441, %v2441
      %v2461 = vpack.c.bf16 %v2443, %v2443
      %v2462 = vpack.c.bf16 %v2446, %v2446
      %v2463 = vpack.c.bf16 %v2448, %v2448
      %v2464 = vpack.c.bf16 %v2451, %v2451
      %v2465 = vpack.c.bf16 %v2453, %v2453
      %v2466 = vpack.c.bf16 %v2456, %v2456
      %v2467 = vpack.c.bf16 %v2458, %v2458
      %s2468 = scalar_lea.vmem %s6, 928
      %v2469 = vld [vmem:[%s2468] sm:$0xf]
      %v2470 = vld [vmem:[%s2468 + $0x4] sm:$0xf]
      %v2471 = vld [vmem:[%s2468 + $0x8] sm:$0xf]
      %v2472 = vld [vmem:[%s2468 + $0xc] sm:$0xf]
      %v2473 = vld [vmem:[%s2468 + $0x10] sm:$0xf]
      %v2474 = vld [vmem:[%s2468 + $0x14] sm:$0xf]
      %v2475 = vld [vmem:[%s2468 + $0x18] sm:$0xf]
      %v2476 = vld [vmem:[%s2468 + $0x1c] sm:$0xf]
      %v2477 = vld [vmem:[%s2468 + $0x20] sm:$0xf]
      %v2478 = vld [vmem:[%s2468 + $0x24] sm:$0xf]
      %v2479 = vld [vmem:[%s2468 + $0x28] sm:$0xf]
      %v2480 = vld [vmem:[%s2468 + $0x2c] sm:$0xf]
      %v2481 = vld [vmem:[%s2468 + $0x30] sm:$0xf]
      %v2482 = vld [vmem:[%s2468 + $0x34] sm:$0xf]
      %v2483 = vld [vmem:[%s2468 + $0x38] sm:$0xf]
      %v2484 = vld [vmem:[%s2468 + $0x3c] sm:$0xf]
      %v2485 = vld [vmem:[%s2468 + $0x40] sm:$0xf]
      %v2486 = vld [vmem:[%s2468 + $0x44] sm:$0xf]
      %v2487 = vld [vmem:[%s2468 + $0x48] sm:$0xf]
      %v2488 = vld [vmem:[%s2468 + $0x4c] sm:$0xf]
      %v2489 = vld [vmem:[%s2468 + $0x50] sm:$0xf]
      %v2490 = vld [vmem:[%s2468 + $0x54] sm:$0xf]
      %v2491 = vld [vmem:[%s2468 + $0x58] sm:$0xf]
      %v2492 = vld [vmem:[%s2468 + $0x5c] sm:$0xf]
      %v2493 = vld [vmem:[%s2468 + $0x60] sm:$0xf]
      %v2494 = vld [vmem:[%s2468 + $0x64] sm:$0xf]
      %v2495 = vld [vmem:[%s2468 + $0x68] sm:$0xf]
      %v2496 = vld [vmem:[%s2468 + $0x6c] sm:$0xf]
      %v2497 = vld [vmem:[%s2468 + $0x70] sm:$0x1]
      %v2527 = vunpack.c.l.b16 %v2469
      %v2528 = vunpack.c.l.b16 %v2470
      %v2529 = vunpack.c.l.b16 %v2471
      %v2530 = vunpack.c.l.b16 %v2472
      %v2531 = vunpack.c.l.b16 %v2473
      %v2532 = vunpack.c.l.b16 %v2474
      %v2533 = vunpack.c.l.b16 %v2475
      %v2534 = vunpack.c.l.b16 %v2476
      %v2535 = vunpack.c.l.b16 %v2477
      %v2536 = vunpack.c.l.b16 %v2478
      %v2537 = vunpack.c.l.b16 %v2479
      %v2538 = vunpack.c.l.b16 %v2480
      %v2539 = vunpack.c.l.b16 %v2481
      %v2540 = vunpack.c.l.b16 %v2482
      %v2541 = vunpack.c.l.b16 %v2483
      %v2542 = vunpack.c.l.b16 %v2484
      %v2543 = vunpack.c.l.b16 %v2485
      %v2544 = vunpack.c.l.b16 %v2486
      %v2545 = vunpack.c.l.b16 %v2487
      %v2546 = vunpack.c.l.b16 %v2488
      %v2547 = vunpack.c.l.b16 %v2489
      %v2548 = vunpack.c.l.b16 %v2490
      %v2549 = vunpack.c.l.b16 %v2491
      %v2550 = vunpack.c.l.b16 %v2492
      %v2551 = vunpack.c.l.b16 %v2493
      %v2552 = vunpack.c.l.b16 %v2494
      %v2553 = vunpack.c.l.b16 %v2495
      %v2554 = vunpack.c.l.b16 %v2496
      %v2555 = vunpack.c.l.b16 %v2497
      %v2556 = vpack.c.b16 %v2528, %v2527
      %v2557 = vpack.c.b16 %v2530, %v2529
      %v2558 = vpack.c.b16 %v2532, %v2531
      %v2559 = vpack.c.b16 %v2534, %v2533
      %v2560 = vpack.c.b16 %v2536, %v2535
      %v2561 = vpack.c.b16 %v2538, %v2537
      %v2562 = vpack.c.b16 %v2540, %v2539
      %v2563 = vpack.c.b16 %v2542, %v2541
      %v2564 = vpack.c.b16 %v2544, %v2543
      %v2565 = vpack.c.b16 %v2546, %v2545
      %v2566 = vpack.c.b16 %v2548, %v2547
      %v2567 = vpack.c.b16 %v2550, %v2549
      %v2568 = vpack.c.b16 %v2552, %v2551
      %v2569 = vpack.c.b16 %v2554, %v2553
      %v2570 = vpack.c.b16 %v2555, %v2555
      %v2586 = vand.u32 %v2570, %v1096
      %2588 = vmatpush.bf16.msra.mxu0 %v2563
      %2589 = vmatpush.bf16.msra.mxu0 %v2562
      %2590 = vmatpush.bf16.msra.mxu0 %v2561
      %2591 = vmatpush.bf16.msra.mxu0 %v2560
      %2592 = vmatpush.bf16.msra.mxu0 %v2559
      %2593 = vmatpush.bf16.msra.mxu0 %v2558
      %2594 = vmatpush.bf16.msra.mxu0 %v2557
      %2595 = vmatpush.bf16.msra.mxu0 %v2556
      %2596 = vmatmul.bf16.gmra.mxu0 %v957
      %v2597 = vpop.f32.mrf.mxu0
      %v2598 = vadd.f32 0.0, %v2597
      %v2599 = vpop.f32.mrf.mxu0
      %v2600 = vadd.f32 0.0, %v2599
      %2601 = vmatmul.bf16.gmra.mxu0 %v959
      %v2602 = vpop.f32.mrf.mxu0
      %v2603 = vadd.f32 0.0, %v2602
      %v2604 = vpop.f32.mrf.mxu0
      %v2605 = vadd.f32 0.0, %v2604
      %2606 = vmatmul.bf16.gmra.mxu0 %v961
      %v2607 = vpop.f32.mrf.mxu0
      %v2608 = vadd.f32 0.0, %v2607
      %v2609 = vpop.f32.mrf.mxu0
      %v2610 = vadd.f32 0.0, %v2609
      %2611 = vmatmul.bf16.gmra.mxu0 %v963
      %v2612 = vpop.f32.mrf.mxu0
      %v2613 = vadd.f32 0.0, %v2612
      %v2614 = vpop.f32.mrf.mxu0
      %v2615 = vadd.f32 0.0, %v2614
      %2616 = vdwg.mxu0
      %2617 = vmatpush.bf16.msra.mxu0 0
      %2618 = vmatpush.bf16.msra.mxu0 %v2586
      %2619 = vmatpush.bf16.msra.mxu0 %v2569
      %2620 = vmatpush.bf16.msra.mxu0 %v2568
      %2621 = vmatpush.bf16.msra.mxu0 %v2567
      %2622 = vmatpush.bf16.msra.mxu0 %v2566
      %2623 = vmatpush.bf16.msra.mxu0 %v2565
      %2624 = vmatpush.bf16.msra.mxu0 %v2564
      %2625 = vmatmul.bf16.gmra.mxu0 %v1083
      %v2626 = vpop.f32.mrf.mxu0
      %v2627 = vadd.f32 %v2598, %v2626
      %v2628 = vpop.f32.mrf.mxu0
      %v2629 = vadd.f32 %v2600, %v2628
      %2630 = vmatmul.bf16.gmra.mxu0 %v1086
      %v2631 = vpop.f32.mrf.mxu0
      %v2632 = vadd.f32 %v2603, %v2631
      %v2633 = vpop.f32.mrf.mxu0
      %v2634 = vadd.f32 %v2605, %v2633
      %2635 = vmatmul.bf16.gmra.mxu0 %v1089
      %v2636 = vpop.f32.mrf.mxu0
      %v2637 = vadd.f32 %v2608, %v2636
      %v2638 = vpop.f32.mrf.mxu0
      %v2639 = vadd.f32 %v2610, %v2638
      %2640 = vmatmul.bf16.gmra.mxu0 %v1092
      %v2641 = vpop.f32.mrf.mxu0
      %v2642 = vadd.f32 %v2613, %v2641
      %v2643 = vpop.f32.mrf.mxu0
      %v2644 = vadd.f32 %v2615, %v2643
      %2645 = vdwg.mxu0
      %v2646 = vpack.c.bf16 %v2627, %v2627
      %v2647 = vpack.c.bf16 %v2629, %v2629
      %v2648 = vpack.c.bf16 %v2632, %v2632
      %v2649 = vpack.c.bf16 %v2634, %v2634
      %v2650 = vpack.c.bf16 %v2637, %v2637
      %v2651 = vpack.c.bf16 %v2639, %v2639
      %v2652 = vpack.c.bf16 %v2642, %v2642
      %v2653 = vpack.c.bf16 %v2644, %v2644
      %s2654 = scalar_lea.vmem %s6, 1044
      %v2655 = vld [vmem:[%s2654] sm:$0xf]
      %v2656 = vld [vmem:[%s2654 + $0x4] sm:$0xf]
      %v2657 = vld [vmem:[%s2654 + $0x8] sm:$0xf]
      %v2658 = vld [vmem:[%s2654 + $0xc] sm:$0xf]
      %v2659 = vld [vmem:[%s2654 + $0x10] sm:$0xf]
      %v2660 = vld [vmem:[%s2654 + $0x14] sm:$0xf]
      %v2661 = vld [vmem:[%s2654 + $0x18] sm:$0xf]
      %v2662 = vld [vmem:[%s2654 + $0x1c] sm:$0xf]
      %v2663 = vld [vmem:[%s2654 + $0x20] sm:$0xf]
      %v2664 = vld [vmem:[%s2654 + $0x24] sm:$0xf]
      %v2665 = vld [vmem:[%s2654 + $0x28] sm:$0xf]
      %v2666 = vld [vmem:[%s2654 + $0x2c] sm:$0xf]
      %v2667 = vld [vmem:[%s2654 + $0x30] sm:$0xf]
      %v2668 = vld [vmem:[%s2654 + $0x34] sm:$0xf]
      %v2669 = vld [vmem:[%s2654 + $0x38] sm:$0xf]
      %v2670 = vld [vmem:[%s2654 + $0x3c] sm:$0xf]
      %v2671 = vld [vmem:[%s2654 + $0x40] sm:$0xf]
      %v2672 = vld [vmem:[%s2654 + $0x44] sm:$0xf]
      %v2673 = vld [vmem:[%s2654 + $0x48] sm:$0xf]
      %v2674 = vld [vmem:[%s2654 + $0x4c] sm:$0xf]
      %v2675 = vld [vmem:[%s2654 + $0x50] sm:$0xf]
      %v2676 = vld [vmem:[%s2654 + $0x54] sm:$0xf]
      %v2677 = vld [vmem:[%s2654 + $0x58] sm:$0xf]
      %v2678 = vld [vmem:[%s2654 + $0x5c] sm:$0xf]
      %v2679 = vld [vmem:[%s2654 + $0x60] sm:$0xf]
      %v2680 = vld [vmem:[%s2654 + $0x64] sm:$0xf]
      %v2681 = vld [vmem:[%s2654 + $0x68] sm:$0xf]
      %v2682 = vld [vmem:[%s2654 + $0x6c] sm:$0xf]
      %v2683 = vld [vmem:[%s2654 + $0x70] sm:$0x1]
      %v2713 = vunpack.c.l.b16 %v2655
      %v2714 = vunpack.c.l.b16 %v2656
      %v2715 = vunpack.c.l.b16 %v2657
      %v2716 = vunpack.c.l.b16 %v2658
      %v2717 = vunpack.c.l.b16 %v2659
      %v2718 = vunpack.c.l.b16 %v2660
      %v2719 = vunpack.c.l.b16 %v2661
      %v2720 = vunpack.c.l.b16 %v2662
      %v2721 = vunpack.c.l.b16 %v2663
      %v2722 = vunpack.c.l.b16 %v2664
      %v2723 = vunpack.c.l.b16 %v2665
      %v2724 = vunpack.c.l.b16 %v2666
      %v2725 = vunpack.c.l.b16 %v2667
      %v2726 = vunpack.c.l.b16 %v2668
      %v2727 = vunpack.c.l.b16 %v2669
      %v2728 = vunpack.c.l.b16 %v2670
      %v2729 = vunpack.c.l.b16 %v2671
      %v2730 = vunpack.c.l.b16 %v2672
      %v2731 = vunpack.c.l.b16 %v2673
      %v2732 = vunpack.c.l.b16 %v2674
      %v2733 = vunpack.c.l.b16 %v2675
      %v2734 = vunpack.c.l.b16 %v2676
      %v2735 = vunpack.c.l.b16 %v2677
      %v2736 = vunpack.c.l.b16 %v2678
      %v2737 = vunpack.c.l.b16 %v2679
      %v2738 = vunpack.c.l.b16 %v2680
      %v2739 = vunpack.c.l.b16 %v2681
      %v2740 = vunpack.c.l.b16 %v2682
      %v2741 = vunpack.c.l.b16 %v2683
      %v2742 = vpack.c.b16 %v2714, %v2713
      %v2743 = vpack.c.b16 %v2716, %v2715
      %v2744 = vpack.c.b16 %v2718, %v2717
      %v2745 = vpack.c.b16 %v2720, %v2719
      %v2746 = vpack.c.b16 %v2722, %v2721
      %v2747 = vpack.c.b16 %v2724, %v2723
      %v2748 = vpack.c.b16 %v2726, %v2725
      %v2749 = vpack.c.b16 %v2728, %v2727
      %v2750 = vpack.c.b16 %v2730, %v2729
      %v2751 = vpack.c.b16 %v2732, %v2731
      %v2752 = vpack.c.b16 %v2734, %v2733
      %v2753 = vpack.c.b16 %v2736, %v2735
      %v2754 = vpack.c.b16 %v2738, %v2737
      %v2755 = vpack.c.b16 %v2740, %v2739
      %v2756 = vpack.c.b16 %v2741, %v2741
      %v2772 = vand.u32 %v2756, %v1096
      %2774 = vmatpush.bf16.msra.mxu0 %v2749
      %2775 = vmatpush.bf16.msra.mxu0 %v2748
      %2776 = vmatpush.bf16.msra.mxu0 %v2747
      %2777 = vmatpush.bf16.msra.mxu0 %v2746
      %2778 = vmatpush.bf16.msra.mxu0 %v2745
      %2779 = vmatpush.bf16.msra.mxu0 %v2744
      %2780 = vmatpush.bf16.msra.mxu0 %v2743
      %2781 = vmatpush.bf16.msra.mxu0 %v2742
      %2782 = vmatmul.bf16.gmra.mxu0 %v957
      %v2783 = vpop.f32.mrf.mxu0
      %v2784 = vadd.f32 0.0, %v2783
      %v2785 = vpop.f32.mrf.mxu0
      %v2786 = vadd.f32 0.0, %v2785
      %2787 = vmatmul.bf16.gmra.mxu0 %v959
      %v2788 = vpop.f32.mrf.mxu0
      %v2789 = vadd.f32 0.0, %v2788
      %v2790 = vpop.f32.mrf.mxu0
      %v2791 = vadd.f32 0.0, %v2790
      %2792 = vmatmul.bf16.gmra.mxu0 %v961
      %v2793 = vpop.f32.mrf.mxu0
      %v2794 = vadd.f32 0.0, %v2793
      %v2795 = vpop.f32.mrf.mxu0
      %v2796 = vadd.f32 0.0, %v2795
      %2797 = vmatmul.bf16.gmra.mxu0 %v963
      %v2798 = vpop.f32.mrf.mxu0
      %v2799 = vadd.f32 0.0, %v2798
      %v2800 = vpop.f32.mrf.mxu0
      %v2801 = vadd.f32 0.0, %v2800
      %2802 = vdwg.mxu0
      %2803 = vmatpush.bf16.msra.mxu0 0
      %2804 = vmatpush.bf16.msra.mxu0 %v2772
      %2805 = vmatpush.bf16.msra.mxu0 %v2755
      %2806 = vmatpush.bf16.msra.mxu0 %v2754
      %2807 = vmatpush.bf16.msra.mxu0 %v2753
      %2808 = vmatpush.bf16.msra.mxu0 %v2752
      %2809 = vmatpush.bf16.msra.mxu0 %v2751
      %2810 = vmatpush.bf16.msra.mxu0 %v2750
      %2811 = vmatmul.bf16.gmra.mxu0 %v1083
      %v2812 = vpop.f32.mrf.mxu0
      %v2813 = vadd.f32 %v2784, %v2812
      %v2814 = vpop.f32.mrf.mxu0
      %v2815 = vadd.f32 %v2786, %v2814
      %2816 = vmatmul.bf16.gmra.mxu0 %v1086
      %v2817 = vpop.f32.mrf.mxu0
      %v2818 = vadd.f32 %v2789, %v2817
      %v2819 = vpop.f32.mrf.mxu0
      %v2820 = vadd.f32 %v2791, %v2819
      %2821 = vmatmul.bf16.gmra.mxu0 %v1089
      %v2822 = vpop.f32.mrf.mxu0
      %v2823 = vadd.f32 %v2794, %v2822
      %v2824 = vpop.f32.mrf.mxu0
      %v2825 = vadd.f32 %v2796, %v2824
      %2826 = vmatmul.bf16.gmra.mxu0 %v1092
      %v2827 = vpop.f32.mrf.mxu0
      %v2828 = vadd.f32 %v2799, %v2827
      %v2829 = vpop.f32.mrf.mxu0
      %v2830 = vadd.f32 %v2801, %v2829
      %2831 = vdwg.mxu0
      %v2832 = vpack.c.bf16 %v2813, %v2813
      %v2833 = vpack.c.bf16 %v2815, %v2815
      %v2834 = vpack.c.bf16 %v2818, %v2818
      %v2835 = vpack.c.bf16 %v2820, %v2820
      %v2836 = vpack.c.bf16 %v2823, %v2823
      %v2837 = vpack.c.bf16 %v2825, %v2825
      %v2838 = vpack.c.bf16 %v2828, %v2828
      %v2839 = vpack.c.bf16 %v2830, %v2830
      %s2840 = scalar_lea.vmem %s6, 1160
      %v2841 = vld [vmem:[%s2840] sm:$0xf]
      %v2842 = vld [vmem:[%s2840 + $0x4] sm:$0xf]
      %v2843 = vld [vmem:[%s2840 + $0x8] sm:$0xf]
      %v2844 = vld [vmem:[%s2840 + $0xc] sm:$0xf]
      %v2845 = vld [vmem:[%s2840 + $0x10] sm:$0xf]
      %v2846 = vld [vmem:[%s2840 + $0x14] sm:$0xf]
      %v2847 = vld [vmem:[%s2840 + $0x18] sm:$0xf]
      %v2848 = vld [vmem:[%s2840 + $0x1c] sm:$0xf]
      %v2849 = vld [vmem:[%s2840 + $0x20] sm:$0xf]
      %v2850 = vld [vmem:[%s2840 + $0x24] sm:$0xf]
      %v2851 = vld [vmem:[%s2840 + $0x28] sm:$0xf]
      %v2852 = vld [vmem:[%s2840 + $0x2c] sm:$0xf]
      %v2853 = vld [vmem:[%s2840 + $0x30] sm:$0xf]
      %v2854 = vld [vmem:[%s2840 + $0x34] sm:$0xf]
      %v2855 = vld [vmem:[%s2840 + $0x38] sm:$0xf]
      %v2856 = vld [vmem:[%s2840 + $0x3c] sm:$0xf]
      %v2857 = vld [vmem:[%s2840 + $0x40] sm:$0xf]
      %v2858 = vld [vmem:[%s2840 + $0x44] sm:$0xf]
      %v2859 = vld [vmem:[%s2840 + $0x48] sm:$0xf]
      %v2860 = vld [vmem:[%s2840 + $0x4c] sm:$0xf]
      %v2861 = vld [vmem:[%s2840 + $0x50] sm:$0xf]
      %v2862 = vld [vmem:[%s2840 + $0x54] sm:$0xf]
      %v2863 = vld [vmem:[%s2840 + $0x58] sm:$0xf]
      %v2864 = vld [vmem:[%s2840 + $0x5c] sm:$0xf]
      %v2865 = vld [vmem:[%s2840 + $0x60] sm:$0xf]
      %v2866 = vld [vmem:[%s2840 + $0x64] sm:$0xf]
      %v2867 = vld [vmem:[%s2840 + $0x68] sm:$0xf]
      %v2868 = vld [vmem:[%s2840 + $0x6c] sm:$0xf]
      %v2869 = vld [vmem:[%s2840 + $0x70] sm:$0x1]
      %v2899 = vunpack.c.l.b16 %v2841
      %v2900 = vunpack.c.l.b16 %v2842
      %v2901 = vunpack.c.l.b16 %v2843
      %v2902 = vunpack.c.l.b16 %v2844
      %v2903 = vunpack.c.l.b16 %v2845
      %v2904 = vunpack.c.l.b16 %v2846
      %v2905 = vunpack.c.l.b16 %v2847
      %v2906 = vunpack.c.l.b16 %v2848
      %v2907 = vunpack.c.l.b16 %v2849
      %v2908 = vunpack.c.l.b16 %v2850
      %v2909 = vunpack.c.l.b16 %v2851
      %v2910 = vunpack.c.l.b16 %v2852
      %v2911 = vunpack.c.l.b16 %v2853
      %v2912 = vunpack.c.l.b16 %v2854
      %v2913 = vunpack.c.l.b16 %v2855
      %v2914 = vunpack.c.l.b16 %v2856
      %v2915 = vunpack.c.l.b16 %v2857
      %v2916 = vunpack.c.l.b16 %v2858
      %v2917 = vunpack.c.l.b16 %v2859
      %v2918 = vunpack.c.l.b16 %v2860
      %v2919 = vunpack.c.l.b16 %v2861
      %v2920 = vunpack.c.l.b16 %v2862
      %v2921 = vunpack.c.l.b16 %v2863
      %v2922 = vunpack.c.l.b16 %v2864
      %v2923 = vunpack.c.l.b16 %v2865
      %v2924 = vunpack.c.l.b16 %v2866
      %v2925 = vunpack.c.l.b16 %v2867
      %v2926 = vunpack.c.l.b16 %v2868
      %v2927 = vunpack.c.l.b16 %v2869
      %v2928 = vpack.c.b16 %v2900, %v2899
      %v2929 = vpack.c.b16 %v2902, %v2901
      %v2930 = vpack.c.b16 %v2904, %v2903
      %v2931 = vpack.c.b16 %v2906, %v2905
      %v2932 = vpack.c.b16 %v2908, %v2907
      %v2933 = vpack.c.b16 %v2910, %v2909
      %v2934 = vpack.c.b16 %v2912, %v2911
      %v2935 = vpack.c.b16 %v2914, %v2913
      %v2936 = vpack.c.b16 %v2916, %v2915
      %v2937 = vpack.c.b16 %v2918, %v2917
      %v2938 = vpack.c.b16 %v2920, %v2919
      %v2939 = vpack.c.b16 %v2922, %v2921
      %v2940 = vpack.c.b16 %v2924, %v2923
      %v2941 = vpack.c.b16 %v2926, %v2925
      %v2942 = vpack.c.b16 %v2927, %v2927
      %v2958 = vand.u32 %v2942, %v1096
      %2960 = vmatpush.bf16.msra.mxu0 %v2935
      %2961 = vmatpush.bf16.msra.mxu0 %v2934
      %2962 = vmatpush.bf16.msra.mxu0 %v2933
      %2963 = vmatpush.bf16.msra.mxu0 %v2932
      %2964 = vmatpush.bf16.msra.mxu0 %v2931
      %2965 = vmatpush.bf16.msra.mxu0 %v2930
      %2966 = vmatpush.bf16.msra.mxu0 %v2929
      %2967 = vmatpush.bf16.msra.mxu0 %v2928
      %2968 = vmatmul.bf16.gmra.mxu0 %v957
      %v2969 = vpop.f32.mrf.mxu0
      %v2970 = vadd.f32 0.0, %v2969
      %v2971 = vpop.f32.mrf.mxu0
      %v2972 = vadd.f32 0.0, %v2971
      %2973 = vmatmul.bf16.gmra.mxu0 %v959
      %v2974 = vpop.f32.mrf.mxu0
      %v2975 = vadd.f32 0.0, %v2974
      %v2976 = vpop.f32.mrf.mxu0
      %v2977 = vadd.f32 0.0, %v2976
      %2978 = vmatmul.bf16.gmra.mxu0 %v961
      %v2979 = vpop.f32.mrf.mxu0
      %v2980 = vadd.f32 0.0, %v2979
      %v2981 = vpop.f32.mrf.mxu0
      %v2982 = vadd.f32 0.0, %v2981
      %2983 = vmatmul.bf16.gmra.mxu0 %v963
      %v2984 = vpop.f32.mrf.mxu0
      %v2985 = vadd.f32 0.0, %v2984
      %v2986 = vpop.f32.mrf.mxu0
      %v2987 = vadd.f32 0.0, %v2986
      %2988 = vdwg.mxu0
      %2989 = vmatpush.bf16.msra.mxu0 0
      %2990 = vmatpush.bf16.msra.mxu0 %v2958
      %2991 = vmatpush.bf16.msra.mxu0 %v2941
      %2992 = vmatpush.bf16.msra.mxu0 %v2940
      %2993 = vmatpush.bf16.msra.mxu0 %v2939
      %2994 = vmatpush.bf16.msra.mxu0 %v2938
      %2995 = vmatpush.bf16.msra.mxu0 %v2937
      %2996 = vmatpush.bf16.msra.mxu0 %v2936
      %2997 = vmatmul.bf16.gmra.mxu0 %v1083
      %v2998 = vpop.f32.mrf.mxu0
      %v2999 = vadd.f32 %v2970, %v2998
      %v3000 = vpop.f32.mrf.mxu0
      %v3001 = vadd.f32 %v2972, %v3000
      %3002 = vmatmul.bf16.gmra.mxu0 %v1086
      %v3003 = vpop.f32.mrf.mxu0
      %v3004 = vadd.f32 %v2975, %v3003
      %v3005 = vpop.f32.mrf.mxu0
      %v3006 = vadd.f32 %v2977, %v3005
      %3007 = vmatmul.bf16.gmra.mxu0 %v1089
      %v3008 = vpop.f32.mrf.mxu0
      %v3009 = vadd.f32 %v2980, %v3008
      %v3010 = vpop.f32.mrf.mxu0
      %v3011 = vadd.f32 %v2982, %v3010
      %3012 = vmatmul.bf16.gmra.mxu0 %v1092
      %v3013 = vpop.f32.mrf.mxu0
      %v3014 = vadd.f32 %v2985, %v3013
      %v3015 = vpop.f32.mrf.mxu0
      %v3016 = vadd.f32 %v2987, %v3015
      %3017 = vdwg.mxu0
      %v3018 = vpack.c.bf16 %v2999, %v2999
      %v3019 = vpack.c.bf16 %v3001, %v3001
      %v3020 = vpack.c.bf16 %v3004, %v3004
      %v3021 = vpack.c.bf16 %v3006, %v3006
      %v3022 = vpack.c.bf16 %v3009, %v3009
      %v3023 = vpack.c.bf16 %v3011, %v3011
      %v3024 = vpack.c.bf16 %v3014, %v3014
      %v3025 = vpack.c.bf16 %v3016, %v3016
      %s3026 = scalar_lea.vmem %s6, 1276
      %v3027 = vld [vmem:[%s3026] sm:$0xf]
      %v3028 = vld [vmem:[%s3026 + $0x4] sm:$0xf]
      %v3029 = vld [vmem:[%s3026 + $0x8] sm:$0xf]
      %v3030 = vld [vmem:[%s3026 + $0xc] sm:$0xf]
      %v3031 = vld [vmem:[%s3026 + $0x10] sm:$0xf]
      %v3032 = vld [vmem:[%s3026 + $0x14] sm:$0xf]
      %v3033 = vld [vmem:[%s3026 + $0x18] sm:$0xf]
      %v3034 = vld [vmem:[%s3026 + $0x1c] sm:$0xf]
      %v3035 = vld [vmem:[%s3026 + $0x20] sm:$0xf]
      %v3036 = vld [vmem:[%s3026 + $0x24] sm:$0xf]
      %v3037 = vld [vmem:[%s3026 + $0x28] sm:$0xf]
      %v3038 = vld [vmem:[%s3026 + $0x2c] sm:$0xf]
      %v3039 = vld [vmem:[%s3026 + $0x30] sm:$0xf]
      %v3040 = vld [vmem:[%s3026 + $0x34] sm:$0xf]
      %v3041 = vld [vmem:[%s3026 + $0x38] sm:$0xf]
      %v3042 = vld [vmem:[%s3026 + $0x3c] sm:$0xf]
      %v3043 = vld [vmem:[%s3026 + $0x40] sm:$0xf]
      %v3044 = vld [vmem:[%s3026 + $0x44] sm:$0xf]
      %v3045 = vld [vmem:[%s3026 + $0x48] sm:$0xf]
      %v3046 = vld [vmem:[%s3026 + $0x4c] sm:$0xf]
      %v3047 = vld [vmem:[%s3026 + $0x50] sm:$0xf]
      %v3048 = vld [vmem:[%s3026 + $0x54] sm:$0xf]
      %v3049 = vld [vmem:[%s3026 + $0x58] sm:$0xf]
      %v3050 = vld [vmem:[%s3026 + $0x5c] sm:$0xf]
      %v3051 = vld [vmem:[%s3026 + $0x60] sm:$0xf]
      %v3052 = vld [vmem:[%s3026 + $0x64] sm:$0xf]
      %v3053 = vld [vmem:[%s3026 + $0x68] sm:$0xf]
      %v3054 = vld [vmem:[%s3026 + $0x6c] sm:$0xf]
      %v3055 = vld [vmem:[%s3026 + $0x70] sm:$0x1]
      %v3085 = vunpack.c.l.b16 %v3027
      %v3086 = vunpack.c.l.b16 %v3028
      %v3087 = vunpack.c.l.b16 %v3029
      %v3088 = vunpack.c.l.b16 %v3030
      %v3089 = vunpack.c.l.b16 %v3031
      %v3090 = vunpack.c.l.b16 %v3032
      %v3091 = vunpack.c.l.b16 %v3033
      %v3092 = vunpack.c.l.b16 %v3034
      %v3093 = vunpack.c.l.b16 %v3035
      %v3094 = vunpack.c.l.b16 %v3036
      %v3095 = vunpack.c.l.b16 %v3037
      %v3096 = vunpack.c.l.b16 %v3038
      %v3097 = vunpack.c.l.b16 %v3039
      %v3098 = vunpack.c.l.b16 %v3040
      %v3099 = vunpack.c.l.b16 %v3041
      %v3100 = vunpack.c.l.b16 %v3042
      %v3101 = vunpack.c.l.b16 %v3043
      %v3102 = vunpack.c.l.b16 %v3044
      %v3103 = vunpack.c.l.b16 %v3045
      %v3104 = vunpack.c.l.b16 %v3046
      %v3105 = vunpack.c.l.b16 %v3047
      %v3106 = vunpack.c.l.b16 %v3048
      %v3107 = vunpack.c.l.b16 %v3049
      %v3108 = vunpack.c.l.b16 %v3050
      %v3109 = vunpack.c.l.b16 %v3051
      %v3110 = vunpack.c.l.b16 %v3052
      %v3111 = vunpack.c.l.b16 %v3053
      %v3112 = vunpack.c.l.b16 %v3054
      %v3113 = vunpack.c.l.b16 %v3055
      %v3114 = vpack.c.b16 %v3086, %v3085
      %v3115 = vpack.c.b16 %v3088, %v3087
      %v3116 = vpack.c.b16 %v3090, %v3089
      %v3117 = vpack.c.b16 %v3092, %v3091
      %v3118 = vpack.c.b16 %v3094, %v3093
      %v3119 = vpack.c.b16 %v3096, %v3095
      %v3120 = vpack.c.b16 %v3098, %v3097
      %v3121 = vpack.c.b16 %v3100, %v3099
      %v3122 = vpack.c.b16 %v3102, %v3101
      %v3123 = vpack.c.b16 %v3104, %v3103
      %v3124 = vpack.c.b16 %v3106, %v3105
      %v3125 = vpack.c.b16 %v3108, %v3107
      %v3126 = vpack.c.b16 %v3110, %v3109
      %v3127 = vpack.c.b16 %v3112, %v3111
      %v3128 = vpack.c.b16 %v3113, %v3113
      %v3144 = vand.u32 %v3128, %v1096
      %3146 = vmatpush.bf16.msra.mxu0 %v3121
      %3147 = vmatpush.bf16.msra.mxu0 %v3120
      %3148 = vmatpush.bf16.msra.mxu0 %v3119
      %3149 = vmatpush.bf16.msra.mxu0 %v3118
      %3150 = vmatpush.bf16.msra.mxu0 %v3117
      %3151 = vmatpush.bf16.msra.mxu0 %v3116
      %3152 = vmatpush.bf16.msra.mxu0 %v3115
      %3153 = vmatpush.bf16.msra.mxu0 %v3114
      %3154 = vmatmul.bf16.gmra.mxu0 %v957
      %v3155 = vpop.f32.mrf.mxu0
      %v3156 = vadd.f32 0.0, %v3155
      %v3157 = vpop.f32.mrf.mxu0
      %v3158 = vadd.f32 0.0, %v3157
      %3159 = vmatmul.bf16.gmra.mxu0 %v959
      %v3160 = vpop.f32.mrf.mxu0
      %v3161 = vadd.f32 0.0, %v3160
      %v3162 = vpop.f32.mrf.mxu0
      %v3163 = vadd.f32 0.0, %v3162
      %3164 = vmatmul.bf16.gmra.mxu0 %v961
      %v3165 = vpop.f32.mrf.mxu0
      %v3166 = vadd.f32 0.0, %v3165
      %v3167 = vpop.f32.mrf.mxu0
      %v3168 = vadd.f32 0.0, %v3167
      %3169 = vmatmul.bf16.gmra.mxu0 %v963
      %v3170 = vpop.f32.mrf.mxu0
      %v3171 = vadd.f32 0.0, %v3170
      %v3172 = vpop.f32.mrf.mxu0
      %v3173 = vadd.f32 0.0, %v3172
      %3174 = vdwg.mxu0
      %3175 = vmatpush.bf16.msra.mxu0 0
      %3176 = vmatpush.bf16.msra.mxu0 %v3144
      %3177 = vmatpush.bf16.msra.mxu0 %v3127
      %3178 = vmatpush.bf16.msra.mxu0 %v3126
      %3179 = vmatpush.bf16.msra.mxu0 %v3125
      %3180 = vmatpush.bf16.msra.mxu0 %v3124
      %3181 = vmatpush.bf16.msra.mxu0 %v3123
      %3182 = vmatpush.bf16.msra.mxu0 %v3122
      %3183 = vmatmul.bf16.gmra.mxu0 %v1083
      %v3184 = vpop.f32.mrf.mxu0
      %v3185 = vadd.f32 %v3156, %v3184
      %v3186 = vpop.f32.mrf.mxu0
      %v3187 = vadd.f32 %v3158, %v3186
      %3188 = vmatmul.bf16.gmra.mxu0 %v1086
      %v3189 = vpop.f32.mrf.mxu0
      %v3190 = vadd.f32 %v3161, %v3189
      %v3191 = vpop.f32.mrf.mxu0
      %v3192 = vadd.f32 %v3163, %v3191
      %3193 = vmatmul.bf16.gmra.mxu0 %v1089
      %v3194 = vpop.f32.mrf.mxu0
      %v3195 = vadd.f32 %v3166, %v3194
      %v3196 = vpop.f32.mrf.mxu0
      %v3197 = vadd.f32 %v3168, %v3196
      %3198 = vmatmul.bf16.gmra.mxu0 %v1092
      %v3199 = vpop.f32.mrf.mxu0
      %v3200 = vadd.f32 %v3171, %v3199
      %v3201 = vpop.f32.mrf.mxu0
      %v3202 = vadd.f32 %v3173, %v3201
      %3203 = vdwg.mxu0
      %v3204 = vpack.c.bf16 %v3185, %v3185
      %v3205 = vpack.c.bf16 %v3187, %v3187
      %v3206 = vpack.c.bf16 %v3190, %v3190
      %v3207 = vpack.c.bf16 %v3192, %v3192
      %v3208 = vpack.c.bf16 %v3195, %v3195
      %v3209 = vpack.c.bf16 %v3197, %v3197
      %v3210 = vpack.c.bf16 %v3200, %v3200
      %v3211 = vpack.c.bf16 %v3202, %v3202
      %s3212 = scalar_lea.vmem %s6, 1392
      %v3213 = vld [vmem:[%s3212] sm:$0xf]
      %v3214 = vld [vmem:[%s3212 + $0x4] sm:$0xf]
      %v3215 = vld [vmem:[%s3212 + $0x8] sm:$0xf]
      %v3216 = vld [vmem:[%s3212 + $0xc] sm:$0xf]
      %v3217 = vld [vmem:[%s3212 + $0x10] sm:$0xf]
      %v3218 = vld [vmem:[%s3212 + $0x14] sm:$0xf]
      %v3219 = vld [vmem:[%s3212 + $0x18] sm:$0xf]
      %v3220 = vld [vmem:[%s3212 + $0x1c] sm:$0xf]
      %v3221 = vld [vmem:[%s3212 + $0x20] sm:$0xf]
      %v3222 = vld [vmem:[%s3212 + $0x24] sm:$0xf]
      %v3223 = vld [vmem:[%s3212 + $0x28] sm:$0xf]
      %v3224 = vld [vmem:[%s3212 + $0x2c] sm:$0xf]
      %v3225 = vld [vmem:[%s3212 + $0x30] sm:$0xf]
      %v3226 = vld [vmem:[%s3212 + $0x34] sm:$0xf]
      %v3227 = vld [vmem:[%s3212 + $0x38] sm:$0xf]
      %v3228 = vld [vmem:[%s3212 + $0x3c] sm:$0xf]
      %v3229 = vld [vmem:[%s3212 + $0x40] sm:$0xf]
      %v3230 = vld [vmem:[%s3212 + $0x44] sm:$0xf]
      %v3231 = vld [vmem:[%s3212 + $0x48] sm:$0xf]
      %v3232 = vld [vmem:[%s3212 + $0x4c] sm:$0xf]
      %v3233 = vld [vmem:[%s3212 + $0x50] sm:$0xf]
      %v3234 = vld [vmem:[%s3212 + $0x54] sm:$0xf]
      %v3235 = vld [vmem:[%s3212 + $0x58] sm:$0xf]
      %v3236 = vld [vmem:[%s3212 + $0x5c] sm:$0xf]
      %v3237 = vld [vmem:[%s3212 + $0x60] sm:$0xf]
      %v3238 = vld [vmem:[%s3212 + $0x64] sm:$0xf]
      %v3239 = vld [vmem:[%s3212 + $0x68] sm:$0xf]
      %v3240 = vld [vmem:[%s3212 + $0x6c] sm:$0xf]
      %v3241 = vld [vmem:[%s3212 + $0x70] sm:$0x1]
      %v3271 = vunpack.c.l.b16 %v3213
      %v3272 = vunpack.c.l.b16 %v3214
      %v3273 = vunpack.c.l.b16 %v3215
      %v3274 = vunpack.c.l.b16 %v3216
      %v3275 = vunpack.c.l.b16 %v3217
      %v3276 = vunpack.c.l.b16 %v3218
      %v3277 = vunpack.c.l.b16 %v3219
      %v3278 = vunpack.c.l.b16 %v3220
      %v3279 = vunpack.c.l.b16 %v3221
      %v3280 = vunpack.c.l.b16 %v3222
      %v3281 = vunpack.c.l.b16 %v3223
      %v3282 = vunpack.c.l.b16 %v3224
      %v3283 = vunpack.c.l.b16 %v3225
      %v3284 = vunpack.c.l.b16 %v3226
      %v3285 = vunpack.c.l.b16 %v3227
      %v3286 = vunpack.c.l.b16 %v3228
      %v3287 = vunpack.c.l.b16 %v3229
      %v3288 = vunpack.c.l.b16 %v3230
      %v3289 = vunpack.c.l.b16 %v3231
      %v3290 = vunpack.c.l.b16 %v3232
      %v3291 = vunpack.c.l.b16 %v3233
      %v3292 = vunpack.c.l.b16 %v3234
      %v3293 = vunpack.c.l.b16 %v3235
      %v3294 = vunpack.c.l.b16 %v3236
      %v3295 = vunpack.c.l.b16 %v3237
      %v3296 = vunpack.c.l.b16 %v3238
      %v3297 = vunpack.c.l.b16 %v3239
      %v3298 = vunpack.c.l.b16 %v3240
      %v3299 = vunpack.c.l.b16 %v3241
      %v3300 = vpack.c.b16 %v3272, %v3271
      %v3301 = vpack.c.b16 %v3274, %v3273
      %v3302 = vpack.c.b16 %v3276, %v3275
      %v3303 = vpack.c.b16 %v3278, %v3277
      %v3304 = vpack.c.b16 %v3280, %v3279
      %v3305 = vpack.c.b16 %v3282, %v3281
      %v3306 = vpack.c.b16 %v3284, %v3283
      %v3307 = vpack.c.b16 %v3286, %v3285
      %v3308 = vpack.c.b16 %v3288, %v3287
      %v3309 = vpack.c.b16 %v3290, %v3289
      %v3310 = vpack.c.b16 %v3292, %v3291
      %v3311 = vpack.c.b16 %v3294, %v3293
      %v3312 = vpack.c.b16 %v3296, %v3295
      %v3313 = vpack.c.b16 %v3298, %v3297
      %v3314 = vpack.c.b16 %v3299, %v3299
      %v3330 = vand.u32 %v3314, %v1096
      %3332 = vmatpush.bf16.msra.mxu0 %v3307
      %3333 = vmatpush.bf16.msra.mxu0 %v3306
      %3334 = vmatpush.bf16.msra.mxu0 %v3305
      %3335 = vmatpush.bf16.msra.mxu0 %v3304
      %3336 = vmatpush.bf16.msra.mxu0 %v3303
      %3337 = vmatpush.bf16.msra.mxu0 %v3302
      %3338 = vmatpush.bf16.msra.mxu0 %v3301
      %3339 = vmatpush.bf16.msra.mxu0 %v3300
      %3340 = vmatmul.bf16.gmra.mxu0 %v957
      %v3341 = vpop.f32.mrf.mxu0
      %v3342 = vadd.f32 0.0, %v3341
      %v3343 = vpop.f32.mrf.mxu0
      %v3344 = vadd.f32 0.0, %v3343
      %3345 = vmatmul.bf16.gmra.mxu0 %v959
      %v3346 = vpop.f32.mrf.mxu0
      %v3347 = vadd.f32 0.0, %v3346
      %v3348 = vpop.f32.mrf.mxu0
      %v3349 = vadd.f32 0.0, %v3348
      %3350 = vmatmul.bf16.gmra.mxu0 %v961
      %v3351 = vpop.f32.mrf.mxu0
      %v3352 = vadd.f32 0.0, %v3351
      %v3353 = vpop.f32.mrf.mxu0
      %v3354 = vadd.f32 0.0, %v3353
      %3355 = vmatmul.bf16.gmra.mxu0 %v963
      %v3356 = vpop.f32.mrf.mxu0
      %v3357 = vadd.f32 0.0, %v3356
      %v3358 = vpop.f32.mrf.mxu0
      %v3359 = vadd.f32 0.0, %v3358
      %3360 = vdwg.mxu0
      %3361 = vmatpush.bf16.msra.mxu0 0
      %3362 = vmatpush.bf16.msra.mxu0 %v3330
      %3363 = vmatpush.bf16.msra.mxu0 %v3313
      %3364 = vmatpush.bf16.msra.mxu0 %v3312
      %3365 = vmatpush.bf16.msra.mxu0 %v3311
      %3366 = vmatpush.bf16.msra.mxu0 %v3310
      %3367 = vmatpush.bf16.msra.mxu0 %v3309
      %3368 = vmatpush.bf16.msra.mxu0 %v3308
      %3369 = vmatmul.bf16.gmra.mxu0 %v1083
      %v3370 = vpop.f32.mrf.mxu0
      %v3371 = vadd.f32 %v3342, %v3370
      %v3372 = vpop.f32.mrf.mxu0
      %v3373 = vadd.f32 %v3344, %v3372
      %3374 = vmatmul.bf16.gmra.mxu0 %v1086
      %v3375 = vpop.f32.mrf.mxu0
      %v3376 = vadd.f32 %v3347, %v3375
      %v3377 = vpop.f32.mrf.mxu0
      %v3378 = vadd.f32 %v3349, %v3377
      %3379 = vmatmul.bf16.gmra.mxu0 %v1089
      %v3380 = vpop.f32.mrf.mxu0
      %v3381 = vadd.f32 %v3352, %v3380
      %v3382 = vpop.f32.mrf.mxu0
      %v3383 = vadd.f32 %v3354, %v3382
      %3384 = vmatmul.bf16.gmra.mxu0 %v1092
      %v3385 = vpop.f32.mrf.mxu0
      %v3386 = vadd.f32 %v3357, %v3385
      %v3387 = vpop.f32.mrf.mxu0
      %v3388 = vadd.f32 %v3359, %v3387
      %3389 = vdwg.mxu0
      %v3390 = vpack.c.bf16 %v3371, %v3371
      %v3391 = vpack.c.bf16 %v3373, %v3373
      %v3392 = vpack.c.bf16 %v3376, %v3376
      %v3393 = vpack.c.bf16 %v3378, %v3378
      %v3394 = vpack.c.bf16 %v3381, %v3381
      %v3395 = vpack.c.bf16 %v3383, %v3383
      %v3396 = vpack.c.bf16 %v3386, %v3386
      %v3397 = vpack.c.bf16 %v3388, %v3388
      %s3398 = scalar_lea.vmem %s6, 1508
      %v3399 = vld [vmem:[%s3398] sm:$0xf]
      %v3400 = vld [vmem:[%s3398 + $0x4] sm:$0xf]
      %v3401 = vld [vmem:[%s3398 + $0x8] sm:$0xf]
      %v3402 = vld [vmem:[%s3398 + $0xc] sm:$0xf]
      %v3403 = vld [vmem:[%s3398 + $0x10] sm:$0xf]
      %v3404 = vld [vmem:[%s3398 + $0x14] sm:$0xf]
      %v3405 = vld [vmem:[%s3398 + $0x18] sm:$0xf]
      %v3406 = vld [vmem:[%s3398 + $0x1c] sm:$0xf]
      %v3407 = vld [vmem:[%s3398 + $0x20] sm:$0xf]
      %v3408 = vld [vmem:[%s3398 + $0x24] sm:$0xf]
      %v3409 = vld [vmem:[%s3398 + $0x28] sm:$0xf]
      %v3410 = vld [vmem:[%s3398 + $0x2c] sm:$0xf]
      %v3411 = vld [vmem:[%s3398 + $0x30] sm:$0xf]
      %v3412 = vld [vmem:[%s3398 + $0x34] sm:$0xf]
      %v3413 = vld [vmem:[%s3398 + $0x38] sm:$0xf]
      %v3414 = vld [vmem:[%s3398 + $0x3c] sm:$0xf]
      %v3415 = vld [vmem:[%s3398 + $0x40] sm:$0xf]
      %v3416 = vld [vmem:[%s3398 + $0x44] sm:$0xf]
      %v3417 = vld [vmem:[%s3398 + $0x48] sm:$0xf]
      %v3418 = vld [vmem:[%s3398 + $0x4c] sm:$0xf]
      %v3419 = vld [vmem:[%s3398 + $0x50] sm:$0xf]
      %v3420 = vld [vmem:[%s3398 + $0x54] sm:$0xf]
      %v3421 = vld [vmem:[%s3398 + $0x58] sm:$0xf]
      %v3422 = vld [vmem:[%s3398 + $0x5c] sm:$0xf]
      %v3423 = vld [vmem:[%s3398 + $0x60] sm:$0xf]
      %v3424 = vld [vmem:[%s3398 + $0x64] sm:$0xf]
      %v3425 = vld [vmem:[%s3398 + $0x68] sm:$0xf]
      %v3426 = vld [vmem:[%s3398 + $0x6c] sm:$0xf]
      %v3427 = vld [vmem:[%s3398 + $0x70] sm:$0x1]
      %v3457 = vunpack.c.l.b16 %v3399
      %v3458 = vunpack.c.l.b16 %v3400
      %v3459 = vunpack.c.l.b16 %v3401
      %v3460 = vunpack.c.l.b16 %v3402
      %v3461 = vunpack.c.l.b16 %v3403
      %v3462 = vunpack.c.l.b16 %v3404
      %v3463 = vunpack.c.l.b16 %v3405
      %v3464 = vunpack.c.l.b16 %v3406
      %v3465 = vunpack.c.l.b16 %v3407
      %v3466 = vunpack.c.l.b16 %v3408
      %v3467 = vunpack.c.l.b16 %v3409
      %v3468 = vunpack.c.l.b16 %v3410
      %v3469 = vunpack.c.l.b16 %v3411
      %v3470 = vunpack.c.l.b16 %v3412
      %v3471 = vunpack.c.l.b16 %v3413
      %v3472 = vunpack.c.l.b16 %v3414
      %v3473 = vunpack.c.l.b16 %v3415
      %v3474 = vunpack.c.l.b16 %v3416
      %v3475 = vunpack.c.l.b16 %v3417
      %v3476 = vunpack.c.l.b16 %v3418
      %v3477 = vunpack.c.l.b16 %v3419
      %v3478 = vunpack.c.l.b16 %v3420
      %v3479 = vunpack.c.l.b16 %v3421
      %v3480 = vunpack.c.l.b16 %v3422
      %v3481 = vunpack.c.l.b16 %v3423
      %v3482 = vunpack.c.l.b16 %v3424
      %v3483 = vunpack.c.l.b16 %v3425
      %v3484 = vunpack.c.l.b16 %v3426
      %v3485 = vunpack.c.l.b16 %v3427
      %v3486 = vpack.c.b16 %v3458, %v3457
      %v3487 = vpack.c.b16 %v3460, %v3459
      %v3488 = vpack.c.b16 %v3462, %v3461
      %v3489 = vpack.c.b16 %v3464, %v3463
      %v3490 = vpack.c.b16 %v3466, %v3465
      %v3491 = vpack.c.b16 %v3468, %v3467
      %v3492 = vpack.c.b16 %v3470, %v3469
      %v3493 = vpack.c.b16 %v3472, %v3471
      %v3494 = vpack.c.b16 %v3474, %v3473
      %v3495 = vpack.c.b16 %v3476, %v3475
      %v3496 = vpack.c.b16 %v3478, %v3477
      %v3497 = vpack.c.b16 %v3480, %v3479
      %v3498 = vpack.c.b16 %v3482, %v3481
      %v3499 = vpack.c.b16 %v3484, %v3483
      %v3500 = vpack.c.b16 %v3485, %v3485
      %v3516 = vand.u32 %v3500, %v1096
      %3518 = vmatpush.bf16.msra.mxu0 %v3493
      %3519 = vmatpush.bf16.msra.mxu0 %v3492
      %3520 = vmatpush.bf16.msra.mxu0 %v3491
      %3521 = vmatpush.bf16.msra.mxu0 %v3490
      %3522 = vmatpush.bf16.msra.mxu0 %v3489
      %3523 = vmatpush.bf16.msra.mxu0 %v3488
      %3524 = vmatpush.bf16.msra.mxu0 %v3487
      %3525 = vmatpush.bf16.msra.mxu0 %v3486
      %3526 = vmatmul.bf16.gmra.mxu0 %v957
      %v3527 = vpop.f32.mrf.mxu0
      %v3528 = vadd.f32 0.0, %v3527
      %v3529 = vpop.f32.mrf.mxu0
      %v3530 = vadd.f32 0.0, %v3529
      %3531 = vmatmul.bf16.gmra.mxu0 %v959
      %v3532 = vpop.f32.mrf.mxu0
      %v3533 = vadd.f32 0.0, %v3532
      %v3534 = vpop.f32.mrf.mxu0
      %v3535 = vadd.f32 0.0, %v3534
      %3536 = vmatmul.bf16.gmra.mxu0 %v961
      %v3537 = vpop.f32.mrf.mxu0
      %v3538 = vadd.f32 0.0, %v3537
      %v3539 = vpop.f32.mrf.mxu0
      %v3540 = vadd.f32 0.0, %v3539
      %3541 = vmatmul.bf16.gmra.mxu0 %v963
      %v3542 = vpop.f32.mrf.mxu0
      %v3543 = vadd.f32 0.0, %v3542
      %v3544 = vpop.f32.mrf.mxu0
      %v3545 = vadd.f32 0.0, %v3544
      %3546 = vdwg.mxu0
      %3547 = vmatpush.bf16.msra.mxu0 0
      %3548 = vmatpush.bf16.msra.mxu0 %v3516
      %3549 = vmatpush.bf16.msra.mxu0 %v3499
      %3550 = vmatpush.bf16.msra.mxu0 %v3498
      %3551 = vmatpush.bf16.msra.mxu0 %v3497
      %3552 = vmatpush.bf16.msra.mxu0 %v3496
      %3553 = vmatpush.bf16.msra.mxu0 %v3495
      %3554 = vmatpush.bf16.msra.mxu0 %v3494
      %3555 = vmatmul.bf16.gmra.mxu0 %v1083
      %v3556 = vpop.f32.mrf.mxu0
      %v3557 = vadd.f32 %v3528, %v3556
      %v3558 = vpop.f32.mrf.mxu0
      %v3559 = vadd.f32 %v3530, %v3558
      %3560 = vmatmul.bf16.gmra.mxu0 %v1086
      %v3561 = vpop.f32.mrf.mxu0
      %v3562 = vadd.f32 %v3533, %v3561
      %v3563 = vpop.f32.mrf.mxu0
      %v3564 = vadd.f32 %v3535, %v3563
      %3565 = vmatmul.bf16.gmra.mxu0 %v1089
      %v3566 = vpop.f32.mrf.mxu0
      %v3567 = vadd.f32 %v3538, %v3566
      %v3568 = vpop.f32.mrf.mxu0
      %v3569 = vadd.f32 %v3540, %v3568
      %3570 = vmatmul.bf16.gmra.mxu0 %v1092
      %v3571 = vpop.f32.mrf.mxu0
      %v3572 = vadd.f32 %v3543, %v3571
      %v3573 = vpop.f32.mrf.mxu0
      %v3574 = vadd.f32 %v3545, %v3573
      %3575 = vdwg.mxu0
      %v3576 = vpack.c.bf16 %v3557, %v3557
      %v3577 = vpack.c.bf16 %v3559, %v3559
      %v3578 = vpack.c.bf16 %v3562, %v3562
      %v3579 = vpack.c.bf16 %v3564, %v3564
      %v3580 = vpack.c.bf16 %v3567, %v3567
      %v3581 = vpack.c.bf16 %v3569, %v3569
      %v3582 = vpack.c.bf16 %v3572, %v3572
      %v3583 = vpack.c.bf16 %v3574, %v3574
      %s3584 = scalar_lea.vmem %s6, 1624
      %v3585 = vld [vmem:[%s3584] sm:$0xf]
      %v3586 = vld [vmem:[%s3584 + $0x4] sm:$0xf]
      %v3587 = vld [vmem:[%s3584 + $0x8] sm:$0xf]
      %v3588 = vld [vmem:[%s3584 + $0xc] sm:$0xf]
      %v3589 = vld [vmem:[%s3584 + $0x10] sm:$0xf]
      %v3590 = vld [vmem:[%s3584 + $0x14] sm:$0xf]
      %v3591 = vld [vmem:[%s3584 + $0x18] sm:$0xf]
      %v3592 = vld [vmem:[%s3584 + $0x1c] sm:$0xf]
      %v3593 = vld [vmem:[%s3584 + $0x20] sm:$0xf]
      %v3594 = vld [vmem:[%s3584 + $0x24] sm:$0xf]
      %v3595 = vld [vmem:[%s3584 + $0x28] sm:$0xf]
      %v3596 = vld [vmem:[%s3584 + $0x2c] sm:$0xf]
      %v3597 = vld [vmem:[%s3584 + $0x30] sm:$0xf]
      %v3598 = vld [vmem:[%s3584 + $0x34] sm:$0xf]
      %v3599 = vld [vmem:[%s3584 + $0x38] sm:$0xf]
      %v3600 = vld [vmem:[%s3584 + $0x3c] sm:$0xf]
      %v3601 = vld [vmem:[%s3584 + $0x40] sm:$0xf]
      %v3602 = vld [vmem:[%s3584 + $0x44] sm:$0xf]
      %v3603 = vld [vmem:[%s3584 + $0x48] sm:$0xf]
      %v3604 = vld [vmem:[%s3584 + $0x4c] sm:$0xf]
      %v3605 = vld [vmem:[%s3584 + $0x50] sm:$0xf]
      %v3606 = vld [vmem:[%s3584 + $0x54] sm:$0xf]
      %v3607 = vld [vmem:[%s3584 + $0x58] sm:$0xf]
      %v3608 = vld [vmem:[%s3584 + $0x5c] sm:$0xf]
      %v3609 = vld [vmem:[%s3584 + $0x60] sm:$0xf]
      %v3610 = vld [vmem:[%s3584 + $0x64] sm:$0xf]
      %v3611 = vld [vmem:[%s3584 + $0x68] sm:$0xf]
      %v3612 = vld [vmem:[%s3584 + $0x6c] sm:$0xf]
      %v3613 = vld [vmem:[%s3584 + $0x70] sm:$0x1]
      %v3643 = vunpack.c.l.b16 %v3585
      %v3644 = vunpack.c.l.b16 %v3586
      %v3645 = vunpack.c.l.b16 %v3587
      %v3646 = vunpack.c.l.b16 %v3588
      %v3647 = vunpack.c.l.b16 %v3589
      %v3648 = vunpack.c.l.b16 %v3590
      %v3649 = vunpack.c.l.b16 %v3591
      %v3650 = vunpack.c.l.b16 %v3592
      %v3651 = vunpack.c.l.b16 %v3593
      %v3652 = vunpack.c.l.b16 %v3594
      %v3653 = vunpack.c.l.b16 %v3595
      %v3654 = vunpack.c.l.b16 %v3596
      %v3655 = vunpack.c.l.b16 %v3597
      %v3656 = vunpack.c.l.b16 %v3598
      %v3657 = vunpack.c.l.b16 %v3599
      %v3658 = vunpack.c.l.b16 %v3600
      %v3659 = vunpack.c.l.b16 %v3601
      %v3660 = vunpack.c.l.b16 %v3602
      %v3661 = vunpack.c.l.b16 %v3603
      %v3662 = vunpack.c.l.b16 %v3604
      %v3663 = vunpack.c.l.b16 %v3605
      %v3664 = vunpack.c.l.b16 %v3606
      %v3665 = vunpack.c.l.b16 %v3607
      %v3666 = vunpack.c.l.b16 %v3608
      %v3667 = vunpack.c.l.b16 %v3609
      %v3668 = vunpack.c.l.b16 %v3610
      %v3669 = vunpack.c.l.b16 %v3611
      %v3670 = vunpack.c.l.b16 %v3612
      %v3671 = vunpack.c.l.b16 %v3613
      %v3672 = vpack.c.b16 %v3644, %v3643
      %v3673 = vpack.c.b16 %v3646, %v3645
      %v3674 = vpack.c.b16 %v3648, %v3647
      %v3675 = vpack.c.b16 %v3650, %v3649
      %v3676 = vpack.c.b16 %v3652, %v3651
      %v3677 = vpack.c.b16 %v3654, %v3653
      %v3678 = vpack.c.b16 %v3656, %v3655
      %v3679 = vpack.c.b16 %v3658, %v3657
      %v3680 = vpack.c.b16 %v3660, %v3659
      %v3681 = vpack.c.b16 %v3662, %v3661
      %v3682 = vpack.c.b16 %v3664, %v3663
      %v3683 = vpack.c.b16 %v3666, %v3665
      %v3684 = vpack.c.b16 %v3668, %v3667
      %v3685 = vpack.c.b16 %v3670, %v3669
      %v3686 = vpack.c.b16 %v3671, %v3671
      %v3702 = vand.u32 %v3686, %v1096
      %3704 = vmatpush.bf16.msra.mxu0 %v3679
      %3705 = vmatpush.bf16.msra.mxu0 %v3678
      %3706 = vmatpush.bf16.msra.mxu0 %v3677
      %3707 = vmatpush.bf16.msra.mxu0 %v3676
      %3708 = vmatpush.bf16.msra.mxu0 %v3675
      %3709 = vmatpush.bf16.msra.mxu0 %v3674
      %3710 = vmatpush.bf16.msra.mxu0 %v3673
      %3711 = vmatpush.bf16.msra.mxu0 %v3672
      %3712 = vmatmul.bf16.gmra.mxu0 %v957
      %v3713 = vpop.f32.mrf.mxu0
      %v3714 = vadd.f32 0.0, %v3713
      %v3715 = vpop.f32.mrf.mxu0
      %v3716 = vadd.f32 0.0, %v3715
      %3717 = vmatmul.bf16.gmra.mxu0 %v959
      %v3718 = vpop.f32.mrf.mxu0
      %v3719 = vadd.f32 0.0, %v3718
      %v3720 = vpop.f32.mrf.mxu0
      %v3721 = vadd.f32 0.0, %v3720
      %3722 = vmatmul.bf16.gmra.mxu0 %v961
      %v3723 = vpop.f32.mrf.mxu0
      %v3724 = vadd.f32 0.0, %v3723
      %v3725 = vpop.f32.mrf.mxu0
      %v3726 = vadd.f32 0.0, %v3725
      %3727 = vmatmul.bf16.gmra.mxu0 %v963
      %v3728 = vpop.f32.mrf.mxu0
      %v3729 = vadd.f32 0.0, %v3728
      %v3730 = vpop.f32.mrf.mxu0
      %v3731 = vadd.f32 0.0, %v3730
      %3732 = vdwg.mxu0
      %3733 = vmatpush.bf16.msra.mxu0 0
      %3734 = vmatpush.bf16.msra.mxu0 %v3702
      %3735 = vmatpush.bf16.msra.mxu0 %v3685
      %3736 = vmatpush.bf16.msra.mxu0 %v3684
      %3737 = vmatpush.bf16.msra.mxu0 %v3683
      %3738 = vmatpush.bf16.msra.mxu0 %v3682
      %3739 = vmatpush.bf16.msra.mxu0 %v3681
      %3740 = vmatpush.bf16.msra.mxu0 %v3680
      %3741 = vmatmul.bf16.gmra.mxu0 %v1083
      %v3742 = vpop.f32.mrf.mxu0
      %v3743 = vadd.f32 %v3714, %v3742
      %v3744 = vpop.f32.mrf.mxu0
      %v3745 = vadd.f32 %v3716, %v3744
      %3746 = vmatmul.bf16.gmra.mxu0 %v1086
      %v3747 = vpop.f32.mrf.mxu0
      %v3748 = vadd.f32 %v3719, %v3747
      %v3749 = vpop.f32.mrf.mxu0
      %v3750 = vadd.f32 %v3721, %v3749
      %3751 = vmatmul.bf16.gmra.mxu0 %v1089
      %v3752 = vpop.f32.mrf.mxu0
      %v3753 = vadd.f32 %v3724, %v3752
      %v3754 = vpop.f32.mrf.mxu0
      %v3755 = vadd.f32 %v3726, %v3754
      %3756 = vmatmul.bf16.gmra.mxu0 %v1092
      %v3757 = vpop.f32.mrf.mxu0
      %v3758 = vadd.f32 %v3729, %v3757
      %v3759 = vpop.f32.mrf.mxu0
      %v3760 = vadd.f32 %v3731, %v3759
      %3761 = vdwg.mxu0
      %v3762 = vpack.c.bf16 %v3743, %v3743
      %v3763 = vpack.c.bf16 %v3745, %v3745
      %v3764 = vpack.c.bf16 %v3748, %v3748
      %v3765 = vpack.c.bf16 %v3750, %v3750
      %v3766 = vpack.c.bf16 %v3753, %v3753
      %v3767 = vpack.c.bf16 %v3755, %v3755
      %v3768 = vpack.c.bf16 %v3758, %v3758
      %v3769 = vpack.c.bf16 %v3760, %v3760
      %s3770 = scalar_lea.vmem %s6, 1740
      %v3771 = vld [vmem:[%s3770] sm:$0xf]
      %v3772 = vld [vmem:[%s3770 + $0x4] sm:$0xf]
      %v3773 = vld [vmem:[%s3770 + $0x8] sm:$0xf]
      %v3774 = vld [vmem:[%s3770 + $0xc] sm:$0xf]
      %v3775 = vld [vmem:[%s3770 + $0x10] sm:$0xf]
      %v3776 = vld [vmem:[%s3770 + $0x14] sm:$0xf]
      %v3777 = vld [vmem:[%s3770 + $0x18] sm:$0xf]
      %v3778 = vld [vmem:[%s3770 + $0x1c] sm:$0xf]
      %v3779 = vld [vmem:[%s3770 + $0x20] sm:$0xf]
      %v3780 = vld [vmem:[%s3770 + $0x24] sm:$0xf]
      %v3781 = vld [vmem:[%s3770 + $0x28] sm:$0xf]
      %v3782 = vld [vmem:[%s3770 + $0x2c] sm:$0xf]
      %v3783 = vld [vmem:[%s3770 + $0x30] sm:$0xf]
      %v3784 = vld [vmem:[%s3770 + $0x34] sm:$0xf]
      %v3785 = vld [vmem:[%s3770 + $0x38] sm:$0xf]
      %v3786 = vld [vmem:[%s3770 + $0x3c] sm:$0xf]
      %v3787 = vld [vmem:[%s3770 + $0x40] sm:$0xf]
      %v3788 = vld [vmem:[%s3770 + $0x44] sm:$0xf]
      %v3789 = vld [vmem:[%s3770 + $0x48] sm:$0xf]
      %v3790 = vld [vmem:[%s3770 + $0x4c] sm:$0xf]
      %v3791 = vld [vmem:[%s3770 + $0x50] sm:$0xf]
      %v3792 = vld [vmem:[%s3770 + $0x54] sm:$0xf]
      %v3793 = vld [vmem:[%s3770 + $0x58] sm:$0xf]
      %v3794 = vld [vmem:[%s3770 + $0x5c] sm:$0xf]
      %v3795 = vld [vmem:[%s3770 + $0x60] sm:$0xf]
      %v3796 = vld [vmem:[%s3770 + $0x64] sm:$0xf]
      %v3797 = vld [vmem:[%s3770 + $0x68] sm:$0xf]
      %v3798 = vld [vmem:[%s3770 + $0x6c] sm:$0xf]
      %v3799 = vld [vmem:[%s3770 + $0x70] sm:$0x1]
      %v3829 = vunpack.c.l.b16 %v3771
      %v3830 = vunpack.c.l.b16 %v3772
      %v3831 = vunpack.c.l.b16 %v3773
      %v3832 = vunpack.c.l.b16 %v3774
      %v3833 = vunpack.c.l.b16 %v3775
      %v3834 = vunpack.c.l.b16 %v3776
      %v3835 = vunpack.c.l.b16 %v3777
      %v3836 = vunpack.c.l.b16 %v3778
      %v3837 = vunpack.c.l.b16 %v3779
      %v3838 = vunpack.c.l.b16 %v3780
      %v3839 = vunpack.c.l.b16 %v3781
      %v3840 = vunpack.c.l.b16 %v3782
      %v3841 = vunpack.c.l.b16 %v3783
      %v3842 = vunpack.c.l.b16 %v3784
      %v3843 = vunpack.c.l.b16 %v3785
      %v3844 = vunpack.c.l.b16 %v3786
      %v3845 = vunpack.c.l.b16 %v3787
      %v3846 = vunpack.c.l.b16 %v3788
      %v3847 = vunpack.c.l.b16 %v3789
      %v3848 = vunpack.c.l.b16 %v3790
      %v3849 = vunpack.c.l.b16 %v3791
      %v3850 = vunpack.c.l.b16 %v3792
      %v3851 = vunpack.c.l.b16 %v3793
      %v3852 = vunpack.c.l.b16 %v3794
      %v3853 = vunpack.c.l.b16 %v3795
      %v3854 = vunpack.c.l.b16 %v3796
      %v3855 = vunpack.c.l.b16 %v3797
      %v3856 = vunpack.c.l.b16 %v3798
      %v3857 = vunpack.c.l.b16 %v3799
      %v3858 = vpack.c.b16 %v3830, %v3829
      %v3859 = vpack.c.b16 %v3832, %v3831
      %v3860 = vpack.c.b16 %v3834, %v3833
      %v3861 = vpack.c.b16 %v3836, %v3835
      %v3862 = vpack.c.b16 %v3838, %v3837
      %v3863 = vpack.c.b16 %v3840, %v3839
      %v3864 = vpack.c.b16 %v3842, %v3841
      %v3865 = vpack.c.b16 %v3844, %v3843
      %v3866 = vpack.c.b16 %v3846, %v3845
      %v3867 = vpack.c.b16 %v3848, %v3847
      %v3868 = vpack.c.b16 %v3850, %v3849
      %v3869 = vpack.c.b16 %v3852, %v3851
      %v3870 = vpack.c.b16 %v3854, %v3853
      %v3871 = vpack.c.b16 %v3856, %v3855
      %v3872 = vpack.c.b16 %v3857, %v3857
      %v3888 = vand.u32 %v3872, %v1096
      %3890 = vmatpush.bf16.msra.mxu0 %v3865
      %3891 = vmatpush.bf16.msra.mxu0 %v3864
      %3892 = vmatpush.bf16.msra.mxu0 %v3863
      %3893 = vmatpush.bf16.msra.mxu0 %v3862
      %3894 = vmatpush.bf16.msra.mxu0 %v3861
      %3895 = vmatpush.bf16.msra.mxu0 %v3860
      %3896 = vmatpush.bf16.msra.mxu0 %v3859
      %3897 = vmatpush.bf16.msra.mxu0 %v3858
      %3898 = vmatmul.bf16.gmra.mxu0 %v957
      %v3899 = vpop.f32.mrf.mxu0
      %v3900 = vadd.f32 0.0, %v3899
      %v3901 = vpop.f32.mrf.mxu0
      %v3902 = vadd.f32 0.0, %v3901
      %3903 = vmatmul.bf16.gmra.mxu0 %v959
      %v3904 = vpop.f32.mrf.mxu0
      %v3905 = vadd.f32 0.0, %v3904
      %v3906 = vpop.f32.mrf.mxu0
      %v3907 = vadd.f32 0.0, %v3906
      %3908 = vmatmul.bf16.gmra.mxu0 %v961
      %v3909 = vpop.f32.mrf.mxu0
      %v3910 = vadd.f32 0.0, %v3909
      %v3911 = vpop.f32.mrf.mxu0
      %v3912 = vadd.f32 0.0, %v3911
      %3913 = vmatmul.bf16.gmra.mxu0 %v963
      %v3914 = vpop.f32.mrf.mxu0
      %v3915 = vadd.f32 0.0, %v3914
      %v3916 = vpop.f32.mrf.mxu0
      %v3917 = vadd.f32 0.0, %v3916
      %3918 = vdwg.mxu0
      %3919 = vmatpush.bf16.msra.mxu0 0
      %3920 = vmatpush.bf16.msra.mxu0 %v3888
      %3921 = vmatpush.bf16.msra.mxu0 %v3871
      %3922 = vmatpush.bf16.msra.mxu0 %v3870
      %3923 = vmatpush.bf16.msra.mxu0 %v3869
      %3924 = vmatpush.bf16.msra.mxu0 %v3868
      %3925 = vmatpush.bf16.msra.mxu0 %v3867
      %3926 = vmatpush.bf16.msra.mxu0 %v3866
      %3927 = vmatmul.bf16.gmra.mxu0 %v1083
      %v3928 = vpop.f32.mrf.mxu0
      %v3929 = vadd.f32 %v3900, %v3928
      %v3930 = vpop.f32.mrf.mxu0
      %v3931 = vadd.f32 %v3902, %v3930
      %3932 = vmatmul.bf16.gmra.mxu0 %v1086
      %v3933 = vpop.f32.mrf.mxu0
      %v3934 = vadd.f32 %v3905, %v3933
      %v3935 = vpop.f32.mrf.mxu0
      %v3936 = vadd.f32 %v3907, %v3935
      %3937 = vmatmul.bf16.gmra.mxu0 %v1089
      %v3938 = vpop.f32.mrf.mxu0
      %v3939 = vadd.f32 %v3910, %v3938
      %v3940 = vpop.f32.mrf.mxu0
      %v3941 = vadd.f32 %v3912, %v3940
      %3942 = vmatmul.bf16.gmra.mxu0 %v1092
      %v3943 = vpop.f32.mrf.mxu0
      %v3944 = vadd.f32 %v3915, %v3943
      %v3945 = vpop.f32.mrf.mxu0
      %v3946 = vadd.f32 %v3917, %v3945
      %3947 = vdwg.mxu0
      %v3948 = vpack.c.bf16 %v3929, %v3929
      %v3949 = vpack.c.bf16 %v3931, %v3931
      %v3950 = vpack.c.bf16 %v3934, %v3934
      %v3951 = vpack.c.bf16 %v3936, %v3936
      %v3952 = vpack.c.bf16 %v3939, %v3939
      %v3953 = vpack.c.bf16 %v3941, %v3941
      %v3954 = vpack.c.bf16 %v3944, %v3944
      %v3955 = vpack.c.bf16 %v3946, %v3946
      %v3964 = vunpack.c.l.b16 %v1158
      %v3965 = vunpack.c.l.b16 %v1159
      %v3966 = vunpack.c.l.b16 %v1160
      %v3967 = vunpack.c.l.b16 %v1161
      %v3968 = vunpack.c.l.b16 %v1162
      %v3969 = vunpack.c.l.b16 %v1163
      %v3970 = vunpack.c.l.b16 %v1164
      %v3971 = vunpack.c.l.b16 %v1165
      %v3972 = vpack.c.b16 %v3965, %v3964
      %v3973 = vpack.c.b16 %v3967, %v3966
      %v3974 = vpack.c.b16 %v3969, %v3968
      %v3975 = vpack.c.b16 %v3971, %v3970
      %v3988 = vunpack.c.l.b16 %v1344
      %v3989 = vunpack.c.l.b16 %v1345
      %v3990 = vunpack.c.l.b16 %v1346
      %v3991 = vunpack.c.l.b16 %v1347
      %v3992 = vunpack.c.l.b16 %v1348
      %v3993 = vunpack.c.l.b16 %v1349
      %v3994 = vunpack.c.l.b16 %v1350
      %v3995 = vunpack.c.l.b16 %v1351
      %v3996 = vpack.c.b16 %v3989, %v3988
      %v3997 = vpack.c.b16 %v3991, %v3990
      %v3998 = vpack.c.b16 %v3993, %v3992
      %v3999 = vpack.c.b16 %v3995, %v3994
      %v4012 = vunpack.c.l.b16 %v1530
      %v4013 = vunpack.c.l.b16 %v1531
      %v4014 = vunpack.c.l.b16 %v1532
      %v4015 = vunpack.c.l.b16 %v1533
      %v4016 = vunpack.c.l.b16 %v1534
      %v4017 = vunpack.c.l.b16 %v1535
      %v4018 = vunpack.c.l.b16 %v1536
      %v4019 = vunpack.c.l.b16 %v1537
      %v4020 = vpack.c.b16 %v4013, %v4012
      %v4021 = vpack.c.b16 %v4015, %v4014
      %v4022 = vpack.c.b16 %v4017, %v4016
      %v4023 = vpack.c.b16 %v4019, %v4018
      %v4036 = vunpack.c.l.b16 %v1716
      %v4037 = vunpack.c.l.b16 %v1717
      %v4038 = vunpack.c.l.b16 %v1718
      %v4039 = vunpack.c.l.b16 %v1719
      %v4040 = vunpack.c.l.b16 %v1720
      %v4041 = vunpack.c.l.b16 %v1721
      %v4042 = vunpack.c.l.b16 %v1722
      %v4043 = vunpack.c.l.b16 %v1723
      %v4044 = vpack.c.b16 %v4037, %v4036
      %v4045 = vpack.c.b16 %v4039, %v4038
      %v4046 = vpack.c.b16 %v4041, %v4040
      %v4047 = vpack.c.b16 %v4043, %v4042
      %v4060 = vunpack.c.l.b16 %v1902
      %v4061 = vunpack.c.l.b16 %v1903
      %v4062 = vunpack.c.l.b16 %v1904
      %v4063 = vunpack.c.l.b16 %v1905
      %v4064 = vunpack.c.l.b16 %v1906
      %v4065 = vunpack.c.l.b16 %v1907
      %v4066 = vunpack.c.l.b16 %v1908
      %v4067 = vunpack.c.l.b16 %v1909
      %v4068 = vpack.c.b16 %v4061, %v4060
      %v4069 = vpack.c.b16 %v4063, %v4062
      %v4070 = vpack.c.b16 %v4065, %v4064
      %v4071 = vpack.c.b16 %v4067, %v4066
      %v4084 = vunpack.c.l.b16 %v2088
      %v4085 = vunpack.c.l.b16 %v2089
      %v4086 = vunpack.c.l.b16 %v2090
      %v4087 = vunpack.c.l.b16 %v2091
      %v4088 = vunpack.c.l.b16 %v2092
      %v4089 = vunpack.c.l.b16 %v2093
      %v4090 = vunpack.c.l.b16 %v2094
      %v4091 = vunpack.c.l.b16 %v2095
      %v4092 = vpack.c.b16 %v4085, %v4084
      %v4093 = vpack.c.b16 %v4087, %v4086
      %v4094 = vpack.c.b16 %v4089, %v4088
      %v4095 = vpack.c.b16 %v4091, %v4090
      %v4108 = vunpack.c.l.b16 %v2274
      %v4109 = vunpack.c.l.b16 %v2275
      %v4110 = vunpack.c.l.b16 %v2276
      %v4111 = vunpack.c.l.b16 %v2277
      %v4112 = vunpack.c.l.b16 %v2278
      %v4113 = vunpack.c.l.b16 %v2279
      %v4114 = vunpack.c.l.b16 %v2280
      %v4115 = vunpack.c.l.b16 %v2281
      %v4116 = vpack.c.b16 %v4109, %v4108
      %v4117 = vpack.c.b16 %v4111, %v4110
      %v4118 = vpack.c.b16 %v4113, %v4112
      %v4119 = vpack.c.b16 %v4115, %v4114
      %v4132 = vunpack.c.l.b16 %v2460
      %v4133 = vunpack.c.l.b16 %v2461
      %v4134 = vunpack.c.l.b16 %v2462
      %v4135 = vunpack.c.l.b16 %v2463
      %v4136 = vunpack.c.l.b16 %v2464
      %v4137 = vunpack.c.l.b16 %v2465
      %v4138 = vunpack.c.l.b16 %v2466
      %v4139 = vunpack.c.l.b16 %v2467
      %v4140 = vpack.c.b16 %v4133, %v4132
      %v4141 = vpack.c.b16 %v4135, %v4134
      %v4142 = vpack.c.b16 %v4137, %v4136
      %v4143 = vpack.c.b16 %v4139, %v4138
      %v4156 = vunpack.c.l.b16 %v2646
      %v4157 = vunpack.c.l.b16 %v2647
      %v4158 = vunpack.c.l.b16 %v2648
      %v4159 = vunpack.c.l.b16 %v2649
      %v4160 = vunpack.c.l.b16 %v2650
      %v4161 = vunpack.c.l.b16 %v2651
      %v4162 = vunpack.c.l.b16 %v2652
      %v4163 = vunpack.c.l.b16 %v2653
      %v4164 = vpack.c.b16 %v4157, %v4156
      %v4165 = vpack.c.b16 %v4159, %v4158
      %v4166 = vpack.c.b16 %v4161, %v4160
      %v4167 = vpack.c.b16 %v4163, %v4162
      %v4180 = vunpack.c.l.b16 %v2832
      %v4181 = vunpack.c.l.b16 %v2833
      %v4182 = vunpack.c.l.b16 %v2834
      %v4183 = vunpack.c.l.b16 %v2835
      %v4184 = vunpack.c.l.b16 %v2836
      %v4185 = vunpack.c.l.b16 %v2837
      %v4186 = vunpack.c.l.b16 %v2838
      %v4187 = vunpack.c.l.b16 %v2839
      %v4188 = vpack.c.b16 %v4181, %v4180
      %v4189 = vpack.c.b16 %v4183, %v4182
      %v4190 = vpack.c.b16 %v4185, %v4184
      %v4191 = vpack.c.b16 %v4187, %v4186
      %v4204 = vunpack.c.l.b16 %v3018
      %v4205 = vunpack.c.l.b16 %v3019
      %v4206 = vunpack.c.l.b16 %v3020
      %v4207 = vunpack.c.l.b16 %v3021
      %v4208 = vunpack.c.l.b16 %v3022
      %v4209 = vunpack.c.l.b16 %v3023
      %v4210 = vunpack.c.l.b16 %v3024
      %v4211 = vunpack.c.l.b16 %v3025
      %v4212 = vpack.c.b16 %v4205, %v4204
      %v4213 = vpack.c.b16 %v4207, %v4206
      %v4214 = vpack.c.b16 %v4209, %v4208
      %v4215 = vpack.c.b16 %v4211, %v4210
      %v4228 = vunpack.c.l.b16 %v3204
      %v4229 = vunpack.c.l.b16 %v3205
      %v4230 = vunpack.c.l.b16 %v3206
      %v4231 = vunpack.c.l.b16 %v3207
      %v4232 = vunpack.c.l.b16 %v3208
      %v4233 = vunpack.c.l.b16 %v3209
      %v4234 = vunpack.c.l.b16 %v3210
      %v4235 = vunpack.c.l.b16 %v3211
      %v4236 = vpack.c.b16 %v4229, %v4228
      %v4237 = vpack.c.b16 %v4231, %v4230
      %v4238 = vpack.c.b16 %v4233, %v4232
      %v4239 = vpack.c.b16 %v4235, %v4234
      %v4252 = vunpack.c.l.b16 %v3390
      %v4253 = vunpack.c.l.b16 %v3391
      %v4254 = vunpack.c.l.b16 %v3392
      %v4255 = vunpack.c.l.b16 %v3393
      %v4256 = vunpack.c.l.b16 %v3394
      %v4257 = vunpack.c.l.b16 %v3395
      %v4258 = vunpack.c.l.b16 %v3396
      %v4259 = vunpack.c.l.b16 %v3397
      %v4260 = vpack.c.b16 %v4253, %v4252
      %v4261 = vpack.c.b16 %v4255, %v4254
      %v4262 = vpack.c.b16 %v4257, %v4256
      %v4263 = vpack.c.b16 %v4259, %v4258
      %v4276 = vunpack.c.l.b16 %v3576
      %v4277 = vunpack.c.l.b16 %v3577
      %v4278 = vunpack.c.l.b16 %v3578
      %v4279 = vunpack.c.l.b16 %v3579
      %v4280 = vunpack.c.l.b16 %v3580
      %v4281 = vunpack.c.l.b16 %v3581
      %v4282 = vunpack.c.l.b16 %v3582
      %v4283 = vunpack.c.l.b16 %v3583
      %v4284 = vpack.c.b16 %v4277, %v4276
      %v4285 = vpack.c.b16 %v4279, %v4278
      %v4286 = vpack.c.b16 %v4281, %v4280
      %v4287 = vpack.c.b16 %v4283, %v4282
      %v4300 = vunpack.c.l.b16 %v3762
      %v4301 = vunpack.c.l.b16 %v3763
      %v4302 = vunpack.c.l.b16 %v3764
      %v4303 = vunpack.c.l.b16 %v3765
      %v4304 = vunpack.c.l.b16 %v3766
      %v4305 = vunpack.c.l.b16 %v3767
      %v4306 = vunpack.c.l.b16 %v3768
      %v4307 = vunpack.c.l.b16 %v3769
      %v4308 = vpack.c.b16 %v4301, %v4300
      %v4309 = vpack.c.b16 %v4303, %v4302
      %v4310 = vpack.c.b16 %v4305, %v4304
      %v4311 = vpack.c.b16 %v4307, %v4306
      %v4324 = vunpack.c.l.b16 %v3948
      %v4325 = vunpack.c.l.b16 %v3949
      %v4326 = vunpack.c.l.b16 %v3950
      %v4327 = vunpack.c.l.b16 %v3951
      %v4328 = vunpack.c.l.b16 %v3952
      %v4329 = vunpack.c.l.b16 %v3953
      %v4330 = vunpack.c.l.b16 %v3954
      %v4331 = vunpack.c.l.b16 %v3955
      %v4332 = vpack.c.b16 %v4325, %v4324
      %v4333 = vpack.c.b16 %v4327, %v4326
      %v4334 = vpack.c.b16 %v4329, %v4328
      %v4335 = vpack.c.b16 %v4331, %v4330
      %v4340 = vld [vmem:[%s4] sm:$0xff]
      %v4341 = vld [vmem:[%s4 + $0x8] sm:$0xff]
      %v4342 = vld [vmem:[%s4 + $0x10] sm:$0xff]
      %v4343 = vld [vmem:[%s4 + $0x18] sm:$0xff]
      %v4344 = vld [vmem:[%s4 + $0x20] sm:$0xff]
      %v4345 = vld [vmem:[%s4 + $0x28] sm:$0xff]
      %v4346 = vld [vmem:[%s4 + $0x30] sm:$0xff]
      %v4347 = vld [vmem:[%s4 + $0x38] sm:$0xff]
      %v4348 = vld [vmem:[%s4 + $0x40] sm:$0xff]
      %v4349 = vld [vmem:[%s4 + $0x48] sm:$0xff]
      %v4350 = vld [vmem:[%s4 + $0x50] sm:$0xff]
      %v4351 = vld [vmem:[%s4 + $0x58] sm:$0xff]
      %v4352 = vld [vmem:[%s4 + $0x60] sm:$0xff]
      %v4353 = vld [vmem:[%s4 + $0x68] sm:$0xff]
      %v4354 = vld [vmem:[%s4 + $0x70] sm:$0xff]
      %v4355 = vld [vmem:[%s4 + $0x78] sm:$0xff]
      %v4356 = vld [vmem:[%s4 + $0x80] sm:$0xff]
      %v4357 = vld [vmem:[%s4 + $0x88] sm:$0xff]
      %v4358 = vld [vmem:[%s4 + $0x90] sm:$0xff]
      %v4359 = vld [vmem:[%s4 + $0x98] sm:$0xff]
      %v4360 = vld [vmem:[%s4 + $0xa0] sm:$0xff]
      %v4361 = vld [vmem:[%s4 + $0xa8] sm:$0xff]
      %v4362 = vld [vmem:[%s4 + $0xb0] sm:$0xff]
      %v4363 = vld [vmem:[%s4 + $0xb8] sm:$0xff]
      %v4364 = vld [vmem:[%s4 + $0xc0] sm:$0xff]
      %v4365 = vld [vmem:[%s4 + $0xc8] sm:$0xff]
      %v4366 = vld [vmem:[%s4 + $0xd0] sm:$0xff]
      %v4367 = vld [vmem:[%s4 + $0xd8] sm:$0xff]
      %v4368 = vld [vmem:[%s4 + $0xe0] sm:$0xff]
      %v4369 = vld [vmem:[%s4 + $0xe8] sm:$0xff]
      %v4370 = vld [vmem:[%s4 + $0xf0] sm:$0xff]
      %v4371 = vld [vmem:[%s4 + $0xf8] sm:$0xff]
      %v4372 = vld [vmem:[%s5] sm:$0xff]
      %v4373 = vld [vmem:[%s5 + $0x8] sm:$0xff]
      %v4374 = vld [vmem:[%s5 + $0x10] sm:$0xff]
      %v4375 = vld [vmem:[%s5 + $0x18] sm:$0xff]
      %v4376 = vld [vmem:[%s5 + $0x20] sm:$0xff]
      %v4377 = vld [vmem:[%s5 + $0x28] sm:$0xff]
      %v4378 = vld [vmem:[%s5 + $0x30] sm:$0xff]
      %v4379 = vld [vmem:[%s5 + $0x38] sm:$0xff]
      %4381 = vset.pattern.permute.xlu0 0
      %4382 = vperm.xlu0 %4381, %v4372
      %v4383 = vpop.permute.xlu0 %4382
      %4386 = vset.pattern.permute.xlu0 0
      %4387 = vperm.xlu0 %4386, %v4373
      %v4388 = vpop.permute.xlu0 %4387
      %4391 = vset.pattern.permute.xlu0 0
      %4392 = vperm.xlu0 %4391, %v4374
      %v4393 = vpop.permute.xlu0 %4392
      %4396 = vset.pattern.permute.xlu0 0
      %4397 = vperm.xlu0 %4396, %v4375
      %v4398 = vpop.permute.xlu0 %4397
      %4401 = vset.pattern.permute.xlu0 0
      %4402 = vperm.xlu0 %4401, %v4376
      %v4403 = vpop.permute.xlu0 %4402
      %4406 = vset.pattern.permute.xlu0 0
      %4407 = vperm.xlu0 %4406, %v4377
      %v4408 = vpop.permute.xlu0 %4407
      %4411 = vset.pattern.permute.xlu0 0
      %4412 = vperm.xlu0 %4411, %v4378
      %v4413 = vpop.permute.xlu0 %4412
      %4416 = vset.pattern.permute.xlu0 0
      %4417 = vperm.xlu0 %4416, %v4379
      %v4418 = vpop.permute.xlu0 %4417
      %v4452 = vunpack.c.l.b16 %v4340
      %v4453 = vunpack.c.h.b16 %v4340
      %v4454 = vunpack.c.l.b16 %v4341
      %v4455 = vunpack.c.h.b16 %v4341
      %v4456 = vunpack.c.l.b16 %v4342
      %v4457 = vunpack.c.h.b16 %v4342
      %v4458 = vunpack.c.l.b16 %v4343
      %v4459 = vunpack.c.h.b16 %v4343
      %v4460 = vunpack.c.l.b16 %v4344
      %v4461 = vunpack.c.h.b16 %v4344
      %v4462 = vunpack.c.l.b16 %v4345
      %v4463 = vunpack.c.h.b16 %v4345
      %v4464 = vunpack.c.l.b16 %v4346
      %v4465 = vunpack.c.h.b16 %v4346
      %v4466 = vunpack.c.l.b16 %v4347
      %v4467 = vunpack.c.h.b16 %v4347
      %v4468 = vunpack.c.l.b16 %v4348
      %v4469 = vunpack.c.h.b16 %v4348
      %v4470 = vunpack.c.l.b16 %v4349
      %v4471 = vunpack.c.h.b16 %v4349
      %v4472 = vunpack.c.l.b16 %v4350
      %v4473 = vunpack.c.h.b16 %v4350
      %v4474 = vunpack.c.l.b16 %v4351
      %v4475 = vunpack.c.h.b16 %v4351
      %v4476 = vunpack.c.l.b16 %v4352
      %v4477 = vunpack.c.h.b16 %v4352
      %v4478 = vunpack.c.l.b16 %v4353
      %v4479 = vunpack.c.h.b16 %v4353
      %v4480 = vunpack.c.l.b16 %v4354
      %v4481 = vunpack.c.h.b16 %v4354
      %v4482 = vunpack.c.l.b16 %v4355
      %v4483 = vunpack.c.h.b16 %v4355
      %v4484 = vunpack.c.l.b16 %v4356
      %v4485 = vunpack.c.h.b16 %v4356
      %v4486 = vunpack.c.l.b16 %v4357
      %v4487 = vunpack.c.h.b16 %v4357
      %v4488 = vunpack.c.l.b16 %v4358
      %v4489 = vunpack.c.h.b16 %v4358
      %v4490 = vunpack.c.l.b16 %v4359
      %v4491 = vunpack.c.h.b16 %v4359
      %v4492 = vunpack.c.l.b16 %v4360
      %v4493 = vunpack.c.h.b16 %v4360
      %v4494 = vunpack.c.l.b16 %v4361
      %v4495 = vunpack.c.h.b16 %v4361
      %v4496 = vunpack.c.l.b16 %v4362
      %v4497 = vunpack.c.h.b16 %v4362
      %v4498 = vunpack.c.l.b16 %v4363
      %v4499 = vunpack.c.h.b16 %v4363
      %v4500 = vunpack.c.l.b16 %v4364
      %v4501 = vunpack.c.h.b16 %v4364
      %v4502 = vunpack.c.l.b16 %v4365
      %v4503 = vunpack.c.h.b16 %v4365
      %v4504 = vunpack.c.l.b16 %v4366
      %v4505 = vunpack.c.h.b16 %v4366
      %v4506 = vunpack.c.l.b16 %v4367
      %v4507 = vunpack.c.h.b16 %v4367
      %v4508 = vunpack.c.l.b16 %v4368
      %v4509 = vunpack.c.h.b16 %v4368
      %v4510 = vunpack.c.l.b16 %v4369
      %v4511 = vunpack.c.h.b16 %v4369
      %v4512 = vunpack.c.l.b16 %v4370
      %v4513 = vunpack.c.h.b16 %v4370
      %v4514 = vunpack.c.l.b16 %v4371
      %v4515 = vunpack.c.h.b16 %v4371
      %v4516 = vpack.c.b16 %v4460, %v4452
      %v4517 = vpack.c.b16 %v4461, %v4453
      %v4518 = vpack.c.b16 %v4462, %v4454
      %v4519 = vpack.c.b16 %v4463, %v4455
      %v4520 = vpack.c.b16 %v4464, %v4456
      %v4521 = vpack.c.b16 %v4465, %v4457
      %v4522 = vpack.c.b16 %v4466, %v4458
      %v4523 = vpack.c.b16 %v4467, %v4459
      %v4524 = vpack.c.b16 %v4476, %v4468
      %v4525 = vpack.c.b16 %v4477, %v4469
      %v4526 = vpack.c.b16 %v4478, %v4470
      %v4527 = vpack.c.b16 %v4479, %v4471
      %v4528 = vpack.c.b16 %v4480, %v4472
      %v4529 = vpack.c.b16 %v4481, %v4473
      %v4530 = vpack.c.b16 %v4482, %v4474
      %v4531 = vpack.c.b16 %v4483, %v4475
      %v4532 = vpack.c.b16 %v4492, %v4484
      %v4533 = vpack.c.b16 %v4493, %v4485
      %v4534 = vpack.c.b16 %v4494, %v4486
      %v4535 = vpack.c.b16 %v4495, %v4487
      %v4536 = vpack.c.b16 %v4496, %v4488
      %v4537 = vpack.c.b16 %v4497, %v4489
      %v4538 = vpack.c.b16 %v4498, %v4490
      %v4539 = vpack.c.b16 %v4499, %v4491
      %v4540 = vpack.c.b16 %v4508, %v4500
      %v4541 = vpack.c.b16 %v4509, %v4501
      %v4542 = vpack.c.b16 %v4510, %v4502
      %v4543 = vpack.c.b16 %v4511, %v4503
      %v4544 = vpack.c.b16 %v4512, %v4504
      %v4545 = vpack.c.b16 %v4513, %v4505
      %v4546 = vpack.c.b16 %v4514, %v4506
      %v4547 = vpack.c.b16 %v4515, %v4507
      %4580 = vmatpush.bf16.msra.mxu0 %v3999
      %4581 = vmatpush.bf16.msra.mxu0 %v3998
      %4582 = vmatpush.bf16.msra.mxu0 %v3997
      %4583 = vmatpush.bf16.msra.mxu0 %v3996
      %4584 = vmatpush.bf16.msra.mxu0 %v3975
      %4585 = vmatpush.bf16.msra.mxu0 %v3974
      %4586 = vmatpush.bf16.msra.mxu0 %v3973
      %4587 = vmatpush.bf16.msra.mxu0 %v3972
      %4588 = vmatmul.bf16.gmra.mxu0 %v4516
      %v4589 = vpop.f32.mrf.mxu0
      %v4590 = vadd.f32 %v4383, %v4589
      %v4591 = vpop.f32.mrf.mxu0
      %v4592 = vadd.f32 %v4388, %v4591
      %4593 = vmatmul.bf16.gmra.mxu0 %v4524
      %v4594 = vpop.f32.mrf.mxu0
      %v4595 = vadd.f32 %v4393, %v4594
      %v4596 = vpop.f32.mrf.mxu0
      %v4597 = vadd.f32 %v4398, %v4596
      %4598 = vmatmul.bf16.gmra.mxu0 %v4532
      %v4599 = vpop.f32.mrf.mxu0
      %v4600 = vadd.f32 %v4403, %v4599
      %v4601 = vpop.f32.mrf.mxu0
      %v4602 = vadd.f32 %v4408, %v4601
      %4603 = vmatmul.bf16.gmra.mxu0 %v4540
      %v4604 = vpop.f32.mrf.mxu0
      %v4605 = vadd.f32 %v4413, %v4604
      %v4606 = vpop.f32.mrf.mxu0
      %v4607 = vadd.f32 %v4418, %v4606
      %4608 = vdwg.mxu0
      %4609 = vmatpush.bf16.msra.mxu0 %v4047
      %4610 = vmatpush.bf16.msra.mxu0 %v4046
      %4611 = vmatpush.bf16.msra.mxu0 %v4045
      %4612 = vmatpush.bf16.msra.mxu0 %v4044
      %4613 = vmatpush.bf16.msra.mxu0 %v4023
      %4614 = vmatpush.bf16.msra.mxu0 %v4022
      %4615 = vmatpush.bf16.msra.mxu0 %v4021
      %4616 = vmatpush.bf16.msra.mxu0 %v4020
      %4617 = vmatmul.bf16.gmra.mxu0 %v4517
      %v4618 = vpop.f32.mrf.mxu0
      %v4619 = vadd.f32 %v4590, %v4618
      %v4620 = vpop.f32.mrf.mxu0
      %v4621 = vadd.f32 %v4592, %v4620
      %4622 = vmatmul.bf16.gmra.mxu0 %v4525
      %v4623 = vpop.f32.mrf.mxu0
      %v4624 = vadd.f32 %v4595, %v4623
      %v4625 = vpop.f32.mrf.mxu0
      %v4626 = vadd.f32 %v4597, %v4625
      %4627 = vmatmul.bf16.gmra.mxu0 %v4533
      %v4628 = vpop.f32.mrf.mxu0
      %v4629 = vadd.f32 %v4600, %v4628
      %v4630 = vpop.f32.mrf.mxu0
      %v4631 = vadd.f32 %v4602, %v4630
      %4632 = vmatmul.bf16.gmra.mxu0 %v4541
      %v4633 = vpop.f32.mrf.mxu0
      %v4634 = vadd.f32 %v4605, %v4633
      %v4635 = vpop.f32.mrf.mxu0
      %v4636 = vadd.f32 %v4607, %v4635
      %4637 = vdwg.mxu0
      %4638 = vmatpush.bf16.msra.mxu0 %v4095
      %4639 = vmatpush.bf16.msra.mxu0 %v4094
      %4640 = vmatpush.bf16.msra.mxu0 %v4093
      %4641 = vmatpush.bf16.msra.mxu0 %v4092
      %4642 = vmatpush.bf16.msra.mxu0 %v4071
      %4643 = vmatpush.bf16.msra.mxu0 %v4070
      %4644 = vmatpush.bf16.msra.mxu0 %v4069
      %4645 = vmatpush.bf16.msra.mxu0 %v4068
      %4646 = vmatmul.bf16.gmra.mxu0 %v4518
      %v4647 = vpop.f32.mrf.mxu0
      %v4648 = vadd.f32 %v4619, %v4647
      %v4649 = vpop.f32.mrf.mxu0
      %v4650 = vadd.f32 %v4621, %v4649
      %4651 = vmatmul.bf16.gmra.mxu0 %v4526
      %v4652 = vpop.f32.mrf.mxu0
      %v4653 = vadd.f32 %v4624, %v4652
      %v4654 = vpop.f32.mrf.mxu0
      %v4655 = vadd.f32 %v4626, %v4654
      %4656 = vmatmul.bf16.gmra.mxu0 %v4534
      %v4657 = vpop.f32.mrf.mxu0
      %v4658 = vadd.f32 %v4629, %v4657
      %v4659 = vpop.f32.mrf.mxu0
      %v4660 = vadd.f32 %v4631, %v4659
      %4661 = vmatmul.bf16.gmra.mxu0 %v4542
      %v4662 = vpop.f32.mrf.mxu0
      %v4663 = vadd.f32 %v4634, %v4662
      %v4664 = vpop.f32.mrf.mxu0
      %v4665 = vadd.f32 %v4636, %v4664
      %4666 = vdwg.mxu0
      %4667 = vmatpush.bf16.msra.mxu0 %v4143
      %4668 = vmatpush.bf16.msra.mxu0 %v4142
      %4669 = vmatpush.bf16.msra.mxu0 %v4141
      %4670 = vmatpush.bf16.msra.mxu0 %v4140
      %4671 = vmatpush.bf16.msra.mxu0 %v4119
      %4672 = vmatpush.bf16.msra.mxu0 %v4118
      %4673 = vmatpush.bf16.msra.mxu0 %v4117
      %4674 = vmatpush.bf16.msra.mxu0 %v4116
      %4675 = vmatmul.bf16.gmra.mxu0 %v4519
      %v4676 = vpop.f32.mrf.mxu0
      %v4677 = vadd.f32 %v4648, %v4676
      %v4678 = vpop.f32.mrf.mxu0
      %v4679 = vadd.f32 %v4650, %v4678
      %4680 = vmatmul.bf16.gmra.mxu0 %v4527
      %v4681 = vpop.f32.mrf.mxu0
      %v4682 = vadd.f32 %v4653, %v4681
      %v4683 = vpop.f32.mrf.mxu0
      %v4684 = vadd.f32 %v4655, %v4683
      %4685 = vmatmul.bf16.gmra.mxu0 %v4535
      %v4686 = vpop.f32.mrf.mxu0
      %v4687 = vadd.f32 %v4658, %v4686
      %v4688 = vpop.f32.mrf.mxu0
      %v4689 = vadd.f32 %v4660, %v4688
      %4690 = vmatmul.bf16.gmra.mxu0 %v4543
      %v4691 = vpop.f32.mrf.mxu0
      %v4692 = vadd.f32 %v4663, %v4691
      %v4693 = vpop.f32.mrf.mxu0
      %v4694 = vadd.f32 %v4665, %v4693
      %4695 = vdwg.mxu0
      %4696 = vmatpush.bf16.msra.mxu0 %v4191
      %4697 = vmatpush.bf16.msra.mxu0 %v4190
      %4698 = vmatpush.bf16.msra.mxu0 %v4189
      %4699 = vmatpush.bf16.msra.mxu0 %v4188
      %4700 = vmatpush.bf16.msra.mxu0 %v4167
      %4701 = vmatpush.bf16.msra.mxu0 %v4166
      %4702 = vmatpush.bf16.msra.mxu0 %v4165
      %4703 = vmatpush.bf16.msra.mxu0 %v4164
      %4704 = vmatmul.bf16.gmra.mxu0 %v4520
      %v4705 = vpop.f32.mrf.mxu0
      %v4706 = vadd.f32 %v4677, %v4705
      %v4707 = vpop.f32.mrf.mxu0
      %v4708 = vadd.f32 %v4679, %v4707
      %4709 = vmatmul.bf16.gmra.mxu0 %v4528
      %v4710 = vpop.f32.mrf.mxu0
      %v4711 = vadd.f32 %v4682, %v4710
      %v4712 = vpop.f32.mrf.mxu0
      %v4713 = vadd.f32 %v4684, %v4712
      %4714 = vmatmul.bf16.gmra.mxu0 %v4536
      %v4715 = vpop.f32.mrf.mxu0
      %v4716 = vadd.f32 %v4687, %v4715
      %v4717 = vpop.f32.mrf.mxu0
      %v4718 = vadd.f32 %v4689, %v4717
      %4719 = vmatmul.bf16.gmra.mxu0 %v4544
      %v4720 = vpop.f32.mrf.mxu0
      %v4721 = vadd.f32 %v4692, %v4720
      %v4722 = vpop.f32.mrf.mxu0
      %v4723 = vadd.f32 %v4694, %v4722
      %4724 = vdwg.mxu0
      %4725 = vmatpush.bf16.msra.mxu0 %v4239
      %4726 = vmatpush.bf16.msra.mxu0 %v4238
      %4727 = vmatpush.bf16.msra.mxu0 %v4237
      %4728 = vmatpush.bf16.msra.mxu0 %v4236
      %4729 = vmatpush.bf16.msra.mxu0 %v4215
      %4730 = vmatpush.bf16.msra.mxu0 %v4214
      %4731 = vmatpush.bf16.msra.mxu0 %v4213
      %4732 = vmatpush.bf16.msra.mxu0 %v4212
      %4733 = vmatmul.bf16.gmra.mxu0 %v4521
      %v4734 = vpop.f32.mrf.mxu0
      %v4735 = vadd.f32 %v4706, %v4734
      %v4736 = vpop.f32.mrf.mxu0
      %v4737 = vadd.f32 %v4708, %v4736
      %4738 = vmatmul.bf16.gmra.mxu0 %v4529
      %v4739 = vpop.f32.mrf.mxu0
      %v4740 = vadd.f32 %v4711, %v4739
      %v4741 = vpop.f32.mrf.mxu0
      %v4742 = vadd.f32 %v4713, %v4741
      %4743 = vmatmul.bf16.gmra.mxu0 %v4537
      %v4744 = vpop.f32.mrf.mxu0
      %v4745 = vadd.f32 %v4716, %v4744
      %v4746 = vpop.f32.mrf.mxu0
      %v4747 = vadd.f32 %v4718, %v4746
      %4748 = vmatmul.bf16.gmra.mxu0 %v4545
      %v4749 = vpop.f32.mrf.mxu0
      %v4750 = vadd.f32 %v4721, %v4749
      %v4751 = vpop.f32.mrf.mxu0
      %v4752 = vadd.f32 %v4723, %v4751
      %4753 = vdwg.mxu0
      %4754 = vmatpush.bf16.msra.mxu0 %v4287
      %4755 = vmatpush.bf16.msra.mxu0 %v4286
      %4756 = vmatpush.bf16.msra.mxu0 %v4285
      %4757 = vmatpush.bf16.msra.mxu0 %v4284
      %4758 = vmatpush.bf16.msra.mxu0 %v4263
      %4759 = vmatpush.bf16.msra.mxu0 %v4262
      %4760 = vmatpush.bf16.msra.mxu0 %v4261
      %4761 = vmatpush.bf16.msra.mxu0 %v4260
      %4762 = vmatmul.bf16.gmra.mxu0 %v4522
      %v4763 = vpop.f32.mrf.mxu0
      %v4764 = vadd.f32 %v4735, %v4763
      %v4765 = vpop.f32.mrf.mxu0
      %v4766 = vadd.f32 %v4737, %v4765
      %4767 = vmatmul.bf16.gmra.mxu0 %v4530
      %v4768 = vpop.f32.mrf.mxu0
      %v4769 = vadd.f32 %v4740, %v4768
      %v4770 = vpop.f32.mrf.mxu0
      %v4771 = vadd.f32 %v4742, %v4770
      %4772 = vmatmul.bf16.gmra.mxu0 %v4538
      %v4773 = vpop.f32.mrf.mxu0
      %v4774 = vadd.f32 %v4745, %v4773
      %v4775 = vpop.f32.mrf.mxu0
      %v4776 = vadd.f32 %v4747, %v4775
      %4777 = vmatmul.bf16.gmra.mxu0 %v4546
      %v4778 = vpop.f32.mrf.mxu0
      %v4779 = vadd.f32 %v4750, %v4778
      %v4780 = vpop.f32.mrf.mxu0
      %v4781 = vadd.f32 %v4752, %v4780
      %4782 = vdwg.mxu0
      %4783 = vmatpush.bf16.msra.mxu0 %v4335
      %4784 = vmatpush.bf16.msra.mxu0 %v4334
      %4785 = vmatpush.bf16.msra.mxu0 %v4333
      %4786 = vmatpush.bf16.msra.mxu0 %v4332
      %4787 = vmatpush.bf16.msra.mxu0 %v4311
      %4788 = vmatpush.bf16.msra.mxu0 %v4310
      %4789 = vmatpush.bf16.msra.mxu0 %v4309
      %4790 = vmatpush.bf16.msra.mxu0 %v4308
      %4791 = vmatmul.bf16.gmra.mxu0 %v4523
      %v4792 = vpop.f32.mrf.mxu0
      %v4793 = vadd.f32 %v4764, %v4792
      %v4794 = vpop.f32.mrf.mxu0
      %v4795 = vadd.f32 %v4766, %v4794
      %4796 = vmatmul.bf16.gmra.mxu0 %v4531
      %v4797 = vpop.f32.mrf.mxu0
      %v4798 = vadd.f32 %v4769, %v4797
      %v4799 = vpop.f32.mrf.mxu0
      %v4800 = vadd.f32 %v4771, %v4799
      %4801 = vmatmul.bf16.gmra.mxu0 %v4539
      %v4802 = vpop.f32.mrf.mxu0
      %v4803 = vadd.f32 %v4774, %v4802
      %v4804 = vpop.f32.mrf.mxu0
      %v4805 = vadd.f32 %v4776, %v4804
      %4806 = vmatmul.bf16.gmra.mxu0 %v4547
      %v4807 = vpop.f32.mrf.mxu0
      %v4808 = vadd.f32 %v4779, %v4807
      %v4809 = vpop.f32.mrf.mxu0
      %v4810 = vadd.f32 %v4781, %v4809
      %4811 = vdwg.mxu0
      %vm4812 = vcmp.ge.f32.partialorder %v4793, 0.0
      %vm4813 = vcmp.ge.f32.partialorder %v4795, 0.0
      %vm4814 = vcmp.ge.f32.partialorder %v4798, 0.0
      %vm4815 = vcmp.ge.f32.partialorder %v4800, 0.0
      %vm4816 = vcmp.ge.f32.partialorder %v4803, 0.0
      %vm4817 = vcmp.ge.f32.partialorder %v4805, 0.0
      %vm4818 = vcmp.ge.f32.partialorder %v4808, 0.0
      %vm4819 = vcmp.ge.f32.partialorder %v4810, 0.0
      %v4820 = vmul.f32 %v4793, 0.01
      %v4821 = vmul.f32 %v4795, 0.01
      %v4822 = vmul.f32 %v4798, 0.01
      %v4823 = vmul.f32 %v4800, 0.01
      %v4824 = vmul.f32 %v4803, 0.01
      %v4825 = vmul.f32 %v4805, 0.01
      %v4826 = vmul.f32 %v4808, 0.01
      %v4827 = vmul.f32 %v4810, 0.01
      %v4828 = vsel %vm4812, %v4793, %v4820
      %v4829 = vsel %vm4813, %v4795, %v4821
      %v4830 = vsel %vm4814, %v4798, %v4822
      %v4831 = vsel %vm4815, %v4800, %v4823
      %v4832 = vsel %vm4816, %v4803, %v4824
      %v4833 = vsel %vm4817, %v4805, %v4825
      %v4834 = vsel %vm4818, %v4808, %v4826
      %v4835 = vsel %vm4819, %v4810, %v4827
      %v4836 = vpack.c.bf16 %v4829, %v4828
      %v4837 = vpack.c.bf16 %v4831, %v4830
      %v4838 = vpack.c.bf16 %v4833, %v4832
      %v4839 = vpack.c.bf16 %v4835, %v4834
      %v4840 = vld [vmem:[%s9] sm:$0xf]
      %v4841 = vld [vmem:[%s9 + $0x4] sm:$0xf]
      %v4842 = vld [vmem:[%s9 + $0x8] sm:$0xf]
      %v4843 = vld [vmem:[%s9 + $0xc] sm:$0xf]
      %v4844 = vld [vmem:[%s9 + $0x10] sm:$0x3]
      %v4850 = vunpack.c.l.b16 %v4840
      %v4851 = vunpack.c.l.b16 %v4841
      %v4852 = vunpack.c.l.b16 %v4842
      %v4853 = vunpack.c.l.b16 %v4843
      %v4854 = vunpack.c.l.b16 %v4844
      %v4855 = vpack.c.b16 %v4851, %v4850
      %v4856 = vpack.c.b16 %v4853, %v4852
      %v4857 = vpack.c.b16 %v4854, %v4854
      %vm4860 = vcmask 293888
      %v4862 = vsel %vm4860, %v4836, 0
      %v4865 = vsel %vm4860, %v4837, 0
      %v4868 = vsel %vm4860, %v4838, 0
      %v4871 = vsel %vm4860, %v4839, 0
      %vm4873 = vcmask 1041408
      %v4875 = vsel %vm4873, %v4857, 0
      %4877 = vmatpush.bf16.msra.mxu0 0
      %4878 = vmatpush.bf16.msra.mxu0 0
      %4879 = vmatpush.bf16.msra.mxu0 0
      %4880 = vmatpush.bf16.msra.mxu0 0
      %4881 = vmatpush.bf16.msra.mxu0 0
      %4882 = vmatpush.bf16.msra.mxu0 %v4875
      %4883 = vmatpush.bf16.msra.mxu0 %v4856
      %4884 = vmatpush.bf16.msra.mxu0 %v4855
      %4885 = vmatmul.bf16.gmra.mxu0 %v4862
      %v4886 = vpop.f32.mrf.mxu0
      %v4887 = vadd.f32 0.0, %v4886
      %v4888 = vpop.f32.mrf.mxu0
      %v4889 = vadd.f32 0.0, %v4888
      %4890 = vmatmul.bf16.gmra.mxu0 %v4865
      %v4891 = vpop.f32.mrf.mxu0
      %v4892 = vadd.f32 0.0, %v4891
      %v4893 = vpop.f32.mrf.mxu0
      %v4894 = vadd.f32 0.0, %v4893
      %4895 = vmatmul.bf16.gmra.mxu0 %v4868
      %v4896 = vpop.f32.mrf.mxu0
      %v4897 = vadd.f32 0.0, %v4896
      %v4898 = vpop.f32.mrf.mxu0
      %v4899 = vadd.f32 0.0, %v4898
      %4900 = vmatmul.bf16.gmra.mxu0 %v4871
      %v4901 = vpop.f32.mrf.mxu0
      %v4902 = vadd.f32 0.0, %v4901
      %v4903 = vpop.f32.mrf.mxu0
      %v4904 = vadd.f32 0.0, %v4903
      %4905 = vdwg.mxu0
      %v4906 = vpack.c.bf16 %v4887, %v4887
      %v4907 = vpack.c.bf16 %v4889, %v4889
      %v4908 = vpack.c.bf16 %v4892, %v4892
      %v4909 = vpack.c.bf16 %v4894, %v4894
      %v4910 = vpack.c.bf16 %v4897, %v4897
      %v4911 = vpack.c.bf16 %v4899, %v4899
      %v4912 = vpack.c.bf16 %v4902, %v4902
      %v4913 = vpack.c.bf16 %v4904, %v4904
      %s4914 = scalar_lea.vmem %s9, 20
      %v4915 = vld [vmem:[%s4914] sm:$0xf]
      %v4916 = vld [vmem:[%s4914 + $0x4] sm:$0xf]
      %v4917 = vld [vmem:[%s4914 + $0x8] sm:$0xf]
      %v4918 = vld [vmem:[%s4914 + $0xc] sm:$0xf]
      %v4919 = vld [vmem:[%s4914 + $0x10] sm:$0x3]
      %v4925 = vunpack.c.l.b16 %v4915
      %v4926 = vunpack.c.l.b16 %v4916
      %v4927 = vunpack.c.l.b16 %v4917
      %v4928 = vunpack.c.l.b16 %v4918
      %v4929 = vunpack.c.l.b16 %v4919
      %v4930 = vpack.c.b16 %v4926, %v4925
      %v4931 = vpack.c.b16 %v4928, %v4927
      %v4932 = vpack.c.b16 %v4929, %v4929
      %v4936 = vsel %vm4873, %v4932, 0
      %4938 = vmatpush.bf16.msra.mxu0 0
      %4939 = vmatpush.bf16.msra.mxu0 0
      %4940 = vmatpush.bf16.msra.mxu0 0
      %4941 = vmatpush.bf16.msra.mxu0 0
      %4942 = vmatpush.bf16.msra.mxu0 0
      %4943 = vmatpush.bf16.msra.mxu0 %v4936
      %4944 = vmatpush.bf16.msra.mxu0 %v4931
      %4945 = vmatpush.bf16.msra.mxu0 %v4930
      %4946 = vmatmul.bf16.gmra.mxu0 %v4862
      %v4947 = vpop.f32.mrf.mxu0
      %v4948 = vadd.f32 0.0, %v4947
      %v4949 = vpop.f32.mrf.mxu0
      %v4950 = vadd.f32 0.0, %v4949
      %4951 = vmatmul.bf16.gmra.mxu0 %v4865
      %v4952 = vpop.f32.mrf.mxu0
      %v4953 = vadd.f32 0.0, %v4952
      %v4954 = vpop.f32.mrf.mxu0
      %v4955 = vadd.f32 0.0, %v4954
      %4956 = vmatmul.bf16.gmra.mxu0 %v4868
      %v4957 = vpop.f32.mrf.mxu0
      %v4958 = vadd.f32 0.0, %v4957
      %v4959 = vpop.f32.mrf.mxu0
      %v4960 = vadd.f32 0.0, %v4959
      %4961 = vmatmul.bf16.gmra.mxu0 %v4871
      %v4962 = vpop.f32.mrf.mxu0
      %v4963 = vadd.f32 0.0, %v4962
      %v4964 = vpop.f32.mrf.mxu0
      %v4965 = vadd.f32 0.0, %v4964
      %4966 = vdwg.mxu0
      %v4967 = vpack.c.bf16 %v4948, %v4948
      %v4968 = vpack.c.bf16 %v4950, %v4950
      %v4969 = vpack.c.bf16 %v4953, %v4953
      %v4970 = vpack.c.bf16 %v4955, %v4955
      %v4971 = vpack.c.bf16 %v4958, %v4958
      %v4972 = vpack.c.bf16 %v4960, %v4960
      %v4973 = vpack.c.bf16 %v4963, %v4963
      %v4974 = vpack.c.bf16 %v4965, %v4965
      %s4975 = scalar_lea.vmem %s9, 40
      %v4976 = vld [vmem:[%s4975] sm:$0xf]
      %v4977 = vld [vmem:[%s4975 + $0x4] sm:$0xf]
      %v4978 = vld [vmem:[%s4975 + $0x8] sm:$0xf]
      %v4979 = vld [vmem:[%s4975 + $0xc] sm:$0xf]
      %v4980 = vld [vmem:[%s4975 + $0x10] sm:$0x3]
      %v4986 = vunpack.c.l.b16 %v4976
      %v4987 = vunpack.c.l.b16 %v4977
      %v4988 = vunpack.c.l.b16 %v4978
      %v4989 = vunpack.c.l.b16 %v4979
      %v4990 = vunpack.c.l.b16 %v4980
      %v4991 = vpack.c.b16 %v4987, %v4986
      %v4992 = vpack.c.b16 %v4989, %v4988
      %v4993 = vpack.c.b16 %v4990, %v4990
      %v4997 = vsel %vm4873, %v4993, 0
      %4999 = vmatpush.bf16.msra.mxu0 0
      %5000 = vmatpush.bf16.msra.mxu0 0
      %5001 = vmatpush.bf16.msra.mxu0 0
      %5002 = vmatpush.bf16.msra.mxu0 0
      %5003 = vmatpush.bf16.msra.mxu0 0
      %5004 = vmatpush.bf16.msra.mxu0 %v4997
      %5005 = vmatpush.bf16.msra.mxu0 %v4992
      %5006 = vmatpush.bf16.msra.mxu0 %v4991
      %5007 = vmatmul.bf16.gmra.mxu0 %v4862
      %v5008 = vpop.f32.mrf.mxu0
      %v5009 = vadd.f32 0.0, %v5008
      %v5010 = vpop.f32.mrf.mxu0
      %v5011 = vadd.f32 0.0, %v5010
      %5012 = vmatmul.bf16.gmra.mxu0 %v4865
      %v5013 = vpop.f32.mrf.mxu0
      %v5014 = vadd.f32 0.0, %v5013
      %v5015 = vpop.f32.mrf.mxu0
      %v5016 = vadd.f32 0.0, %v5015
      %5017 = vmatmul.bf16.gmra.mxu0 %v4868
      %v5018 = vpop.f32.mrf.mxu0
      %v5019 = vadd.f32 0.0, %v5018
      %v5020 = vpop.f32.mrf.mxu0
      %v5021 = vadd.f32 0.0, %v5020
      %5022 = vmatmul.bf16.gmra.mxu0 %v4871
      %v5023 = vpop.f32.mrf.mxu0
      %v5024 = vadd.f32 0.0, %v5023
      %v5025 = vpop.f32.mrf.mxu0
      %v5026 = vadd.f32 0.0, %v5025
      %5027 = vdwg.mxu0
      %v5028 = vpack.c.bf16 %v5009, %v5009
      %v5029 = vpack.c.bf16 %v5011, %v5011
      %v5030 = vpack.c.bf16 %v5014, %v5014
      %v5031 = vpack.c.bf16 %v5016, %v5016
      %v5032 = vpack.c.bf16 %v5019, %v5019
      %v5033 = vpack.c.bf16 %v5021, %v5021
      %v5034 = vpack.c.bf16 %v5024, %v5024
      %v5035 = vpack.c.bf16 %v5026, %v5026
      %s5036 = scalar_lea.vmem %s9, 60
      %v5037 = vld [vmem:[%s5036] sm:$0xf]
      %v5038 = vld [vmem:[%s5036 + $0x4] sm:$0xf]
      %v5039 = vld [vmem:[%s5036 + $0x8] sm:$0xf]
      %v5040 = vld [vmem:[%s5036 + $0xc] sm:$0xf]
      %v5041 = vld [vmem:[%s5036 + $0x10] sm:$0x3]
      %v5047 = vunpack.c.l.b16 %v5037
      %v5048 = vunpack.c.l.b16 %v5038
      %v5049 = vunpack.c.l.b16 %v5039
      %v5050 = vunpack.c.l.b16 %v5040
      %v5051 = vunpack.c.l.b16 %v5041
      %v5052 = vpack.c.b16 %v5048, %v5047
      %v5053 = vpack.c.b16 %v5050, %v5049
      %v5054 = vpack.c.b16 %v5051, %v5051
      %v5058 = vsel %vm4873, %v5054, 0
      %5060 = vmatpush.bf16.msra.mxu0 0
      %5061 = vmatpush.bf16.msra.mxu0 0
      %5062 = vmatpush.bf16.msra.mxu0 0
      %5063 = vmatpush.bf16.msra.mxu0 0
      %5064 = vmatpush.bf16.msra.mxu0 0
      %5065 = vmatpush.bf16.msra.mxu0 %v5058
      %5066 = vmatpush.bf16.msra.mxu0 %v5053
      %5067 = vmatpush.bf16.msra.mxu0 %v5052
      %5068 = vmatmul.bf16.gmra.mxu0 %v4862
      %v5069 = vpop.f32.mrf.mxu0
      %v5070 = vadd.f32 0.0, %v5069
      %v5071 = vpop.f32.mrf.mxu0
      %v5072 = vadd.f32 0.0, %v5071
      %5073 = vmatmul.bf16.gmra.mxu0 %v4865
      %v5074 = vpop.f32.mrf.mxu0
      %v5075 = vadd.f32 0.0, %v5074
      %v5076 = vpop.f32.mrf.mxu0
      %v5077 = vadd.f32 0.0, %v5076
      %5078 = vmatmul.bf16.gmra.mxu0 %v4868
      %v5079 = vpop.f32.mrf.mxu0
      %v5080 = vadd.f32 0.0, %v5079
      %v5081 = vpop.f32.mrf.mxu0
      %v5082 = vadd.f32 0.0, %v5081
      %5083 = vmatmul.bf16.gmra.mxu0 %v4871
      %v5084 = vpop.f32.mrf.mxu0
      %v5085 = vadd.f32 0.0, %v5084
      %v5086 = vpop.f32.mrf.mxu0
      %v5087 = vadd.f32 0.0, %v5086
      %5088 = vdwg.mxu0
      %v5089 = vpack.c.bf16 %v5070, %v5070
      %v5090 = vpack.c.bf16 %v5072, %v5072
      %v5091 = vpack.c.bf16 %v5075, %v5075
      %v5092 = vpack.c.bf16 %v5077, %v5077
      %v5093 = vpack.c.bf16 %v5080, %v5080
      %v5094 = vpack.c.bf16 %v5082, %v5082
      %v5095 = vpack.c.bf16 %v5085, %v5085
      %v5096 = vpack.c.bf16 %v5087, %v5087
      %s5097 = scalar_lea.vmem %s9, 80
      %v5098 = vld [vmem:[%s5097] sm:$0xf]
      %v5099 = vld [vmem:[%s5097 + $0x4] sm:$0xf]
      %v5100 = vld [vmem:[%s5097 + $0x8] sm:$0xf]
      %v5101 = vld [vmem:[%s5097 + $0xc] sm:$0xf]
      %v5102 = vld [vmem:[%s5097 + $0x10] sm:$0x3]
      %v5108 = vunpack.c.l.b16 %v5098
      %v5109 = vunpack.c.l.b16 %v5099
      %v5110 = vunpack.c.l.b16 %v5100
      %v5111 = vunpack.c.l.b16 %v5101
      %v5112 = vunpack.c.l.b16 %v5102
      %v5113 = vpack.c.b16 %v5109, %v5108
      %v5114 = vpack.c.b16 %v5111, %v5110
      %v5115 = vpack.c.b16 %v5112, %v5112
      %v5119 = vsel %vm4873, %v5115, 0
      %5121 = vmatpush.bf16.msra.mxu0 0
      %5122 = vmatpush.bf16.msra.mxu0 0
      %5123 = vmatpush.bf16.msra.mxu0 0
      %5124 = vmatpush.bf16.msra.mxu0 0
      %5125 = vmatpush.bf16.msra.mxu0 0
      %5126 = vmatpush.bf16.msra.mxu0 %v5119
      %5127 = vmatpush.bf16.msra.mxu0 %v5114
      %5128 = vmatpush.bf16.msra.mxu0 %v5113
      %5129 = vmatmul.bf16.gmra.mxu0 %v4862
      %v5130 = vpop.f32.mrf.mxu0
      %v5131 = vadd.f32 0.0, %v5130
      %v5132 = vpop.f32.mrf.mxu0
      %v5133 = vadd.f32 0.0, %v5132
      %5134 = vmatmul.bf16.gmra.mxu0 %v4865
      %v5135 = vpop.f32.mrf.mxu0
      %v5136 = vadd.f32 0.0, %v5135
      %v5137 = vpop.f32.mrf.mxu0
      %v5138 = vadd.f32 0.0, %v5137
      %5139 = vmatmul.bf16.gmra.mxu0 %v4868
      %v5140 = vpop.f32.mrf.mxu0
      %v5141 = vadd.f32 0.0, %v5140
      %v5142 = vpop.f32.mrf.mxu0
      %v5143 = vadd.f32 0.0, %v5142
      %5144 = vmatmul.bf16.gmra.mxu0 %v4871
      %v5145 = vpop.f32.mrf.mxu0
      %v5146 = vadd.f32 0.0, %v5145
      %v5147 = vpop.f32.mrf.mxu0
      %v5148 = vadd.f32 0.0, %v5147
      %5149 = vdwg.mxu0
      %v5150 = vpack.c.bf16 %v5131, %v5131
      %v5151 = vpack.c.bf16 %v5133, %v5133
      %v5152 = vpack.c.bf16 %v5136, %v5136
      %v5153 = vpack.c.bf16 %v5138, %v5138
      %v5154 = vpack.c.bf16 %v5141, %v5141
      %v5155 = vpack.c.bf16 %v5143, %v5143
      %v5156 = vpack.c.bf16 %v5146, %v5146
      %v5157 = vpack.c.bf16 %v5148, %v5148
      %s5158 = scalar_lea.vmem %s9, 100
      %v5159 = vld [vmem:[%s5158] sm:$0xf]
      %v5160 = vld [vmem:[%s5158 + $0x4] sm:$0xf]
      %v5161 = vld [vmem:[%s5158 + $0x8] sm:$0xf]
      %v5162 = vld [vmem:[%s5158 + $0xc] sm:$0xf]
      %v5163 = vld [vmem:[%s5158 + $0x10] sm:$0x3]
      %v5169 = vunpack.c.l.b16 %v5159
      %v5170 = vunpack.c.l.b16 %v5160
      %v5171 = vunpack.c.l.b16 %v5161
      %v5172 = vunpack.c.l.b16 %v5162
      %v5173 = vunpack.c.l.b16 %v5163
      %v5174 = vpack.c.b16 %v5170, %v5169
      %v5175 = vpack.c.b16 %v5172, %v5171
      %v5176 = vpack.c.b16 %v5173, %v5173
      %v5180 = vsel %vm4873, %v5176, 0
      %5182 = vmatpush.bf16.msra.mxu0 0
      %5183 = vmatpush.bf16.msra.mxu0 0
      %5184 = vmatpush.bf16.msra.mxu0 0
      %5185 = vmatpush.bf16.msra.mxu0 0
      %5186 = vmatpush.bf16.msra.mxu0 0
      %5187 = vmatpush.bf16.msra.mxu0 %v5180
      %5188 = vmatpush.bf16.msra.mxu0 %v5175
      %5189 = vmatpush.bf16.msra.mxu0 %v5174
      %5190 = vmatmul.bf16.gmra.mxu0 %v4862
      %v5191 = vpop.f32.mrf.mxu0
      %v5192 = vadd.f32 0.0, %v5191
      %v5193 = vpop.f32.mrf.mxu0
      %v5194 = vadd.f32 0.0, %v5193
      %5195 = vmatmul.bf16.gmra.mxu0 %v4865
      %v5196 = vpop.f32.mrf.mxu0
      %v5197 = vadd.f32 0.0, %v5196
      %v5198 = vpop.f32.mrf.mxu0
      %v5199 = vadd.f32 0.0, %v5198
      %5200 = vmatmul.bf16.gmra.mxu0 %v4868
      %v5201 = vpop.f32.mrf.mxu0
      %v5202 = vadd.f32 0.0, %v5201
      %v5203 = vpop.f32.mrf.mxu0
      %v5204 = vadd.f32 0.0, %v5203
      %5205 = vmatmul.bf16.gmra.mxu0 %v4871
      %v5206 = vpop.f32.mrf.mxu0
      %v5207 = vadd.f32 0.0, %v5206
      %v5208 = vpop.f32.mrf.mxu0
      %v5209 = vadd.f32 0.0, %v5208
      %5210 = vdwg.mxu0
      %v5211 = vpack.c.bf16 %v5192, %v5192
      %v5212 = vpack.c.bf16 %v5194, %v5194
      %v5213 = vpack.c.bf16 %v5197, %v5197
      %v5214 = vpack.c.bf16 %v5199, %v5199
      %v5215 = vpack.c.bf16 %v5202, %v5202
      %v5216 = vpack.c.bf16 %v5204, %v5204
      %v5217 = vpack.c.bf16 %v5207, %v5207
      %v5218 = vpack.c.bf16 %v5209, %v5209
      %s5219 = scalar_lea.vmem %s9, 120
      %v5220 = vld [vmem:[%s5219] sm:$0xf]
      %v5221 = vld [vmem:[%s5219 + $0x4] sm:$0xf]
      %v5222 = vld [vmem:[%s5219 + $0x8] sm:$0xf]
      %v5223 = vld [vmem:[%s5219 + $0xc] sm:$0xf]
      %v5224 = vld [vmem:[%s5219 + $0x10] sm:$0x3]
      %v5230 = vunpack.c.l.b16 %v5220
      %v5231 = vunpack.c.l.b16 %v5221
      %v5232 = vunpack.c.l.b16 %v5222
      %v5233 = vunpack.c.l.b16 %v5223
      %v5234 = vunpack.c.l.b16 %v5224
      %v5235 = vpack.c.b16 %v5231, %v5230
      %v5236 = vpack.c.b16 %v5233, %v5232
      %v5237 = vpack.c.b16 %v5234, %v5234
      %v5241 = vsel %vm4873, %v5237, 0
      %5243 = vmatpush.bf16.msra.mxu0 0
      %5244 = vmatpush.bf16.msra.mxu0 0
      %5245 = vmatpush.bf16.msra.mxu0 0
      %5246 = vmatpush.bf16.msra.mxu0 0
      %5247 = vmatpush.bf16.msra.mxu0 0
      %5248 = vmatpush.bf16.msra.mxu0 %v5241
      %5249 = vmatpush.bf16.msra.mxu0 %v5236
      %5250 = vmatpush.bf16.msra.mxu0 %v5235
      %5251 = vmatmul.bf16.gmra.mxu0 %v4862
      %v5252 = vpop.f32.mrf.mxu0
      %v5253 = vadd.f32 0.0, %v5252
      %v5254 = vpop.f32.mrf.mxu0
      %v5255 = vadd.f32 0.0, %v5254
      %5256 = vmatmul.bf16.gmra.mxu0 %v4865
      %v5257 = vpop.f32.mrf.mxu0
      %v5258 = vadd.f32 0.0, %v5257
      %v5259 = vpop.f32.mrf.mxu0
      %v5260 = vadd.f32 0.0, %v5259
      %5261 = vmatmul.bf16.gmra.mxu0 %v4868
      %v5262 = vpop.f32.mrf.mxu0
      %v5263 = vadd.f32 0.0, %v5262
      %v5264 = vpop.f32.mrf.mxu0
      %v5265 = vadd.f32 0.0, %v5264
      %5266 = vmatmul.bf16.gmra.mxu0 %v4871
      %v5267 = vpop.f32.mrf.mxu0
      %v5268 = vadd.f32 0.0, %v5267
      %v5269 = vpop.f32.mrf.mxu0
      %v5270 = vadd.f32 0.0, %v5269
      %5271 = vdwg.mxu0
      %v5272 = vpack.c.bf16 %v5253, %v5253
      %v5273 = vpack.c.bf16 %v5255, %v5255
      %v5274 = vpack.c.bf16 %v5258, %v5258
      %v5275 = vpack.c.bf16 %v5260, %v5260
      %v5276 = vpack.c.bf16 %v5263, %v5263
      %v5277 = vpack.c.bf16 %v5265, %v5265
      %v5278 = vpack.c.bf16 %v5268, %v5268
      %v5279 = vpack.c.bf16 %v5270, %v5270
      %s5280 = scalar_lea.vmem %s9, 140
      %v5281 = vld [vmem:[%s5280] sm:$0xf]
      %v5282 = vld [vmem:[%s5280 + $0x4] sm:$0xf]
      %v5283 = vld [vmem:[%s5280 + $0x8] sm:$0xf]
      %v5284 = vld [vmem:[%s5280 + $0xc] sm:$0xf]
      %v5285 = vld [vmem:[%s5280 + $0x10] sm:$0x3]
      %v5291 = vunpack.c.l.b16 %v5281
      %v5292 = vunpack.c.l.b16 %v5282
      %v5293 = vunpack.c.l.b16 %v5283
      %v5294 = vunpack.c.l.b16 %v5284
      %v5295 = vunpack.c.l.b16 %v5285
      %v5296 = vpack.c.b16 %v5292, %v5291
      %v5297 = vpack.c.b16 %v5294, %v5293
      %v5298 = vpack.c.b16 %v5295, %v5295
      %v5302 = vsel %vm4873, %v5298, 0
      %5304 = vmatpush.bf16.msra.mxu0 0
      %5305 = vmatpush.bf16.msra.mxu0 0
      %5306 = vmatpush.bf16.msra.mxu0 0
      %5307 = vmatpush.bf16.msra.mxu0 0
      %5308 = vmatpush.bf16.msra.mxu0 0
      %5309 = vmatpush.bf16.msra.mxu0 %v5302
      %5310 = vmatpush.bf16.msra.mxu0 %v5297
      %5311 = vmatpush.bf16.msra.mxu0 %v5296
      %5312 = vmatmul.bf16.gmra.mxu0 %v4862
      %v5313 = vpop.f32.mrf.mxu0
      %v5314 = vadd.f32 0.0, %v5313
      %v5315 = vpop.f32.mrf.mxu0
      %v5316 = vadd.f32 0.0, %v5315
      %5317 = vmatmul.bf16.gmra.mxu0 %v4865
      %v5318 = vpop.f32.mrf.mxu0
      %v5319 = vadd.f32 0.0, %v5318
      %v5320 = vpop.f32.mrf.mxu0
      %v5321 = vadd.f32 0.0, %v5320
      %5322 = vmatmul.bf16.gmra.mxu0 %v4868
      %v5323 = vpop.f32.mrf.mxu0
      %v5324 = vadd.f32 0.0, %v5323
      %v5325 = vpop.f32.mrf.mxu0
      %v5326 = vadd.f32 0.0, %v5325
      %5327 = vmatmul.bf16.gmra.mxu0 %v4871
      %v5328 = vpop.f32.mrf.mxu0
      %v5329 = vadd.f32 0.0, %v5328
      %v5330 = vpop.f32.mrf.mxu0
      %v5331 = vadd.f32 0.0, %v5330
      %5332 = vdwg.mxu0
      %v5333 = vpack.c.bf16 %v5314, %v5314
      %v5334 = vpack.c.bf16 %v5316, %v5316
      %v5335 = vpack.c.bf16 %v5319, %v5319
      %v5336 = vpack.c.bf16 %v5321, %v5321
      %v5337 = vpack.c.bf16 %v5324, %v5324
      %v5338 = vpack.c.bf16 %v5326, %v5326
      %v5339 = vpack.c.bf16 %v5329, %v5329
      %v5340 = vpack.c.bf16 %v5331, %v5331
      %s5341 = scalar_lea.vmem %s9, 160
      %v5342 = vld [vmem:[%s5341] sm:$0xf]
      %v5343 = vld [vmem:[%s5341 + $0x4] sm:$0xf]
      %v5344 = vld [vmem:[%s5341 + $0x8] sm:$0xf]
      %v5345 = vld [vmem:[%s5341 + $0xc] sm:$0xf]
      %v5346 = vld [vmem:[%s5341 + $0x10] sm:$0x3]
      %v5352 = vunpack.c.l.b16 %v5342
      %v5353 = vunpack.c.l.b16 %v5343
      %v5354 = vunpack.c.l.b16 %v5344
      %v5355 = vunpack.c.l.b16 %v5345
      %v5356 = vunpack.c.l.b16 %v5346
      %v5357 = vpack.c.b16 %v5353, %v5352
      %v5358 = vpack.c.b16 %v5355, %v5354
      %v5359 = vpack.c.b16 %v5356, %v5356
      %v5363 = vsel %vm4873, %v5359, 0
      %5365 = vmatpush.bf16.msra.mxu0 0
      %5366 = vmatpush.bf16.msra.mxu0 0
      %5367 = vmatpush.bf16.msra.mxu0 0
      %5368 = vmatpush.bf16.msra.mxu0 0
      %5369 = vmatpush.bf16.msra.mxu0 0
      %5370 = vmatpush.bf16.msra.mxu0 %v5363
      %5371 = vmatpush.bf16.msra.mxu0 %v5358
      %5372 = vmatpush.bf16.msra.mxu0 %v5357
      %5373 = vmatmul.bf16.gmra.mxu0 %v4862
      %v5374 = vpop.f32.mrf.mxu0
      %v5375 = vadd.f32 0.0, %v5374
      %v5376 = vpop.f32.mrf.mxu0
      %v5377 = vadd.f32 0.0, %v5376
      %5378 = vmatmul.bf16.gmra.mxu0 %v4865
      %v5379 = vpop.f32.mrf.mxu0
      %v5380 = vadd.f32 0.0, %v5379
      %v5381 = vpop.f32.mrf.mxu0
      %v5382 = vadd.f32 0.0, %v5381
      %5383 = vmatmul.bf16.gmra.mxu0 %v4868
      %v5384 = vpop.f32.mrf.mxu0
      %v5385 = vadd.f32 0.0, %v5384
      %v5386 = vpop.f32.mrf.mxu0
      %v5387 = vadd.f32 0.0, %v5386
      %5388 = vmatmul.bf16.gmra.mxu0 %v4871
      %v5389 = vpop.f32.mrf.mxu0
      %v5390 = vadd.f32 0.0, %v5389
      %v5391 = vpop.f32.mrf.mxu0
      %v5392 = vadd.f32 0.0, %v5391
      %5393 = vdwg.mxu0
      %v5394 = vpack.c.bf16 %v5375, %v5375
      %v5395 = vpack.c.bf16 %v5377, %v5377
      %v5396 = vpack.c.bf16 %v5380, %v5380
      %v5397 = vpack.c.bf16 %v5382, %v5382
      %v5398 = vpack.c.bf16 %v5385, %v5385
      %v5399 = vpack.c.bf16 %v5387, %v5387
      %v5400 = vpack.c.bf16 %v5390, %v5390
      %v5401 = vpack.c.bf16 %v5392, %v5392
      %v5410 = vunpack.c.l.b16 %v4906
      %v5411 = vunpack.c.l.b16 %v4907
      %v5412 = vunpack.c.l.b16 %v4908
      %v5413 = vunpack.c.l.b16 %v4909
      %v5414 = vunpack.c.l.b16 %v4910
      %v5415 = vunpack.c.l.b16 %v4911
      %v5416 = vunpack.c.l.b16 %v4912
      %v5417 = vunpack.c.l.b16 %v4913
      %v5418 = vpack.c.b16 %v5411, %v5410
      %v5419 = vpack.c.b16 %v5413, %v5412
      %v5420 = vpack.c.b16 %v5415, %v5414
      %v5421 = vpack.c.b16 %v5417, %v5416
      %v5434 = vunpack.c.l.b16 %v4967
      %v5435 = vunpack.c.l.b16 %v4968
      %v5436 = vunpack.c.l.b16 %v4969
      %v5437 = vunpack.c.l.b16 %v4970
      %v5438 = vunpack.c.l.b16 %v4971
      %v5439 = vunpack.c.l.b16 %v4972
      %v5440 = vunpack.c.l.b16 %v4973
      %v5441 = vunpack.c.l.b16 %v4974
      %v5442 = vpack.c.b16 %v5435, %v5434
      %v5443 = vpack.c.b16 %v5437, %v5436
      %v5444 = vpack.c.b16 %v5439, %v5438
      %v5445 = vpack.c.b16 %v5441, %v5440
      %v5458 = vunpack.c.l.b16 %v5028
      %v5459 = vunpack.c.l.b16 %v5029
      %v5460 = vunpack.c.l.b16 %v5030
      %v5461 = vunpack.c.l.b16 %v5031
      %v5462 = vunpack.c.l.b16 %v5032
      %v5463 = vunpack.c.l.b16 %v5033
      %v5464 = vunpack.c.l.b16 %v5034
      %v5465 = vunpack.c.l.b16 %v5035
      %v5466 = vpack.c.b16 %v5459, %v5458
      %v5467 = vpack.c.b16 %v5461, %v5460
      %v5468 = vpack.c.b16 %v5463, %v5462
      %v5469 = vpack.c.b16 %v5465, %v5464
      %v5482 = vunpack.c.l.b16 %v5089
      %v5483 = vunpack.c.l.b16 %v5090
      %v5484 = vunpack.c.l.b16 %v5091
      %v5485 = vunpack.c.l.b16 %v5092
      %v5486 = vunpack.c.l.b16 %v5093
      %v5487 = vunpack.c.l.b16 %v5094
      %v5488 = vunpack.c.l.b16 %v5095
      %v5489 = vunpack.c.l.b16 %v5096
      %v5490 = vpack.c.b16 %v5483, %v5482
      %v5491 = vpack.c.b16 %v5485, %v5484
      %v5492 = vpack.c.b16 %v5487, %v5486
      %v5493 = vpack.c.b16 %v5489, %v5488
      %v5506 = vunpack.c.l.b16 %v5150
      %v5507 = vunpack.c.l.b16 %v5151
      %v5508 = vunpack.c.l.b16 %v5152
      %v5509 = vunpack.c.l.b16 %v5153
      %v5510 = vunpack.c.l.b16 %v5154
      %v5511 = vunpack.c.l.b16 %v5155
      %v5512 = vunpack.c.l.b16 %v5156
      %v5513 = vunpack.c.l.b16 %v5157
      %v5514 = vpack.c.b16 %v5507, %v5506
      %v5515 = vpack.c.b16 %v5509, %v5508
      %v5516 = vpack.c.b16 %v5511, %v5510
      %v5517 = vpack.c.b16 %v5513, %v5512
      %v5530 = vunpack.c.l.b16 %v5211
      %v5531 = vunpack.c.l.b16 %v5212
      %v5532 = vunpack.c.l.b16 %v5213
      %v5533 = vunpack.c.l.b16 %v5214
      %v5534 = vunpack.c.l.b16 %v5215
      %v5535 = vunpack.c.l.b16 %v5216
      %v5536 = vunpack.c.l.b16 %v5217
      %v5537 = vunpack.c.l.b16 %v5218
      %v5538 = vpack.c.b16 %v5531, %v5530
      %v5539 = vpack.c.b16 %v5533, %v5532
      %v5540 = vpack.c.b16 %v5535, %v5534
      %v5541 = vpack.c.b16 %v5537, %v5536
      %v5554 = vunpack.c.l.b16 %v5272
      %v5555 = vunpack.c.l.b16 %v5273
      %v5556 = vunpack.c.l.b16 %v5274
      %v5557 = vunpack.c.l.b16 %v5275
      %v5558 = vunpack.c.l.b16 %v5276
      %v5559 = vunpack.c.l.b16 %v5277
      %v5560 = vunpack.c.l.b16 %v5278
      %v5561 = vunpack.c.l.b16 %v5279
      %v5562 = vpack.c.b16 %v5555, %v5554
      %v5563 = vpack.c.b16 %v5557, %v5556
      %v5564 = vpack.c.b16 %v5559, %v5558
      %v5565 = vpack.c.b16 %v5561, %v5560
      %v5578 = vunpack.c.l.b16 %v5333
      %v5579 = vunpack.c.l.b16 %v5334
      %v5580 = vunpack.c.l.b16 %v5335
      %v5581 = vunpack.c.l.b16 %v5336
      %v5582 = vunpack.c.l.b16 %v5337
      %v5583 = vunpack.c.l.b16 %v5338
      %v5584 = vunpack.c.l.b16 %v5339
      %v5585 = vunpack.c.l.b16 %v5340
      %v5586 = vpack.c.b16 %v5579, %v5578
      %v5587 = vpack.c.b16 %v5581, %v5580
      %v5588 = vpack.c.b16 %v5583, %v5582
      %v5589 = vpack.c.b16 %v5585, %v5584
      %v5602 = vunpack.c.l.b16 %v5394
      %v5603 = vunpack.c.l.b16 %v5395
      %v5604 = vunpack.c.l.b16 %v5396
      %v5605 = vunpack.c.l.b16 %v5397
      %v5606 = vunpack.c.l.b16 %v5398
      %v5607 = vunpack.c.l.b16 %v5399
      %v5608 = vunpack.c.l.b16 %v5400
      %v5609 = vunpack.c.l.b16 %v5401
      %v5610 = vpack.c.b16 %v5603, %v5602
      %v5611 = vpack.c.b16 %v5605, %v5604
      %v5612 = vpack.c.b16 %v5607, %v5606
      %v5613 = vpack.c.b16 %v5609, %v5608
      %v5618 = vld [vmem:[%s7] sm:$0xff]
      %v5619 = vld [vmem:[%s7 + $0x8] sm:$0xff]
      %v5620 = vld [vmem:[%s7 + $0x10] sm:$0xf]
      %v5621 = vld [vmem:[%s8] sm:$0xff]
      %5623 = vset.pattern.permute.xlu0 0
      %5624 = vperm.xlu0 %5623, %v5621
      %v5625 = vpop.permute.xlu0 %5624
      %v5630 = vunpack.c.l.b16 %v5618
      %v5631 = vunpack.c.h.b16 %v5618
      %v5632 = vunpack.c.l.b16 %v5619
      %v5633 = vunpack.c.h.b16 %v5619
      %v5634 = vunpack.c.l.b16 %v5620
      %v5635 = vpack.c.b16 %v5630, %v5630
      %v5636 = vpack.c.b16 %v5631, %v5631
      %v5637 = vpack.c.b16 %v5632, %v5632
      %v5638 = vpack.c.b16 %v5633, %v5633
      %v5639 = vpack.c.b16 %v5634, %v5634
      %vm5644 = vcmask 523264
      %v5646 = vsel %vm5644, %v5639, 0
      %5648 = vmatpush.bf16.msra.mxu0 %v5445
      %5649 = vmatpush.bf16.msra.mxu0 %v5444
      %5650 = vmatpush.bf16.msra.mxu0 %v5443
      %5651 = vmatpush.bf16.msra.mxu0 %v5442
      %5652 = vmatpush.bf16.msra.mxu0 %v5421
      %5653 = vmatpush.bf16.msra.mxu0 %v5420
      %5654 = vmatpush.bf16.msra.mxu0 %v5419
      %5655 = vmatpush.bf16.msra.mxu0 %v5418
      %5656 = vmatmul.bf16.gmra.mxu0 %v5635
      %v5657 = vpop.f32.mrf.mxu0
      %v5658 = vadd.f32 %v5625, %v5657
      %v5659 = vpop.f32.mrf.mxu0
      %5660 = vdwg.mxu0
      %5661 = vmatpush.bf16.msra.mxu0 %v5493
      %5662 = vmatpush.bf16.msra.mxu0 %v5492
      %5663 = vmatpush.bf16.msra.mxu0 %v5491
      %5664 = vmatpush.bf16.msra.mxu0 %v5490
      %5665 = vmatpush.bf16.msra.mxu0 %v5469
      %5666 = vmatpush.bf16.msra.mxu0 %v5468
      %5667 = vmatpush.bf16.msra.mxu0 %v5467
      %5668 = vmatpush.bf16.msra.mxu0 %v5466
      %5669 = vmatmul.bf16.gmra.mxu0 %v5636
      %v5670 = vpop.f32.mrf.mxu0
      %v5671 = vadd.f32 %v5658, %v5670
      %v5672 = vpop.f32.mrf.mxu0
      %5673 = vdwg.mxu0
      %5674 = vmatpush.bf16.msra.mxu0 %v5541
      %5675 = vmatpush.bf16.msra.mxu0 %v5540
      %5676 = vmatpush.bf16.msra.mxu0 %v5539
      %5677 = vmatpush.bf16.msra.mxu0 %v5538
      %5678 = vmatpush.bf16.msra.mxu0 %v5517
      %5679 = vmatpush.bf16.msra.mxu0 %v5516
      %5680 = vmatpush.bf16.msra.mxu0 %v5515
      %5681 = vmatpush.bf16.msra.mxu0 %v5514
      %5682 = vmatmul.bf16.gmra.mxu0 %v5637
      %v5683 = vpop.f32.mrf.mxu0
      %v5684 = vadd.f32 %v5671, %v5683
      %v5685 = vpop.f32.mrf.mxu0
      %5686 = vdwg.mxu0
      %5687 = vmatpush.bf16.msra.mxu0 %v5589
      %5688 = vmatpush.bf16.msra.mxu0 %v5588
      %5689 = vmatpush.bf16.msra.mxu0 %v5587
      %5690 = vmatpush.bf16.msra.mxu0 %v5586
      %5691 = vmatpush.bf16.msra.mxu0 %v5565
      %5692 = vmatpush.bf16.msra.mxu0 %v5564
      %5693 = vmatpush.bf16.msra.mxu0 %v5563
      %5694 = vmatpush.bf16.msra.mxu0 %v5562
      %5695 = vmatmul.bf16.gmra.mxu0 %v5638
      %v5696 = vpop.f32.mrf.mxu0
      %v5697 = vadd.f32 %v5684, %v5696
      %v5698 = vpop.f32.mrf.mxu0
      %5699 = vdwg.mxu0
      %5700 = vmatpush.bf16.msra.mxu0 0
      %5701 = vmatpush.bf16.msra.mxu0 0
      %5702 = vmatpush.bf16.msra.mxu0 0
      %5703 = vmatpush.bf16.msra.mxu0 0
      %5704 = vmatpush.bf16.msra.mxu0 %v5613
      %5705 = vmatpush.bf16.msra.mxu0 %v5612
      %5706 = vmatpush.bf16.msra.mxu0 %v5611
      %5707 = vmatpush.bf16.msra.mxu0 %v5610
      %5708 = vmatmul.bf16.gmra.mxu0 %v5646
      %v5709 = vpop.f32.mrf.mxu0
      %v5710 = vadd.f32 %v5697, %v5709
      %v5711 = vpop.f32.mrf.mxu0
      %5712 = vdwg.mxu0
      %vm5713 = vcmask 68608
      %5714 = vst.msk [vmem:[%s739] sm:$0xf] %vm5713, %v5710
      %vm5715 = vcmask 72708
      %5716 = vst.msk [vmem:[%s743 - $0x4] sm:$0xf0] %vm5715, %v5710
      %v5717 = vld [vmem:[%s735] sm:$0xf]
      %v5718 = vmul.f32 %v5710, 0.5
      %v5719 = vmul.f32 %v5718, 1.442695
      %v5720 = vpow.pop %v5719
      %v5722 = vrot.slane %v5720, 4
      %v5724 = vmul.f32 %v5717, %v5722
      %v5725 = vadd.f32 %v5710, %v5724
      %v5726 = vpack.c.bf16 %v5725, %v5725
      %v5727 = vld [vmem:[%s11] sm:$0xff]
      %v5728 = vld [vmem:[%s11 + $0x8] sm:$0xff]
      %v5729 = vld [vmem:[%s11 + $0x10] sm:$0xff]
      %v5730 = vld [vmem:[%s11 + $0x18] sm:$0xff]
      %v5731 = vld [vmem:[%s11 + $0x20] sm:$0xff]
      %v5732 = vld [vmem:[%s11 + $0x28] sm:$0xff]
      %v5733 = vld [vmem:[%s11 + $0x30] sm:$0xff]
      %v5734 = vld [vmem:[%s11 + $0x38] sm:$0xff]
      %v5735 = vld [vmem:[%s11 + $0x40] sm:$0xff]
      %v5736 = vld [vmem:[%s11 + $0x48] sm:$0xff]
      %v5737 = vld [vmem:[%s11 + $0x50] sm:$0xff]
      %v5738 = vld [vmem:[%s11 + $0x58] sm:$0xff]
      %v5739 = vld [vmem:[%s11 + $0x60] sm:$0xff]
      %v5740 = vld [vmem:[%s11 + $0x68] sm:$0xff]
      %v5741 = vld [vmem:[%s11 + $0x70] sm:$0xff]
      %v5742 = vld [vmem:[%s11 + $0x78] sm:$0xff]
      %v5743 = vld [vmem:[%s11 + $0x80] sm:$0xff]
      %v5744 = vld [vmem:[%s11 + $0x88] sm:$0xff]
      %v5745 = vld [vmem:[%s11 + $0x90] sm:$0xff]
      %v5746 = vld [vmem:[%s11 + $0x98] sm:$0xff]
      %v5747 = vld [vmem:[%s11 + $0xa0] sm:$0xff]
      %v5748 = vld [vmem:[%s11 + $0xa8] sm:$0xff]
      %v5749 = vld [vmem:[%s11 + $0xb0] sm:$0xff]
      %v5750 = vld [vmem:[%s11 + $0xb8] sm:$0xff]
      %v5751 = vld [vmem:[%s11 + $0xc0] sm:$0xff]
      %v5752 = vld [vmem:[%s11 + $0xc8] sm:$0xff]
      %v5753 = vld [vmem:[%s11 + $0xd0] sm:$0xff]
      %v5754 = vld [vmem:[%s11 + $0xd8] sm:$0xff]
      %v5755 = vld [vmem:[%s11 + $0xe0] sm:$0xff]
      %v5756 = vld [vmem:[%s11 + $0xe8] sm:$0xff]
      %v5757 = vld [vmem:[%s11 + $0xf0] sm:$0xff]
      %v5758 = vld [vmem:[%s11 + $0xf8] sm:$0xff]
      %v5759 = vld [vmem:[%s12] sm:$0xf]
      %v5760 = vld [vmem:[%s12 + $0x4] sm:$0x1]
      %v5763 = vunpack.c.l.b16 %v5759
      %v5764 = vunpack.c.l.b16 %v5760
      %v5765 = vpack.c.b16 %v5764, %v5763
      %vm5766 = vcmask 72704
      %v5768 = vsel %vm5766, %v5726, 0
      %vm5770 = vcmask 1043456
      %vm5771 = vcmask 1044480
      %v5772 = vsel %vm5770, 4294967295, 65535
      %v5773 = vsel %vm5771, %v5772, 0
      %v5775 = vand.u32 %v5765, %v5773
      %5777 = vmatpush.bf16.msra.mxu0 0
      %5778 = vmatpush.bf16.msra.mxu0 0
      %5779 = vmatpush.bf16.msra.mxu0 0
      %5780 = vmatpush.bf16.msra.mxu0 0
      %5781 = vmatpush.bf16.msra.mxu0 0
      %5782 = vmatpush.bf16.msra.mxu0 0
      %5783 = vmatpush.bf16.msra.mxu0 0
      %5784 = vmatpush.bf16.msra.mxu0 %v5775
      %5785 = vmatmul.bf16.gmra.mxu0 %v5768
      %v5786 = vpop.f32.mrf.mxu0
      %v5787 = vadd.f32 0.0, %v5786
      %v5788 = vpop.f32.mrf.mxu0
      %5789 = vdwg.mxu0
      %v5790 = vpack.c.bf16 %v5787, %v5787
      %v5791 = vld [vmem:[%s10] sm:$0xf]
      %v5792 = vld [vmem:[%s10 + $0x4] sm:$0xf]
      %v5793 = vld [vmem:[%s10 + $0x8] sm:$0xf]
      %v5794 = vld [vmem:[%s10 + $0xc] sm:$0xf]
      %v5795 = vld [vmem:[%s10 + $0x10] sm:$0xf]
      %v5796 = vld [vmem:[%s10 + $0x14] sm:$0xf]
      %v5797 = vld [vmem:[%s10 + $0x18] sm:$0xf]
      %v5798 = vld [vmem:[%s10 + $0x1c] sm:$0xf]
      %v5799 = vld [vmem:[%s10 + $0x20] sm:$0xf]
      %v5800 = vld [vmem:[%s10 + $0x24] sm:$0xf]
      %v5801 = vld [vmem:[%s10 + $0x28] sm:$0xf]
      %v5802 = vld [vmem:[%s10 + $0x2c] sm:$0xf]
      %v5803 = vld [vmem:[%s10 + $0x30] sm:$0xf]
      %v5804 = vld [vmem:[%s10 + $0x34] sm:$0xf]
      %v5805 = vld [vmem:[%s10 + $0x38] sm:$0xf]
      %v5806 = vld [vmem:[%s10 + $0x3c] sm:$0xf]
      %v5807 = vld [vmem:[%s10 + $0x40] sm:$0xf]
      %v5808 = vld [vmem:[%s10 + $0x44] sm:$0xf]
      %v5809 = vld [vmem:[%s10 + $0x48] sm:$0xf]
      %v5810 = vld [vmem:[%s10 + $0x4c] sm:$0xf]
      %v5811 = vld [vmem:[%s10 + $0x50] sm:$0xf]
      %v5812 = vld [vmem:[%s10 + $0x54] sm:$0xf]
      %v5813 = vld [vmem:[%s10 + $0x58] sm:$0xf]
      %v5814 = vld [vmem:[%s10 + $0x5c] sm:$0xf]
      %v5815 = vld [vmem:[%s10 + $0x60] sm:$0xf]
      %v5816 = vld [vmem:[%s10 + $0x64] sm:$0xf]
      %v5817 = vld [vmem:[%s10 + $0x68] sm:$0xf]
      %v5818 = vld [vmem:[%s10 + $0x6c] sm:$0xf]
      %v5819 = vld [vmem:[%s10 + $0x70] sm:$0xf]
      %v5820 = vld [vmem:[%s10 + $0x74] sm:$0xf]
      %v5821 = vld [vmem:[%s10 + $0x78] sm:$0xf]
      %v5822 = vld [vmem:[%s10 + $0x7c] sm:$0xf]
      %v5855 = vunpack.c.l.b16 %v5791
      %v5856 = vunpack.c.l.b16 %v5792
      %v5857 = vunpack.c.l.b16 %v5793
      %v5858 = vunpack.c.l.b16 %v5794
      %v5859 = vunpack.c.l.b16 %v5795
      %v5860 = vunpack.c.l.b16 %v5796
      %v5861 = vunpack.c.l.b16 %v5797
      %v5862 = vunpack.c.l.b16 %v5798
      %v5863 = vunpack.c.l.b16 %v5799
      %v5864 = vunpack.c.l.b16 %v5800
      %v5865 = vunpack.c.l.b16 %v5801
      %v5866 = vunpack.c.l.b16 %v5802
      %v5867 = vunpack.c.l.b16 %v5803
      %v5868 = vunpack.c.l.b16 %v5804
      %v5869 = vunpack.c.l.b16 %v5805
      %v5870 = vunpack.c.l.b16 %v5806
      %v5871 = vunpack.c.l.b16 %v5807
      %v5872 = vunpack.c.l.b16 %v5808
      %v5873 = vunpack.c.l.b16 %v5809
      %v5874 = vunpack.c.l.b16 %v5810
      %v5875 = vunpack.c.l.b16 %v5811
      %v5876 = vunpack.c.l.b16 %v5812
      %v5877 = vunpack.c.l.b16 %v5813
      %v5878 = vunpack.c.l.b16 %v5814
      %v5879 = vunpack.c.l.b16 %v5815
      %v5880 = vunpack.c.l.b16 %v5816
      %v5881 = vunpack.c.l.b16 %v5817
      %v5882 = vunpack.c.l.b16 %v5818
      %v5883 = vunpack.c.l.b16 %v5819
      %v5884 = vunpack.c.l.b16 %v5820
      %v5885 = vunpack.c.l.b16 %v5821
      %v5886 = vunpack.c.l.b16 %v5822
      %v5887 = vpack.c.b16 %v5856, %v5855
      %v5888 = vpack.c.b16 %v5858, %v5857
      %v5889 = vpack.c.b16 %v5860, %v5859
      %v5890 = vpack.c.b16 %v5862, %v5861
      %v5891 = vpack.c.b16 %v5864, %v5863
      %v5892 = vpack.c.b16 %v5866, %v5865
      %v5893 = vpack.c.b16 %v5868, %v5867
      %v5894 = vpack.c.b16 %v5870, %v5869
      %v5895 = vpack.c.b16 %v5872, %v5871
      %v5896 = vpack.c.b16 %v5874, %v5873
      %v5897 = vpack.c.b16 %v5876, %v5875
      %v5898 = vpack.c.b16 %v5878, %v5877
      %v5899 = vpack.c.b16 %v5880, %v5879
      %v5900 = vpack.c.b16 %v5882, %v5881
      %v5901 = vpack.c.b16 %v5884, %v5883
      %v5902 = vpack.c.b16 %v5886, %v5885
      %vm5903 = vcmask 31744
      %v5905 = vsel %vm5903, %v5887, 0
      %v5908 = vsel %vm5903, %v5888, 0
      %v5911 = vsel %vm5903, %v5889, 0
      %v5914 = vsel %vm5903, %v5890, 0
      %v5917 = vsel %vm5903, %v5891, 0
      %v5920 = vsel %vm5903, %v5892, 0
      %v5923 = vsel %vm5903, %v5893, 0
      %v5926 = vsel %vm5903, %v5894, 0
      %v5929 = vsel %vm5903, %v5895, 0
      %v5932 = vsel %vm5903, %v5896, 0
      %v5935 = vsel %vm5903, %v5897, 0
      %v5938 = vsel %vm5903, %v5898, 0
      %v5941 = vsel %vm5903, %v5899, 0
      %v5944 = vsel %vm5903, %v5900, 0
      %v5947 = vsel %vm5903, %v5901, 0
      %v5950 = vsel %vm5903, %v5902, 0
      %v5953 = vsel %vm4873, %v5790, 0
      %5955 = vmatpush.bf16.msra.mxu0 0
      %5956 = vmatpush.bf16.msra.mxu0 0
      %5957 = vmatpush.bf16.msra.mxu0 0
      %5958 = vmatpush.bf16.msra.mxu0 0
      %5959 = vmatpush.bf16.msra.mxu0 0
      %5960 = vmatpush.bf16.msra.mxu0 0
      %5961 = vmatpush.bf16.msra.mxu0 0
      %5962 = vmatpush.bf16.msra.mxu0 %v5953
      %5963 = vmatmul.bf16.gmra.mxu0 %v5905
      %v5964 = vpop.f32.mrf.mxu0
      %v5965 = vadd.f32 0.0, %v5964
      %v5966 = vpop.f32.mrf.mxu0
      %v5967 = vadd.f32 0.0, %v5966
      %5968 = vmatmul.bf16.gmra.mxu0 %v5908
      %v5969 = vpop.f32.mrf.mxu0
      %v5970 = vadd.f32 0.0, %v5969
      %v5971 = vpop.f32.mrf.mxu0
      %v5972 = vadd.f32 0.0, %v5971
      %5973 = vmatmul.bf16.gmra.mxu0 %v5911
      %v5974 = vpop.f32.mrf.mxu0
      %v5975 = vadd.f32 0.0, %v5974
      %v5976 = vpop.f32.mrf.mxu0
      %v5977 = vadd.f32 0.0, %v5976
      %5978 = vmatmul.bf16.gmra.mxu0 %v5914
      %v5979 = vpop.f32.mrf.mxu0
      %v5980 = vadd.f32 0.0, %v5979
      %v5981 = vpop.f32.mrf.mxu0
      %v5982 = vadd.f32 0.0, %v5981
      %5983 = vmatmul.bf16.gmra.mxu0 %v5917
      %v5984 = vpop.f32.mrf.mxu0
      %v5985 = vadd.f32 0.0, %v5984
      %v5986 = vpop.f32.mrf.mxu0
      %v5987 = vadd.f32 0.0, %v5986
      %5988 = vmatmul.bf16.gmra.mxu0 %v5920
      %v5989 = vpop.f32.mrf.mxu0
      %v5990 = vadd.f32 0.0, %v5989
      %v5991 = vpop.f32.mrf.mxu0
      %v5992 = vadd.f32 0.0, %v5991
      %5993 = vmatmul.bf16.gmra.mxu0 %v5923
      %v5994 = vpop.f32.mrf.mxu0
      %v5995 = vadd.f32 0.0, %v5994
      %v5996 = vpop.f32.mrf.mxu0
      %v5997 = vadd.f32 0.0, %v5996
      %5998 = vmatmul.bf16.gmra.mxu0 %v5926
      %v5999 = vpop.f32.mrf.mxu0
      %v6000 = vadd.f32 0.0, %v5999
      %v6001 = vpop.f32.mrf.mxu0
      %v6002 = vadd.f32 0.0, %v6001
      %6003 = vmatmul.bf16.gmra.mxu0 %v5929
      %v6004 = vpop.f32.mrf.mxu0
      %v6005 = vadd.f32 0.0, %v6004
      %v6006 = vpop.f32.mrf.mxu0
      %v6007 = vadd.f32 0.0, %v6006
      %6008 = vmatmul.bf16.gmra.mxu0 %v5932
      %v6009 = vpop.f32.mrf.mxu0
      %v6010 = vadd.f32 0.0, %v6009
      %v6011 = vpop.f32.mrf.mxu0
      %v6012 = vadd.f32 0.0, %v6011
      %6013 = vmatmul.bf16.gmra.mxu0 %v5935
      %v6014 = vpop.f32.mrf.mxu0
      %v6015 = vadd.f32 0.0, %v6014
      %v6016 = vpop.f32.mrf.mxu0
      %v6017 = vadd.f32 0.0, %v6016
      %6018 = vmatmul.bf16.gmra.mxu0 %v5938
      %v6019 = vpop.f32.mrf.mxu0
      %v6020 = vadd.f32 0.0, %v6019
      %v6021 = vpop.f32.mrf.mxu0
      %v6022 = vadd.f32 0.0, %v6021
      %6023 = vmatmul.bf16.gmra.mxu0 %v5941
      %v6024 = vpop.f32.mrf.mxu0
      %v6025 = vadd.f32 0.0, %v6024
      %v6026 = vpop.f32.mrf.mxu0
      %v6027 = vadd.f32 0.0, %v6026
      %6028 = vmatmul.bf16.gmra.mxu0 %v5944
      %v6029 = vpop.f32.mrf.mxu0
      %v6030 = vadd.f32 0.0, %v6029
      %v6031 = vpop.f32.mrf.mxu0
      %v6032 = vadd.f32 0.0, %v6031
      %6033 = vmatmul.bf16.gmra.mxu0 %v5947
      %v6034 = vpop.f32.mrf.mxu0
      %v6035 = vadd.f32 0.0, %v6034
      %v6036 = vpop.f32.mrf.mxu0
      %v6037 = vadd.f32 0.0, %v6036
      %6038 = vmatmul.bf16.gmra.mxu0 %v5950
      %v6039 = vpop.f32.mrf.mxu0
      %v6040 = vadd.f32 0.0, %v6039
      %v6041 = vpop.f32.mrf.mxu0
      %v6042 = vadd.f32 0.0, %v6041
      %6043 = vdwg.mxu0
      %6045 = vset.pattern.permute.xlu0 0
      %6046 = vperm.xlu0 %6045, %v5727
      %v6047 = vpop.permute.xlu0 %6046
      %6050 = vset.pattern.permute.xlu0 0
      %6051 = vperm.xlu0 %6050, %v5728
      %v6052 = vpop.permute.xlu0 %6051
      %6055 = vset.pattern.permute.xlu0 0
      %6056 = vperm.xlu0 %6055, %v5729
      %v6057 = vpop.permute.xlu0 %6056
      %6060 = vset.pattern.permute.xlu0 0
      %6061 = vperm.xlu0 %6060, %v5730
      %v6062 = vpop.permute.xlu0 %6061
      %6065 = vset.pattern.permute.xlu0 0
      %6066 = vperm.xlu0 %6065, %v5731
      %v6067 = vpop.permute.xlu0 %6066
      %6070 = vset.pattern.permute.xlu0 0
      %6071 = vperm.xlu0 %6070, %v5732
      %v6072 = vpop.permute.xlu0 %6071
      %6075 = vset.pattern.permute.xlu0 0
      %6076 = vperm.xlu0 %6075, %v5733
      %v6077 = vpop.permute.xlu0 %6076
      %6080 = vset.pattern.permute.xlu0 0
      %6081 = vperm.xlu0 %6080, %v5734
      %v6082 = vpop.permute.xlu0 %6081
      %6085 = vset.pattern.permute.xlu0 0
      %6086 = vperm.xlu0 %6085, %v5735
      %v6087 = vpop.permute.xlu0 %6086
      %6090 = vset.pattern.permute.xlu0 0
      %6091 = vperm.xlu0 %6090, %v5736
      %v6092 = vpop.permute.xlu0 %6091
      %6095 = vset.pattern.permute.xlu0 0
      %6096 = vperm.xlu0 %6095, %v5737
      %v6097 = vpop.permute.xlu0 %6096
      %6100 = vset.pattern.permute.xlu0 0
      %6101 = vperm.xlu0 %6100, %v5738
      %v6102 = vpop.permute.xlu0 %6101
      %6105 = vset.pattern.permute.xlu0 0
      %6106 = vperm.xlu0 %6105, %v5739
      %v6107 = vpop.permute.xlu0 %6106
      %6110 = vset.pattern.permute.xlu0 0
      %6111 = vperm.xlu0 %6110, %v5740
      %v6112 = vpop.permute.xlu0 %6111
      %6115 = vset.pattern.permute.xlu0 0
      %6116 = vperm.xlu0 %6115, %v5741
      %v6117 = vpop.permute.xlu0 %6116
      %6120 = vset.pattern.permute.xlu0 0
      %6121 = vperm.xlu0 %6120, %v5742
      %v6122 = vpop.permute.xlu0 %6121
      %6125 = vset.pattern.permute.xlu0 0
      %6126 = vperm.xlu0 %6125, %v5743
      %v6127 = vpop.permute.xlu0 %6126
      %6130 = vset.pattern.permute.xlu0 0
      %6131 = vperm.xlu0 %6130, %v5744
      %v6132 = vpop.permute.xlu0 %6131
      %6135 = vset.pattern.permute.xlu0 0
      %6136 = vperm.xlu0 %6135, %v5745
      %v6137 = vpop.permute.xlu0 %6136
      %6140 = vset.pattern.permute.xlu0 0
      %6141 = vperm.xlu0 %6140, %v5746
      %v6142 = vpop.permute.xlu0 %6141
      %6145 = vset.pattern.permute.xlu0 0
      %6146 = vperm.xlu0 %6145, %v5747
      %v6147 = vpop.permute.xlu0 %6146
      %6150 = vset.pattern.permute.xlu0 0
      %6151 = vperm.xlu0 %6150, %v5748
      %v6152 = vpop.permute.xlu0 %6151
      %6155 = vset.pattern.permute.xlu0 0
      %6156 = vperm.xlu0 %6155, %v5749
      %v6157 = vpop.permute.xlu0 %6156
      %6160 = vset.pattern.permute.xlu0 0
      %6161 = vperm.xlu0 %6160, %v5750
      %v6162 = vpop.permute.xlu0 %6161
      %6165 = vset.pattern.permute.xlu0 0
      %6166 = vperm.xlu0 %6165, %v5751
      %v6167 = vpop.permute.xlu0 %6166
      %6170 = vset.pattern.permute.xlu0 0
      %6171 = vperm.xlu0 %6170, %v5752
      %v6172 = vpop.permute.xlu0 %6171
      %6175 = vset.pattern.permute.xlu0 0
      %6176 = vperm.xlu0 %6175, %v5753
      %v6177 = vpop.permute.xlu0 %6176
      %6180 = vset.pattern.permute.xlu0 0
      %6181 = vperm.xlu0 %6180, %v5754
      %v6182 = vpop.permute.xlu0 %6181
      %6185 = vset.pattern.permute.xlu0 0
      %6186 = vperm.xlu0 %6185, %v5755
      %v6187 = vpop.permute.xlu0 %6186
      %6190 = vset.pattern.permute.xlu0 0
      %6191 = vperm.xlu0 %6190, %v5756
      %v6192 = vpop.permute.xlu0 %6191
      %6195 = vset.pattern.permute.xlu0 0
      %6196 = vperm.xlu0 %6195, %v5757
      %v6197 = vpop.permute.xlu0 %6196
      %6200 = vset.pattern.permute.xlu0 0
      %6201 = vperm.xlu0 %6200, %v5758
      %v6202 = vpop.permute.xlu0 %6201
      %v6204 = vadd.f32 %v6047, %v5965
      %v6205 = vadd.f32 %v6052, %v5967
      %v6206 = vadd.f32 %v6057, %v5970
      %v6207 = vadd.f32 %v6062, %v5972
      %v6208 = vadd.f32 %v6067, %v5975
      %v6209 = vadd.f32 %v6072, %v5977
      %v6210 = vadd.f32 %v6077, %v5980
      %v6211 = vadd.f32 %v6082, %v5982
      %v6212 = vadd.f32 %v6087, %v5985
      %v6213 = vadd.f32 %v6092, %v5987
      %v6214 = vadd.f32 %v6097, %v5990
      %v6215 = vadd.f32 %v6102, %v5992
      %v6216 = vadd.f32 %v6107, %v5995
      %v6217 = vadd.f32 %v6112, %v5997
      %v6218 = vadd.f32 %v6117, %v6000
      %v6219 = vadd.f32 %v6122, %v6002
      %v6220 = vadd.f32 %v6127, %v6005
      %v6221 = vadd.f32 %v6132, %v6007
      %v6222 = vadd.f32 %v6137, %v6010
      %v6223 = vadd.f32 %v6142, %v6012
      %v6224 = vadd.f32 %v6147, %v6015
      %v6225 = vadd.f32 %v6152, %v6017
      %v6226 = vadd.f32 %v6157, %v6020
      %v6227 = vadd.f32 %v6162, %v6022
      %v6228 = vadd.f32 %v6167, %v6025
      %v6229 = vadd.f32 %v6172, %v6027
      %v6230 = vadd.f32 %v6177, %v6030
      %v6231 = vadd.f32 %v6182, %v6032
      %v6232 = vadd.f32 %v6187, %v6035
      %v6233 = vadd.f32 %v6192, %v6037
      %v6234 = vadd.f32 %v6197, %v6040
      %v6235 = vadd.f32 %v6202, %v6042
      %s6236 = scalar_lea.vmem %s12, 8
      %v6237 = vld [vmem:[%s6236] sm:$0xf]
      %v6238 = vld [vmem:[%s6236 + $0x4] sm:$0x1]
      %v6241 = vunpack.c.l.b16 %v6237
      %v6242 = vunpack.c.l.b16 %v6238
      %v6243 = vpack.c.b16 %v6242, %v6241
      %v6245 = vand.u32 %v6243, %v5773
      %6247 = vmatpush.bf16.msra.mxu0 0
      %6248 = vmatpush.bf16.msra.mxu0 0
      %6249 = vmatpush.bf16.msra.mxu0 0
      %6250 = vmatpush.bf16.msra.mxu0 0
      %6251 = vmatpush.bf16.msra.mxu0 0
      %6252 = vmatpush.bf16.msra.mxu0 0
      %6253 = vmatpush.bf16.msra.mxu0 0
      %6254 = vmatpush.bf16.msra.mxu0 %v6245
      %6255 = vmatmul.bf16.gmra.mxu0 %v5768
      %v6256 = vpop.f32.mrf.mxu0
      %v6257 = vadd.f32 0.0, %v6256
      %v6258 = vpop.f32.mrf.mxu0
      %6259 = vdwg.mxu0
      %v6260 = vpack.c.bf16 %v6257, %v6257
      %s6261 = scalar_lea.vmem %s10, 128
      %v6262 = vld [vmem:[%s6261] sm:$0xf]
      %v6263 = vld [vmem:[%s6261 + $0x4] sm:$0xf]
      %v6264 = vld [vmem:[%s6261 + $0x8] sm:$0xf]
      %v6265 = vld [vmem:[%s6261 + $0xc] sm:$0xf]
      %v6266 = vld [vmem:[%s6261 + $0x10] sm:$0xf]
      %v6267 = vld [vmem:[%s6261 + $0x14] sm:$0xf]
      %v6268 = vld [vmem:[%s6261 + $0x18] sm:$0xf]
      %v6269 = vld [vmem:[%s6261 + $0x1c] sm:$0xf]
      %v6270 = vld [vmem:[%s6261 + $0x20] sm:$0xf]
      %v6271 = vld [vmem:[%s6261 + $0x24] sm:$0xf]
      %v6272 = vld [vmem:[%s6261 + $0x28] sm:$0xf]
      %v6273 = vld [vmem:[%s6261 + $0x2c] sm:$0xf]
      %v6274 = vld [vmem:[%s6261 + $0x30] sm:$0xf]
      %v6275 = vld [vmem:[%s6261 + $0x34] sm:$0xf]
      %v6276 = vld [vmem:[%s6261 + $0x38] sm:$0xf]
      %v6277 = vld [vmem:[%s6261 + $0x3c] sm:$0xf]
      %v6278 = vld [vmem:[%s6261 + $0x40] sm:$0xf]
      %v6279 = vld [vmem:[%s6261 + $0x44] sm:$0xf]
      %v6280 = vld [vmem:[%s6261 + $0x48] sm:$0xf]
      %v6281 = vld [vmem:[%s6261 + $0x4c] sm:$0xf]
      %v6282 = vld [vmem:[%s6261 + $0x50] sm:$0xf]
      %v6283 = vld [vmem:[%s6261 + $0x54] sm:$0xf]
      %v6284 = vld [vmem:[%s6261 + $0x58] sm:$0xf]
      %v6285 = vld [vmem:[%s6261 + $0x5c] sm:$0xf]
      %v6286 = vld [vmem:[%s6261 + $0x60] sm:$0xf]
      %v6287 = vld [vmem:[%s6261 + $0x64] sm:$0xf]
      %v6288 = vld [vmem:[%s6261 + $0x68] sm:$0xf]
      %v6289 = vld [vmem:[%s6261 + $0x6c] sm:$0xf]
      %v6290 = vld [vmem:[%s6261 + $0x70] sm:$0xf]
      %v6291 = vld [vmem:[%s6261 + $0x74] sm:$0xf]
      %v6292 = vld [vmem:[%s6261 + $0x78] sm:$0xf]
      %v6293 = vld [vmem:[%s6261 + $0x7c] sm:$0xf]
      %v6326 = vunpack.c.l.b16 %v6262
      %v6327 = vunpack.c.l.b16 %v6263
      %v6328 = vunpack.c.l.b16 %v6264
      %v6329 = vunpack.c.l.b16 %v6265
      %v6330 = vunpack.c.l.b16 %v6266
      %v6331 = vunpack.c.l.b16 %v6267
      %v6332 = vunpack.c.l.b16 %v6268
      %v6333 = vunpack.c.l.b16 %v6269
      %v6334 = vunpack.c.l.b16 %v6270
      %v6335 = vunpack.c.l.b16 %v6271
      %v6336 = vunpack.c.l.b16 %v6272
      %v6337 = vunpack.c.l.b16 %v6273
      %v6338 = vunpack.c.l.b16 %v6274
      %v6339 = vunpack.c.l.b16 %v6275
      %v6340 = vunpack.c.l.b16 %v6276
      %v6341 = vunpack.c.l.b16 %v6277
      %v6342 = vunpack.c.l.b16 %v6278
      %v6343 = vunpack.c.l.b16 %v6279
      %v6344 = vunpack.c.l.b16 %v6280
      %v6345 = vunpack.c.l.b16 %v6281
      %v6346 = vunpack.c.l.b16 %v6282
      %v6347 = vunpack.c.l.b16 %v6283
      %v6348 = vunpack.c.l.b16 %v6284
      %v6349 = vunpack.c.l.b16 %v6285
      %v6350 = vunpack.c.l.b16 %v6286
      %v6351 = vunpack.c.l.b16 %v6287
      %v6352 = vunpack.c.l.b16 %v6288
      %v6353 = vunpack.c.l.b16 %v6289
      %v6354 = vunpack.c.l.b16 %v6290
      %v6355 = vunpack.c.l.b16 %v6291
      %v6356 = vunpack.c.l.b16 %v6292
      %v6357 = vunpack.c.l.b16 %v6293
      %v6358 = vpack.c.b16 %v6327, %v6326
      %v6359 = vpack.c.b16 %v6329, %v6328
      %v6360 = vpack.c.b16 %v6331, %v6330
      %v6361 = vpack.c.b16 %v6333, %v6332
      %v6362 = vpack.c.b16 %v6335, %v6334
      %v6363 = vpack.c.b16 %v6337, %v6336
      %v6364 = vpack.c.b16 %v6339, %v6338
      %v6365 = vpack.c.b16 %v6341, %v6340
      %v6366 = vpack.c.b16 %v6343, %v6342
      %v6367 = vpack.c.b16 %v6345, %v6344
      %v6368 = vpack.c.b16 %v6347, %v6346
      %v6369 = vpack.c.b16 %v6349, %v6348
      %v6370 = vpack.c.b16 %v6351, %v6350
      %v6371 = vpack.c.b16 %v6353, %v6352
      %v6372 = vpack.c.b16 %v6355, %v6354
      %v6373 = vpack.c.b16 %v6357, %v6356
      %v6375 = vsel %vm5903, %v6358, 0
      %v6378 = vsel %vm5903, %v6359, 0
      %v6381 = vsel %vm5903, %v6360, 0
      %v6384 = vsel %vm5903, %v6361, 0
      %v6387 = vsel %vm5903, %v6362, 0
      %v6390 = vsel %vm5903, %v6363, 0
      %v6393 = vsel %vm5903, %v6364, 0
      %v6396 = vsel %vm5903, %v6365, 0
      %v6399 = vsel %vm5903, %v6366, 0
      %v6402 = vsel %vm5903, %v6367, 0
      %v6405 = vsel %vm5903, %v6368, 0
      %v6408 = vsel %vm5903, %v6369, 0
      %v6411 = vsel %vm5903, %v6370, 0
      %v6414 = vsel %vm5903, %v6371, 0
      %v6417 = vsel %vm5903, %v6372, 0
      %v6420 = vsel %vm5903, %v6373, 0
      %v6423 = vsel %vm4873, %v6260, 0
      %6425 = vmatpush.bf16.msra.mxu0 0
      %6426 = vmatpush.bf16.msra.mxu0 0
      %6427 = vmatpush.bf16.msra.mxu0 0
      %6428 = vmatpush.bf16.msra.mxu0 0
      %6429 = vmatpush.bf16.msra.mxu0 0
      %6430 = vmatpush.bf16.msra.mxu0 0
      %6431 = vmatpush.bf16.msra.mxu0 0
      %6432 = vmatpush.bf16.msra.mxu0 %v6423
      %6433 = vmatmul.bf16.gmra.mxu0 %v6375
      %v6434 = vpop.f32.mrf.mxu0
      %v6435 = vadd.f32 0.0, %v6434
      %v6436 = vpop.f32.mrf.mxu0
      %v6437 = vadd.f32 0.0, %v6436
      %6438 = vmatmul.bf16.gmra.mxu0 %v6378
      %v6439 = vpop.f32.mrf.mxu0
      %v6440 = vadd.f32 0.0, %v6439
      %v6441 = vpop.f32.mrf.mxu0
      %v6442 = vadd.f32 0.0, %v6441
      %6443 = vmatmul.bf16.gmra.mxu0 %v6381
      %v6444 = vpop.f32.mrf.mxu0
      %v6445 = vadd.f32 0.0, %v6444
      %v6446 = vpop.f32.mrf.mxu0
      %v6447 = vadd.f32 0.0, %v6446
      %6448 = vmatmul.bf16.gmra.mxu0 %v6384
      %v6449 = vpop.f32.mrf.mxu0
      %v6450 = vadd.f32 0.0, %v6449
      %v6451 = vpop.f32.mrf.mxu0
      %v6452 = vadd.f32 0.0, %v6451
      %6453 = vmatmul.bf16.gmra.mxu0 %v6387
      %v6454 = vpop.f32.mrf.mxu0
      %v6455 = vadd.f32 0.0, %v6454
      %v6456 = vpop.f32.mrf.mxu0
      %v6457 = vadd.f32 0.0, %v6456
      %6458 = vmatmul.bf16.gmra.mxu0 %v6390
      %v6459 = vpop.f32.mrf.mxu0
      %v6460 = vadd.f32 0.0, %v6459
      %v6461 = vpop.f32.mrf.mxu0
      %v6462 = vadd.f32 0.0, %v6461
      %6463 = vmatmul.bf16.gmra.mxu0 %v6393
      %v6464 = vpop.f32.mrf.mxu0
      %v6465 = vadd.f32 0.0, %v6464
      %v6466 = vpop.f32.mrf.mxu0
      %v6467 = vadd.f32 0.0, %v6466
      %6468 = vmatmul.bf16.gmra.mxu0 %v6396
      %v6469 = vpop.f32.mrf.mxu0
      %v6470 = vadd.f32 0.0, %v6469
      %v6471 = vpop.f32.mrf.mxu0
      %v6472 = vadd.f32 0.0, %v6471
      %6473 = vmatmul.bf16.gmra.mxu0 %v6399
      %v6474 = vpop.f32.mrf.mxu0
      %v6475 = vadd.f32 0.0, %v6474
      %v6476 = vpop.f32.mrf.mxu0
      %v6477 = vadd.f32 0.0, %v6476
      %6478 = vmatmul.bf16.gmra.mxu0 %v6402
      %v6479 = vpop.f32.mrf.mxu0
      %v6480 = vadd.f32 0.0, %v6479
      %v6481 = vpop.f32.mrf.mxu0
      %v6482 = vadd.f32 0.0, %v6481
      %6483 = vmatmul.bf16.gmra.mxu0 %v6405
      %v6484 = vpop.f32.mrf.mxu0
      %v6485 = vadd.f32 0.0, %v6484
      %v6486 = vpop.f32.mrf.mxu0
      %v6487 = vadd.f32 0.0, %v6486
      %6488 = vmatmul.bf16.gmra.mxu0 %v6408
      %v6489 = vpop.f32.mrf.mxu0
      %v6490 = vadd.f32 0.0, %v6489
      %v6491 = vpop.f32.mrf.mxu0
      %v6492 = vadd.f32 0.0, %v6491
      %6493 = vmatmul.bf16.gmra.mxu0 %v6411
      %v6494 = vpop.f32.mrf.mxu0
      %v6495 = vadd.f32 0.0, %v6494
      %v6496 = vpop.f32.mrf.mxu0
      %v6497 = vadd.f32 0.0, %v6496
      %6498 = vmatmul.bf16.gmra.mxu0 %v6414
      %v6499 = vpop.f32.mrf.mxu0
      %v6500 = vadd.f32 0.0, %v6499
      %v6501 = vpop.f32.mrf.mxu0
      %v6502 = vadd.f32 0.0, %v6501
      %6503 = vmatmul.bf16.gmra.mxu0 %v6417
      %v6504 = vpop.f32.mrf.mxu0
      %v6505 = vadd.f32 0.0, %v6504
      %v6506 = vpop.f32.mrf.mxu0
      %v6507 = vadd.f32 0.0, %v6506
      %6508 = vmatmul.bf16.gmra.mxu0 %v6420
      %v6509 = vpop.f32.mrf.mxu0
      %v6510 = vadd.f32 0.0, %v6509
      %v6511 = vpop.f32.mrf.mxu0
      %v6512 = vadd.f32 0.0, %v6511
      %6513 = vdwg.mxu0
      %v6514 = vadd.f32 %v6204, %v6435
      %v6515 = vadd.f32 %v6205, %v6437
      %v6516 = vadd.f32 %v6206, %v6440
      %v6517 = vadd.f32 %v6207, %v6442
      %v6518 = vadd.f32 %v6208, %v6445
      %v6519 = vadd.f32 %v6209, %v6447
      %v6520 = vadd.f32 %v6210, %v6450
      %v6521 = vadd.f32 %v6211, %v6452
      %v6522 = vadd.f32 %v6212, %v6455
      %v6523 = vadd.f32 %v6213, %v6457
      %v6524 = vadd.f32 %v6214, %v6460
      %v6525 = vadd.f32 %v6215, %v6462
      %v6526 = vadd.f32 %v6216, %v6465
      %v6527 = vadd.f32 %v6217, %v6467
      %v6528 = vadd.f32 %v6218, %v6470
      %v6529 = vadd.f32 %v6219, %v6472
      %v6530 = vadd.f32 %v6220, %v6475
      %v6531 = vadd.f32 %v6221, %v6477
      %v6532 = vadd.f32 %v6222, %v6480
      %v6533 = vadd.f32 %v6223, %v6482
      %v6534 = vadd.f32 %v6224, %v6485
      %v6535 = vadd.f32 %v6225, %v6487
      %v6536 = vadd.f32 %v6226, %v6490
      %v6537 = vadd.f32 %v6227, %v6492
      %v6538 = vadd.f32 %v6228, %v6495
      %v6539 = vadd.f32 %v6229, %v6497
      %v6540 = vadd.f32 %v6230, %v6500
      %v6541 = vadd.f32 %v6231, %v6502
      %v6542 = vadd.f32 %v6232, %v6505
      %v6543 = vadd.f32 %v6233, %v6507
      %v6544 = vadd.f32 %v6234, %v6510
      %v6545 = vadd.f32 %v6235, %v6512
      %s6546 = scalar_lea.vmem %s12, 16
      %v6547 = vld [vmem:[%s6546] sm:$0xf]
      %v6548 = vld [vmem:[%s6546 + $0x4] sm:$0x1]
      %v6551 = vunpack.c.l.b16 %v6547
      %v6552 = vunpack.c.l.b16 %v6548
      %v6553 = vpack.c.b16 %v6552, %v6551
      %v6555 = vand.u32 %v6553, %v5773
      %6557 = vmatpush.bf16.msra.mxu0 0
      %6558 = vmatpush.bf16.msra.mxu0 0
      %6559 = vmatpush.bf16.msra.mxu0 0
      %6560 = vmatpush.bf16.msra.mxu0 0
      %6561 = vmatpush.bf16.msra.mxu0 0
      %6562 = vmatpush.bf16.msra.mxu0 0
      %6563 = vmatpush.bf16.msra.mxu0 0
      %6564 = vmatpush.bf16.msra.mxu0 %v6555
      %6565 = vmatmul.bf16.gmra.mxu0 %v5768
      %v6566 = vpop.f32.mrf.mxu0
      %v6567 = vadd.f32 0.0, %v6566
      %v6568 = vpop.f32.mrf.mxu0
      %6569 = vdwg.mxu0
      %v6570 = vpack.c.bf16 %v6567, %v6567
      %s6571 = scalar_lea.vmem %s10, 256
      %v6572 = vld [vmem:[%s6571] sm:$0xf]
      %v6573 = vld [vmem:[%s6571 + $0x4] sm:$0xf]
      %v6574 = vld [vmem:[%s6571 + $0x8] sm:$0xf]
      %v6575 = vld [vmem:[%s6571 + $0xc] sm:$0xf]
      %v6576 = vld [vmem:[%s6571 + $0x10] sm:$0xf]
      %v6577 = vld [vmem:[%s6571 + $0x14] sm:$0xf]
      %v6578 = vld [vmem:[%s6571 + $0x18] sm:$0xf]
      %v6579 = vld [vmem:[%s6571 + $0x1c] sm:$0xf]
      %v6580 = vld [vmem:[%s6571 + $0x20] sm:$0xf]
      %v6581 = vld [vmem:[%s6571 + $0x24] sm:$0xf]
      %v6582 = vld [vmem:[%s6571 + $0x28] sm:$0xf]
      %v6583 = vld [vmem:[%s6571 + $0x2c] sm:$0xf]
      %v6584 = vld [vmem:[%s6571 + $0x30] sm:$0xf]
      %v6585 = vld [vmem:[%s6571 + $0x34] sm:$0xf]
      %v6586 = vld [vmem:[%s6571 + $0x38] sm:$0xf]
      %v6587 = vld [vmem:[%s6571 + $0x3c] sm:$0xf]
      %v6588 = vld [vmem:[%s6571 + $0x40] sm:$0xf]
      %v6589 = vld [vmem:[%s6571 + $0x44] sm:$0xf]
      %v6590 = vld [vmem:[%s6571 + $0x48] sm:$0xf]
      %v6591 = vld [vmem:[%s6571 + $0x4c] sm:$0xf]
      %v6592 = vld [vmem:[%s6571 + $0x50] sm:$0xf]
      %v6593 = vld [vmem:[%s6571 + $0x54] sm:$0xf]
      %v6594 = vld [vmem:[%s6571 + $0x58] sm:$0xf]
      %v6595 = vld [vmem:[%s6571 + $0x5c] sm:$0xf]
      %v6596 = vld [vmem:[%s6571 + $0x60] sm:$0xf]
      %v6597 = vld [vmem:[%s6571 + $0x64] sm:$0xf]
      %v6598 = vld [vmem:[%s6571 + $0x68] sm:$0xf]
      %v6599 = vld [vmem:[%s6571 + $0x6c] sm:$0xf]
      %v6600 = vld [vmem:[%s6571 + $0x70] sm:$0xf]
      %v6601 = vld [vmem:[%s6571 + $0x74] sm:$0xf]
      %v6602 = vld [vmem:[%s6571 + $0x78] sm:$0xf]
      %v6603 = vld [vmem:[%s6571 + $0x7c] sm:$0xf]
      %v6636 = vunpack.c.l.b16 %v6572
      %v6637 = vunpack.c.l.b16 %v6573
      %v6638 = vunpack.c.l.b16 %v6574
      %v6639 = vunpack.c.l.b16 %v6575
      %v6640 = vunpack.c.l.b16 %v6576
      %v6641 = vunpack.c.l.b16 %v6577
      %v6642 = vunpack.c.l.b16 %v6578
      %v6643 = vunpack.c.l.b16 %v6579
      %v6644 = vunpack.c.l.b16 %v6580
      %v6645 = vunpack.c.l.b16 %v6581
      %v6646 = vunpack.c.l.b16 %v6582
      %v6647 = vunpack.c.l.b16 %v6583
      %v6648 = vunpack.c.l.b16 %v6584
      %v6649 = vunpack.c.l.b16 %v6585
      %v6650 = vunpack.c.l.b16 %v6586
      %v6651 = vunpack.c.l.b16 %v6587
      %v6652 = vunpack.c.l.b16 %v6588
      %v6653 = vunpack.c.l.b16 %v6589
      %v6654 = vunpack.c.l.b16 %v6590
      %v6655 = vunpack.c.l.b16 %v6591
      %v6656 = vunpack.c.l.b16 %v6592
      %v6657 = vunpack.c.l.b16 %v6593
      %v6658 = vunpack.c.l.b16 %v6594
      %v6659 = vunpack.c.l.b16 %v6595
      %v6660 = vunpack.c.l.b16 %v6596
      %v6661 = vunpack.c.l.b16 %v6597
      %v6662 = vunpack.c.l.b16 %v6598
      %v6663 = vunpack.c.l.b16 %v6599
      %v6664 = vunpack.c.l.b16 %v6600
      %v6665 = vunpack.c.l.b16 %v6601
      %v6666 = vunpack.c.l.b16 %v6602
      %v6667 = vunpack.c.l.b16 %v6603
      %v6668 = vpack.c.b16 %v6637, %v6636
      %v6669 = vpack.c.b16 %v6639, %v6638
      %v6670 = vpack.c.b16 %v6641, %v6640
      %v6671 = vpack.c.b16 %v6643, %v6642
      %v6672 = vpack.c.b16 %v6645, %v6644
      %v6673 = vpack.c.b16 %v6647, %v6646
      %v6674 = vpack.c.b16 %v6649, %v6648
      %v6675 = vpack.c.b16 %v6651, %v6650
      %v6676 = vpack.c.b16 %v6653, %v6652
      %v6677 = vpack.c.b16 %v6655, %v6654
      %v6678 = vpack.c.b16 %v6657, %v6656
      %v6679 = vpack.c.b16 %v6659, %v6658
      %v6680 = vpack.c.b16 %v6661, %v6660
      %v6681 = vpack.c.b16 %v6663, %v6662
      %v6682 = vpack.c.b16 %v6665, %v6664
      %v6683 = vpack.c.b16 %v6667, %v6666
      %v6685 = vsel %vm5903, %v6668, 0
      %v6688 = vsel %vm5903, %v6669, 0
      %v6691 = vsel %vm5903, %v6670, 0
      %v6694 = vsel %vm5903, %v6671, 0
      %v6697 = vsel %vm5903, %v6672, 0
      %v6700 = vsel %vm5903, %v6673, 0
      %v6703 = vsel %vm5903, %v6674, 0
      %v6706 = vsel %vm5903, %v6675, 0
      %v6709 = vsel %vm5903, %v6676, 0
      %v6712 = vsel %vm5903, %v6677, 0
      %v6715 = vsel %vm5903, %v6678, 0
      %v6718 = vsel %vm5903, %v6679, 0
      %v6721 = vsel %vm5903, %v6680, 0
      %v6724 = vsel %vm5903, %v6681, 0
      %v6727 = vsel %vm5903, %v6682, 0
      %v6730 = vsel %vm5903, %v6683, 0
      %v6733 = vsel %vm4873, %v6570, 0
      %6735 = vmatpush.bf16.msra.mxu0 0
      %6736 = vmatpush.bf16.msra.mxu0 0
      %6737 = vmatpush.bf16.msra.mxu0 0
      %6738 = vmatpush.bf16.msra.mxu0 0
      %6739 = vmatpush.bf16.msra.mxu0 0
      %6740 = vmatpush.bf16.msra.mxu0 0
      %6741 = vmatpush.bf16.msra.mxu0 0
      %6742 = vmatpush.bf16.msra.mxu0 %v6733
      %6743 = vmatmul.bf16.gmra.mxu0 %v6685
      %v6744 = vpop.f32.mrf.mxu0
      %v6745 = vadd.f32 0.0, %v6744
      %v6746 = vpop.f32.mrf.mxu0
      %v6747 = vadd.f32 0.0, %v6746
      %6748 = vmatmul.bf16.gmra.mxu0 %v6688
      %v6749 = vpop.f32.mrf.mxu0
      %v6750 = vadd.f32 0.0, %v6749
      %v6751 = vpop.f32.mrf.mxu0
      %v6752 = vadd.f32 0.0, %v6751
      %6753 = vmatmul.bf16.gmra.mxu0 %v6691
      %v6754 = vpop.f32.mrf.mxu0
      %v6755 = vadd.f32 0.0, %v6754
      %v6756 = vpop.f32.mrf.mxu0
      %v6757 = vadd.f32 0.0, %v6756
      %6758 = vmatmul.bf16.gmra.mxu0 %v6694
      %v6759 = vpop.f32.mrf.mxu0
      %v6760 = vadd.f32 0.0, %v6759
      %v6761 = vpop.f32.mrf.mxu0
      %v6762 = vadd.f32 0.0, %v6761
      %6763 = vmatmul.bf16.gmra.mxu0 %v6697
      %v6764 = vpop.f32.mrf.mxu0
      %v6765 = vadd.f32 0.0, %v6764
      %v6766 = vpop.f32.mrf.mxu0
      %v6767 = vadd.f32 0.0, %v6766
      %6768 = vmatmul.bf16.gmra.mxu0 %v6700
      %v6769 = vpop.f32.mrf.mxu0
      %v6770 = vadd.f32 0.0, %v6769
      %v6771 = vpop.f32.mrf.mxu0
      %v6772 = vadd.f32 0.0, %v6771
      %6773 = vmatmul.bf16.gmra.mxu0 %v6703
      %v6774 = vpop.f32.mrf.mxu0
      %v6775 = vadd.f32 0.0, %v6774
      %v6776 = vpop.f32.mrf.mxu0
      %v6777 = vadd.f32 0.0, %v6776
      %6778 = vmatmul.bf16.gmra.mxu0 %v6706
      %v6779 = vpop.f32.mrf.mxu0
      %v6780 = vadd.f32 0.0, %v6779
      %v6781 = vpop.f32.mrf.mxu0
      %v6782 = vadd.f32 0.0, %v6781
      %6783 = vmatmul.bf16.gmra.mxu0 %v6709
      %v6784 = vpop.f32.mrf.mxu0
      %v6785 = vadd.f32 0.0, %v6784
      %v6786 = vpop.f32.mrf.mxu0
      %v6787 = vadd.f32 0.0, %v6786
      %6788 = vmatmul.bf16.gmra.mxu0 %v6712
      %v6789 = vpop.f32.mrf.mxu0
      %v6790 = vadd.f32 0.0, %v6789
      %v6791 = vpop.f32.mrf.mxu0
      %v6792 = vadd.f32 0.0, %v6791
      %6793 = vmatmul.bf16.gmra.mxu0 %v6715
      %v6794 = vpop.f32.mrf.mxu0
      %v6795 = vadd.f32 0.0, %v6794
      %v6796 = vpop.f32.mrf.mxu0
      %v6797 = vadd.f32 0.0, %v6796
      %6798 = vmatmul.bf16.gmra.mxu0 %v6718
      %v6799 = vpop.f32.mrf.mxu0
      %v6800 = vadd.f32 0.0, %v6799
      %v6801 = vpop.f32.mrf.mxu0
      %v6802 = vadd.f32 0.0, %v6801
      %6803 = vmatmul.bf16.gmra.mxu0 %v6721
      %v6804 = vpop.f32.mrf.mxu0
      %v6805 = vadd.f32 0.0, %v6804
      %v6806 = vpop.f32.mrf.mxu0
      %v6807 = vadd.f32 0.0, %v6806
      %6808 = vmatmul.bf16.gmra.mxu0 %v6724
      %v6809 = vpop.f32.mrf.mxu0
      %v6810 = vadd.f32 0.0, %v6809
      %v6811 = vpop.f32.mrf.mxu0
      %v6812 = vadd.f32 0.0, %v6811
      %6813 = vmatmul.bf16.gmra.mxu0 %v6727
      %v6814 = vpop.f32.mrf.mxu0
      %v6815 = vadd.f32 0.0, %v6814
      %v6816 = vpop.f32.mrf.mxu0
      %v6817 = vadd.f32 0.0, %v6816
      %6818 = vmatmul.bf16.gmra.mxu0 %v6730
      %v6819 = vpop.f32.mrf.mxu0
      %v6820 = vadd.f32 0.0, %v6819
      %v6821 = vpop.f32.mrf.mxu0
      %v6822 = vadd.f32 0.0, %v6821
      %6823 = vdwg.mxu0
      %v6824 = vadd.f32 %v6514, %v6745
      %v6825 = vadd.f32 %v6515, %v6747
      %v6826 = vadd.f32 %v6516, %v6750
      %v6827 = vadd.f32 %v6517, %v6752
      %v6828 = vadd.f32 %v6518, %v6755
      %v6829 = vadd.f32 %v6519, %v6757
      %v6830 = vadd.f32 %v6520, %v6760
      %v6831 = vadd.f32 %v6521, %v6762
      %v6832 = vadd.f32 %v6522, %v6765
      %v6833 = vadd.f32 %v6523, %v6767
      %v6834 = vadd.f32 %v6524, %v6770
      %v6835 = vadd.f32 %v6525, %v6772
      %v6836 = vadd.f32 %v6526, %v6775
      %v6837 = vadd.f32 %v6527, %v6777
      %v6838 = vadd.f32 %v6528, %v6780
      %v6839 = vadd.f32 %v6529, %v6782
      %v6840 = vadd.f32 %v6530, %v6785
      %v6841 = vadd.f32 %v6531, %v6787
      %v6842 = vadd.f32 %v6532, %v6790
      %v6843 = vadd.f32 %v6533, %v6792
      %v6844 = vadd.f32 %v6534, %v6795
      %v6845 = vadd.f32 %v6535, %v6797
      %v6846 = vadd.f32 %v6536, %v6800
      %v6847 = vadd.f32 %v6537, %v6802
      %v6848 = vadd.f32 %v6538, %v6805
      %v6849 = vadd.f32 %v6539, %v6807
      %v6850 = vadd.f32 %v6540, %v6810
      %v6851 = vadd.f32 %v6541, %v6812
      %v6852 = vadd.f32 %v6542, %v6815
      %v6853 = vadd.f32 %v6543, %v6817
      %v6854 = vadd.f32 %v6544, %v6820
      %v6855 = vadd.f32 %v6545, %v6822
      %s6856 = scalar_lea.vmem %s12, 24
      %v6857 = vld [vmem:[%s6856] sm:$0xf]
      %v6858 = vld [vmem:[%s6856 + $0x4] sm:$0x1]
      %v6861 = vunpack.c.l.b16 %v6857
      %v6862 = vunpack.c.l.b16 %v6858
      %v6863 = vpack.c.b16 %v6862, %v6861
      %v6865 = vand.u32 %v6863, %v5773
      %6867 = vmatpush.bf16.msra.mxu0 0
      %6868 = vmatpush.bf16.msra.mxu0 0
      %6869 = vmatpush.bf16.msra.mxu0 0
      %6870 = vmatpush.bf16.msra.mxu0 0
      %6871 = vmatpush.bf16.msra.mxu0 0
      %6872 = vmatpush.bf16.msra.mxu0 0
      %6873 = vmatpush.bf16.msra.mxu0 0
      %6874 = vmatpush.bf16.msra.mxu0 %v6865
      %6875 = vmatmul.bf16.gmra.mxu0 %v5768
      %v6876 = vpop.f32.mrf.mxu0
      %v6877 = vadd.f32 0.0, %v6876
      %v6878 = vpop.f32.mrf.mxu0
      %6879 = vdwg.mxu0
      %v6880 = vpack.c.bf16 %v6877, %v6877
      %s6881 = scalar_lea.vmem %s10, 384
      %v6882 = vld [vmem:[%s6881] sm:$0xf]
      %v6883 = vld [vmem:[%s6881 + $0x4] sm:$0xf]
      %v6884 = vld [vmem:[%s6881 + $0x8] sm:$0xf]
      %v6885 = vld [vmem:[%s6881 + $0xc] sm:$0xf]
      %v6886 = vld [vmem:[%s6881 + $0x10] sm:$0xf]
      %v6887 = vld [vmem:[%s6881 + $0x14] sm:$0xf]
      %v6888 = vld [vmem:[%s6881 + $0x18] sm:$0xf]
      %v6889 = vld [vmem:[%s6881 + $0x1c] sm:$0xf]
      %v6890 = vld [vmem:[%s6881 + $0x20] sm:$0xf]
      %v6891 = vld [vmem:[%s6881 + $0x24] sm:$0xf]
      %v6892 = vld [vmem:[%s6881 + $0x28] sm:$0xf]
      %v6893 = vld [vmem:[%s6881 + $0x2c] sm:$0xf]
      %v6894 = vld [vmem:[%s6881 + $0x30] sm:$0xf]
      %v6895 = vld [vmem:[%s6881 + $0x34] sm:$0xf]
      %v6896 = vld [vmem:[%s6881 + $0x38] sm:$0xf]
      %v6897 = vld [vmem:[%s6881 + $0x3c] sm:$0xf]
      %v6898 = vld [vmem:[%s6881 + $0x40] sm:$0xf]
      %v6899 = vld [vmem:[%s6881 + $0x44] sm:$0xf]
      %v6900 = vld [vmem:[%s6881 + $0x48] sm:$0xf]
      %v6901 = vld [vmem:[%s6881 + $0x4c] sm:$0xf]
      %v6902 = vld [vmem:[%s6881 + $0x50] sm:$0xf]
      %v6903 = vld [vmem:[%s6881 + $0x54] sm:$0xf]
      %v6904 = vld [vmem:[%s6881 + $0x58] sm:$0xf]
      %v6905 = vld [vmem:[%s6881 + $0x5c] sm:$0xf]
      %v6906 = vld [vmem:[%s6881 + $0x60] sm:$0xf]
      %v6907 = vld [vmem:[%s6881 + $0x64] sm:$0xf]
      %v6908 = vld [vmem:[%s6881 + $0x68] sm:$0xf]
      %v6909 = vld [vmem:[%s6881 + $0x6c] sm:$0xf]
      %v6910 = vld [vmem:[%s6881 + $0x70] sm:$0xf]
      %v6911 = vld [vmem:[%s6881 + $0x74] sm:$0xf]
      %v6912 = vld [vmem:[%s6881 + $0x78] sm:$0xf]
      %v6913 = vld [vmem:[%s6881 + $0x7c] sm:$0xf]
      %v6946 = vunpack.c.l.b16 %v6882
      %v6947 = vunpack.c.l.b16 %v6883
      %v6948 = vunpack.c.l.b16 %v6884
      %v6949 = vunpack.c.l.b16 %v6885
      %v6950 = vunpack.c.l.b16 %v6886
      %v6951 = vunpack.c.l.b16 %v6887
      %v6952 = vunpack.c.l.b16 %v6888
      %v6953 = vunpack.c.l.b16 %v6889
      %v6954 = vunpack.c.l.b16 %v6890
      %v6955 = vunpack.c.l.b16 %v6891
      %v6956 = vunpack.c.l.b16 %v6892
      %v6957 = vunpack.c.l.b16 %v6893
      %v6958 = vunpack.c.l.b16 %v6894
      %v6959 = vunpack.c.l.b16 %v6895
      %v6960 = vunpack.c.l.b16 %v6896
      %v6961 = vunpack.c.l.b16 %v6897
      %v6962 = vunpack.c.l.b16 %v6898
      %v6963 = vunpack.c.l.b16 %v6899
      %v6964 = vunpack.c.l.b16 %v6900
      %v6965 = vunpack.c.l.b16 %v6901
      %v6966 = vunpack.c.l.b16 %v6902
      %v6967 = vunpack.c.l.b16 %v6903
      %v6968 = vunpack.c.l.b16 %v6904
      %v6969 = vunpack.c.l.b16 %v6905
      %v6970 = vunpack.c.l.b16 %v6906
      %v6971 = vunpack.c.l.b16 %v6907
      %v6972 = vunpack.c.l.b16 %v6908
      %v6973 = vunpack.c.l.b16 %v6909
      %v6974 = vunpack.c.l.b16 %v6910
      %v6975 = vunpack.c.l.b16 %v6911
      %v6976 = vunpack.c.l.b16 %v6912
      %v6977 = vunpack.c.l.b16 %v6913
      %v6978 = vpack.c.b16 %v6947, %v6946
      %v6979 = vpack.c.b16 %v6949, %v6948
      %v6980 = vpack.c.b16 %v6951, %v6950
      %v6981 = vpack.c.b16 %v6953, %v6952
      %v6982 = vpack.c.b16 %v6955, %v6954
      %v6983 = vpack.c.b16 %v6957, %v6956
      %v6984 = vpack.c.b16 %v6959, %v6958
      %v6985 = vpack.c.b16 %v6961, %v6960
      %v6986 = vpack.c.b16 %v6963, %v6962
      %v6987 = vpack.c.b16 %v6965, %v6964
      %v6988 = vpack.c.b16 %v6967, %v6966
      %v6989 = vpack.c.b16 %v6969, %v6968
      %v6990 = vpack.c.b16 %v6971, %v6970
      %v6991 = vpack.c.b16 %v6973, %v6972
      %v6992 = vpack.c.b16 %v6975, %v6974
      %v6993 = vpack.c.b16 %v6977, %v6976
      %v6995 = vsel %vm5903, %v6978, 0
      %v6998 = vsel %vm5903, %v6979, 0
      %v7001 = vsel %vm5903, %v6980, 0
      %v7004 = vsel %vm5903, %v6981, 0
      %v7007 = vsel %vm5903, %v6982, 0
      %v7010 = vsel %vm5903, %v6983, 0
      %v7013 = vsel %vm5903, %v6984, 0
      %v7016 = vsel %vm5903, %v6985, 0
      %v7019 = vsel %vm5903, %v6986, 0
      %v7022 = vsel %vm5903, %v6987, 0
      %v7025 = vsel %vm5903, %v6988, 0
      %v7028 = vsel %vm5903, %v6989, 0
      %v7031 = vsel %vm5903, %v6990, 0
      %v7034 = vsel %vm5903, %v6991, 0
      %v7037 = vsel %vm5903, %v6992, 0
      %v7040 = vsel %vm5903, %v6993, 0
      %v7043 = vsel %vm4873, %v6880, 0
      %7045 = vmatpush.bf16.msra.mxu0 0
      %7046 = vmatpush.bf16.msra.mxu0 0
      %7047 = vmatpush.bf16.msra.mxu0 0
      %7048 = vmatpush.bf16.msra.mxu0 0
      %7049 = vmatpush.bf16.msra.mxu0 0
      %7050 = vmatpush.bf16.msra.mxu0 0
      %7051 = vmatpush.bf16.msra.mxu0 0
      %7052 = vmatpush.bf16.msra.mxu0 %v7043
      %7053 = vmatmul.bf16.gmra.mxu0 %v6995
      %v7054 = vpop.f32.mrf.mxu0
      %v7055 = vadd.f32 0.0, %v7054
      %v7056 = vpop.f32.mrf.mxu0
      %v7057 = vadd.f32 0.0, %v7056
      %7058 = vmatmul.bf16.gmra.mxu0 %v6998
      %v7059 = vpop.f32.mrf.mxu0
      %v7060 = vadd.f32 0.0, %v7059
      %v7061 = vpop.f32.mrf.mxu0
      %v7062 = vadd.f32 0.0, %v7061
      %7063 = vmatmul.bf16.gmra.mxu0 %v7001
      %v7064 = vpop.f32.mrf.mxu0
      %v7065 = vadd.f32 0.0, %v7064
      %v7066 = vpop.f32.mrf.mxu0
      %v7067 = vadd.f32 0.0, %v7066
      %7068 = vmatmul.bf16.gmra.mxu0 %v7004
      %v7069 = vpop.f32.mrf.mxu0
      %v7070 = vadd.f32 0.0, %v7069
      %v7071 = vpop.f32.mrf.mxu0
      %v7072 = vadd.f32 0.0, %v7071
      %7073 = vmatmul.bf16.gmra.mxu0 %v7007
      %v7074 = vpop.f32.mrf.mxu0
      %v7075 = vadd.f32 0.0, %v7074
      %v7076 = vpop.f32.mrf.mxu0
      %v7077 = vadd.f32 0.0, %v7076
      %7078 = vmatmul.bf16.gmra.mxu0 %v7010
      %v7079 = vpop.f32.mrf.mxu0
      %v7080 = vadd.f32 0.0, %v7079
      %v7081 = vpop.f32.mrf.mxu0
      %v7082 = vadd.f32 0.0, %v7081
      %7083 = vmatmul.bf16.gmra.mxu0 %v7013
      %v7084 = vpop.f32.mrf.mxu0
      %v7085 = vadd.f32 0.0, %v7084
      %v7086 = vpop.f32.mrf.mxu0
      %v7087 = vadd.f32 0.0, %v7086
      %7088 = vmatmul.bf16.gmra.mxu0 %v7016
      %v7089 = vpop.f32.mrf.mxu0
      %v7090 = vadd.f32 0.0, %v7089
      %v7091 = vpop.f32.mrf.mxu0
      %v7092 = vadd.f32 0.0, %v7091
      %7093 = vmatmul.bf16.gmra.mxu0 %v7019
      %v7094 = vpop.f32.mrf.mxu0
      %v7095 = vadd.f32 0.0, %v7094
      %v7096 = vpop.f32.mrf.mxu0
      %v7097 = vadd.f32 0.0, %v7096
      %7098 = vmatmul.bf16.gmra.mxu0 %v7022
      %v7099 = vpop.f32.mrf.mxu0
      %v7100 = vadd.f32 0.0, %v7099
      %v7101 = vpop.f32.mrf.mxu0
      %v7102 = vadd.f32 0.0, %v7101
      %7103 = vmatmul.bf16.gmra.mxu0 %v7025
      %v7104 = vpop.f32.mrf.mxu0
      %v7105 = vadd.f32 0.0, %v7104
      %v7106 = vpop.f32.mrf.mxu0
      %v7107 = vadd.f32 0.0, %v7106
      %7108 = vmatmul.bf16.gmra.mxu0 %v7028
      %v7109 = vpop.f32.mrf.mxu0
      %v7110 = vadd.f32 0.0, %v7109
      %v7111 = vpop.f32.mrf.mxu0
      %v7112 = vadd.f32 0.0, %v7111
      %7113 = vmatmul.bf16.gmra.mxu0 %v7031
      %v7114 = vpop.f32.mrf.mxu0
      %v7115 = vadd.f32 0.0, %v7114
      %v7116 = vpop.f32.mrf.mxu0
      %v7117 = vadd.f32 0.0, %v7116
      %7118 = vmatmul.bf16.gmra.mxu0 %v7034
      %v7119 = vpop.f32.mrf.mxu0
      %v7120 = vadd.f32 0.0, %v7119
      %v7121 = vpop.f32.mrf.mxu0
      %v7122 = vadd.f32 0.0, %v7121
      %7123 = vmatmul.bf16.gmra.mxu0 %v7037
      %v7124 = vpop.f32.mrf.mxu0
      %v7125 = vadd.f32 0.0, %v7124
      %v7126 = vpop.f32.mrf.mxu0
      %v7127 = vadd.f32 0.0, %v7126
      %7128 = vmatmul.bf16.gmra.mxu0 %v7040
      %v7129 = vpop.f32.mrf.mxu0
      %v7130 = vadd.f32 0.0, %v7129
      %v7131 = vpop.f32.mrf.mxu0
      %v7132 = vadd.f32 0.0, %v7131
      %7133 = vdwg.mxu0
      %v7134 = vadd.f32 %v6824, %v7055
      %v7135 = vadd.f32 %v6825, %v7057
      %v7136 = vadd.f32 %v6826, %v7060
      %v7137 = vadd.f32 %v6827, %v7062
      %v7138 = vadd.f32 %v6828, %v7065
      %v7139 = vadd.f32 %v6829, %v7067
      %v7140 = vadd.f32 %v6830, %v7070
      %v7141 = vadd.f32 %v6831, %v7072
      %v7142 = vadd.f32 %v6832, %v7075
      %v7143 = vadd.f32 %v6833, %v7077
      %v7144 = vadd.f32 %v6834, %v7080
      %v7145 = vadd.f32 %v6835, %v7082
      %v7146 = vadd.f32 %v6836, %v7085
      %v7147 = vadd.f32 %v6837, %v7087
      %v7148 = vadd.f32 %v6838, %v7090
      %v7149 = vadd.f32 %v6839, %v7092
      %v7150 = vadd.f32 %v6840, %v7095
      %v7151 = vadd.f32 %v6841, %v7097
      %v7152 = vadd.f32 %v6842, %v7100
      %v7153 = vadd.f32 %v6843, %v7102
      %v7154 = vadd.f32 %v6844, %v7105
      %v7155 = vadd.f32 %v6845, %v7107
      %v7156 = vadd.f32 %v6846, %v7110
      %v7157 = vadd.f32 %v6847, %v7112
      %v7158 = vadd.f32 %v6848, %v7115
      %v7159 = vadd.f32 %v6849, %v7117
      %v7160 = vadd.f32 %v6850, %v7120
      %v7161 = vadd.f32 %v6851, %v7122
      %v7162 = vadd.f32 %v6852, %v7125
      %v7163 = vadd.f32 %v6853, %v7127
      %v7164 = vadd.f32 %v6854, %v7130
      %v7165 = vadd.f32 %v6855, %v7132
      %vm7166 = vcmp.ge.f32.partialorder %v7134, 0.0
      %vm7167 = vcmp.ge.f32.partialorder %v7135, 0.0
      %vm7168 = vcmp.ge.f32.partialorder %v7136, 0.0
      %vm7169 = vcmp.ge.f32.partialorder %v7137, 0.0
      %vm7170 = vcmp.ge.f32.partialorder %v7138, 0.0
      %vm7171 = vcmp.ge.f32.partialorder %v7139, 0.0
      %vm7172 = vcmp.ge.f32.partialorder %v7140, 0.0
      %vm7173 = vcmp.ge.f32.partialorder %v7141, 0.0
      %vm7174 = vcmp.ge.f32.partialorder %v7142, 0.0
      %vm7175 = vcmp.ge.f32.partialorder %v7143, 0.0
      %vm7176 = vcmp.ge.f32.partialorder %v7144, 0.0
      %vm7177 = vcmp.ge.f32.partialorder %v7145, 0.0
      %vm7178 = vcmp.ge.f32.partialorder %v7146, 0.0
      %vm7179 = vcmp.ge.f32.partialorder %v7147, 0.0
      %vm7180 = vcmp.ge.f32.partialorder %v7148, 0.0
      %vm7181 = vcmp.ge.f32.partialorder %v7149, 0.0
      %vm7182 = vcmp.ge.f32.partialorder %v7150, 0.0
      %vm7183 = vcmp.ge.f32.partialorder %v7151, 0.0
      %vm7184 = vcmp.ge.f32.partialorder %v7152, 0.0
      %vm7185 = vcmp.ge.f32.partialorder %v7153, 0.0
      %vm7186 = vcmp.ge.f32.partialorder %v7154, 0.0
      %vm7187 = vcmp.ge.f32.partialorder %v7155, 0.0
      %vm7188 = vcmp.ge.f32.partialorder %v7156, 0.0
      %vm7189 = vcmp.ge.f32.partialorder %v7157, 0.0
      %vm7190 = vcmp.ge.f32.partialorder %v7158, 0.0
      %vm7191 = vcmp.ge.f32.partialorder %v7159, 0.0
      %vm7192 = vcmp.ge.f32.partialorder %v7160, 0.0
      %vm7193 = vcmp.ge.f32.partialorder %v7161, 0.0
      %vm7194 = vcmp.ge.f32.partialorder %v7162, 0.0
      %vm7195 = vcmp.ge.f32.partialorder %v7163, 0.0
      %vm7196 = vcmp.ge.f32.partialorder %v7164, 0.0
      %vm7197 = vcmp.ge.f32.partialorder %v7165, 0.0
      %v7198 = vmul.f32 %v7134, 0.01
      %v7199 = vmul.f32 %v7135, 0.01
      %v7200 = vmul.f32 %v7136, 0.01
      %v7201 = vmul.f32 %v7137, 0.01
      %v7202 = vmul.f32 %v7138, 0.01
      %v7203 = vmul.f32 %v7139, 0.01
      %v7204 = vmul.f32 %v7140, 0.01
      %v7205 = vmul.f32 %v7141, 0.01
      %v7206 = vmul.f32 %v7142, 0.01
      %v7207 = vmul.f32 %v7143, 0.01
      %v7208 = vmul.f32 %v7144, 0.01
      %v7209 = vmul.f32 %v7145, 0.01
      %v7210 = vmul.f32 %v7146, 0.01
      %v7211 = vmul.f32 %v7147, 0.01
      %v7212 = vmul.f32 %v7148, 0.01
      %v7213 = vmul.f32 %v7149, 0.01
      %v7214 = vmul.f32 %v7150, 0.01
      %v7215 = vmul.f32 %v7151, 0.01
      %v7216 = vmul.f32 %v7152, 0.01
      %v7217 = vmul.f32 %v7153, 0.01
      %v7218 = vmul.f32 %v7154, 0.01
      %v7219 = vmul.f32 %v7155, 0.01
      %v7220 = vmul.f32 %v7156, 0.01
      %v7221 = vmul.f32 %v7157, 0.01
      %v7222 = vmul.f32 %v7158, 0.01
      %v7223 = vmul.f32 %v7159, 0.01
      %v7224 = vmul.f32 %v7160, 0.01
      %v7225 = vmul.f32 %v7161, 0.01
      %v7226 = vmul.f32 %v7162, 0.01
      %v7227 = vmul.f32 %v7163, 0.01
      %v7228 = vmul.f32 %v7164, 0.01
      %v7229 = vmul.f32 %v7165, 0.01
      %v7230 = vsel %vm7166, %v7134, %v7198
      %v7231 = vsel %vm7167, %v7135, %v7199
      %v7232 = vsel %vm7168, %v7136, %v7200
      %v7233 = vsel %vm7169, %v7137, %v7201
      %v7234 = vsel %vm7170, %v7138, %v7202
      %v7235 = vsel %vm7171, %v7139, %v7203
      %v7236 = vsel %vm7172, %v7140, %v7204
      %v7237 = vsel %vm7173, %v7141, %v7205
      %v7238 = vsel %vm7174, %v7142, %v7206
      %v7239 = vsel %vm7175, %v7143, %v7207
      %v7240 = vsel %vm7176, %v7144, %v7208
      %v7241 = vsel %vm7177, %v7145, %v7209
      %v7242 = vsel %vm7178, %v7146, %v7210
      %v7243 = vsel %vm7179, %v7147, %v7211
      %v7244 = vsel %vm7180, %v7148, %v7212
      %v7245 = vsel %vm7181, %v7149, %v7213
      %v7246 = vsel %vm7182, %v7150, %v7214
      %v7247 = vsel %vm7183, %v7151, %v7215
      %v7248 = vsel %vm7184, %v7152, %v7216
      %v7249 = vsel %vm7185, %v7153, %v7217
      %v7250 = vsel %vm7186, %v7154, %v7218
      %v7251 = vsel %vm7187, %v7155, %v7219
      %v7252 = vsel %vm7188, %v7156, %v7220
      %v7253 = vsel %vm7189, %v7157, %v7221
      %v7254 = vsel %vm7190, %v7158, %v7222
      %v7255 = vsel %vm7191, %v7159, %v7223
      %v7256 = vsel %vm7192, %v7160, %v7224
      %v7257 = vsel %vm7193, %v7161, %v7225
      %v7258 = vsel %vm7194, %v7162, %v7226
      %v7259 = vsel %vm7195, %v7163, %v7227
      %v7260 = vsel %vm7196, %v7164, %v7228
      %v7261 = vsel %vm7197, %v7165, %v7229
      %v7262 = vpack.c.bf16 %v7230, %v7230
      %v7263 = vpack.c.bf16 %v7231, %v7231
      %v7264 = vpack.c.bf16 %v7232, %v7232
      %v7265 = vpack.c.bf16 %v7233, %v7233
      %v7266 = vpack.c.bf16 %v7234, %v7234
      %v7267 = vpack.c.bf16 %v7235, %v7235
      %v7268 = vpack.c.bf16 %v7236, %v7236
      %v7269 = vpack.c.bf16 %v7237, %v7237
      %v7270 = vpack.c.bf16 %v7238, %v7238
      %v7271 = vpack.c.bf16 %v7239, %v7239
      %v7272 = vpack.c.bf16 %v7240, %v7240
      %v7273 = vpack.c.bf16 %v7241, %v7241
      %v7274 = vpack.c.bf16 %v7242, %v7242
      %v7275 = vpack.c.bf16 %v7243, %v7243
      %v7276 = vpack.c.bf16 %v7244, %v7244
      %v7277 = vpack.c.bf16 %v7245, %v7245
      %v7278 = vpack.c.bf16 %v7246, %v7246
      %v7279 = vpack.c.bf16 %v7247, %v7247
      %v7280 = vpack.c.bf16 %v7248, %v7248
      %v7281 = vpack.c.bf16 %v7249, %v7249
      %v7282 = vpack.c.bf16 %v7250, %v7250
      %v7283 = vpack.c.bf16 %v7251, %v7251
      %v7284 = vpack.c.bf16 %v7252, %v7252
      %v7285 = vpack.c.bf16 %v7253, %v7253
      %v7286 = vpack.c.bf16 %v7254, %v7254
      %v7287 = vpack.c.bf16 %v7255, %v7255
      %v7288 = vpack.c.bf16 %v7256, %v7256
      %v7289 = vpack.c.bf16 %v7257, %v7257
      %v7290 = vpack.c.bf16 %v7258, %v7258
      %v7291 = vpack.c.bf16 %v7259, %v7259
      %v7292 = vpack.c.bf16 %v7260, %v7260
      %v7293 = vpack.c.bf16 %v7261, %v7261
      %v7294 = vld [vmem:[%s13] sm:$0xf]
      %v7295 = vld [vmem:[%s13 + $0x4] sm:$0xf]
      %s7296 = scalar_lea.vmem %s13, 8
      %v7297 = vld [vmem:[%s7296] sm:$0xf]
      %v7298 = vld [vmem:[%s7296 + $0x4] sm:$0xf]
      %v7307 = vunpack.c.l.b16 %v7270
      %v7308 = vunpack.c.l.b16 %v7271
      %v7309 = vunpack.c.l.b16 %v7272
      %v7310 = vunpack.c.l.b16 %v7273
      %v7311 = vunpack.c.l.b16 %v7274
      %v7312 = vunpack.c.l.b16 %v7275
      %v7313 = vunpack.c.l.b16 %v7276
      %v7314 = vunpack.c.l.b16 %v7277
      %v7315 = vpack.c.b16 %v7308, %v7307
      %v7316 = vpack.c.b16 %v7310, %v7309
      %v7317 = vpack.c.b16 %v7312, %v7311
      %v7318 = vpack.c.b16 %v7314, %v7313
      %v7321 = vunpack.c.l.b16 %v7297
      %v7322 = vunpack.c.l.b16 %v7298
      %v7323 = vpack.c.b16 %v7322, %v7321
      %v7326 = vsel %vm838, %v7315, 0
      %v7329 = vsel %vm838, %v7316, 0
      %v7332 = vsel %vm838, %v7317, 0
      %v7335 = vsel %vm838, %v7318, 0
      %7337 = vmatpush.bf16.msra.mxu0 0
      %7338 = vmatpush.bf16.msra.mxu0 0
      %7339 = vmatpush.bf16.msra.mxu0 0
      %7340 = vmatpush.bf16.msra.mxu0 0
      %7341 = vmatpush.bf16.msra.mxu0 0
      %7342 = vmatpush.bf16.msra.mxu0 0
      %7343 = vmatpush.bf16.msra.mxu0 0
      %7344 = vmatpush.bf16.msra.mxu0 %v7323
      %7345 = vmatmul.bf16.gmra.mxu0 %v7326
      %v7346 = vpop.f32.mrf.mxu0
      %v7347 = vadd.f32 0.0, %v7346
      %v7348 = vpop.f32.mrf.mxu0
      %v7349 = vadd.f32 0.0, %v7348
      %7350 = vmatmul.bf16.gmra.mxu0 %v7329
      %v7351 = vpop.f32.mrf.mxu0
      %v7352 = vadd.f32 0.0, %v7351
      %v7353 = vpop.f32.mrf.mxu0
      %v7354 = vadd.f32 0.0, %v7353
      %7355 = vmatmul.bf16.gmra.mxu0 %v7332
      %v7356 = vpop.f32.mrf.mxu0
      %v7357 = vadd.f32 0.0, %v7356
      %v7358 = vpop.f32.mrf.mxu0
      %v7359 = vadd.f32 0.0, %v7358
      %7360 = vmatmul.bf16.gmra.mxu0 %v7335
      %v7361 = vpop.f32.mrf.mxu0
      %v7362 = vadd.f32 0.0, %v7361
      %v7363 = vpop.f32.mrf.mxu0
      %v7364 = vadd.f32 0.0, %v7363
      %7365 = vdwg.mxu0
      %v7374 = vunpack.c.l.b16 %v7262
      %v7375 = vunpack.c.l.b16 %v7263
      %v7376 = vunpack.c.l.b16 %v7264
      %v7377 = vunpack.c.l.b16 %v7265
      %v7378 = vunpack.c.l.b16 %v7266
      %v7379 = vunpack.c.l.b16 %v7267
      %v7380 = vunpack.c.l.b16 %v7268
      %v7381 = vunpack.c.l.b16 %v7269
      %v7382 = vpack.c.b16 %v7375, %v7374
      %v7383 = vpack.c.b16 %v7377, %v7376
      %v7384 = vpack.c.b16 %v7379, %v7378
      %v7385 = vpack.c.b16 %v7381, %v7380
      %v7388 = vunpack.c.l.b16 %v7294
      %v7389 = vunpack.c.l.b16 %v7295
      %v7390 = vpack.c.b16 %v7389, %v7388
      %v7393 = vsel %vm838, %v7382, 0
      %v7396 = vsel %vm838, %v7383, 0
      %v7399 = vsel %vm838, %v7384, 0
      %v7402 = vsel %vm838, %v7385, 0
      %7404 = vmatpush.bf16.msra.mxu0 0
      %7405 = vmatpush.bf16.msra.mxu0 0
      %7406 = vmatpush.bf16.msra.mxu0 0
      %7407 = vmatpush.bf16.msra.mxu0 0
      %7408 = vmatpush.bf16.msra.mxu0 0
      %7409 = vmatpush.bf16.msra.mxu0 0
      %7410 = vmatpush.bf16.msra.mxu0 0
      %7411 = vmatpush.bf16.msra.mxu0 %v7390
      %7412 = vmatmul.bf16.gmra.mxu0 %v7393
      %v7413 = vpop.f32.mrf.mxu0
      %v7414 = vadd.f32 %v7347, %v7413
      %v7415 = vpop.f32.mrf.mxu0
      %v7416 = vadd.f32 %v7349, %v7415
      %7417 = vmatmul.bf16.gmra.mxu0 %v7396
      %v7418 = vpop.f32.mrf.mxu0
      %v7419 = vadd.f32 %v7352, %v7418
      %v7420 = vpop.f32.mrf.mxu0
      %v7421 = vadd.f32 %v7354, %v7420
      %7422 = vmatmul.bf16.gmra.mxu0 %v7399
      %v7423 = vpop.f32.mrf.mxu0
      %v7424 = vadd.f32 %v7357, %v7423
      %v7425 = vpop.f32.mrf.mxu0
      %v7426 = vadd.f32 %v7359, %v7425
      %7427 = vmatmul.bf16.gmra.mxu0 %v7402
      %v7428 = vpop.f32.mrf.mxu0
      %v7429 = vadd.f32 %v7362, %v7428
      %v7430 = vpop.f32.mrf.mxu0
      %v7431 = vadd.f32 %v7364, %v7430
      %7432 = vdwg.mxu0
      %s7433 = scalar_lea.vmem %s13, 16
      %v7434 = vld [vmem:[%s7433] sm:$0xf]
      %v7435 = vld [vmem:[%s7433 + $0x4] sm:$0xf]
      %v7444 = vunpack.c.l.b16 %v7278
      %v7445 = vunpack.c.l.b16 %v7279
      %v7446 = vunpack.c.l.b16 %v7280
      %v7447 = vunpack.c.l.b16 %v7281
      %v7448 = vunpack.c.l.b16 %v7282
      %v7449 = vunpack.c.l.b16 %v7283
      %v7450 = vunpack.c.l.b16 %v7284
      %v7451 = vunpack.c.l.b16 %v7285
      %v7452 = vpack.c.b16 %v7445, %v7444
      %v7453 = vpack.c.b16 %v7447, %v7446
      %v7454 = vpack.c.b16 %v7449, %v7448
      %v7455 = vpack.c.b16 %v7451, %v7450
      %v7458 = vunpack.c.l.b16 %v7434
      %v7459 = vunpack.c.l.b16 %v7435
      %v7460 = vpack.c.b16 %v7459, %v7458
      %v7463 = vsel %vm838, %v7452, 0
      %v7466 = vsel %vm838, %v7453, 0
      %v7469 = vsel %vm838, %v7454, 0
      %v7472 = vsel %vm838, %v7455, 0
      %7474 = vmatpush.bf16.msra.mxu0 0
      %7475 = vmatpush.bf16.msra.mxu0 0
      %7476 = vmatpush.bf16.msra.mxu0 0
      %7477 = vmatpush.bf16.msra.mxu0 0
      %7478 = vmatpush.bf16.msra.mxu0 0
      %7479 = vmatpush.bf16.msra.mxu0 0
      %7480 = vmatpush.bf16.msra.mxu0 0
      %7481 = vmatpush.bf16.msra.mxu0 %v7460
      %7482 = vmatmul.bf16.gmra.mxu0 %v7463
      %v7483 = vpop.f32.mrf.mxu0
      %v7484 = vadd.f32 0.0, %v7483
      %v7485 = vpop.f32.mrf.mxu0
      %v7486 = vadd.f32 0.0, %v7485
      %7487 = vmatmul.bf16.gmra.mxu0 %v7466
      %v7488 = vpop.f32.mrf.mxu0
      %v7489 = vadd.f32 0.0, %v7488
      %v7490 = vpop.f32.mrf.mxu0
      %v7491 = vadd.f32 0.0, %v7490
      %7492 = vmatmul.bf16.gmra.mxu0 %v7469
      %v7493 = vpop.f32.mrf.mxu0
      %v7494 = vadd.f32 0.0, %v7493
      %v7495 = vpop.f32.mrf.mxu0
      %v7496 = vadd.f32 0.0, %v7495
      %7497 = vmatmul.bf16.gmra.mxu0 %v7472
      %v7498 = vpop.f32.mrf.mxu0
      %v7499 = vadd.f32 0.0, %v7498
      %v7500 = vpop.f32.mrf.mxu0
      %v7501 = vadd.f32 0.0, %v7500
      %7502 = vdwg.mxu0
      %v7503 = vadd.f32 %v7414, %v7484
      %v7504 = vadd.f32 %v7416, %v7486
      %v7505 = vadd.f32 %v7419, %v7489
      %v7506 = vadd.f32 %v7421, %v7491
      %v7507 = vadd.f32 %v7424, %v7494
      %v7508 = vadd.f32 %v7426, %v7496
      %v7509 = vadd.f32 %v7429, %v7499
      %v7510 = vadd.f32 %v7431, %v7501
      %s7511 = scalar_lea.vmem %s13, 24
      %v7512 = vld [vmem:[%s7511] sm:$0xf]
      %v7513 = vld [vmem:[%s7511 + $0x4] sm:$0xf]
      %v7522 = vunpack.c.l.b16 %v7286
      %v7523 = vunpack.c.l.b16 %v7287
      %v7524 = vunpack.c.l.b16 %v7288
      %v7525 = vunpack.c.l.b16 %v7289
      %v7526 = vunpack.c.l.b16 %v7290
      %v7527 = vunpack.c.l.b16 %v7291
      %v7528 = vunpack.c.l.b16 %v7292
      %v7529 = vunpack.c.l.b16 %v7293
      %v7530 = vpack.c.b16 %v7523, %v7522
      %v7531 = vpack.c.b16 %v7525, %v7524
      %v7532 = vpack.c.b16 %v7527, %v7526
      %v7533 = vpack.c.b16 %v7529, %v7528
      %v7536 = vunpack.c.l.b16 %v7512
      %v7537 = vunpack.c.l.b16 %v7513
      %v7538 = vpack.c.b16 %v7537, %v7536
      %v7541 = vsel %vm838, %v7530, 0
      %v7544 = vsel %vm838, %v7531, 0
      %v7547 = vsel %vm838, %v7532, 0
      %v7550 = vsel %vm838, %v7533, 0
      %7552 = vmatpush.bf16.msra.mxu0 0
      %7553 = vmatpush.bf16.msra.mxu0 0
      %7554 = vmatpush.bf16.msra.mxu0 0
      %7555 = vmatpush.bf16.msra.mxu0 0
      %7556 = vmatpush.bf16.msra.mxu0 0
      %7557 = vmatpush.bf16.msra.mxu0 0
      %7558 = vmatpush.bf16.msra.mxu0 0
      %7559 = vmatpush.bf16.msra.mxu0 %v7538
      %7560 = vmatmul.bf16.gmra.mxu0 %v7541
      %v7561 = vpop.f32.mrf.mxu0
      %v7562 = vadd.f32 0.0, %v7561
      %v7563 = vpop.f32.mrf.mxu0
      %v7564 = vadd.f32 0.0, %v7563
      %7565 = vmatmul.bf16.gmra.mxu0 %v7544
      %v7566 = vpop.f32.mrf.mxu0
      %v7567 = vadd.f32 0.0, %v7566
      %v7568 = vpop.f32.mrf.mxu0
      %v7569 = vadd.f32 0.0, %v7568
      %7570 = vmatmul.bf16.gmra.mxu0 %v7547
      %v7571 = vpop.f32.mrf.mxu0
      %v7572 = vadd.f32 0.0, %v7571
      %v7573 = vpop.f32.mrf.mxu0
      %v7574 = vadd.f32 0.0, %v7573
      %7575 = vmatmul.bf16.gmra.mxu0 %v7550
      %v7576 = vpop.f32.mrf.mxu0
      %v7577 = vadd.f32 0.0, %v7576
      %v7578 = vpop.f32.mrf.mxu0
      %v7579 = vadd.f32 0.0, %v7578
      %7580 = vdwg.mxu0
      %v7581 = vadd.f32 %v7503, %v7562
      %v7582 = vadd.f32 %v7504, %v7564
      %v7583 = vadd.f32 %v7505, %v7567
      %v7584 = vadd.f32 %v7506, %v7569
      %v7585 = vadd.f32 %v7507, %v7572
      %v7586 = vadd.f32 %v7508, %v7574
      %v7587 = vadd.f32 %v7509, %v7577
      %v7588 = vadd.f32 %v7510, %v7579
      %v7589 = vpack.c.bf16 %v7582, %v7581
      %v7590 = vpack.c.bf16 %v7584, %v7583
      %v7591 = vpack.c.bf16 %v7586, %v7585
      %v7592 = vpack.c.bf16 %v7588, %v7587
      %v7593 = vld [vmem:[%s16] sm:$0xf]
      %v7594 = vld [vmem:[%s16 + $0x4] sm:$0xf]
      %v7595 = vld [vmem:[%s16 + $0x8] sm:$0xf]
      %v7596 = vld [vmem:[%s16 + $0xc] sm:$0xf]
      %v7597 = vld [vmem:[%s16 + $0x10] sm:$0xf]
      %v7598 = vld [vmem:[%s16 + $0x14] sm:$0xf]
      %v7599 = vld [vmem:[%s16 + $0x18] sm:$0x1]
      %v7607 = vunpack.c.l.b16 %v7593
      %v7608 = vunpack.c.l.b16 %v7594
      %v7609 = vunpack.c.l.b16 %v7595
      %v7610 = vunpack.c.l.b16 %v7596
      %v7611 = vunpack.c.l.b16 %v7597
      %v7612 = vunpack.c.l.b16 %v7598
      %v7613 = vunpack.c.l.b16 %v7599
      %v7614 = vpack.c.b16 %v7608, %v7607
      %v7615 = vpack.c.b16 %v7610, %v7609
      %v7616 = vpack.c.b16 %v7612, %v7611
      %v7617 = vpack.c.b16 %v7613, %v7613
      %vm7621 = vcmask 400384
      %v7623 = vsel %vm7621, %v7589, 0
      %v7626 = vsel %vm7621, %v7590, 0
      %v7629 = vsel %vm7621, %v7591, 0
      %v7632 = vsel %vm7621, %v7592, 0
      %v7635 = vand.u32 %v7617, %v1096
      %7637 = vmatpush.bf16.msra.mxu0 0
      %7638 = vmatpush.bf16.msra.mxu0 0
      %7639 = vmatpush.bf16.msra.mxu0 0
      %7640 = vmatpush.bf16.msra.mxu0 0
      %7641 = vmatpush.bf16.msra.mxu0 %v7635
      %7642 = vmatpush.bf16.msra.mxu0 %v7616
      %7643 = vmatpush.bf16.msra.mxu0 %v7615
      %7644 = vmatpush.bf16.msra.mxu0 %v7614
      %7645 = vmatmul.bf16.gmra.mxu0 %v7623
      %v7646 = vpop.f32.mrf.mxu0
      %v7647 = vadd.f32 0.0, %v7646
      %v7648 = vpop.f32.mrf.mxu0
      %v7649 = vadd.f32 0.0, %v7648
      %7650 = vmatmul.bf16.gmra.mxu0 %v7626
      %v7651 = vpop.f32.mrf.mxu0
      %v7652 = vadd.f32 0.0, %v7651
      %v7653 = vpop.f32.mrf.mxu0
      %v7654 = vadd.f32 0.0, %v7653
      %7655 = vmatmul.bf16.gmra.mxu0 %v7629
      %v7656 = vpop.f32.mrf.mxu0
      %v7657 = vadd.f32 0.0, %v7656
      %v7658 = vpop.f32.mrf.mxu0
      %v7659 = vadd.f32 0.0, %v7658
      %7660 = vmatmul.bf16.gmra.mxu0 %v7632
      %v7661 = vpop.f32.mrf.mxu0
      %v7662 = vadd.f32 0.0, %v7661
      %v7663 = vpop.f32.mrf.mxu0
      %v7664 = vadd.f32 0.0, %v7663
      %7665 = vdwg.mxu0
      %v7666 = vpack.c.bf16 %v7647, %v7647
      %v7667 = vpack.c.bf16 %v7649, %v7649
      %v7668 = vpack.c.bf16 %v7652, %v7652
      %v7669 = vpack.c.bf16 %v7654, %v7654
      %v7670 = vpack.c.bf16 %v7657, %v7657
      %v7671 = vpack.c.bf16 %v7659, %v7659
      %v7672 = vpack.c.bf16 %v7662, %v7662
      %v7673 = vpack.c.bf16 %v7664, %v7664
      %s7674 = scalar_lea.vmem %s16, 28
      %v7675 = vld [vmem:[%s7674] sm:$0xf]
      %v7676 = vld [vmem:[%s7674 + $0x4] sm:$0xf]
      %v7677 = vld [vmem:[%s7674 + $0x8] sm:$0xf]
      %v7678 = vld [vmem:[%s7674 + $0xc] sm:$0xf]
      %v7679 = vld [vmem:[%s7674 + $0x10] sm:$0xf]
      %v7680 = vld [vmem:[%s7674 + $0x14] sm:$0xf]
      %v7681 = vld [vmem:[%s7674 + $0x18] sm:$0x1]
      %v7689 = vunpack.c.l.b16 %v7675
      %v7690 = vunpack.c.l.b16 %v7676
      %v7691 = vunpack.c.l.b16 %v7677
      %v7692 = vunpack.c.l.b16 %v7678
      %v7693 = vunpack.c.l.b16 %v7679
      %v7694 = vunpack.c.l.b16 %v7680
      %v7695 = vunpack.c.l.b16 %v7681
      %v7696 = vpack.c.b16 %v7690, %v7689
      %v7697 = vpack.c.b16 %v7692, %v7691
      %v7698 = vpack.c.b16 %v7694, %v7693
      %v7699 = vpack.c.b16 %v7695, %v7695
      %v7704 = vand.u32 %v7699, %v1096
      %7706 = vmatpush.bf16.msra.mxu0 0
      %7707 = vmatpush.bf16.msra.mxu0 0
      %7708 = vmatpush.bf16.msra.mxu0 0
      %7709 = vmatpush.bf16.msra.mxu0 0
      %7710 = vmatpush.bf16.msra.mxu0 %v7704
      %7711 = vmatpush.bf16.msra.mxu0 %v7698
      %7712 = vmatpush.bf16.msra.mxu0 %v7697
      %7713 = vmatpush.bf16.msra.mxu0 %v7696
      %7714 = vmatmul.bf16.gmra.mxu0 %v7623
      %v7715 = vpop.f32.mrf.mxu0
      %v7716 = vadd.f32 0.0, %v7715
      %v7717 = vpop.f32.mrf.mxu0
      %v7718 = vadd.f32 0.0, %v7717
      %7719 = vmatmul.bf16.gmra.mxu0 %v7626
      %v7720 = vpop.f32.mrf.mxu0
      %v7721 = vadd.f32 0.0, %v7720
      %v7722 = vpop.f32.mrf.mxu0
      %v7723 = vadd.f32 0.0, %v7722
      %7724 = vmatmul.bf16.gmra.mxu0 %v7629
      %v7725 = vpop.f32.mrf.mxu0
      %v7726 = vadd.f32 0.0, %v7725
      %v7727 = vpop.f32.mrf.mxu0
      %v7728 = vadd.f32 0.0, %v7727
      %7729 = vmatmul.bf16.gmra.mxu0 %v7632
      %v7730 = vpop.f32.mrf.mxu0
      %v7731 = vadd.f32 0.0, %v7730
      %v7732 = vpop.f32.mrf.mxu0
      %v7733 = vadd.f32 0.0, %v7732
      %7734 = vdwg.mxu0
      %v7735 = vpack.c.bf16 %v7716, %v7716
      %v7736 = vpack.c.bf16 %v7718, %v7718
      %v7737 = vpack.c.bf16 %v7721, %v7721
      %v7738 = vpack.c.bf16 %v7723, %v7723
      %v7739 = vpack.c.bf16 %v7726, %v7726
      %v7740 = vpack.c.bf16 %v7728, %v7728
      %v7741 = vpack.c.bf16 %v7731, %v7731
      %v7742 = vpack.c.bf16 %v7733, %v7733
      %s7743 = scalar_lea.vmem %s16, 56
      %v7744 = vld [vmem:[%s7743] sm:$0xf]
      %v7745 = vld [vmem:[%s7743 + $0x4] sm:$0xf]
      %v7746 = vld [vmem:[%s7743 + $0x8] sm:$0xf]
      %v7747 = vld [vmem:[%s7743 + $0xc] sm:$0xf]
      %v7748 = vld [vmem:[%s7743 + $0x10] sm:$0xf]
      %v7749 = vld [vmem:[%s7743 + $0x14] sm:$0xf]
      %v7750 = vld [vmem:[%s7743 + $0x18] sm:$0x1]
      %v7758 = vunpack.c.l.b16 %v7744
      %v7759 = vunpack.c.l.b16 %v7745
      %v7760 = vunpack.c.l.b16 %v7746
      %v7761 = vunpack.c.l.b16 %v7747
      %v7762 = vunpack.c.l.b16 %v7748
      %v7763 = vunpack.c.l.b16 %v7749
      %v7764 = vunpack.c.l.b16 %v7750
      %v7765 = vpack.c.b16 %v7759, %v7758
      %v7766 = vpack.c.b16 %v7761, %v7760
      %v7767 = vpack.c.b16 %v7763, %v7762
      %v7768 = vpack.c.b16 %v7764, %v7764
      %v7773 = vand.u32 %v7768, %v1096
      %7775 = vmatpush.bf16.msra.mxu0 0
      %7776 = vmatpush.bf16.msra.mxu0 0
      %7777 = vmatpush.bf16.msra.mxu0 0
      %7778 = vmatpush.bf16.msra.mxu0 0
      %7779 = vmatpush.bf16.msra.mxu0 %v7773
      %7780 = vmatpush.bf16.msra.mxu0 %v7767
      %7781 = vmatpush.bf16.msra.mxu0 %v7766
      %7782 = vmatpush.bf16.msra.mxu0 %v7765
      %7783 = vmatmul.bf16.gmra.mxu0 %v7623
      %v7784 = vpop.f32.mrf.mxu0
      %v7785 = vadd.f32 0.0, %v7784
      %v7786 = vpop.f32.mrf.mxu0
      %v7787 = vadd.f32 0.0, %v7786
      %7788 = vmatmul.bf16.gmra.mxu0 %v7626
      %v7789 = vpop.f32.mrf.mxu0
      %v7790 = vadd.f32 0.0, %v7789
      %v7791 = vpop.f32.mrf.mxu0
      %v7792 = vadd.f32 0.0, %v7791
      %7793 = vmatmul.bf16.gmra.mxu0 %v7629
      %v7794 = vpop.f32.mrf.mxu0
      %v7795 = vadd.f32 0.0, %v7794
      %v7796 = vpop.f32.mrf.mxu0
      %v7797 = vadd.f32 0.0, %v7796
      %7798 = vmatmul.bf16.gmra.mxu0 %v7632
      %v7799 = vpop.f32.mrf.mxu0
      %v7800 = vadd.f32 0.0, %v7799
      %v7801 = vpop.f32.mrf.mxu0
      %v7802 = vadd.f32 0.0, %v7801
      %7803 = vdwg.mxu0
      %v7804 = vpack.c.bf16 %v7785, %v7785
      %v7805 = vpack.c.bf16 %v7787, %v7787
      %v7806 = vpack.c.bf16 %v7790, %v7790
      %v7807 = vpack.c.bf16 %v7792, %v7792
      %v7808 = vpack.c.bf16 %v7795, %v7795
      %v7809 = vpack.c.bf16 %v7797, %v7797
      %v7810 = vpack.c.bf16 %v7800, %v7800
      %v7811 = vpack.c.bf16 %v7802, %v7802
      %s7812 = scalar_lea.vmem %s16, 84
      %v7813 = vld [vmem:[%s7812] sm:$0xf]
      %v7814 = vld [vmem:[%s7812 + $0x4] sm:$0xf]
      %v7815 = vld [vmem:[%s7812 + $0x8] sm:$0xf]
      %v7816 = vld [vmem:[%s7812 + $0xc] sm:$0xf]
      %v7817 = vld [vmem:[%s7812 + $0x10] sm:$0xf]
      %v7818 = vld [vmem:[%s7812 + $0x14] sm:$0xf]
      %v7819 = vld [vmem:[%s7812 + $0x18] sm:$0x1]
      %v7827 = vunpack.c.l.b16 %v7813
      %v7828 = vunpack.c.l.b16 %v7814
      %v7829 = vunpack.c.l.b16 %v7815
      %v7830 = vunpack.c.l.b16 %v7816
      %v7831 = vunpack.c.l.b16 %v7817
      %v7832 = vunpack.c.l.b16 %v7818
      %v7833 = vunpack.c.l.b16 %v7819
      %v7834 = vpack.c.b16 %v7828, %v7827
      %v7835 = vpack.c.b16 %v7830, %v7829
      %v7836 = vpack.c.b16 %v7832, %v7831
      %v7837 = vpack.c.b16 %v7833, %v7833
      %v7842 = vand.u32 %v7837, %v1096
      %7844 = vmatpush.bf16.msra.mxu0 0
      %7845 = vmatpush.bf16.msra.mxu0 0
      %7846 = vmatpush.bf16.msra.mxu0 0
      %7847 = vmatpush.bf16.msra.mxu0 0
      %7848 = vmatpush.bf16.msra.mxu0 %v7842
      %7849 = vmatpush.bf16.msra.mxu0 %v7836
      %7850 = vmatpush.bf16.msra.mxu0 %v7835
      %7851 = vmatpush.bf16.msra.mxu0 %v7834
      %7852 = vmatmul.bf16.gmra.mxu0 %v7623
      %v7853 = vpop.f32.mrf.mxu0
      %v7854 = vadd.f32 0.0, %v7853
      %v7855 = vpop.f32.mrf.mxu0
      %v7856 = vadd.f32 0.0, %v7855
      %7857 = vmatmul.bf16.gmra.mxu0 %v7626
      %v7858 = vpop.f32.mrf.mxu0
      %v7859 = vadd.f32 0.0, %v7858
      %v7860 = vpop.f32.mrf.mxu0
      %v7861 = vadd.f32 0.0, %v7860
      %7862 = vmatmul.bf16.gmra.mxu0 %v7629
      %v7863 = vpop.f32.mrf.mxu0
      %v7864 = vadd.f32 0.0, %v7863
      %v7865 = vpop.f32.mrf.mxu0
      %v7866 = vadd.f32 0.0, %v7865
      %7867 = vmatmul.bf16.gmra.mxu0 %v7632
      %v7868 = vpop.f32.mrf.mxu0
      %v7869 = vadd.f32 0.0, %v7868
      %v7870 = vpop.f32.mrf.mxu0
      %v7871 = vadd.f32 0.0, %v7870
      %7872 = vdwg.mxu0
      %v7873 = vpack.c.bf16 %v7854, %v7854
      %v7874 = vpack.c.bf16 %v7856, %v7856
      %v7875 = vpack.c.bf16 %v7859, %v7859
      %v7876 = vpack.c.bf16 %v7861, %v7861
      %v7877 = vpack.c.bf16 %v7864, %v7864
      %v7878 = vpack.c.bf16 %v7866, %v7866
      %v7879 = vpack.c.bf16 %v7869, %v7869
      %v7880 = vpack.c.bf16 %v7871, %v7871
      %v7889 = vunpack.c.l.b16 %v7666
      %v7890 = vunpack.c.l.b16 %v7667
      %v7891 = vunpack.c.l.b16 %v7668
      %v7892 = vunpack.c.l.b16 %v7669
      %v7893 = vunpack.c.l.b16 %v7670
      %v7894 = vunpack.c.l.b16 %v7671
      %v7895 = vunpack.c.l.b16 %v7672
      %v7896 = vunpack.c.l.b16 %v7673
      %v7897 = vpack.c.b16 %v7890, %v7889
      %v7898 = vpack.c.b16 %v7892, %v7891
      %v7899 = vpack.c.b16 %v7894, %v7893
      %v7900 = vpack.c.b16 %v7896, %v7895
      %v7913 = vunpack.c.l.b16 %v7735
      %v7914 = vunpack.c.l.b16 %v7736
      %v7915 = vunpack.c.l.b16 %v7737
      %v7916 = vunpack.c.l.b16 %v7738
      %v7917 = vunpack.c.l.b16 %v7739
      %v7918 = vunpack.c.l.b16 %v7740
      %v7919 = vunpack.c.l.b16 %v7741
      %v7920 = vunpack.c.l.b16 %v7742
      %v7921 = vpack.c.b16 %v7914, %v7913
      %v7922 = vpack.c.b16 %v7916, %v7915
      %v7923 = vpack.c.b16 %v7918, %v7917
      %v7924 = vpack.c.b16 %v7920, %v7919
      %v7937 = vunpack.c.l.b16 %v7804
      %v7938 = vunpack.c.l.b16 %v7805
      %v7939 = vunpack.c.l.b16 %v7806
      %v7940 = vunpack.c.l.b16 %v7807
      %v7941 = vunpack.c.l.b16 %v7808
      %v7942 = vunpack.c.l.b16 %v7809
      %v7943 = vunpack.c.l.b16 %v7810
      %v7944 = vunpack.c.l.b16 %v7811
      %v7945 = vpack.c.b16 %v7938, %v7937
      %v7946 = vpack.c.b16 %v7940, %v7939
      %v7947 = vpack.c.b16 %v7942, %v7941
      %v7948 = vpack.c.b16 %v7944, %v7943
      %v7961 = vunpack.c.l.b16 %v7873
      %v7962 = vunpack.c.l.b16 %v7874
      %v7963 = vunpack.c.l.b16 %v7875
      %v7964 = vunpack.c.l.b16 %v7876
      %v7965 = vunpack.c.l.b16 %v7877
      %v7966 = vunpack.c.l.b16 %v7878
      %v7967 = vunpack.c.l.b16 %v7879
      %v7968 = vunpack.c.l.b16 %v7880
      %v7969 = vpack.c.b16 %v7962, %v7961
      %v7970 = vpack.c.b16 %v7964, %v7963
      %v7971 = vpack.c.b16 %v7966, %v7965
      %v7972 = vpack.c.b16 %v7968, %v7967
      %v7977 = vld [vmem:[%s14] sm:$0xff]
      %v7978 = vld [vmem:[%s14 + $0x8] sm:$0xff]
      %v7979 = vld [vmem:[%s14 + $0x10] sm:$0xff]
      %v7980 = vld [vmem:[%s14 + $0x18] sm:$0xff]
      %v7981 = vld [vmem:[%s14 + $0x20] sm:$0xff]
      %v7982 = vld [vmem:[%s14 + $0x28] sm:$0xff]
      %v7983 = vld [vmem:[%s14 + $0x30] sm:$0xff]
      %v7984 = vld [vmem:[%s14 + $0x38] sm:$0xff]
      %v7985 = vld [vmem:[%s14 + $0x40] sm:$0xff]
      %v7986 = vld [vmem:[%s14 + $0x48] sm:$0xff]
      %v7987 = vld [vmem:[%s14 + $0x50] sm:$0xff]
      %v7988 = vld [vmem:[%s14 + $0x58] sm:$0xff]
      %v7989 = vld [vmem:[%s14 + $0x60] sm:$0xff]
      %v7990 = vld [vmem:[%s14 + $0x68] sm:$0xff]
      %v7991 = vld [vmem:[%s14 + $0x70] sm:$0xff]
      %v7992 = vld [vmem:[%s14 + $0x78] sm:$0xff]
      %v7993 = vld [vmem:[%s14 + $0x80] sm:$0xff]
      %v7994 = vld [vmem:[%s14 + $0x88] sm:$0xff]
      %v7995 = vld [vmem:[%s14 + $0x90] sm:$0xff]
      %v7996 = vld [vmem:[%s14 + $0x98] sm:$0xff]
      %v7997 = vld [vmem:[%s14 + $0xa0] sm:$0xff]
      %v7998 = vld [vmem:[%s14 + $0xa8] sm:$0xff]
      %v7999 = vld [vmem:[%s14 + $0xb0] sm:$0xff]
      %v8000 = vld [vmem:[%s14 + $0xb8] sm:$0xff]
      %v8001 = vld [vmem:[%s14 + $0xc0] sm:$0xff]
      %v8002 = vld [vmem:[%s14 + $0xc8] sm:$0xff]
      %v8003 = vld [vmem:[%s14 + $0xd0] sm:$0xff]
      %v8004 = vld [vmem:[%s14 + $0xd8] sm:$0xff]
      %v8005 = vld [vmem:[%s14 + $0xe0] sm:$0xff]
      %v8006 = vld [vmem:[%s14 + $0xe8] sm:$0xff]
      %v8007 = vld [vmem:[%s14 + $0xf0] sm:$0xff]
      %v8008 = vld [vmem:[%s14 + $0xf8] sm:$0xff]
      %v8009 = vld [vmem:[%s15] sm:$0xff]
      %v8010 = vld [vmem:[%s15 + $0x8] sm:$0xff]
      %v8011 = vld [vmem:[%s15 + $0x10] sm:$0xff]
      %v8012 = vld [vmem:[%s15 + $0x18] sm:$0xff]
      %v8013 = vld [vmem:[%s15 + $0x20] sm:$0xff]
      %v8014 = vld [vmem:[%s15 + $0x28] sm:$0xff]
      %v8015 = vld [vmem:[%s15 + $0x30] sm:$0xff]
      %v8016 = vld [vmem:[%s15 + $0x38] sm:$0xff]
      %v8017 = vld [vmem:[%s15 + $0x40] sm:$0xff]
      %v8018 = vld [vmem:[%s15 + $0x48] sm:$0xff]
      %v8019 = vld [vmem:[%s15 + $0x50] sm:$0xff]
      %v8020 = vld [vmem:[%s15 + $0x58] sm:$0xff]
      %v8021 = vld [vmem:[%s15 + $0x60] sm:$0xff]
      %v8022 = vld [vmem:[%s15 + $0x68] sm:$0xff]
      %v8023 = vld [vmem:[%s15 + $0x70] sm:$0xff]
      %v8024 = vld [vmem:[%s15 + $0x78] sm:$0xff]
      %v8025 = vld [vmem:[%s15 + $0x80] sm:$0xff]
      %v8026 = vld [vmem:[%s15 + $0x88] sm:$0xff]
      %v8027 = vld [vmem:[%s15 + $0x90] sm:$0xff]
      %v8028 = vld [vmem:[%s15 + $0x98] sm:$0xff]
      %v8029 = vld [vmem:[%s15 + $0xa0] sm:$0xff]
      %v8030 = vld [vmem:[%s15 + $0xa8] sm:$0xff]
      %v8031 = vld [vmem:[%s15 + $0xb0] sm:$0xff]
      %v8032 = vld [vmem:[%s15 + $0xb8] sm:$0xff]
      %v8033 = vld [vmem:[%s15 + $0xc0] sm:$0xff]
      %v8034 = vld [vmem:[%s15 + $0xc8] sm:$0xff]
      %v8035 = vld [vmem:[%s15 + $0xd0] sm:$0xff]
      %v8036 = vld [vmem:[%s15 + $0xd8] sm:$0xff]
      %v8037 = vld [vmem:[%s15 + $0xe0] sm:$0xff]
      %v8038 = vld [vmem:[%s15 + $0xe8] sm:$0xff]
      %v8039 = vld [vmem:[%s15 + $0xf0] sm:$0xff]
      %v8040 = vld [vmem:[%s15 + $0xf8] sm:$0xff]
      %8042 = vset.pattern.permute.xlu0 0
      %8043 = vperm.xlu0 %8042, %v8009
      %v8044 = vpop.permute.xlu0 %8043
      %8047 = vset.pattern.permute.xlu0 0
      %8048 = vperm.xlu0 %8047, %v8010
      %v8049 = vpop.permute.xlu0 %8048
      %8052 = vset.pattern.permute.xlu0 0
      %8053 = vperm.xlu0 %8052, %v8011
      %v8054 = vpop.permute.xlu0 %8053
      %8057 = vset.pattern.permute.xlu0 0
      %8058 = vperm.xlu0 %8057, %v8012
      %v8059 = vpop.permute.xlu0 %8058
      %8062 = vset.pattern.permute.xlu0 0
      %8063 = vperm.xlu0 %8062, %v8013
      %v8064 = vpop.permute.xlu0 %8063
      %8067 = vset.pattern.permute.xlu0 0
      %8068 = vperm.xlu0 %8067, %v8014
      %v8069 = vpop.permute.xlu0 %8068
      %8072 = vset.pattern.permute.xlu0 0
      %8073 = vperm.xlu0 %8072, %v8015
      %v8074 = vpop.permute.xlu0 %8073
      %8077 = vset.pattern.permute.xlu0 0
      %8078 = vperm.xlu0 %8077, %v8016
      %v8079 = vpop.permute.xlu0 %8078
      %8082 = vset.pattern.permute.xlu0 0
      %8083 = vperm.xlu0 %8082, %v8017
      %v8084 = vpop.permute.xlu0 %8083
      %8087 = vset.pattern.permute.xlu0 0
      %8088 = vperm.xlu0 %8087, %v8018
      %v8089 = vpop.permute.xlu0 %8088
      %8092 = vset.pattern.permute.xlu0 0
      %8093 = vperm.xlu0 %8092, %v8019
      %v8094 = vpop.permute.xlu0 %8093
      %8097 = vset.pattern.permute.xlu0 0
      %8098 = vperm.xlu0 %8097, %v8020
      %v8099 = vpop.permute.xlu0 %8098
      %8102 = vset.pattern.permute.xlu0 0
      %8103 = vperm.xlu0 %8102, %v8021
      %v8104 = vpop.permute.xlu0 %8103
      %8107 = vset.pattern.permute.xlu0 0
      %8108 = vperm.xlu0 %8107, %v8022
      %v8109 = vpop.permute.xlu0 %8108
      %8112 = vset.pattern.permute.xlu0 0
      %8113 = vperm.xlu0 %8112, %v8023
      %v8114 = vpop.permute.xlu0 %8113
      %8117 = vset.pattern.permute.xlu0 0
      %8118 = vperm.xlu0 %8117, %v8024
      %v8119 = vpop.permute.xlu0 %8118
      %8122 = vset.pattern.permute.xlu0 0
      %8123 = vperm.xlu0 %8122, %v8025
      %v8124 = vpop.permute.xlu0 %8123
      %8127 = vset.pattern.permute.xlu0 0
      %8128 = vperm.xlu0 %8127, %v8026
      %v8129 = vpop.permute.xlu0 %8128
      %8132 = vset.pattern.permute.xlu0 0
      %8133 = vperm.xlu0 %8132, %v8027
      %v8134 = vpop.permute.xlu0 %8133
      %8137 = vset.pattern.permute.xlu0 0
      %8138 = vperm.xlu0 %8137, %v8028
      %v8139 = vpop.permute.xlu0 %8138
      %8142 = vset.pattern.permute.xlu0 0
      %8143 = vperm.xlu0 %8142, %v8029
      %v8144 = vpop.permute.xlu0 %8143
      %8147 = vset.pattern.permute.xlu0 0
      %8148 = vperm.xlu0 %8147, %v8030
      %v8149 = vpop.permute.xlu0 %8148
      %8152 = vset.pattern.permute.xlu0 0
      %8153 = vperm.xlu0 %8152, %v8031
      %v8154 = vpop.permute.xlu0 %8153
      %8157 = vset.pattern.permute.xlu0 0
      %8158 = vperm.xlu0 %8157, %v8032
      %v8159 = vpop.permute.xlu0 %8158
      %8162 = vset.pattern.permute.xlu0 0
      %8163 = vperm.xlu0 %8162, %v8033
      %v8164 = vpop.permute.xlu0 %8163
      %8167 = vset.pattern.permute.xlu0 0
      %8168 = vperm.xlu0 %8167, %v8034
      %v8169 = vpop.permute.xlu0 %8168
      %8172 = vset.pattern.permute.xlu0 0
      %8173 = vperm.xlu0 %8172, %v8035
      %v8174 = vpop.permute.xlu0 %8173
      %8177 = vset.pattern.permute.xlu0 0
      %8178 = vperm.xlu0 %8177, %v8036
      %v8179 = vpop.permute.xlu0 %8178
      %8182 = vset.pattern.permute.xlu0 0
      %8183 = vperm.xlu0 %8182, %v8037
      %v8184 = vpop.permute.xlu0 %8183
      %8187 = vset.pattern.permute.xlu0 0
      %8188 = vperm.xlu0 %8187, %v8038
      %v8189 = vpop.permute.xlu0 %8188
      %8192 = vset.pattern.permute.xlu0 0
      %8193 = vperm.xlu0 %8192, %v8039
      %v8194 = vpop.permute.xlu0 %8193
      %8197 = vset.pattern.permute.xlu0 0
      %8198 = vperm.xlu0 %8197, %v8040
      %v8199 = vpop.permute.xlu0 %8198
      %v8233 = vunpack.c.l.b16 %v7977
      %v8234 = vunpack.c.h.b16 %v7977
      %v8235 = vunpack.c.l.b16 %v7978
      %v8236 = vunpack.c.h.b16 %v7978
      %v8237 = vunpack.c.l.b16 %v7979
      %v8238 = vunpack.c.h.b16 %v7979
      %v8239 = vunpack.c.l.b16 %v7980
      %v8240 = vunpack.c.h.b16 %v7980
      %v8241 = vunpack.c.l.b16 %v7981
      %v8242 = vunpack.c.h.b16 %v7981
      %v8243 = vunpack.c.l.b16 %v7982
      %v8244 = vunpack.c.h.b16 %v7982
      %v8245 = vunpack.c.l.b16 %v7983
      %v8246 = vunpack.c.h.b16 %v7983
      %v8247 = vunpack.c.l.b16 %v7984
      %v8248 = vunpack.c.h.b16 %v7984
      %v8249 = vunpack.c.l.b16 %v7985
      %v8250 = vunpack.c.h.b16 %v7985
      %v8251 = vunpack.c.l.b16 %v7986
      %v8252 = vunpack.c.h.b16 %v7986
      %v8253 = vunpack.c.l.b16 %v7987
      %v8254 = vunpack.c.h.b16 %v7987
      %v8255 = vunpack.c.l.b16 %v7988
      %v8256 = vunpack.c.h.b16 %v7988
      %v8257 = vunpack.c.l.b16 %v7989
      %v8258 = vunpack.c.h.b16 %v7989
      %v8259 = vunpack.c.l.b16 %v7990
      %v8260 = vunpack.c.h.b16 %v7990
      %v8261 = vunpack.c.l.b16 %v7991
      %v8262 = vunpack.c.h.b16 %v7991
      %v8263 = vunpack.c.l.b16 %v7992
      %v8264 = vunpack.c.h.b16 %v7992
      %v8265 = vunpack.c.l.b16 %v7993
      %v8266 = vunpack.c.h.b16 %v7993
      %v8267 = vunpack.c.l.b16 %v7994
      %v8268 = vunpack.c.h.b16 %v7994
      %v8269 = vunpack.c.l.b16 %v7995
      %v8270 = vunpack.c.h.b16 %v7995
      %v8271 = vunpack.c.l.b16 %v7996
      %v8272 = vunpack.c.h.b16 %v7996
      %v8273 = vunpack.c.l.b16 %v7997
      %v8274 = vunpack.c.h.b16 %v7997
      %v8275 = vunpack.c.l.b16 %v7998
      %v8276 = vunpack.c.h.b16 %v7998
      %v8277 = vunpack.c.l.b16 %v7999
      %v8278 = vunpack.c.h.b16 %v7999
      %v8279 = vunpack.c.l.b16 %v8000
      %v8280 = vunpack.c.h.b16 %v8000
      %v8281 = vunpack.c.l.b16 %v8001
      %v8282 = vunpack.c.h.b16 %v8001
      %v8283 = vunpack.c.l.b16 %v8002
      %v8284 = vunpack.c.h.b16 %v8002
      %v8285 = vunpack.c.l.b16 %v8003
      %v8286 = vunpack.c.h.b16 %v8003
      %v8287 = vunpack.c.l.b16 %v8004
      %v8288 = vunpack.c.h.b16 %v8004
      %v8289 = vunpack.c.l.b16 %v8005
      %v8290 = vunpack.c.h.b16 %v8005
      %v8291 = vunpack.c.l.b16 %v8006
      %v8292 = vunpack.c.h.b16 %v8006
      %v8293 = vunpack.c.l.b16 %v8007
      %v8294 = vunpack.c.h.b16 %v8007
      %v8295 = vunpack.c.l.b16 %v8008
      %v8296 = vunpack.c.h.b16 %v8008
      %v8297 = vpack.c.b16 %v8235, %v8233
      %v8298 = vpack.c.b16 %v8236, %v8234
      %v8299 = vpack.c.b16 %v8239, %v8237
      %v8300 = vpack.c.b16 %v8240, %v8238
      %v8301 = vpack.c.b16 %v8243, %v8241
      %v8302 = vpack.c.b16 %v8244, %v8242
      %v8303 = vpack.c.b16 %v8247, %v8245
      %v8304 = vpack.c.b16 %v8248, %v8246
      %v8305 = vpack.c.b16 %v8251, %v8249
      %v8306 = vpack.c.b16 %v8252, %v8250
      %v8307 = vpack.c.b16 %v8255, %v8253
      %v8308 = vpack.c.b16 %v8256, %v8254
      %v8309 = vpack.c.b16 %v8259, %v8257
      %v8310 = vpack.c.b16 %v8260, %v8258
      %v8311 = vpack.c.b16 %v8263, %v8261
      %v8312 = vpack.c.b16 %v8264, %v8262
      %v8313 = vpack.c.b16 %v8267, %v8265
      %v8314 = vpack.c.b16 %v8268, %v8266
      %v8315 = vpack.c.b16 %v8271, %v8269
      %v8316 = vpack.c.b16 %v8272, %v8270
      %v8317 = vpack.c.b16 %v8275, %v8273
      %v8318 = vpack.c.b16 %v8276, %v8274
      %v8319 = vpack.c.b16 %v8279, %v8277
      %v8320 = vpack.c.b16 %v8280, %v8278
      %v8321 = vpack.c.b16 %v8283, %v8281
      %v8322 = vpack.c.b16 %v8284, %v8282
      %v8323 = vpack.c.b16 %v8287, %v8285
      %v8324 = vpack.c.b16 %v8288, %v8286
      %v8325 = vpack.c.b16 %v8291, %v8289
      %v8326 = vpack.c.b16 %v8292, %v8290
      %v8327 = vpack.c.b16 %v8295, %v8293
      %v8328 = vpack.c.b16 %v8296, %v8294
      %8361 = vmatpush.bf16.msra.mxu0 %v7924
      %8362 = vmatpush.bf16.msra.mxu0 %v7923
      %8363 = vmatpush.bf16.msra.mxu0 %v7922
      %8364 = vmatpush.bf16.msra.mxu0 %v7921
      %8365 = vmatpush.bf16.msra.mxu0 %v7900
      %8366 = vmatpush.bf16.msra.mxu0 %v7899
      %8367 = vmatpush.bf16.msra.mxu0 %v7898
      %8368 = vmatpush.bf16.msra.mxu0 %v7897
      %8369 = vmatmul.bf16.gmra.mxu0 %v8297
      %v8370 = vpop.f32.mrf.mxu0
      %v8371 = vadd.f32 %v8044, %v8370
      %v8372 = vpop.f32.mrf.mxu0
      %v8373 = vadd.f32 %v8049, %v8372
      %8374 = vmatmul.bf16.gmra.mxu0 %v8299
      %v8375 = vpop.f32.mrf.mxu0
      %v8376 = vadd.f32 %v8054, %v8375
      %v8377 = vpop.f32.mrf.mxu0
      %v8378 = vadd.f32 %v8059, %v8377
      %8379 = vmatmul.bf16.gmra.mxu0 %v8301
      %v8380 = vpop.f32.mrf.mxu0
      %v8381 = vadd.f32 %v8064, %v8380
      %v8382 = vpop.f32.mrf.mxu0
      %v8383 = vadd.f32 %v8069, %v8382
      %8384 = vmatmul.bf16.gmra.mxu0 %v8303
      %v8385 = vpop.f32.mrf.mxu0
      %v8386 = vadd.f32 %v8074, %v8385
      %v8387 = vpop.f32.mrf.mxu0
      %v8388 = vadd.f32 %v8079, %v8387
      %8389 = vmatmul.bf16.gmra.mxu0 %v8305
      %v8390 = vpop.f32.mrf.mxu0
      %v8391 = vadd.f32 %v8084, %v8390
      %v8392 = vpop.f32.mrf.mxu0
      %v8393 = vadd.f32 %v8089, %v8392
      %8394 = vmatmul.bf16.gmra.mxu0 %v8307
      %v8395 = vpop.f32.mrf.mxu0
      %v8396 = vadd.f32 %v8094, %v8395
      %v8397 = vpop.f32.mrf.mxu0
      %v8398 = vadd.f32 %v8099, %v8397
      %8399 = vmatmul.bf16.gmra.mxu0 %v8309
      %v8400 = vpop.f32.mrf.mxu0
      %v8401 = vadd.f32 %v8104, %v8400
      %v8402 = vpop.f32.mrf.mxu0
      %v8403 = vadd.f32 %v8109, %v8402
      %8404 = vmatmul.bf16.gmra.mxu0 %v8311
      %v8405 = vpop.f32.mrf.mxu0
      %v8406 = vadd.f32 %v8114, %v8405
      %v8407 = vpop.f32.mrf.mxu0
      %v8408 = vadd.f32 %v8119, %v8407
      %8409 = vmatmul.bf16.gmra.mxu0 %v8313
      %v8410 = vpop.f32.mrf.mxu0
      %v8411 = vadd.f32 %v8124, %v8410
      %v8412 = vpop.f32.mrf.mxu0
      %v8413 = vadd.f32 %v8129, %v8412
      %8414 = vmatmul.bf16.gmra.mxu0 %v8315
      %v8415 = vpop.f32.mrf.mxu0
      %v8416 = vadd.f32 %v8134, %v8415
      %v8417 = vpop.f32.mrf.mxu0
      %v8418 = vadd.f32 %v8139, %v8417
      %8419 = vmatmul.bf16.gmra.mxu0 %v8317
      %v8420 = vpop.f32.mrf.mxu0
      %v8421 = vadd.f32 %v8144, %v8420
      %v8422 = vpop.f32.mrf.mxu0
      %v8423 = vadd.f32 %v8149, %v8422
      %8424 = vmatmul.bf16.gmra.mxu0 %v8319
      %v8425 = vpop.f32.mrf.mxu0
      %v8426 = vadd.f32 %v8154, %v8425
      %v8427 = vpop.f32.mrf.mxu0
      %v8428 = vadd.f32 %v8159, %v8427
      %8429 = vmatmul.bf16.gmra.mxu0 %v8321
      %v8430 = vpop.f32.mrf.mxu0
      %v8431 = vadd.f32 %v8164, %v8430
      %v8432 = vpop.f32.mrf.mxu0
      %v8433 = vadd.f32 %v8169, %v8432
      %8434 = vmatmul.bf16.gmra.mxu0 %v8323
      %v8435 = vpop.f32.mrf.mxu0
      %v8436 = vadd.f32 %v8174, %v8435
      %v8437 = vpop.f32.mrf.mxu0
      %v8438 = vadd.f32 %v8179, %v8437
      %8439 = vmatmul.bf16.gmra.mxu0 %v8325
      %v8440 = vpop.f32.mrf.mxu0
      %v8441 = vadd.f32 %v8184, %v8440
      %v8442 = vpop.f32.mrf.mxu0
      %v8443 = vadd.f32 %v8189, %v8442
      %8444 = vmatmul.bf16.gmra.mxu0 %v8327
      %v8445 = vpop.f32.mrf.mxu0
      %v8446 = vadd.f32 %v8194, %v8445
      %v8447 = vpop.f32.mrf.mxu0
      %v8448 = vadd.f32 %v8199, %v8447
      %8449 = vdwg.mxu0
      %8450 = vmatpush.bf16.msra.mxu0 %v7972
      %8451 = vmatpush.bf16.msra.mxu0 %v7971
      %8452 = vmatpush.bf16.msra.mxu0 %v7970
      %8453 = vmatpush.bf16.msra.mxu0 %v7969
      %8454 = vmatpush.bf16.msra.mxu0 %v7948
      %8455 = vmatpush.bf16.msra.mxu0 %v7947
      %8456 = vmatpush.bf16.msra.mxu0 %v7946
      %8457 = vmatpush.bf16.msra.mxu0 %v7945
      %8458 = vmatmul.bf16.gmra.mxu0 %v8298
      %v8459 = vpop.f32.mrf.mxu0
      %v8460 = vadd.f32 %v8371, %v8459
      %v8461 = vpop.f32.mrf.mxu0
      %v8462 = vadd.f32 %v8373, %v8461
      %8463 = vmatmul.bf16.gmra.mxu0 %v8300
      %v8464 = vpop.f32.mrf.mxu0
      %v8465 = vadd.f32 %v8376, %v8464
      %v8466 = vpop.f32.mrf.mxu0
      %v8467 = vadd.f32 %v8378, %v8466
      %8468 = vmatmul.bf16.gmra.mxu0 %v8302
      %v8469 = vpop.f32.mrf.mxu0
      %v8470 = vadd.f32 %v8381, %v8469
      %v8471 = vpop.f32.mrf.mxu0
      %v8472 = vadd.f32 %v8383, %v8471
      %8473 = vmatmul.bf16.gmra.mxu0 %v8304
      %v8474 = vpop.f32.mrf.mxu0
      %v8475 = vadd.f32 %v8386, %v8474
      %v8476 = vpop.f32.mrf.mxu0
      %v8477 = vadd.f32 %v8388, %v8476
      %8478 = vmatmul.bf16.gmra.mxu0 %v8306
      %v8479 = vpop.f32.mrf.mxu0
      %v8480 = vadd.f32 %v8391, %v8479
      %v8481 = vpop.f32.mrf.mxu0
      %v8482 = vadd.f32 %v8393, %v8481
      %8483 = vmatmul.bf16.gmra.mxu0 %v8308
      %v8484 = vpop.f32.mrf.mxu0
      %v8485 = vadd.f32 %v8396, %v8484
      %v8486 = vpop.f32.mrf.mxu0
      %v8487 = vadd.f32 %v8398, %v8486
      %8488 = vmatmul.bf16.gmra.mxu0 %v8310
      %v8489 = vpop.f32.mrf.mxu0
      %v8490 = vadd.f32 %v8401, %v8489
      %v8491 = vpop.f32.mrf.mxu0
      %v8492 = vadd.f32 %v8403, %v8491
      %8493 = vmatmul.bf16.gmra.mxu0 %v8312
      %v8494 = vpop.f32.mrf.mxu0
      %v8495 = vadd.f32 %v8406, %v8494
      %v8496 = vpop.f32.mrf.mxu0
      %v8497 = vadd.f32 %v8408, %v8496
      %8498 = vmatmul.bf16.gmra.mxu0 %v8314
      %v8499 = vpop.f32.mrf.mxu0
      %v8500 = vadd.f32 %v8411, %v8499
      %v8501 = vpop.f32.mrf.mxu0
      %v8502 = vadd.f32 %v8413, %v8501
      %8503 = vmatmul.bf16.gmra.mxu0 %v8316
      %v8504 = vpop.f32.mrf.mxu0
      %v8505 = vadd.f32 %v8416, %v8504
      %v8506 = vpop.f32.mrf.mxu0
      %v8507 = vadd.f32 %v8418, %v8506
      %8508 = vmatmul.bf16.gmra.mxu0 %v8318
      %v8509 = vpop.f32.mrf.mxu0
      %v8510 = vadd.f32 %v8421, %v8509
      %v8511 = vpop.f32.mrf.mxu0
      %v8512 = vadd.f32 %v8423, %v8511
      %8513 = vmatmul.bf16.gmra.mxu0 %v8320
      %v8514 = vpop.f32.mrf.mxu0
      %v8515 = vadd.f32 %v8426, %v8514
      %v8516 = vpop.f32.mrf.mxu0
      %v8517 = vadd.f32 %v8428, %v8516
      %8518 = vmatmul.bf16.gmra.mxu0 %v8322
      %v8519 = vpop.f32.mrf.mxu0
      %v8520 = vadd.f32 %v8431, %v8519
      %v8521 = vpop.f32.mrf.mxu0
      %v8522 = vadd.f32 %v8433, %v8521
      %8523 = vmatmul.bf16.gmra.mxu0 %v8324
      %v8524 = vpop.f32.mrf.mxu0
      %v8525 = vadd.f32 %v8436, %v8524
      %v8526 = vpop.f32.mrf.mxu0
      %v8527 = vadd.f32 %v8438, %v8526
      %8528 = vmatmul.bf16.gmra.mxu0 %v8326
      %v8529 = vpop.f32.mrf.mxu0
      %v8530 = vadd.f32 %v8441, %v8529
      %v8531 = vpop.f32.mrf.mxu0
      %v8532 = vadd.f32 %v8443, %v8531
      %8533 = vmatmul.bf16.gmra.mxu0 %v8328
      %v8534 = vpop.f32.mrf.mxu0
      %v8535 = vadd.f32 %v8446, %v8534
      %v8536 = vpop.f32.mrf.mxu0
      %v8537 = vadd.f32 %v8448, %v8536
      %8538 = vdwg.mxu0
      %vm8539 = vcmp.ge.f32.partialorder %v8460, 0.0
      %vm8540 = vcmp.ge.f32.partialorder %v8462, 0.0
      %vm8541 = vcmp.ge.f32.partialorder %v8465, 0.0
      %vm8542 = vcmp.ge.f32.partialorder %v8467, 0.0
      %vm8543 = vcmp.ge.f32.partialorder %v8470, 0.0
      %vm8544 = vcmp.ge.f32.partialorder %v8472, 0.0
      %vm8545 = vcmp.ge.f32.partialorder %v8475, 0.0
      %vm8546 = vcmp.ge.f32.partialorder %v8477, 0.0
      %vm8547 = vcmp.ge.f32.partialorder %v8480, 0.0
      %vm8548 = vcmp.ge.f32.partialorder %v8482, 0.0
      %vm8549 = vcmp.ge.f32.partialorder %v8485, 0.0
      %vm8550 = vcmp.ge.f32.partialorder %v8487, 0.0
      %vm8551 = vcmp.ge.f32.partialorder %v8490, 0.0
      %vm8552 = vcmp.ge.f32.partialorder %v8492, 0.0
      %vm8553 = vcmp.ge.f32.partialorder %v8495, 0.0
      %vm8554 = vcmp.ge.f32.partialorder %v8497, 0.0
      %vm8555 = vcmp.ge.f32.partialorder %v8500, 0.0
      %vm8556 = vcmp.ge.f32.partialorder %v8502, 0.0
      %vm8557 = vcmp.ge.f32.partialorder %v8505, 0.0
      %vm8558 = vcmp.ge.f32.partialorder %v8507, 0.0
      %vm8559 = vcmp.ge.f32.partialorder %v8510, 0.0
      %vm8560 = vcmp.ge.f32.partialorder %v8512, 0.0
      %vm8561 = vcmp.ge.f32.partialorder %v8515, 0.0
      %vm8562 = vcmp.ge.f32.partialorder %v8517, 0.0
      %vm8563 = vcmp.ge.f32.partialorder %v8520, 0.0
      %vm8564 = vcmp.ge.f32.partialorder %v8522, 0.0
      %vm8565 = vcmp.ge.f32.partialorder %v8525, 0.0
      %vm8566 = vcmp.ge.f32.partialorder %v8527, 0.0
      %vm8567 = vcmp.ge.f32.partialorder %v8530, 0.0
      %vm8568 = vcmp.ge.f32.partialorder %v8532, 0.0
      %vm8569 = vcmp.ge.f32.partialorder %v8535, 0.0
      %vm8570 = vcmp.ge.f32.partialorder %v8537, 0.0
      %v8571 = vmul.f32 %v8460, 0.01
      %v8572 = vmul.f32 %v8462, 0.01
      %v8573 = vmul.f32 %v8465, 0.01
      %v8574 = vmul.f32 %v8467, 0.01
      %v8575 = vmul.f32 %v8470, 0.01
      %v8576 = vmul.f32 %v8472, 0.01
      %v8577 = vmul.f32 %v8475, 0.01
      %v8578 = vmul.f32 %v8477, 0.01
      %v8579 = vmul.f32 %v8480, 0.01
      %v8580 = vmul.f32 %v8482, 0.01
      %v8581 = vmul.f32 %v8485, 0.01
      %v8582 = vmul.f32 %v8487, 0.01
      %v8583 = vmul.f32 %v8490, 0.01
      %v8584 = vmul.f32 %v8492, 0.01
      %v8585 = vmul.f32 %v8495, 0.01
      %v8586 = vmul.f32 %v8497, 0.01
      %v8587 = vmul.f32 %v8500, 0.01
      %v8588 = vmul.f32 %v8502, 0.01
      %v8589 = vmul.f32 %v8505, 0.01
      %v8590 = vmul.f32 %v8507, 0.01
      %v8591 = vmul.f32 %v8510, 0.01
      %v8592 = vmul.f32 %v8512, 0.01
      %v8593 = vmul.f32 %v8515, 0.01
      %v8594 = vmul.f32 %v8517, 0.01
      %v8595 = vmul.f32 %v8520, 0.01
      %v8596 = vmul.f32 %v8522, 0.01
      %v8597 = vmul.f32 %v8525, 0.01
      %v8598 = vmul.f32 %v8527, 0.01
      %v8599 = vmul.f32 %v8530, 0.01
      %v8600 = vmul.f32 %v8532, 0.01
      %v8601 = vmul.f32 %v8535, 0.01
      %v8602 = vmul.f32 %v8537, 0.01
      %v8603 = vsel %vm8539, %v8460, %v8571
      %v8604 = vsel %vm8540, %v8462, %v8572
      %v8605 = vsel %vm8541, %v8465, %v8573
      %v8606 = vsel %vm8542, %v8467, %v8574
      %v8607 = vsel %vm8543, %v8470, %v8575
      %v8608 = vsel %vm8544, %v8472, %v8576
      %v8609 = vsel %vm8545, %v8475, %v8577
      %v8610 = vsel %vm8546, %v8477, %v8578
      %v8611 = vsel %vm8547, %v8480, %v8579
      %v8612 = vsel %vm8548, %v8482, %v8580
      %v8613 = vsel %vm8549, %v8485, %v8581
      %v8614 = vsel %vm8550, %v8487, %v8582
      %v8615 = vsel %vm8551, %v8490, %v8583
      %v8616 = vsel %vm8552, %v8492, %v8584
      %v8617 = vsel %vm8553, %v8495, %v8585
      %v8618 = vsel %vm8554, %v8497, %v8586
      %v8619 = vsel %vm8555, %v8500, %v8587
      %v8620 = vsel %vm8556, %v8502, %v8588
      %v8621 = vsel %vm8557, %v8505, %v8589
      %v8622 = vsel %vm8558, %v8507, %v8590
      %v8623 = vsel %vm8559, %v8510, %v8591
      %v8624 = vsel %vm8560, %v8512, %v8592
      %v8625 = vsel %vm8561, %v8515, %v8593
      %v8626 = vsel %vm8562, %v8517, %v8594
      %v8627 = vsel %vm8563, %v8520, %v8595
      %v8628 = vsel %vm8564, %v8522, %v8596
      %v8629 = vsel %vm8565, %v8525, %v8597
      %v8630 = vsel %vm8566, %v8527, %v8598
      %v8631 = vsel %vm8567, %v8530, %v8599
      %v8632 = vsel %vm8568, %v8532, %v8600
      %v8633 = vsel %vm8569, %v8535, %v8601
      %v8634 = vsel %vm8570, %v8537, %v8602
      %v8635 = vpack.c.bf16 %v8603, %v8603
      %v8636 = vpack.c.bf16 %v8604, %v8604
      %v8637 = vpack.c.bf16 %v8605, %v8605
      %v8638 = vpack.c.bf16 %v8606, %v8606
      %v8639 = vpack.c.bf16 %v8607, %v8607
      %v8640 = vpack.c.bf16 %v8608, %v8608
      %v8641 = vpack.c.bf16 %v8609, %v8609
      %v8642 = vpack.c.bf16 %v8610, %v8610
      %v8643 = vpack.c.bf16 %v8611, %v8611
      %v8644 = vpack.c.bf16 %v8612, %v8612
      %v8645 = vpack.c.bf16 %v8613, %v8613
      %v8646 = vpack.c.bf16 %v8614, %v8614
      %v8647 = vpack.c.bf16 %v8615, %v8615
      %v8648 = vpack.c.bf16 %v8616, %v8616
      %v8649 = vpack.c.bf16 %v8617, %v8617
      %v8650 = vpack.c.bf16 %v8618, %v8618
      %v8651 = vpack.c.bf16 %v8619, %v8619
      %v8652 = vpack.c.bf16 %v8620, %v8620
      %v8653 = vpack.c.bf16 %v8621, %v8621
      %v8654 = vpack.c.bf16 %v8622, %v8622
      %v8655 = vpack.c.bf16 %v8623, %v8623
      %v8656 = vpack.c.bf16 %v8624, %v8624
      %v8657 = vpack.c.bf16 %v8625, %v8625
      %v8658 = vpack.c.bf16 %v8626, %v8626
      %v8659 = vpack.c.bf16 %v8627, %v8627
      %v8660 = vpack.c.bf16 %v8628, %v8628
      %v8661 = vpack.c.bf16 %v8629, %v8629
      %v8662 = vpack.c.bf16 %v8630, %v8630
      %v8663 = vpack.c.bf16 %v8631, %v8631
      %v8664 = vpack.c.bf16 %v8632, %v8632
      %v8665 = vpack.c.bf16 %v8633, %v8633
      %v8666 = vpack.c.bf16 %v8634, %v8634
      %v8667 = vld [vmem:[%s17] sm:$0xff]
      %v8668 = vld [vmem:[%s17 + $0x8] sm:$0xff]
      %v8669 = vld [vmem:[%s17 + $0x10] sm:$0xff]
      %v8670 = vld [vmem:[%s17 + $0x18] sm:$0xff]
      %v8671 = vld [vmem:[%s17 + $0x20] sm:$0xff]
      %v8672 = vld [vmem:[%s17 + $0x28] sm:$0xff]
      %v8673 = vld [vmem:[%s17 + $0x30] sm:$0xff]
      %v8674 = vld [vmem:[%s17 + $0x38] sm:$0xff]
      %s8675 = scalar_lea.vmem %s17, 64
      %v8676 = vld [vmem:[%s8675] sm:$0xff]
      %v8677 = vld [vmem:[%s8675 + $0x8] sm:$0xff]
      %v8678 = vld [vmem:[%s8675 + $0x10] sm:$0xff]
      %v8679 = vld [vmem:[%s8675 + $0x18] sm:$0xff]
      %v8680 = vld [vmem:[%s8675 + $0x20] sm:$0xff]
      %v8681 = vld [vmem:[%s8675 + $0x28] sm:$0xff]
      %v8682 = vld [vmem:[%s8675 + $0x30] sm:$0xff]
      %v8683 = vld [vmem:[%s8675 + $0x38] sm:$0xff]
      %v8692 = vunpack.c.l.b16 %v8643
      %v8693 = vunpack.c.l.b16 %v8644
      %v8694 = vunpack.c.l.b16 %v8645
      %v8695 = vunpack.c.l.b16 %v8646
      %v8696 = vunpack.c.l.b16 %v8647
      %v8697 = vunpack.c.l.b16 %v8648
      %v8698 = vunpack.c.l.b16 %v8649
      %v8699 = vunpack.c.l.b16 %v8650
      %v8700 = vpack.c.b16 %v8693, %v8692
      %v8701 = vpack.c.b16 %v8695, %v8694
      %v8702 = vpack.c.b16 %v8697, %v8696
      %v8703 = vpack.c.b16 %v8699, %v8698
      %v8712 = vunpack.c.l.b16 %v8676
      %v8713 = vunpack.c.h.b16 %v8676
      %v8714 = vunpack.c.l.b16 %v8677
      %v8715 = vunpack.c.h.b16 %v8677
      %v8716 = vunpack.c.l.b16 %v8678
      %v8717 = vunpack.c.h.b16 %v8678
      %v8718 = vunpack.c.l.b16 %v8679
      %v8719 = vunpack.c.h.b16 %v8679
      %v8720 = vunpack.c.l.b16 %v8680
      %v8721 = vunpack.c.h.b16 %v8680
      %v8722 = vunpack.c.l.b16 %v8681
      %v8723 = vunpack.c.h.b16 %v8681
      %v8724 = vunpack.c.l.b16 %v8682
      %v8725 = vunpack.c.h.b16 %v8682
      %v8726 = vunpack.c.l.b16 %v8683
      %v8727 = vunpack.c.h.b16 %v8683
      %v8728 = vpack.c.b16 %v8714, %v8712
      %v8729 = vpack.c.b16 %v8715, %v8713
      %v8730 = vpack.c.b16 %v8718, %v8716
      %v8731 = vpack.c.b16 %v8719, %v8717
      %v8732 = vpack.c.b16 %v8722, %v8720
      %v8733 = vpack.c.b16 %v8723, %v8721
      %v8734 = vpack.c.b16 %v8726, %v8724
      %v8735 = vpack.c.b16 %v8727, %v8725
      %v8745 = vsel %vm5644, %v8700, 0
      %v8748 = vsel %vm5644, %v8701, 0
      %v8751 = vsel %vm5644, %v8702, 0
      %v8754 = vsel %vm5644, %v8703, 0
      %8756 = vmatpush.bf16.msra.mxu0 0
      %8757 = vmatpush.bf16.msra.mxu0 0
      %8758 = vmatpush.bf16.msra.mxu0 0
      %8759 = vmatpush.bf16.msra.mxu0 0
      %8760 = vmatpush.bf16.msra.mxu0 %v8734
      %8761 = vmatpush.bf16.msra.mxu0 %v8732
      %8762 = vmatpush.bf16.msra.mxu0 %v8730
      %8763 = vmatpush.bf16.msra.mxu0 %v8728
      %8764 = vmatmul.bf16.gmra.mxu0 %v8745
      %v8765 = vpop.f32.mrf.mxu0
      %v8766 = vadd.f32 0.0, %v8765
      %v8767 = vpop.f32.mrf.mxu0
      %v8768 = vadd.f32 0.0, %v8767
      %8769 = vmatmul.bf16.gmra.mxu0 %v8748
      %v8770 = vpop.f32.mrf.mxu0
      %v8771 = vadd.f32 0.0, %v8770
      %v8772 = vpop.f32.mrf.mxu0
      %v8773 = vadd.f32 0.0, %v8772
      %8774 = vmatmul.bf16.gmra.mxu0 %v8751
      %v8775 = vpop.f32.mrf.mxu0
      %v8776 = vadd.f32 0.0, %v8775
      %v8777 = vpop.f32.mrf.mxu0
      %v8778 = vadd.f32 0.0, %v8777
      %8779 = vmatmul.bf16.gmra.mxu0 %v8754
      %v8780 = vpop.f32.mrf.mxu0
      %v8781 = vadd.f32 0.0, %v8780
      %v8782 = vpop.f32.mrf.mxu0
      %v8783 = vadd.f32 0.0, %v8782
      %8784 = vdwg.mxu0
      %8785 = vmatpush.bf16.msra.mxu0 0
      %8786 = vmatpush.bf16.msra.mxu0 0
      %8787 = vmatpush.bf16.msra.mxu0 0
      %8788 = vmatpush.bf16.msra.mxu0 0
      %8789 = vmatpush.bf16.msra.mxu0 %v8735
      %8790 = vmatpush.bf16.msra.mxu0 %v8733
      %8791 = vmatpush.bf16.msra.mxu0 %v8731
      %8792 = vmatpush.bf16.msra.mxu0 %v8729
      %8793 = vmatmul.bf16.gmra.mxu0 %v8745
      %v8794 = vpop.f32.mrf.mxu0
      %v8795 = vadd.f32 0.0, %v8794
      %v8796 = vpop.f32.mrf.mxu0
      %v8797 = vadd.f32 0.0, %v8796
      %8798 = vmatmul.bf16.gmra.mxu0 %v8748
      %v8799 = vpop.f32.mrf.mxu0
      %v8800 = vadd.f32 0.0, %v8799
      %v8801 = vpop.f32.mrf.mxu0
      %v8802 = vadd.f32 0.0, %v8801
      %8803 = vmatmul.bf16.gmra.mxu0 %v8751
      %v8804 = vpop.f32.mrf.mxu0
      %v8805 = vadd.f32 0.0, %v8804
      %v8806 = vpop.f32.mrf.mxu0
      %v8807 = vadd.f32 0.0, %v8806
      %8808 = vmatmul.bf16.gmra.mxu0 %v8754
      %v8809 = vpop.f32.mrf.mxu0
      %v8810 = vadd.f32 0.0, %v8809
      %v8811 = vpop.f32.mrf.mxu0
      %v8812 = vadd.f32 0.0, %v8811
      %8813 = vdwg.mxu0
      %v8822 = vunpack.c.l.b16 %v8635
      %v8823 = vunpack.c.l.b16 %v8636
      %v8824 = vunpack.c.l.b16 %v8637
      %v8825 = vunpack.c.l.b16 %v8638
      %v8826 = vunpack.c.l.b16 %v8639
      %v8827 = vunpack.c.l.b16 %v8640
      %v8828 = vunpack.c.l.b16 %v8641
      %v8829 = vunpack.c.l.b16 %v8642
      %v8830 = vpack.c.b16 %v8823, %v8822
      %v8831 = vpack.c.b16 %v8825, %v8824
      %v8832 = vpack.c.b16 %v8827, %v8826
      %v8833 = vpack.c.b16 %v8829, %v8828
      %v8842 = vunpack.c.l.b16 %v8667
      %v8843 = vunpack.c.h.b16 %v8667
      %v8844 = vunpack.c.l.b16 %v8668
      %v8845 = vunpack.c.h.b16 %v8668
      %v8846 = vunpack.c.l.b16 %v8669
      %v8847 = vunpack.c.h.b16 %v8669
      %v8848 = vunpack.c.l.b16 %v8670
      %v8849 = vunpack.c.h.b16 %v8670
      %v8850 = vunpack.c.l.b16 %v8671
      %v8851 = vunpack.c.h.b16 %v8671
      %v8852 = vunpack.c.l.b16 %v8672
      %v8853 = vunpack.c.h.b16 %v8672
      %v8854 = vunpack.c.l.b16 %v8673
      %v8855 = vunpack.c.h.b16 %v8673
      %v8856 = vunpack.c.l.b16 %v8674
      %v8857 = vunpack.c.h.b16 %v8674
      %v8858 = vpack.c.b16 %v8844, %v8842
      %v8859 = vpack.c.b16 %v8845, %v8843
      %v8860 = vpack.c.b16 %v8848, %v8846
      %v8861 = vpack.c.b16 %v8849, %v8847
      %v8862 = vpack.c.b16 %v8852, %v8850
      %v8863 = vpack.c.b16 %v8853, %v8851
      %v8864 = vpack.c.b16 %v8856, %v8854
      %v8865 = vpack.c.b16 %v8857, %v8855
      %v8875 = vsel %vm5644, %v8830, 0
      %v8878 = vsel %vm5644, %v8831, 0
      %v8881 = vsel %vm5644, %v8832, 0
      %v8884 = vsel %vm5644, %v8833, 0
      %8886 = vmatpush.bf16.msra.mxu0 0
      %8887 = vmatpush.bf16.msra.mxu0 0
      %8888 = vmatpush.bf16.msra.mxu0 0
      %8889 = vmatpush.bf16.msra.mxu0 0
      %8890 = vmatpush.bf16.msra.mxu0 %v8864
      %8891 = vmatpush.bf16.msra.mxu0 %v8862
      %8892 = vmatpush.bf16.msra.mxu0 %v8860
      %8893 = vmatpush.bf16.msra.mxu0 %v8858
      %8894 = vmatmul.bf16.gmra.mxu0 %v8875
      %v8895 = vpop.f32.mrf.mxu0
      %v8896 = vadd.f32 %v8766, %v8895
      %v8897 = vpop.f32.mrf.mxu0
      %v8898 = vadd.f32 %v8768, %v8897
      %8899 = vmatmul.bf16.gmra.mxu0 %v8878
      %v8900 = vpop.f32.mrf.mxu0
      %v8901 = vadd.f32 %v8771, %v8900
      %v8902 = vpop.f32.mrf.mxu0
      %v8903 = vadd.f32 %v8773, %v8902
      %8904 = vmatmul.bf16.gmra.mxu0 %v8881
      %v8905 = vpop.f32.mrf.mxu0
      %v8906 = vadd.f32 %v8776, %v8905
      %v8907 = vpop.f32.mrf.mxu0
      %v8908 = vadd.f32 %v8778, %v8907
      %8909 = vmatmul.bf16.gmra.mxu0 %v8884
      %v8910 = vpop.f32.mrf.mxu0
      %v8911 = vadd.f32 %v8781, %v8910
      %v8912 = vpop.f32.mrf.mxu0
      %v8913 = vadd.f32 %v8783, %v8912
      %8914 = vdwg.mxu0
      %8915 = vmatpush.bf16.msra.mxu0 0
      %8916 = vmatpush.bf16.msra.mxu0 0
      %8917 = vmatpush.bf16.msra.mxu0 0
      %8918 = vmatpush.bf16.msra.mxu0 0
      %8919 = vmatpush.bf16.msra.mxu0 %v8865
      %8920 = vmatpush.bf16.msra.mxu0 %v8863
      %8921 = vmatpush.bf16.msra.mxu0 %v8861
      %8922 = vmatpush.bf16.msra.mxu0 %v8859
      %8923 = vmatmul.bf16.gmra.mxu0 %v8875
      %v8924 = vpop.f32.mrf.mxu0
      %v8925 = vadd.f32 %v8795, %v8924
      %v8926 = vpop.f32.mrf.mxu0
      %v8927 = vadd.f32 %v8797, %v8926
      %8928 = vmatmul.bf16.gmra.mxu0 %v8878
      %v8929 = vpop.f32.mrf.mxu0
      %v8930 = vadd.f32 %v8800, %v8929
      %v8931 = vpop.f32.mrf.mxu0
      %v8932 = vadd.f32 %v8802, %v8931
      %8933 = vmatmul.bf16.gmra.mxu0 %v8881
      %v8934 = vpop.f32.mrf.mxu0
      %v8935 = vadd.f32 %v8805, %v8934
      %v8936 = vpop.f32.mrf.mxu0
      %v8937 = vadd.f32 %v8807, %v8936
      %8938 = vmatmul.bf16.gmra.mxu0 %v8884
      %v8939 = vpop.f32.mrf.mxu0
      %v8940 = vadd.f32 %v8810, %v8939
      %v8941 = vpop.f32.mrf.mxu0
      %v8942 = vadd.f32 %v8812, %v8941
      %8943 = vdwg.mxu0
      %s8944 = scalar_lea.vmem %s17, 128
      %v8945 = vld [vmem:[%s8944] sm:$0xff]
      %v8946 = vld [vmem:[%s8944 + $0x8] sm:$0xff]
      %v8947 = vld [vmem:[%s8944 + $0x10] sm:$0xff]
      %v8948 = vld [vmem:[%s8944 + $0x18] sm:$0xff]
      %v8949 = vld [vmem:[%s8944 + $0x20] sm:$0xff]
      %v8950 = vld [vmem:[%s8944 + $0x28] sm:$0xff]
      %v8951 = vld [vmem:[%s8944 + $0x30] sm:$0xff]
      %v8952 = vld [vmem:[%s8944 + $0x38] sm:$0xff]
      %v8961 = vunpack.c.l.b16 %v8651
      %v8962 = vunpack.c.l.b16 %v8652
      %v8963 = vunpack.c.l.b16 %v8653
      %v8964 = vunpack.c.l.b16 %v8654
      %v8965 = vunpack.c.l.b16 %v8655
      %v8966 = vunpack.c.l.b16 %v8656
      %v8967 = vunpack.c.l.b16 %v8657
      %v8968 = vunpack.c.l.b16 %v8658
      %v8969 = vpack.c.b16 %v8962, %v8961
      %v8970 = vpack.c.b16 %v8964, %v8963
      %v8971 = vpack.c.b16 %v8966, %v8965
      %v8972 = vpack.c.b16 %v8968, %v8967
      %v8981 = vunpack.c.l.b16 %v8945
      %v8982 = vunpack.c.h.b16 %v8945
      %v8983 = vunpack.c.l.b16 %v8946
      %v8984 = vunpack.c.h.b16 %v8946
      %v8985 = vunpack.c.l.b16 %v8947
      %v8986 = vunpack.c.h.b16 %v8947
      %v8987 = vunpack.c.l.b16 %v8948
      %v8988 = vunpack.c.h.b16 %v8948
      %v8989 = vunpack.c.l.b16 %v8949
      %v8990 = vunpack.c.h.b16 %v8949
      %v8991 = vunpack.c.l.b16 %v8950
      %v8992 = vunpack.c.h.b16 %v8950
      %v8993 = vunpack.c.l.b16 %v8951
      %v8994 = vunpack.c.h.b16 %v8951
      %v8995 = vunpack.c.l.b16 %v8952
      %v8996 = vunpack.c.h.b16 %v8952
      %v8997 = vpack.c.b16 %v8983, %v8981
      %v8998 = vpack.c.b16 %v8984, %v8982
      %v8999 = vpack.c.b16 %v8987, %v8985
      %v9000 = vpack.c.b16 %v8988, %v8986
      %v9001 = vpack.c.b16 %v8991, %v8989
      %v9002 = vpack.c.b16 %v8992, %v8990
      %v9003 = vpack.c.b16 %v8995, %v8993
      %v9004 = vpack.c.b16 %v8996, %v8994
      %v9014 = vsel %vm5644, %v8969, 0
      %v9017 = vsel %vm5644, %v8970, 0
      %v9020 = vsel %vm5644, %v8971, 0
      %v9023 = vsel %vm5644, %v8972, 0
      %9025 = vmatpush.bf16.msra.mxu0 0
      %9026 = vmatpush.bf16.msra.mxu0 0
      %9027 = vmatpush.bf16.msra.mxu0 0
      %9028 = vmatpush.bf16.msra.mxu0 0
      %9029 = vmatpush.bf16.msra.mxu0 %v9003
      %9030 = vmatpush.bf16.msra.mxu0 %v9001
      %9031 = vmatpush.bf16.msra.mxu0 %v8999
      %9032 = vmatpush.bf16.msra.mxu0 %v8997
      %9033 = vmatmul.bf16.gmra.mxu0 %v9014
      %v9034 = vpop.f32.mrf.mxu0
      %v9035 = vadd.f32 0.0, %v9034
      %v9036 = vpop.f32.mrf.mxu0
      %v9037 = vadd.f32 0.0, %v9036
      %9038 = vmatmul.bf16.gmra.mxu0 %v9017
      %v9039 = vpop.f32.mrf.mxu0
      %v9040 = vadd.f32 0.0, %v9039
      %v9041 = vpop.f32.mrf.mxu0
      %v9042 = vadd.f32 0.0, %v9041
      %9043 = vmatmul.bf16.gmra.mxu0 %v9020
      %v9044 = vpop.f32.mrf.mxu0
      %v9045 = vadd.f32 0.0, %v9044
      %v9046 = vpop.f32.mrf.mxu0
      %v9047 = vadd.f32 0.0, %v9046
      %9048 = vmatmul.bf16.gmra.mxu0 %v9023
      %v9049 = vpop.f32.mrf.mxu0
      %v9050 = vadd.f32 0.0, %v9049
      %v9051 = vpop.f32.mrf.mxu0
      %v9052 = vadd.f32 0.0, %v9051
      %9053 = vdwg.mxu0
      %9054 = vmatpush.bf16.msra.mxu0 0
      %9055 = vmatpush.bf16.msra.mxu0 0
      %9056 = vmatpush.bf16.msra.mxu0 0
      %9057 = vmatpush.bf16.msra.mxu0 0
      %9058 = vmatpush.bf16.msra.mxu0 %v9004
      %9059 = vmatpush.bf16.msra.mxu0 %v9002
      %9060 = vmatpush.bf16.msra.mxu0 %v9000
      %9061 = vmatpush.bf16.msra.mxu0 %v8998
      %9062 = vmatmul.bf16.gmra.mxu0 %v9014
      %v9063 = vpop.f32.mrf.mxu0
      %v9064 = vadd.f32 0.0, %v9063
      %v9065 = vpop.f32.mrf.mxu0
      %v9066 = vadd.f32 0.0, %v9065
      %9067 = vmatmul.bf16.gmra.mxu0 %v9017
      %v9068 = vpop.f32.mrf.mxu0
      %v9069 = vadd.f32 0.0, %v9068
      %v9070 = vpop.f32.mrf.mxu0
      %v9071 = vadd.f32 0.0, %v9070
      %9072 = vmatmul.bf16.gmra.mxu0 %v9020
      %v9073 = vpop.f32.mrf.mxu0
      %v9074 = vadd.f32 0.0, %v9073
      %v9075 = vpop.f32.mrf.mxu0
      %v9076 = vadd.f32 0.0, %v9075
      %9077 = vmatmul.bf16.gmra.mxu0 %v9023
      %v9078 = vpop.f32.mrf.mxu0
      %v9079 = vadd.f32 0.0, %v9078
      %v9080 = vpop.f32.mrf.mxu0
      %v9081 = vadd.f32 0.0, %v9080
      %9082 = vdwg.mxu0
      %v9083 = vadd.f32 %v8896, %v9035
      %v9084 = vadd.f32 %v8925, %v9064
      %v9085 = vadd.f32 %v8898, %v9037
      %v9086 = vadd.f32 %v8927, %v9066
      %v9087 = vadd.f32 %v8901, %v9040
      %v9088 = vadd.f32 %v8930, %v9069
      %v9089 = vadd.f32 %v8903, %v9042
      %v9090 = vadd.f32 %v8932, %v9071
      %v9091 = vadd.f32 %v8906, %v9045
      %v9092 = vadd.f32 %v8935, %v9074
      %v9093 = vadd.f32 %v8908, %v9047
      %v9094 = vadd.f32 %v8937, %v9076
      %v9095 = vadd.f32 %v8911, %v9050
      %v9096 = vadd.f32 %v8940, %v9079
      %v9097 = vadd.f32 %v8913, %v9052
      %v9098 = vadd.f32 %v8942, %v9081
      %s9099 = scalar_lea.vmem %s17, 192
      %v9100 = vld [vmem:[%s9099] sm:$0xff]
      %v9101 = vld [vmem:[%s9099 + $0x8] sm:$0xff]
      %v9102 = vld [vmem:[%s9099 + $0x10] sm:$0xff]
      %v9103 = vld [vmem:[%s9099 + $0x18] sm:$0xff]
      %v9104 = vld [vmem:[%s9099 + $0x20] sm:$0xff]
      %v9105 = vld [vmem:[%s9099 + $0x28] sm:$0xff]
      %v9106 = vld [vmem:[%s9099 + $0x30] sm:$0xff]
      %v9107 = vld [vmem:[%s9099 + $0x38] sm:$0xff]
      %v9116 = vunpack.c.l.b16 %v8659
      %v9117 = vunpack.c.l.b16 %v8660
      %v9118 = vunpack.c.l.b16 %v8661
      %v9119 = vunpack.c.l.b16 %v8662
      %v9120 = vunpack.c.l.b16 %v8663
      %v9121 = vunpack.c.l.b16 %v8664
      %v9122 = vunpack.c.l.b16 %v8665
      %v9123 = vunpack.c.l.b16 %v8666
      %v9124 = vpack.c.b16 %v9117, %v9116
      %v9125 = vpack.c.b16 %v9119, %v9118
      %v9126 = vpack.c.b16 %v9121, %v9120
      %v9127 = vpack.c.b16 %v9123, %v9122
      %v9136 = vunpack.c.l.b16 %v9100
      %v9137 = vunpack.c.h.b16 %v9100
      %v9138 = vunpack.c.l.b16 %v9101
      %v9139 = vunpack.c.h.b16 %v9101
      %v9140 = vunpack.c.l.b16 %v9102
      %v9141 = vunpack.c.h.b16 %v9102
      %v9142 = vunpack.c.l.b16 %v9103
      %v9143 = vunpack.c.h.b16 %v9103
      %v9144 = vunpack.c.l.b16 %v9104
      %v9145 = vunpack.c.h.b16 %v9104
      %v9146 = vunpack.c.l.b16 %v9105
      %v9147 = vunpack.c.h.b16 %v9105
      %v9148 = vunpack.c.l.b16 %v9106
      %v9149 = vunpack.c.h.b16 %v9106
      %v9150 = vunpack.c.l.b16 %v9107
      %v9151 = vunpack.c.h.b16 %v9107
      %v9152 = vpack.c.b16 %v9138, %v9136
      %v9153 = vpack.c.b16 %v9139, %v9137
      %v9154 = vpack.c.b16 %v9142, %v9140
      %v9155 = vpack.c.b16 %v9143, %v9141
      %v9156 = vpack.c.b16 %v9146, %v9144
      %v9157 = vpack.c.b16 %v9147, %v9145
      %v9158 = vpack.c.b16 %v9150, %v9148
      %v9159 = vpack.c.b16 %v9151, %v9149
      %v9169 = vsel %vm5644, %v9124, 0
      %v9172 = vsel %vm5644, %v9125, 0
      %v9175 = vsel %vm5644, %v9126, 0
      %v9178 = vsel %vm5644, %v9127, 0
      %9180 = vmatpush.bf16.msra.mxu0 0
      %9181 = vmatpush.bf16.msra.mxu0 0
      %9182 = vmatpush.bf16.msra.mxu0 0
      %9183 = vmatpush.bf16.msra.mxu0 0
      %9184 = vmatpush.bf16.msra.mxu0 %v9158
      %9185 = vmatpush.bf16.msra.mxu0 %v9156
      %9186 = vmatpush.bf16.msra.mxu0 %v9154
      %9187 = vmatpush.bf16.msra.mxu0 %v9152
      %9188 = vmatmul.bf16.gmra.mxu0 %v9169
      %v9189 = vpop.f32.mrf.mxu0
      %v9190 = vadd.f32 0.0, %v9189
      %v9191 = vpop.f32.mrf.mxu0
      %v9192 = vadd.f32 0.0, %v9191
      %9193 = vmatmul.bf16.gmra.mxu0 %v9172
      %v9194 = vpop.f32.mrf.mxu0
      %v9195 = vadd.f32 0.0, %v9194
      %v9196 = vpop.f32.mrf.mxu0
      %v9197 = vadd.f32 0.0, %v9196
      %9198 = vmatmul.bf16.gmra.mxu0 %v9175
      %v9199 = vpop.f32.mrf.mxu0
      %v9200 = vadd.f32 0.0, %v9199
      %v9201 = vpop.f32.mrf.mxu0
      %v9202 = vadd.f32 0.0, %v9201
      %9203 = vmatmul.bf16.gmra.mxu0 %v9178
      %v9204 = vpop.f32.mrf.mxu0
      %v9205 = vadd.f32 0.0, %v9204
      %v9206 = vpop.f32.mrf.mxu0
      %v9207 = vadd.f32 0.0, %v9206
      %9208 = vdwg.mxu0
      %9209 = vmatpush.bf16.msra.mxu0 0
      %9210 = vmatpush.bf16.msra.mxu0 0
      %9211 = vmatpush.bf16.msra.mxu0 0
      %9212 = vmatpush.bf16.msra.mxu0 0
      %9213 = vmatpush.bf16.msra.mxu0 %v9159
      %9214 = vmatpush.bf16.msra.mxu0 %v9157
      %9215 = vmatpush.bf16.msra.mxu0 %v9155
      %9216 = vmatpush.bf16.msra.mxu0 %v9153
      %9217 = vmatmul.bf16.gmra.mxu0 %v9169
      %v9218 = vpop.f32.mrf.mxu0
      %v9219 = vadd.f32 0.0, %v9218
      %v9220 = vpop.f32.mrf.mxu0
      %v9221 = vadd.f32 0.0, %v9220
      %9222 = vmatmul.bf16.gmra.mxu0 %v9172
      %v9223 = vpop.f32.mrf.mxu0
      %v9224 = vadd.f32 0.0, %v9223
      %v9225 = vpop.f32.mrf.mxu0
      %v9226 = vadd.f32 0.0, %v9225
      %9227 = vmatmul.bf16.gmra.mxu0 %v9175
      %v9228 = vpop.f32.mrf.mxu0
      %v9229 = vadd.f32 0.0, %v9228
      %v9230 = vpop.f32.mrf.mxu0
      %v9231 = vadd.f32 0.0, %v9230
      %9232 = vmatmul.bf16.gmra.mxu0 %v9178
      %v9233 = vpop.f32.mrf.mxu0
      %v9234 = vadd.f32 0.0, %v9233
      %v9235 = vpop.f32.mrf.mxu0
      %v9236 = vadd.f32 0.0, %v9235
      %9237 = vdwg.mxu0
      %v9238 = vadd.f32 %v9083, %v9190
      %v9239 = vadd.f32 %v9084, %v9219
      %v9240 = vadd.f32 %v9085, %v9192
      %v9241 = vadd.f32 %v9086, %v9221
      %v9242 = vadd.f32 %v9087, %v9195
      %v9243 = vadd.f32 %v9088, %v9224
      %v9244 = vadd.f32 %v9089, %v9197
      %v9245 = vadd.f32 %v9090, %v9226
      %v9246 = vadd.f32 %v9091, %v9200
      %v9247 = vadd.f32 %v9092, %v9229
      %v9248 = vadd.f32 %v9093, %v9202
      %v9249 = vadd.f32 %v9094, %v9231
      %v9250 = vadd.f32 %v9095, %v9205
      %v9251 = vadd.f32 %v9096, %v9234
      %v9252 = vadd.f32 %v9097, %v9207
      %v9253 = vadd.f32 %v9098, %v9236
      %v9254 = vpack.c.bf16 %v9240, %v9238
      %v9255 = vpack.c.bf16 %v9241, %v9239
      %v9256 = vpack.c.bf16 %v9244, %v9242
      %v9257 = vpack.c.bf16 %v9245, %v9243
      %v9258 = vpack.c.bf16 %v9248, %v9246
      %v9259 = vpack.c.bf16 %v9249, %v9247
      %v9260 = vpack.c.bf16 %v9252, %v9250
      %v9261 = vpack.c.bf16 %v9253, %v9251
      %v9262 = vld [vmem:[%s20] sm:$0xff]
      %v9263 = vld [vmem:[%s20 + $0x8] sm:$0xf]
      %v9264 = vld [vmem:[%s20 + $0xc] sm:$0xff]
      %v9265 = vld [vmem:[%s20 + $0x14] sm:$0xf]
      %v9266 = vld [vmem:[%s20 + $0x18] sm:$0xff]
      %v9267 = vld [vmem:[%s20 + $0x20] sm:$0xf]
      %v9268 = vld [vmem:[%s20 + $0x24] sm:$0xff]
      %v9269 = vld [vmem:[%s20 + $0x2c] sm:$0xf]
      %v9270 = vld [vmem:[%s20 + $0x30] sm:$0xff]
      %v9271 = vld [vmem:[%s20 + $0x38] sm:$0xf]
      %v9272 = vld [vmem:[%s20 + $0x3c] sm:$0xff]
      %v9273 = vld [vmem:[%s20 + $0x44] sm:$0xf]
      %v9274 = vld [vmem:[%s20 + $0x48] sm:$0xff]
      %v9275 = vld [vmem:[%s20 + $0x50] sm:$0xf]
      %v9276 = vld [vmem:[%s20 + $0x54] sm:$0xff]
      %v9277 = vld [vmem:[%s20 + $0x5c] sm:$0xf]
      %v9278 = vld [vmem:[%s20 + $0x60] sm:$0xff]
      %v9279 = vld [vmem:[%s20 + $0x68] sm:$0xf]
      %v9280 = vld [vmem:[%s20 + $0x6c] sm:$0xff]
      %v9281 = vld [vmem:[%s20 + $0x74] sm:$0xf]
      %v9282 = vld [vmem:[%s20 + $0x78] sm:$0xff]
      %v9283 = vld [vmem:[%s20 + $0x80] sm:$0xf]
      %v9284 = vld [vmem:[%s20 + $0x84] sm:$0xff]
      %v9285 = vld [vmem:[%s20 + $0x8c] sm:$0xf]
      %v9286 = vld [vmem:[%s20 + $0x90] sm:$0xff]
      %v9287 = vld [vmem:[%s20 + $0x98] sm:$0xf]
      %v9288 = vld [vmem:[%s20 + $0x9c] sm:$0xff]
      %v9289 = vld [vmem:[%s20 + $0xa4] sm:$0xf]
      %v9290 = vld [vmem:[%s20 + $0xa8] sm:$0xff]
      %v9291 = vld [vmem:[%s20 + $0xb0] sm:$0xf]
      %v9292 = vld [vmem:[%s20 + $0xb4] sm:$0xff]
      %v9293 = vld [vmem:[%s20 + $0xbc] sm:$0xf]
      %v9294 = vld [vmem:[%s20 + $0xc0] sm:$0xff]
      %v9295 = vld [vmem:[%s20 + $0xc8] sm:$0xf]
      %v9296 = vld [vmem:[%s20 + $0xcc] sm:$0xff]
      %v9297 = vld [vmem:[%s20 + $0xd4] sm:$0xf]
      %v9298 = vld [vmem:[%s20 + $0xd8] sm:$0xff]
      %v9299 = vld [vmem:[%s20 + $0xe0] sm:$0xf]
      %v9300 = vld [vmem:[%s20 + $0xe4] sm:$0xff]
      %v9301 = vld [vmem:[%s20 + $0xec] sm:$0xf]
      %v9302 = vld [vmem:[%s20 + $0xf0] sm:$0xff]
      %v9303 = vld [vmem:[%s20 + $0xf8] sm:$0xf]
      %v9304 = vld [vmem:[%s20 + $0xfc] sm:$0xff]
      %v9305 = vld [vmem:[%s20 + $0x104] sm:$0xf]
      %v9306 = vld [vmem:[%s20 + $0x108] sm:$0xff]
      %v9307 = vld [vmem:[%s20 + $0x110] sm:$0xf]
      %v9308 = vld [vmem:[%s20 + $0x114] sm:$0xff]
      %v9309 = vld [vmem:[%s20 + $0x11c] sm:$0xf]
      %v9310 = vld [vmem:[%s20 + $0x120] sm:$0xff]
      %v9311 = vld [vmem:[%s20 + $0x128] sm:$0xf]
      %v9312 = vld [vmem:[%s20 + $0x12c] sm:$0xff]
      %v9313 = vld [vmem:[%s20 + $0x134] sm:$0xf]
      %v9314 = vld [vmem:[%s20 + $0x138] sm:$0xff]
      %v9315 = vld [vmem:[%s20 + $0x140] sm:$0xf]
      %v9316 = vld [vmem:[%s20 + $0x144] sm:$0xff]
      %v9317 = vld [vmem:[%s20 + $0x14c] sm:$0xf]
      %v9318 = vld [vmem:[%s20 + $0x150] sm:$0xff]
      %v9319 = vld [vmem:[%s20 + $0x158] sm:$0xf]
      %v9320 = vld [vmem:[%s20 + $0x15c] sm:$0xff]
      %v9321 = vld [vmem:[%s20 + $0x164] sm:$0xf]
      %v9322 = vld [vmem:[%s20 + $0x168] sm:$0xff]
      %v9323 = vld [vmem:[%s20 + $0x170] sm:$0xf]
      %v9324 = vld [vmem:[%s20 + $0x174] sm:$0xff]
      %v9325 = vld [vmem:[%s20 + $0x17c] sm:$0xf]
      %v9390 = vunpack.c.l.b16 %v9262
      %v9391 = vunpack.c.h.b16 %v9262
      %v9392 = vunpack.c.l.b16 %v9263
      %v9393 = vunpack.c.l.b16 %v9264
      %v9394 = vunpack.c.h.b16 %v9264
      %v9395 = vunpack.c.l.b16 %v9265
      %v9396 = vunpack.c.l.b16 %v9266
      %v9397 = vunpack.c.h.b16 %v9266
      %v9398 = vunpack.c.l.b16 %v9267
      %v9399 = vunpack.c.l.b16 %v9268
      %v9400 = vunpack.c.h.b16 %v9268
      %v9401 = vunpack.c.l.b16 %v9269
      %v9402 = vunpack.c.l.b16 %v9270
      %v9403 = vunpack.c.h.b16 %v9270
      %v9404 = vunpack.c.l.b16 %v9271
      %v9405 = vunpack.c.l.b16 %v9272
      %v9406 = vunpack.c.h.b16 %v9272
      %v9407 = vunpack.c.l.b16 %v9273
      %v9408 = vunpack.c.l.b16 %v9274
      %v9409 = vunpack.c.h.b16 %v9274
      %v9410 = vunpack.c.l.b16 %v9275
      %v9411 = vunpack.c.l.b16 %v9276
      %v9412 = vunpack.c.h.b16 %v9276
      %v9413 = vunpack.c.l.b16 %v9277
      %v9414 = vunpack.c.l.b16 %v9278
      %v9415 = vunpack.c.h.b16 %v9278
      %v9416 = vunpack.c.l.b16 %v9279
      %v9417 = vunpack.c.l.b16 %v9280
      %v9418 = vunpack.c.h.b16 %v9280
      %v9419 = vunpack.c.l.b16 %v9281
      %v9420 = vunpack.c.l.b16 %v9282
      %v9421 = vunpack.c.h.b16 %v9282
      %v9422 = vunpack.c.l.b16 %v9283
      %v9423 = vunpack.c.l.b16 %v9284
      %v9424 = vunpack.c.h.b16 %v9284
      %v9425 = vunpack.c.l.b16 %v9285
      %v9426 = vunpack.c.l.b16 %v9286
      %v9427 = vunpack.c.h.b16 %v9286
      %v9428 = vunpack.c.l.b16 %v9287
      %v9429 = vunpack.c.l.b16 %v9288
      %v9430 = vunpack.c.h.b16 %v9288
      %v9431 = vunpack.c.l.b16 %v9289
      %v9432 = vunpack.c.l.b16 %v9290
      %v9433 = vunpack.c.h.b16 %v9290
      %v9434 = vunpack.c.l.b16 %v9291
      %v9435 = vunpack.c.l.b16 %v9292
      %v9436 = vunpack.c.h.b16 %v9292
      %v9437 = vunpack.c.l.b16 %v9293
      %v9438 = vunpack.c.l.b16 %v9294
      %v9439 = vunpack.c.h.b16 %v9294
      %v9440 = vunpack.c.l.b16 %v9295
      %v9441 = vunpack.c.l.b16 %v9296
      %v9442 = vunpack.c.h.b16 %v9296
      %v9443 = vunpack.c.l.b16 %v9297
      %v9444 = vunpack.c.l.b16 %v9298
      %v9445 = vunpack.c.h.b16 %v9298
      %v9446 = vunpack.c.l.b16 %v9299
      %v9447 = vunpack.c.l.b16 %v9300
      %v9448 = vunpack.c.h.b16 %v9300
      %v9449 = vunpack.c.l.b16 %v9301
      %v9450 = vunpack.c.l.b16 %v9302
      %v9451 = vunpack.c.h.b16 %v9302
      %v9452 = vunpack.c.l.b16 %v9303
      %v9453 = vunpack.c.l.b16 %v9304
      %v9454 = vunpack.c.h.b16 %v9304
      %v9455 = vunpack.c.l.b16 %v9305
      %v9456 = vunpack.c.l.b16 %v9306
      %v9457 = vunpack.c.h.b16 %v9306
      %v9458 = vunpack.c.l.b16 %v9307
      %v9459 = vunpack.c.l.b16 %v9308
      %v9460 = vunpack.c.h.b16 %v9308
      %v9461 = vunpack.c.l.b16 %v9309
      %v9462 = vunpack.c.l.b16 %v9310
      %v9463 = vunpack.c.h.b16 %v9310
      %v9464 = vunpack.c.l.b16 %v9311
      %v9465 = vunpack.c.l.b16 %v9312
      %v9466 = vunpack.c.h.b16 %v9312
      %v9467 = vunpack.c.l.b16 %v9313
      %v9468 = vunpack.c.l.b16 %v9314
      %v9469 = vunpack.c.h.b16 %v9314
      %v9470 = vunpack.c.l.b16 %v9315
      %v9471 = vunpack.c.l.b16 %v9316
      %v9472 = vunpack.c.h.b16 %v9316
      %v9473 = vunpack.c.l.b16 %v9317
      %v9474 = vunpack.c.l.b16 %v9318
      %v9475 = vunpack.c.h.b16 %v9318
      %v9476 = vunpack.c.l.b16 %v9319
      %v9477 = vunpack.c.l.b16 %v9320
      %v9478 = vunpack.c.h.b16 %v9320
      %v9479 = vunpack.c.l.b16 %v9321
      %v9480 = vunpack.c.l.b16 %v9322
      %v9481 = vunpack.c.h.b16 %v9322
      %v9482 = vunpack.c.l.b16 %v9323
      %v9483 = vunpack.c.l.b16 %v9324
      %v9484 = vunpack.c.h.b16 %v9324
      %v9485 = vunpack.c.l.b16 %v9325
      %v9486 = vpack.c.b16 %v9393, %v9390
      %v9487 = vpack.c.b16 %v9394, %v9391
      %v9488 = vpack.c.b16 %v9395, %v9392
      %v9489 = vpack.c.b16 %v9399, %v9396
      %v9490 = vpack.c.b16 %v9400, %v9397
      %v9491 = vpack.c.b16 %v9401, %v9398
      %v9492 = vpack.c.b16 %v9405, %v9402
      %v9493 = vpack.c.b16 %v9406, %v9403
      %v9494 = vpack.c.b16 %v9407, %v9404
      %v9495 = vpack.c.b16 %v9411, %v9408
      %v9496 = vpack.c.b16 %v9412, %v9409
      %v9497 = vpack.c.b16 %v9413, %v9410
      %v9498 = vpack.c.b16 %v9417, %v9414
      %v9499 = vpack.c.b16 %v9418, %v9415
      %v9500 = vpack.c.b16 %v9419, %v9416
      %v9501 = vpack.c.b16 %v9423, %v9420
      %v9502 = vpack.c.b16 %v9424, %v9421
      %v9503 = vpack.c.b16 %v9425, %v9422
      %v9504 = vpack.c.b16 %v9429, %v9426
      %v9505 = vpack.c.b16 %v9430, %v9427
      %v9506 = vpack.c.b16 %v9431, %v9428
      %v9507 = vpack.c.b16 %v9435, %v9432
      %v9508 = vpack.c.b16 %v9436, %v9433
      %v9509 = vpack.c.b16 %v9437, %v9434
      %v9510 = vpack.c.b16 %v9441, %v9438
      %v9511 = vpack.c.b16 %v9442, %v9439
      %v9512 = vpack.c.b16 %v9443, %v9440
      %v9513 = vpack.c.b16 %v9447, %v9444
      %v9514 = vpack.c.b16 %v9448, %v9445
      %v9515 = vpack.c.b16 %v9449, %v9446
      %v9516 = vpack.c.b16 %v9453, %v9450
      %v9517 = vpack.c.b16 %v9454, %v9451
      %v9518 = vpack.c.b16 %v9455, %v9452
      %v9519 = vpack.c.b16 %v9459, %v9456
      %v9520 = vpack.c.b16 %v9460, %v9457
      %v9521 = vpack.c.b16 %v9461, %v9458
      %v9522 = vpack.c.b16 %v9465, %v9462
      %v9523 = vpack.c.b16 %v9466, %v9463
      %v9524 = vpack.c.b16 %v9467, %v9464
      %v9525 = vpack.c.b16 %v9471, %v9468
      %v9526 = vpack.c.b16 %v9472, %v9469
      %v9527 = vpack.c.b16 %v9473, %v9470
      %v9528 = vpack.c.b16 %v9477, %v9474
      %v9529 = vpack.c.b16 %v9478, %v9475
      %v9530 = vpack.c.b16 %v9479, %v9476
      %v9531 = vpack.c.b16 %v9483, %v9480
      %v9532 = vpack.c.b16 %v9484, %v9481
      %v9533 = vpack.c.b16 %v9485, %v9482
      %9582 = vmatpush.bf16.msra.mxu0 %v9507
      %9583 = vmatpush.bf16.msra.mxu0 %v9504
      %9584 = vmatpush.bf16.msra.mxu0 %v9501
      %9585 = vmatpush.bf16.msra.mxu0 %v9498
      %9586 = vmatpush.bf16.msra.mxu0 %v9495
      %9587 = vmatpush.bf16.msra.mxu0 %v9492
      %9588 = vmatpush.bf16.msra.mxu0 %v9489
      %9589 = vmatpush.bf16.msra.mxu0 %v9486
      %9590 = vmatmul.bf16.gmra.mxu0 %v9254
      %v9591 = vpop.f32.mrf.mxu0
      %v9592 = vadd.f32 0.0, %v9591
      %v9593 = vpop.f32.mrf.mxu0
      %v9594 = vadd.f32 0.0, %v9593
      %9595 = vmatmul.bf16.gmra.mxu0 %v9256
      %v9596 = vpop.f32.mrf.mxu0
      %v9597 = vadd.f32 0.0, %v9596
      %v9598 = vpop.f32.mrf.mxu0
      %v9599 = vadd.f32 0.0, %v9598
      %9600 = vmatmul.bf16.gmra.mxu0 %v9258
      %v9601 = vpop.f32.mrf.mxu0
      %v9602 = vadd.f32 0.0, %v9601
      %v9603 = vpop.f32.mrf.mxu0
      %v9604 = vadd.f32 0.0, %v9603
      %9605 = vmatmul.bf16.gmra.mxu0 %v9260
      %v9606 = vpop.f32.mrf.mxu0
      %v9607 = vadd.f32 0.0, %v9606
      %v9608 = vpop.f32.mrf.mxu0
      %v9609 = vadd.f32 0.0, %v9608
      %9610 = vdwg.mxu0
      %9611 = vmatpush.bf16.msra.mxu0 %v9531
      %9612 = vmatpush.bf16.msra.mxu0 %v9528
      %9613 = vmatpush.bf16.msra.mxu0 %v9525
      %9614 = vmatpush.bf16.msra.mxu0 %v9522
      %9615 = vmatpush.bf16.msra.mxu0 %v9519
      %9616 = vmatpush.bf16.msra.mxu0 %v9516
      %9617 = vmatpush.bf16.msra.mxu0 %v9513
      %9618 = vmatpush.bf16.msra.mxu0 %v9510
      %9619 = vmatmul.bf16.gmra.mxu0 %v9255
      %v9620 = vpop.f32.mrf.mxu0
      %v9621 = vadd.f32 %v9592, %v9620
      %v9622 = vpop.f32.mrf.mxu0
      %v9623 = vadd.f32 %v9594, %v9622
      %9624 = vmatmul.bf16.gmra.mxu0 %v9257
      %v9625 = vpop.f32.mrf.mxu0
      %v9626 = vadd.f32 %v9597, %v9625
      %v9627 = vpop.f32.mrf.mxu0
      %v9628 = vadd.f32 %v9599, %v9627
      %9629 = vmatmul.bf16.gmra.mxu0 %v9259
      %v9630 = vpop.f32.mrf.mxu0
      %v9631 = vadd.f32 %v9602, %v9630
      %v9632 = vpop.f32.mrf.mxu0
      %v9633 = vadd.f32 %v9604, %v9632
      %9634 = vmatmul.bf16.gmra.mxu0 %v9261
      %v9635 = vpop.f32.mrf.mxu0
      %v9636 = vadd.f32 %v9607, %v9635
      %v9637 = vpop.f32.mrf.mxu0
      %v9638 = vadd.f32 %v9609, %v9637
      %9639 = vdwg.mxu0
      %9640 = vmatpush.bf16.msra.mxu0 %v9508
      %9641 = vmatpush.bf16.msra.mxu0 %v9505
      %9642 = vmatpush.bf16.msra.mxu0 %v9502
      %9643 = vmatpush.bf16.msra.mxu0 %v9499
      %9644 = vmatpush.bf16.msra.mxu0 %v9496
      %9645 = vmatpush.bf16.msra.mxu0 %v9493
      %9646 = vmatpush.bf16.msra.mxu0 %v9490
      %9647 = vmatpush.bf16.msra.mxu0 %v9487
      %9648 = vmatmul.bf16.gmra.mxu0 %v9254
      %v9649 = vpop.f32.mrf.mxu0
      %v9650 = vadd.f32 0.0, %v9649
      %v9651 = vpop.f32.mrf.mxu0
      %v9652 = vadd.f32 0.0, %v9651
      %9653 = vmatmul.bf16.gmra.mxu0 %v9256
      %v9654 = vpop.f32.mrf.mxu0
      %v9655 = vadd.f32 0.0, %v9654
      %v9656 = vpop.f32.mrf.mxu0
      %v9657 = vadd.f32 0.0, %v9656
      %9658 = vmatmul.bf16.gmra.mxu0 %v9258
      %v9659 = vpop.f32.mrf.mxu0
      %v9660 = vadd.f32 0.0, %v9659
      %v9661 = vpop.f32.mrf.mxu0
      %v9662 = vadd.f32 0.0, %v9661
      %9663 = vmatmul.bf16.gmra.mxu0 %v9260
      %v9664 = vpop.f32.mrf.mxu0
      %v9665 = vadd.f32 0.0, %v9664
      %v9666 = vpop.f32.mrf.mxu0
      %v9667 = vadd.f32 0.0, %v9666
      %9668 = vdwg.mxu0
      %9669 = vmatpush.bf16.msra.mxu0 %v9532
      %9670 = vmatpush.bf16.msra.mxu0 %v9529
      %9671 = vmatpush.bf16.msra.mxu0 %v9526
      %9672 = vmatpush.bf16.msra.mxu0 %v9523
      %9673 = vmatpush.bf16.msra.mxu0 %v9520
      %9674 = vmatpush.bf16.msra.mxu0 %v9517
      %9675 = vmatpush.bf16.msra.mxu0 %v9514
      %9676 = vmatpush.bf16.msra.mxu0 %v9511
      %9677 = vmatmul.bf16.gmra.mxu0 %v9255
      %v9678 = vpop.f32.mrf.mxu0
      %v9679 = vadd.f32 %v9650, %v9678
      %v9680 = vpop.f32.mrf.mxu0
      %v9681 = vadd.f32 %v9652, %v9680
      %9682 = vmatmul.bf16.gmra.mxu0 %v9257
      %v9683 = vpop.f32.mrf.mxu0
      %v9684 = vadd.f32 %v9655, %v9683
      %v9685 = vpop.f32.mrf.mxu0
      %v9686 = vadd.f32 %v9657, %v9685
      %9687 = vmatmul.bf16.gmra.mxu0 %v9259
      %v9688 = vpop.f32.mrf.mxu0
      %v9689 = vadd.f32 %v9660, %v9688
      %v9690 = vpop.f32.mrf.mxu0
      %v9691 = vadd.f32 %v9662, %v9690
      %9692 = vmatmul.bf16.gmra.mxu0 %v9261
      %v9693 = vpop.f32.mrf.mxu0
      %v9694 = vadd.f32 %v9665, %v9693
      %v9695 = vpop.f32.mrf.mxu0
      %v9696 = vadd.f32 %v9667, %v9695
      %9697 = vdwg.mxu0
      %9698 = vmatpush.bf16.msra.mxu0 %v9509
      %9699 = vmatpush.bf16.msra.mxu0 %v9506
      %9700 = vmatpush.bf16.msra.mxu0 %v9503
      %9701 = vmatpush.bf16.msra.mxu0 %v9500
      %9702 = vmatpush.bf16.msra.mxu0 %v9497
      %9703 = vmatpush.bf16.msra.mxu0 %v9494
      %9704 = vmatpush.bf16.msra.mxu0 %v9491
      %9705 = vmatpush.bf16.msra.mxu0 %v9488
      %9706 = vmatmul.bf16.gmra.mxu0 %v9254
      %v9707 = vpop.f32.mrf.mxu0
      %v9708 = vadd.f32 0.0, %v9707
      %v9709 = vpop.f32.mrf.mxu0
      %v9710 = vadd.f32 0.0, %v9709
      %9711 = vmatmul.bf16.gmra.mxu0 %v9256
      %v9712 = vpop.f32.mrf.mxu0
      %v9713 = vadd.f32 0.0, %v9712
      %v9714 = vpop.f32.mrf.mxu0
      %v9715 = vadd.f32 0.0, %v9714
      %9716 = vmatmul.bf16.gmra.mxu0 %v9258
      %v9717 = vpop.f32.mrf.mxu0
      %v9718 = vadd.f32 0.0, %v9717
      %v9719 = vpop.f32.mrf.mxu0
      %v9720 = vadd.f32 0.0, %v9719
      %9721 = vmatmul.bf16.gmra.mxu0 %v9260
      %v9722 = vpop.f32.mrf.mxu0
      %v9723 = vadd.f32 0.0, %v9722
      %v9724 = vpop.f32.mrf.mxu0
      %v9725 = vadd.f32 0.0, %v9724
      %9726 = vdwg.mxu0
      %9727 = vmatpush.bf16.msra.mxu0 %v9533
      %9728 = vmatpush.bf16.msra.mxu0 %v9530
      %9729 = vmatpush.bf16.msra.mxu0 %v9527
      %9730 = vmatpush.bf16.msra.mxu0 %v9524
      %9731 = vmatpush.bf16.msra.mxu0 %v9521
      %9732 = vmatpush.bf16.msra.mxu0 %v9518
      %9733 = vmatpush.bf16.msra.mxu0 %v9515
      %9734 = vmatpush.bf16.msra.mxu0 %v9512
      %9735 = vmatmul.bf16.gmra.mxu0 %v9255
      %v9736 = vpop.f32.mrf.mxu0
      %v9737 = vadd.f32 %v9708, %v9736
      %v9738 = vpop.f32.mrf.mxu0
      %v9739 = vadd.f32 %v9710, %v9738
      %9740 = vmatmul.bf16.gmra.mxu0 %v9257
      %v9741 = vpop.f32.mrf.mxu0
      %v9742 = vadd.f32 %v9713, %v9741
      %v9743 = vpop.f32.mrf.mxu0
      %v9744 = vadd.f32 %v9715, %v9743
      %9745 = vmatmul.bf16.gmra.mxu0 %v9259
      %v9746 = vpop.f32.mrf.mxu0
      %v9747 = vadd.f32 %v9718, %v9746
      %v9748 = vpop.f32.mrf.mxu0
      %v9749 = vadd.f32 %v9720, %v9748
      %9750 = vmatmul.bf16.gmra.mxu0 %v9261
      %v9751 = vpop.f32.mrf.mxu0
      %v9752 = vadd.f32 %v9723, %v9751
      %v9753 = vpop.f32.mrf.mxu0
      %v9754 = vadd.f32 %v9725, %v9753
      %9755 = vdwg.mxu0
      %v9756 = vpack.c.bf16 %v9679, %v9621
      %v9757 = vpack.c.bf16 %v9737, %v9737
      %v9758 = vpack.c.bf16 %v9681, %v9623
      %v9759 = vpack.c.bf16 %v9739, %v9739
      %v9760 = vpack.c.bf16 %v9684, %v9626
      %v9761 = vpack.c.bf16 %v9742, %v9742
      %v9762 = vpack.c.bf16 %v9686, %v9628
      %v9763 = vpack.c.bf16 %v9744, %v9744
      %v9764 = vpack.c.bf16 %v9689, %v9631
      %v9765 = vpack.c.bf16 %v9747, %v9747
      %v9766 = vpack.c.bf16 %v9691, %v9633
      %v9767 = vpack.c.bf16 %v9749, %v9749
      %v9768 = vpack.c.bf16 %v9694, %v9636
      %v9769 = vpack.c.bf16 %v9752, %v9752
      %v9770 = vpack.c.bf16 %v9696, %v9638
      %v9771 = vpack.c.bf16 %v9754, %v9754
      %s9772 = scalar_lea.vmem %s20, 384
      %v9773 = vld [vmem:[%s9772] sm:$0xff]
      %v9774 = vld [vmem:[%s9772 + $0x8] sm:$0xf]
      %v9775 = vld [vmem:[%s9772 + $0xc] sm:$0xff]
      %v9776 = vld [vmem:[%s9772 + $0x14] sm:$0xf]
      %v9777 = vld [vmem:[%s9772 + $0x18] sm:$0xff]
      %v9778 = vld [vmem:[%s9772 + $0x20] sm:$0xf]
      %v9779 = vld [vmem:[%s9772 + $0x24] sm:$0xff]
      %v9780 = vld [vmem:[%s9772 + $0x2c] sm:$0xf]
      %v9781 = vld [vmem:[%s9772 + $0x30] sm:$0xff]
      %v9782 = vld [vmem:[%s9772 + $0x38] sm:$0xf]
      %v9783 = vld [vmem:[%s9772 + $0x3c] sm:$0xff]
      %v9784 = vld [vmem:[%s9772 + $0x44] sm:$0xf]
      %v9785 = vld [vmem:[%s9772 + $0x48] sm:$0xff]
      %v9786 = vld [vmem:[%s9772 + $0x50] sm:$0xf]
      %v9787 = vld [vmem:[%s9772 + $0x54] sm:$0xff]
      %v9788 = vld [vmem:[%s9772 + $0x5c] sm:$0xf]
      %v9789 = vld [vmem:[%s9772 + $0x60] sm:$0xff]
      %v9790 = vld [vmem:[%s9772 + $0x68] sm:$0xf]
      %v9791 = vld [vmem:[%s9772 + $0x6c] sm:$0xff]
      %v9792 = vld [vmem:[%s9772 + $0x74] sm:$0xf]
      %v9793 = vld [vmem:[%s9772 + $0x78] sm:$0xff]
      %v9794 = vld [vmem:[%s9772 + $0x80] sm:$0xf]
      %v9795 = vld [vmem:[%s9772 + $0x84] sm:$0xff]
      %v9796 = vld [vmem:[%s9772 + $0x8c] sm:$0xf]
      %v9797 = vld [vmem:[%s9772 + $0x90] sm:$0xff]
      %v9798 = vld [vmem:[%s9772 + $0x98] sm:$0xf]
      %v9799 = vld [vmem:[%s9772 + $0x9c] sm:$0xff]
      %v9800 = vld [vmem:[%s9772 + $0xa4] sm:$0xf]
      %v9801 = vld [vmem:[%s9772 + $0xa8] sm:$0xff]
      %v9802 = vld [vmem:[%s9772 + $0xb0] sm:$0xf]
      %v9803 = vld [vmem:[%s9772 + $0xb4] sm:$0xff]
      %v9804 = vld [vmem:[%s9772 + $0xbc] sm:$0xf]
      %v9805 = vld [vmem:[%s9772 + $0xc0] sm:$0xff]
      %v9806 = vld [vmem:[%s9772 + $0xc8] sm:$0xf]
      %v9807 = vld [vmem:[%s9772 + $0xcc] sm:$0xff]
      %v9808 = vld [vmem:[%s9772 + $0xd4] sm:$0xf]
      %v9809 = vld [vmem:[%s9772 + $0xd8] sm:$0xff]
      %v9810 = vld [vmem:[%s9772 + $0xe0] sm:$0xf]
      %v9811 = vld [vmem:[%s9772 + $0xe4] sm:$0xff]
      %v9812 = vld [vmem:[%s9772 + $0xec] sm:$0xf]
      %v9813 = vld [vmem:[%s9772 + $0xf0] sm:$0xff]
      %v9814 = vld [vmem:[%s9772 + $0xf8] sm:$0xf]
      %v9815 = vld [vmem:[%s9772 + $0xfc] sm:$0xff]
      %v9816 = vld [vmem:[%s9772 + $0x104] sm:$0xf]
      %v9817 = vld [vmem:[%s9772 + $0x108] sm:$0xff]
      %v9818 = vld [vmem:[%s9772 + $0x110] sm:$0xf]
      %v9819 = vld [vmem:[%s9772 + $0x114] sm:$0xff]
      %v9820 = vld [vmem:[%s9772 + $0x11c] sm:$0xf]
      %v9821 = vld [vmem:[%s9772 + $0x120] sm:$0xff]
      %v9822 = vld [vmem:[%s9772 + $0x128] sm:$0xf]
      %v9823 = vld [vmem:[%s9772 + $0x12c] sm:$0xff]
      %v9824 = vld [vmem:[%s9772 + $0x134] sm:$0xf]
      %v9825 = vld [vmem:[%s9772 + $0x138] sm:$0xff]
      %v9826 = vld [vmem:[%s9772 + $0x140] sm:$0xf]
      %v9827 = vld [vmem:[%s9772 + $0x144] sm:$0xff]
      %v9828 = vld [vmem:[%s9772 + $0x14c] sm:$0xf]
      %v9829 = vld [vmem:[%s9772 + $0x150] sm:$0xff]
      %v9830 = vld [vmem:[%s9772 + $0x158] sm:$0xf]
      %v9831 = vld [vmem:[%s9772 + $0x15c] sm:$0xff]
      %v9832 = vld [vmem:[%s9772 + $0x164] sm:$0xf]
      %v9833 = vld [vmem:[%s9772 + $0x168] sm:$0xff]
      %v9834 = vld [vmem:[%s9772 + $0x170] sm:$0xf]
      %v9835 = vld [vmem:[%s9772 + $0x174] sm:$0xff]
      %v9836 = vld [vmem:[%s9772 + $0x17c] sm:$0xf]
      %v9901 = vunpack.c.l.b16 %v9773
      %v9902 = vunpack.c.h.b16 %v9773
      %v9903 = vunpack.c.l.b16 %v9774
      %v9904 = vunpack.c.l.b16 %v9775
      %v9905 = vunpack.c.h.b16 %v9775
      %v9906 = vunpack.c.l.b16 %v9776
      %v9907 = vunpack.c.l.b16 %v9777
      %v9908 = vunpack.c.h.b16 %v9777
      %v9909 = vunpack.c.l.b16 %v9778
      %v9910 = vunpack.c.l.b16 %v9779
      %v9911 = vunpack.c.h.b16 %v9779
      %v9912 = vunpack.c.l.b16 %v9780
      %v9913 = vunpack.c.l.b16 %v9781
      %v9914 = vunpack.c.h.b16 %v9781
      %v9915 = vunpack.c.l.b16 %v9782
      %v9916 = vunpack.c.l.b16 %v9783
      %v9917 = vunpack.c.h.b16 %v9783
      %v9918 = vunpack.c.l.b16 %v9784
      %v9919 = vunpack.c.l.b16 %v9785
      %v9920 = vunpack.c.h.b16 %v9785
      %v9921 = vunpack.c.l.b16 %v9786
      %v9922 = vunpack.c.l.b16 %v9787
      %v9923 = vunpack.c.h.b16 %v9787
      %v9924 = vunpack.c.l.b16 %v9788
      %v9925 = vunpack.c.l.b16 %v9789
      %v9926 = vunpack.c.h.b16 %v9789
      %v9927 = vunpack.c.l.b16 %v9790
      %v9928 = vunpack.c.l.b16 %v9791
      %v9929 = vunpack.c.h.b16 %v9791
      %v9930 = vunpack.c.l.b16 %v9792
      %v9931 = vunpack.c.l.b16 %v9793
      %v9932 = vunpack.c.h.b16 %v9793
      %v9933 = vunpack.c.l.b16 %v9794
      %v9934 = vunpack.c.l.b16 %v9795
      %v9935 = vunpack.c.h.b16 %v9795
      %v9936 = vunpack.c.l.b16 %v9796
      %v9937 = vunpack.c.l.b16 %v9797
      %v9938 = vunpack.c.h.b16 %v9797
      %v9939 = vunpack.c.l.b16 %v9798
      %v9940 = vunpack.c.l.b16 %v9799
      %v9941 = vunpack.c.h.b16 %v9799
      %v9942 = vunpack.c.l.b16 %v9800
      %v9943 = vunpack.c.l.b16 %v9801
      %v9944 = vunpack.c.h.b16 %v9801
      %v9945 = vunpack.c.l.b16 %v9802
      %v9946 = vunpack.c.l.b16 %v9803
      %v9947 = vunpack.c.h.b16 %v9803
      %v9948 = vunpack.c.l.b16 %v9804
      %v9949 = vunpack.c.l.b16 %v9805
      %v9950 = vunpack.c.h.b16 %v9805
      %v9951 = vunpack.c.l.b16 %v9806
      %v9952 = vunpack.c.l.b16 %v9807
      %v9953 = vunpack.c.h.b16 %v9807
      %v9954 = vunpack.c.l.b16 %v9808
      %v9955 = vunpack.c.l.b16 %v9809
      %v9956 = vunpack.c.h.b16 %v9809
      %v9957 = vunpack.c.l.b16 %v9810
      %v9958 = vunpack.c.l.b16 %v9811
      %v9959 = vunpack.c.h.b16 %v9811
      %v9960 = vunpack.c.l.b16 %v9812
      %v9961 = vunpack.c.l.b16 %v9813
      %v9962 = vunpack.c.h.b16 %v9813
      %v9963 = vunpack.c.l.b16 %v9814
      %v9964 = vunpack.c.l.b16 %v9815
      %v9965 = vunpack.c.h.b16 %v9815
      %v9966 = vunpack.c.l.b16 %v9816
      %v9967 = vunpack.c.l.b16 %v9817
      %v9968 = vunpack.c.h.b16 %v9817
      %v9969 = vunpack.c.l.b16 %v9818
      %v9970 = vunpack.c.l.b16 %v9819
      %v9971 = vunpack.c.h.b16 %v9819
      %v9972 = vunpack.c.l.b16 %v9820
      %v9973 = vunpack.c.l.b16 %v9821
      %v9974 = vunpack.c.h.b16 %v9821
      %v9975 = vunpack.c.l.b16 %v9822
      %v9976 = vunpack.c.l.b16 %v9823
      %v9977 = vunpack.c.h.b16 %v9823
      %v9978 = vunpack.c.l.b16 %v9824
      %v9979 = vunpack.c.l.b16 %v9825
      %v9980 = vunpack.c.h.b16 %v9825
      %v9981 = vunpack.c.l.b16 %v9826
      %v9982 = vunpack.c.l.b16 %v9827
      %v9983 = vunpack.c.h.b16 %v9827
      %v9984 = vunpack.c.l.b16 %v9828
      %v9985 = vunpack.c.l.b16 %v9829
      %v9986 = vunpack.c.h.b16 %v9829
      %v9987 = vunpack.c.l.b16 %v9830
      %v9988 = vunpack.c.l.b16 %v9831
      %v9989 = vunpack.c.h.b16 %v9831
      %v9990 = vunpack.c.l.b16 %v9832
      %v9991 = vunpack.c.l.b16 %v9833
      %v9992 = vunpack.c.h.b16 %v9833
      %v9993 = vunpack.c.l.b16 %v9834
      %v9994 = vunpack.c.l.b16 %v9835
      %v9995 = vunpack.c.h.b16 %v9835
      %v9996 = vunpack.c.l.b16 %v9836
      %v9997 = vpack.c.b16 %v9904, %v9901
      %v9998 = vpack.c.b16 %v9905, %v9902
      %v9999 = vpack.c.b16 %v9906, %v9903
      %v10000 = vpack.c.b16 %v9910, %v9907
      %v10001 = vpack.c.b16 %v9911, %v9908
      %v10002 = vpack.c.b16 %v9912, %v9909
      %v10003 = vpack.c.b16 %v9916, %v9913
      %v10004 = vpack.c.b16 %v9917, %v9914
      %v10005 = vpack.c.b16 %v9918, %v9915
      %v10006 = vpack.c.b16 %v9922, %v9919
      %v10007 = vpack.c.b16 %v9923, %v9920
      %v10008 = vpack.c.b16 %v9924, %v9921
      %v10009 = vpack.c.b16 %v9928, %v9925
      %v10010 = vpack.c.b16 %v9929, %v9926
      %v10011 = vpack.c.b16 %v9930, %v9927
      %v10012 = vpack.c.b16 %v9934, %v9931
      %v10013 = vpack.c.b16 %v9935, %v9932
      %v10014 = vpack.c.b16 %v9936, %v9933
      %v10015 = vpack.c.b16 %v9940, %v9937
      %v10016 = vpack.c.b16 %v9941, %v9938
      %v10017 = vpack.c.b16 %v9942, %v9939
      %v10018 = vpack.c.b16 %v9946, %v9943
      %v10019 = vpack.c.b16 %v9947, %v9944
      %v10020 = vpack.c.b16 %v9948, %v9945
      %v10021 = vpack.c.b16 %v9952, %v9949
      %v10022 = vpack.c.b16 %v9953, %v9950
      %v10023 = vpack.c.b16 %v9954, %v9951
      %v10024 = vpack.c.b16 %v9958, %v9955
      %v10025 = vpack.c.b16 %v9959, %v9956
      %v10026 = vpack.c.b16 %v9960, %v9957
      %v10027 = vpack.c.b16 %v9964, %v9961
      %v10028 = vpack.c.b16 %v9965, %v9962
      %v10029 = vpack.c.b16 %v9966, %v9963
      %v10030 = vpack.c.b16 %v9970, %v9967
      %v10031 = vpack.c.b16 %v9971, %v9968
      %v10032 = vpack.c.b16 %v9972, %v9969
      %v10033 = vpack.c.b16 %v9976, %v9973
      %v10034 = vpack.c.b16 %v9977, %v9974
      %v10035 = vpack.c.b16 %v9978, %v9975
      %v10036 = vpack.c.b16 %v9982, %v9979
      %v10037 = vpack.c.b16 %v9983, %v9980
      %v10038 = vpack.c.b16 %v9984, %v9981
      %v10039 = vpack.c.b16 %v9988, %v9985
      %v10040 = vpack.c.b16 %v9989, %v9986
      %v10041 = vpack.c.b16 %v9990, %v9987
      %v10042 = vpack.c.b16 %v9994, %v9991
      %v10043 = vpack.c.b16 %v9995, %v9992
      %v10044 = vpack.c.b16 %v9996, %v9993
      %10093 = vmatpush.bf16.msra.mxu0 %v10018
      %10094 = vmatpush.bf16.msra.mxu0 %v10015
      %10095 = vmatpush.bf16.msra.mxu0 %v10012
      %10096 = vmatpush.bf16.msra.mxu0 %v10009
      %10097 = vmatpush.bf16.msra.mxu0 %v10006
      %10098 = vmatpush.bf16.msra.mxu0 %v10003
      %10099 = vmatpush.bf16.msra.mxu0 %v10000
      %10100 = vmatpush.bf16.msra.mxu0 %v9997
      %10101 = vmatmul.bf16.gmra.mxu0 %v9254
      %v10102 = vpop.f32.mrf.mxu0
      %v10103 = vadd.f32 0.0, %v10102
      %v10104 = vpop.f32.mrf.mxu0
      %v10105 = vadd.f32 0.0, %v10104
      %10106 = vmatmul.bf16.gmra.mxu0 %v9256
      %v10107 = vpop.f32.mrf.mxu0
      %v10108 = vadd.f32 0.0, %v10107
      %v10109 = vpop.f32.mrf.mxu0
      %v10110 = vadd.f32 0.0, %v10109
      %10111 = vmatmul.bf16.gmra.mxu0 %v9258
      %v10112 = vpop.f32.mrf.mxu0
      %v10113 = vadd.f32 0.0, %v10112
      %v10114 = vpop.f32.mrf.mxu0
      %v10115 = vadd.f32 0.0, %v10114
      %10116 = vmatmul.bf16.gmra.mxu0 %v9260
      %v10117 = vpop.f32.mrf.mxu0
      %v10118 = vadd.f32 0.0, %v10117
      %v10119 = vpop.f32.mrf.mxu0
      %v10120 = vadd.f32 0.0, %v10119
      %10121 = vdwg.mxu0
      %10122 = vmatpush.bf16.msra.mxu0 %v10042
      %10123 = vmatpush.bf16.msra.mxu0 %v10039
      %10124 = vmatpush.bf16.msra.mxu0 %v10036
      %10125 = vmatpush.bf16.msra.mxu0 %v10033
      %10126 = vmatpush.bf16.msra.mxu0 %v10030
      %10127 = vmatpush.bf16.msra.mxu0 %v10027
      %10128 = vmatpush.bf16.msra.mxu0 %v10024
      %10129 = vmatpush.bf16.msra.mxu0 %v10021
      %10130 = vmatmul.bf16.gmra.mxu0 %v9255
      %v10131 = vpop.f32.mrf.mxu0
      %v10132 = vadd.f32 %v10103, %v10131
      %v10133 = vpop.f32.mrf.mxu0
      %v10134 = vadd.f32 %v10105, %v10133
      %10135 = vmatmul.bf16.gmra.mxu0 %v9257
      %v10136 = vpop.f32.mrf.mxu0
      %v10137 = vadd.f32 %v10108, %v10136
      %v10138 = vpop.f32.mrf.mxu0
      %v10139 = vadd.f32 %v10110, %v10138
      %10140 = vmatmul.bf16.gmra.mxu0 %v9259
      %v10141 = vpop.f32.mrf.mxu0
      %v10142 = vadd.f32 %v10113, %v10141
      %v10143 = vpop.f32.mrf.mxu0
      %v10144 = vadd.f32 %v10115, %v10143
      %10145 = vmatmul.bf16.gmra.mxu0 %v9261
      %v10146 = vpop.f32.mrf.mxu0
      %v10147 = vadd.f32 %v10118, %v10146
      %v10148 = vpop.f32.mrf.mxu0
      %v10149 = vadd.f32 %v10120, %v10148
      %10150 = vdwg.mxu0
      %10151 = vmatpush.bf16.msra.mxu0 %v10019
      %10152 = vmatpush.bf16.msra.mxu0 %v10016
      %10153 = vmatpush.bf16.msra.mxu0 %v10013
      %10154 = vmatpush.bf16.msra.mxu0 %v10010
      %10155 = vmatpush.bf16.msra.mxu0 %v10007
      %10156 = vmatpush.bf16.msra.mxu0 %v10004
      %10157 = vmatpush.bf16.msra.mxu0 %v10001
      %10158 = vmatpush.bf16.msra.mxu0 %v9998
      %10159 = vmatmul.bf16.gmra.mxu0 %v9254
      %v10160 = vpop.f32.mrf.mxu0
      %v10161 = vadd.f32 0.0, %v10160
      %v10162 = vpop.f32.mrf.mxu0
      %v10163 = vadd.f32 0.0, %v10162
      %10164 = vmatmul.bf16.gmra.mxu0 %v9256
      %v10165 = vpop.f32.mrf.mxu0
      %v10166 = vadd.f32 0.0, %v10165
      %v10167 = vpop.f32.mrf.mxu0
      %v10168 = vadd.f32 0.0, %v10167
      %10169 = vmatmul.bf16.gmra.mxu0 %v9258
      %v10170 = vpop.f32.mrf.mxu0
      %v10171 = vadd.f32 0.0, %v10170
      %v10172 = vpop.f32.mrf.mxu0
      %v10173 = vadd.f32 0.0, %v10172
      %10174 = vmatmul.bf16.gmra.mxu0 %v9260
      %v10175 = vpop.f32.mrf.mxu0
      %v10176 = vadd.f32 0.0, %v10175
      %v10177 = vpop.f32.mrf.mxu0
      %v10178 = vadd.f32 0.0, %v10177
      %10179 = vdwg.mxu0
      %10180 = vmatpush.bf16.msra.mxu0 %v10043
      %10181 = vmatpush.bf16.msra.mxu0 %v10040
      %10182 = vmatpush.bf16.msra.mxu0 %v10037
      %10183 = vmatpush.bf16.msra.mxu0 %v10034
      %10184 = vmatpush.bf16.msra.mxu0 %v10031
      %10185 = vmatpush.bf16.msra.mxu0 %v10028
      %10186 = vmatpush.bf16.msra.mxu0 %v10025
      %10187 = vmatpush.bf16.msra.mxu0 %v10022
      %10188 = vmatmul.bf16.gmra.mxu0 %v9255
      %v10189 = vpop.f32.mrf.mxu0
      %v10190 = vadd.f32 %v10161, %v10189
      %v10191 = vpop.f32.mrf.mxu0
      %v10192 = vadd.f32 %v10163, %v10191
      %10193 = vmatmul.bf16.gmra.mxu0 %v9257
      %v10194 = vpop.f32.mrf.mxu0
      %v10195 = vadd.f32 %v10166, %v10194
      %v10196 = vpop.f32.mrf.mxu0
      %v10197 = vadd.f32 %v10168, %v10196
      %10198 = vmatmul.bf16.gmra.mxu0 %v9259
      %v10199 = vpop.f32.mrf.mxu0
      %v10200 = vadd.f32 %v10171, %v10199
      %v10201 = vpop.f32.mrf.mxu0
      %v10202 = vadd.f32 %v10173, %v10201
      %10203 = vmatmul.bf16.gmra.mxu0 %v9261
      %v10204 = vpop.f32.mrf.mxu0
      %v10205 = vadd.f32 %v10176, %v10204
      %v10206 = vpop.f32.mrf.mxu0
      %v10207 = vadd.f32 %v10178, %v10206
      %10208 = vdwg.mxu0
      %10209 = vmatpush.bf16.msra.mxu0 %v10020
      %10210 = vmatpush.bf16.msra.mxu0 %v10017
      %10211 = vmatpush.bf16.msra.mxu0 %v10014
      %10212 = vmatpush.bf16.msra.mxu0 %v10011
      %10213 = vmatpush.bf16.msra.mxu0 %v10008
      %10214 = vmatpush.bf16.msra.mxu0 %v10005
      %10215 = vmatpush.bf16.msra.mxu0 %v10002
      %10216 = vmatpush.bf16.msra.mxu0 %v9999
      %10217 = vmatmul.bf16.gmra.mxu0 %v9254
      %v10218 = vpop.f32.mrf.mxu0
      %v10219 = vadd.f32 0.0, %v10218
      %v10220 = vpop.f32.mrf.mxu0
      %v10221 = vadd.f32 0.0, %v10220
      %10222 = vmatmul.bf16.gmra.mxu0 %v9256
      %v10223 = vpop.f32.mrf.mxu0
      %v10224 = vadd.f32 0.0, %v10223
      %v10225 = vpop.f32.mrf.mxu0
      %v10226 = vadd.f32 0.0, %v10225
      %10227 = vmatmul.bf16.gmra.mxu0 %v9258
      %v10228 = vpop.f32.mrf.mxu0
      %v10229 = vadd.f32 0.0, %v10228
      %v10230 = vpop.f32.mrf.mxu0
      %v10231 = vadd.f32 0.0, %v10230
      %10232 = vmatmul.bf16.gmra.mxu0 %v9260
      %v10233 = vpop.f32.mrf.mxu0
      %v10234 = vadd.f32 0.0, %v10233
      %v10235 = vpop.f32.mrf.mxu0
      %v10236 = vadd.f32 0.0, %v10235
      %10237 = vdwg.mxu0
      %10238 = vmatpush.bf16.msra.mxu0 %v10044
      %10239 = vmatpush.bf16.msra.mxu0 %v10041
      %10240 = vmatpush.bf16.msra.mxu0 %v10038
      %10241 = vmatpush.bf16.msra.mxu0 %v10035
      %10242 = vmatpush.bf16.msra.mxu0 %v10032
      %10243 = vmatpush.bf16.msra.mxu0 %v10029
      %10244 = vmatpush.bf16.msra.mxu0 %v10026
      %10245 = vmatpush.bf16.msra.mxu0 %v10023
      %10246 = vmatmul.bf16.gmra.mxu0 %v9255
      %v10247 = vpop.f32.mrf.mxu0
      %v10248 = vadd.f32 %v10219, %v10247
      %v10249 = vpop.f32.mrf.mxu0
      %v10250 = vadd.f32 %v10221, %v10249
      %10251 = vmatmul.bf16.gmra.mxu0 %v9257
      %v10252 = vpop.f32.mrf.mxu0
      %v10253 = vadd.f32 %v10224, %v10252
      %v10254 = vpop.f32.mrf.mxu0
      %v10255 = vadd.f32 %v10226, %v10254
      %10256 = vmatmul.bf16.gmra.mxu0 %v9259
      %v10257 = vpop.f32.mrf.mxu0
      %v10258 = vadd.f32 %v10229, %v10257
      %v10259 = vpop.f32.mrf.mxu0
      %v10260 = vadd.f32 %v10231, %v10259
      %10261 = vmatmul.bf16.gmra.mxu0 %v9261
      %v10262 = vpop.f32.mrf.mxu0
      %v10263 = vadd.f32 %v10234, %v10262
      %v10264 = vpop.f32.mrf.mxu0
      %v10265 = vadd.f32 %v10236, %v10264
      %10266 = vdwg.mxu0
      %v10267 = vpack.c.bf16 %v10190, %v10132
      %v10268 = vpack.c.bf16 %v10248, %v10248
      %v10269 = vpack.c.bf16 %v10192, %v10134
      %v10270 = vpack.c.bf16 %v10250, %v10250
      %v10271 = vpack.c.bf16 %v10195, %v10137
      %v10272 = vpack.c.bf16 %v10253, %v10253
      %v10273 = vpack.c.bf16 %v10197, %v10139
      %v10274 = vpack.c.bf16 %v10255, %v10255
      %v10275 = vpack.c.bf16 %v10200, %v10142
      %v10276 = vpack.c.bf16 %v10258, %v10258
      %v10277 = vpack.c.bf16 %v10202, %v10144
      %v10278 = vpack.c.bf16 %v10260, %v10260
      %v10279 = vpack.c.bf16 %v10205, %v10147
      %v10280 = vpack.c.bf16 %v10263, %v10263
      %v10281 = vpack.c.bf16 %v10207, %v10149
      %v10282 = vpack.c.bf16 %v10265, %v10265
      %s10283 = scalar_lea.vmem %s20, 768
      %v10284 = vld [vmem:[%s10283] sm:$0xff]
      %v10285 = vld [vmem:[%s10283 + $0x8] sm:$0xf]
      %v10286 = vld [vmem:[%s10283 + $0xc] sm:$0xff]
      %v10287 = vld [vmem:[%s10283 + $0x14] sm:$0xf]
      %v10288 = vld [vmem:[%s10283 + $0x18] sm:$0xff]
      %v10289 = vld [vmem:[%s10283 + $0x20] sm:$0xf]
      %v10290 = vld [vmem:[%s10283 + $0x24] sm:$0xff]
      %v10291 = vld [vmem:[%s10283 + $0x2c] sm:$0xf]
      %v10292 = vld [vmem:[%s10283 + $0x30] sm:$0xff]
      %v10293 = vld [vmem:[%s10283 + $0x38] sm:$0xf]
      %v10294 = vld [vmem:[%s10283 + $0x3c] sm:$0xff]
      %v10295 = vld [vmem:[%s10283 + $0x44] sm:$0xf]
      %v10296 = vld [vmem:[%s10283 + $0x48] sm:$0xff]
      %v10297 = vld [vmem:[%s10283 + $0x50] sm:$0xf]
      %v10298 = vld [vmem:[%s10283 + $0x54] sm:$0xff]
      %v10299 = vld [vmem:[%s10283 + $0x5c] sm:$0xf]
      %v10300 = vld [vmem:[%s10283 + $0x60] sm:$0xff]
      %v10301 = vld [vmem:[%s10283 + $0x68] sm:$0xf]
      %v10302 = vld [vmem:[%s10283 + $0x6c] sm:$0xff]
      %v10303 = vld [vmem:[%s10283 + $0x74] sm:$0xf]
      %v10304 = vld [vmem:[%s10283 + $0x78] sm:$0xff]
      %v10305 = vld [vmem:[%s10283 + $0x80] sm:$0xf]
      %v10306 = vld [vmem:[%s10283 + $0x84] sm:$0xff]
      %v10307 = vld [vmem:[%s10283 + $0x8c] sm:$0xf]
      %v10308 = vld [vmem:[%s10283 + $0x90] sm:$0xff]
      %v10309 = vld [vmem:[%s10283 + $0x98] sm:$0xf]
      %v10310 = vld [vmem:[%s10283 + $0x9c] sm:$0xff]
      %v10311 = vld [vmem:[%s10283 + $0xa4] sm:$0xf]
      %v10312 = vld [vmem:[%s10283 + $0xa8] sm:$0xff]
      %v10313 = vld [vmem:[%s10283 + $0xb0] sm:$0xf]
      %v10314 = vld [vmem:[%s10283 + $0xb4] sm:$0xff]
      %v10315 = vld [vmem:[%s10283 + $0xbc] sm:$0xf]
      %v10316 = vld [vmem:[%s10283 + $0xc0] sm:$0xff]
      %v10317 = vld [vmem:[%s10283 + $0xc8] sm:$0xf]
      %v10318 = vld [vmem:[%s10283 + $0xcc] sm:$0xff]
      %v10319 = vld [vmem:[%s10283 + $0xd4] sm:$0xf]
      %v10320 = vld [vmem:[%s10283 + $0xd8] sm:$0xff]
      %v10321 = vld [vmem:[%s10283 + $0xe0] sm:$0xf]
      %v10322 = vld [vmem:[%s10283 + $0xe4] sm:$0xff]
      %v10323 = vld [vmem:[%s10283 + $0xec] sm:$0xf]
      %v10324 = vld [vmem:[%s10283 + $0xf0] sm:$0xff]
      %v10325 = vld [vmem:[%s10283 + $0xf8] sm:$0xf]
      %v10326 = vld [vmem:[%s10283 + $0xfc] sm:$0xff]
      %v10327 = vld [vmem:[%s10283 + $0x104] sm:$0xf]
      %v10328 = vld [vmem:[%s10283 + $0x108] sm:$0xff]
      %v10329 = vld [vmem:[%s10283 + $0x110] sm:$0xf]
      %v10330 = vld [vmem:[%s10283 + $0x114] sm:$0xff]
      %v10331 = vld [vmem:[%s10283 + $0x11c] sm:$0xf]
      %v10332 = vld [vmem:[%s10283 + $0x120] sm:$0xff]
      %v10333 = vld [vmem:[%s10283 + $0x128] sm:$0xf]
      %v10334 = vld [vmem:[%s10283 + $0x12c] sm:$0xff]
      %v10335 = vld [vmem:[%s10283 + $0x134] sm:$0xf]
      %v10336 = vld [vmem:[%s10283 + $0x138] sm:$0xff]
      %v10337 = vld [vmem:[%s10283 + $0x140] sm:$0xf]
      %v10338 = vld [vmem:[%s10283 + $0x144] sm:$0xff]
      %v10339 = vld [vmem:[%s10283 + $0x14c] sm:$0xf]
      %v10340 = vld [vmem:[%s10283 + $0x150] sm:$0xff]
      %v10341 = vld [vmem:[%s10283 + $0x158] sm:$0xf]
      %v10342 = vld [vmem:[%s10283 + $0x15c] sm:$0xff]
      %v10343 = vld [vmem:[%s10283 + $0x164] sm:$0xf]
      %v10344 = vld [vmem:[%s10283 + $0x168] sm:$0xff]
      %v10345 = vld [vmem:[%s10283 + $0x170] sm:$0xf]
      %v10346 = vld [vmem:[%s10283 + $0x174] sm:$0xff]
      %v10347 = vld [vmem:[%s10283 + $0x17c] sm:$0xf]
      %v10412 = vunpack.c.l.b16 %v10284
      %v10413 = vunpack.c.h.b16 %v10284
      %v10414 = vunpack.c.l.b16 %v10285
      %v10415 = vunpack.c.l.b16 %v10286
      %v10416 = vunpack.c.h.b16 %v10286
      %v10417 = vunpack.c.l.b16 %v10287
      %v10418 = vunpack.c.l.b16 %v10288
      %v10419 = vunpack.c.h.b16 %v10288
      %v10420 = vunpack.c.l.b16 %v10289
      %v10421 = vunpack.c.l.b16 %v10290
      %v10422 = vunpack.c.h.b16 %v10290
      %v10423 = vunpack.c.l.b16 %v10291
      %v10424 = vunpack.c.l.b16 %v10292
      %v10425 = vunpack.c.h.b16 %v10292
      %v10426 = vunpack.c.l.b16 %v10293
      %v10427 = vunpack.c.l.b16 %v10294
      %v10428 = vunpack.c.h.b16 %v10294
      %v10429 = vunpack.c.l.b16 %v10295
      %v10430 = vunpack.c.l.b16 %v10296
      %v10431 = vunpack.c.h.b16 %v10296
      %v10432 = vunpack.c.l.b16 %v10297
      %v10433 = vunpack.c.l.b16 %v10298
      %v10434 = vunpack.c.h.b16 %v10298
      %v10435 = vunpack.c.l.b16 %v10299
      %v10436 = vunpack.c.l.b16 %v10300
      %v10437 = vunpack.c.h.b16 %v10300
      %v10438 = vunpack.c.l.b16 %v10301
      %v10439 = vunpack.c.l.b16 %v10302
      %v10440 = vunpack.c.h.b16 %v10302
      %v10441 = vunpack.c.l.b16 %v10303
      %v10442 = vunpack.c.l.b16 %v10304
      %v10443 = vunpack.c.h.b16 %v10304
      %v10444 = vunpack.c.l.b16 %v10305
      %v10445 = vunpack.c.l.b16 %v10306
      %v10446 = vunpack.c.h.b16 %v10306
      %v10447 = vunpack.c.l.b16 %v10307
      %v10448 = vunpack.c.l.b16 %v10308
      %v10449 = vunpack.c.h.b16 %v10308
      %v10450 = vunpack.c.l.b16 %v10309
      %v10451 = vunpack.c.l.b16 %v10310
      %v10452 = vunpack.c.h.b16 %v10310
      %v10453 = vunpack.c.l.b16 %v10311
      %v10454 = vunpack.c.l.b16 %v10312
      %v10455 = vunpack.c.h.b16 %v10312
      %v10456 = vunpack.c.l.b16 %v10313
      %v10457 = vunpack.c.l.b16 %v10314
      %v10458 = vunpack.c.h.b16 %v10314
      %v10459 = vunpack.c.l.b16 %v10315
      %v10460 = vunpack.c.l.b16 %v10316
      %v10461 = vunpack.c.h.b16 %v10316
      %v10462 = vunpack.c.l.b16 %v10317
      %v10463 = vunpack.c.l.b16 %v10318
      %v10464 = vunpack.c.h.b16 %v10318
      %v10465 = vunpack.c.l.b16 %v10319
      %v10466 = vunpack.c.l.b16 %v10320
      %v10467 = vunpack.c.h.b16 %v10320
      %v10468 = vunpack.c.l.b16 %v10321
      %v10469 = vunpack.c.l.b16 %v10322
      %v10470 = vunpack.c.h.b16 %v10322
      %v10471 = vunpack.c.l.b16 %v10323
      %v10472 = vunpack.c.l.b16 %v10324
      %v10473 = vunpack.c.h.b16 %v10324
      %v10474 = vunpack.c.l.b16 %v10325
      %v10475 = vunpack.c.l.b16 %v10326
      %v10476 = vunpack.c.h.b16 %v10326
      %v10477 = vunpack.c.l.b16 %v10327
      %v10478 = vunpack.c.l.b16 %v10328
      %v10479 = vunpack.c.h.b16 %v10328
      %v10480 = vunpack.c.l.b16 %v10329
      %v10481 = vunpack.c.l.b16 %v10330
      %v10482 = vunpack.c.h.b16 %v10330
      %v10483 = vunpack.c.l.b16 %v10331
      %v10484 = vunpack.c.l.b16 %v10332
      %v10485 = vunpack.c.h.b16 %v10332
      %v10486 = vunpack.c.l.b16 %v10333
      %v10487 = vunpack.c.l.b16 %v10334
      %v10488 = vunpack.c.h.b16 %v10334
      %v10489 = vunpack.c.l.b16 %v10335
      %v10490 = vunpack.c.l.b16 %v10336
      %v10491 = vunpack.c.h.b16 %v10336
      %v10492 = vunpack.c.l.b16 %v10337
      %v10493 = vunpack.c.l.b16 %v10338
      %v10494 = vunpack.c.h.b16 %v10338
      %v10495 = vunpack.c.l.b16 %v10339
      %v10496 = vunpack.c.l.b16 %v10340
      %v10497 = vunpack.c.h.b16 %v10340
      %v10498 = vunpack.c.l.b16 %v10341
      %v10499 = vunpack.c.l.b16 %v10342
      %v10500 = vunpack.c.h.b16 %v10342
      %v10501 = vunpack.c.l.b16 %v10343
      %v10502 = vunpack.c.l.b16 %v10344
      %v10503 = vunpack.c.h.b16 %v10344
      %v10504 = vunpack.c.l.b16 %v10345
      %v10505 = vunpack.c.l.b16 %v10346
      %v10506 = vunpack.c.h.b16 %v10346
      %v10507 = vunpack.c.l.b16 %v10347
      %v10508 = vpack.c.b16 %v10415, %v10412
      %v10509 = vpack.c.b16 %v10416, %v10413
      %v10510 = vpack.c.b16 %v10417, %v10414
      %v10511 = vpack.c.b16 %v10421, %v10418
      %v10512 = vpack.c.b16 %v10422, %v10419
      %v10513 = vpack.c.b16 %v10423, %v10420
      %v10514 = vpack.c.b16 %v10427, %v10424
      %v10515 = vpack.c.b16 %v10428, %v10425
      %v10516 = vpack.c.b16 %v10429, %v10426
      %v10517 = vpack.c.b16 %v10433, %v10430
      %v10518 = vpack.c.b16 %v10434, %v10431
      %v10519 = vpack.c.b16 %v10435, %v10432
      %v10520 = vpack.c.b16 %v10439, %v10436
      %v10521 = vpack.c.b16 %v10440, %v10437
      %v10522 = vpack.c.b16 %v10441, %v10438
      %v10523 = vpack.c.b16 %v10445, %v10442
      %v10524 = vpack.c.b16 %v10446, %v10443
      %v10525 = vpack.c.b16 %v10447, %v10444
      %v10526 = vpack.c.b16 %v10451, %v10448
      %v10527 = vpack.c.b16 %v10452, %v10449
      %v10528 = vpack.c.b16 %v10453, %v10450
      %v10529 = vpack.c.b16 %v10457, %v10454
      %v10530 = vpack.c.b16 %v10458, %v10455
      %v10531 = vpack.c.b16 %v10459, %v10456
      %v10532 = vpack.c.b16 %v10463, %v10460
      %v10533 = vpack.c.b16 %v10464, %v10461
      %v10534 = vpack.c.b16 %v10465, %v10462
      %v10535 = vpack.c.b16 %v10469, %v10466
      %v10536 = vpack.c.b16 %v10470, %v10467
      %v10537 = vpack.c.b16 %v10471, %v10468
      %v10538 = vpack.c.b16 %v10475, %v10472
      %v10539 = vpack.c.b16 %v10476, %v10473
      %v10540 = vpack.c.b16 %v10477, %v10474
      %v10541 = vpack.c.b16 %v10481, %v10478
      %v10542 = vpack.c.b16 %v10482, %v10479
      %v10543 = vpack.c.b16 %v10483, %v10480
      %v10544 = vpack.c.b16 %v10487, %v10484
      %v10545 = vpack.c.b16 %v10488, %v10485
      %v10546 = vpack.c.b16 %v10489, %v10486
      %v10547 = vpack.c.b16 %v10493, %v10490
      %v10548 = vpack.c.b16 %v10494, %v10491
      %v10549 = vpack.c.b16 %v10495, %v10492
      %v10550 = vpack.c.b16 %v10499, %v10496
      %v10551 = vpack.c.b16 %v10500, %v10497
      %v10552 = vpack.c.b16 %v10501, %v10498
      %v10553 = vpack.c.b16 %v10505, %v10502
      %v10554 = vpack.c.b16 %v10506, %v10503
      %v10555 = vpack.c.b16 %v10507, %v10504
      %10604 = vmatpush.bf16.msra.mxu0 %v10529
      %10605 = vmatpush.bf16.msra.mxu0 %v10526
      %10606 = vmatpush.bf16.msra.mxu0 %v10523
      %10607 = vmatpush.bf16.msra.mxu0 %v10520
      %10608 = vmatpush.bf16.msra.mxu0 %v10517
      %10609 = vmatpush.bf16.msra.mxu0 %v10514
      %10610 = vmatpush.bf16.msra.mxu0 %v10511
      %10611 = vmatpush.bf16.msra.mxu0 %v10508
      %10612 = vmatmul.bf16.gmra.mxu0 %v9254
      %v10613 = vpop.f32.mrf.mxu0
      %v10614 = vadd.f32 0.0, %v10613
      %v10615 = vpop.f32.mrf.mxu0
      %v10616 = vadd.f32 0.0, %v10615
      %10617 = vmatmul.bf16.gmra.mxu0 %v9256
      %v10618 = vpop.f32.mrf.mxu0
      %v10619 = vadd.f32 0.0, %v10618
      %v10620 = vpop.f32.mrf.mxu0
      %v10621 = vadd.f32 0.0, %v10620
      %10622 = vmatmul.bf16.gmra.mxu0 %v9258
      %v10623 = vpop.f32.mrf.mxu0
      %v10624 = vadd.f32 0.0, %v10623
      %v10625 = vpop.f32.mrf.mxu0
      %v10626 = vadd.f32 0.0, %v10625
      %10627 = vmatmul.bf16.gmra.mxu0 %v9260
      %v10628 = vpop.f32.mrf.mxu0
      %v10629 = vadd.f32 0.0, %v10628
      %v10630 = vpop.f32.mrf.mxu0
      %v10631 = vadd.f32 0.0, %v10630
      %10632 = vdwg.mxu0
      %10633 = vmatpush.bf16.msra.mxu0 %v10553
      %10634 = vmatpush.bf16.msra.mxu0 %v10550
      %10635 = vmatpush.bf16.msra.mxu0 %v10547
      %10636 = vmatpush.bf16.msra.mxu0 %v10544
      %10637 = vmatpush.bf16.msra.mxu0 %v10541
      %10638 = vmatpush.bf16.msra.mxu0 %v10538
      %10639 = vmatpush.bf16.msra.mxu0 %v10535
      %10640 = vmatpush.bf16.msra.mxu0 %v10532
      %10641 = vmatmul.bf16.gmra.mxu0 %v9255
      %v10642 = vpop.f32.mrf.mxu0
      %v10643 = vadd.f32 %v10614, %v10642
      %v10644 = vpop.f32.mrf.mxu0
      %v10645 = vadd.f32 %v10616, %v10644
      %10646 = vmatmul.bf16.gmra.mxu0 %v9257
      %v10647 = vpop.f32.mrf.mxu0
      %v10648 = vadd.f32 %v10619, %v10647
      %v10649 = vpop.f32.mrf.mxu0
      %v10650 = vadd.f32 %v10621, %v10649
      %10651 = vmatmul.bf16.gmra.mxu0 %v9259
      %v10652 = vpop.f32.mrf.mxu0
      %v10653 = vadd.f32 %v10624, %v10652
      %v10654 = vpop.f32.mrf.mxu0
      %v10655 = vadd.f32 %v10626, %v10654
      %10656 = vmatmul.bf16.gmra.mxu0 %v9261
      %v10657 = vpop.f32.mrf.mxu0
      %v10658 = vadd.f32 %v10629, %v10657
      %v10659 = vpop.f32.mrf.mxu0
      %v10660 = vadd.f32 %v10631, %v10659
      %10661 = vdwg.mxu0
      %10662 = vmatpush.bf16.msra.mxu0 %v10530
      %10663 = vmatpush.bf16.msra.mxu0 %v10527
      %10664 = vmatpush.bf16.msra.mxu0 %v10524
      %10665 = vmatpush.bf16.msra.mxu0 %v10521
      %10666 = vmatpush.bf16.msra.mxu0 %v10518
      %10667 = vmatpush.bf16.msra.mxu0 %v10515
      %10668 = vmatpush.bf16.msra.mxu0 %v10512
      %10669 = vmatpush.bf16.msra.mxu0 %v10509
      %10670 = vmatmul.bf16.gmra.mxu0 %v9254
      %v10671 = vpop.f32.mrf.mxu0
      %v10672 = vadd.f32 0.0, %v10671
      %v10673 = vpop.f32.mrf.mxu0
      %v10674 = vadd.f32 0.0, %v10673
      %10675 = vmatmul.bf16.gmra.mxu0 %v9256
      %v10676 = vpop.f32.mrf.mxu0
      %v10677 = vadd.f32 0.0, %v10676
      %v10678 = vpop.f32.mrf.mxu0
      %v10679 = vadd.f32 0.0, %v10678
      %10680 = vmatmul.bf16.gmra.mxu0 %v9258
      %v10681 = vpop.f32.mrf.mxu0
      %v10682 = vadd.f32 0.0, %v10681
      %v10683 = vpop.f32.mrf.mxu0
      %v10684 = vadd.f32 0.0, %v10683
      %10685 = vmatmul.bf16.gmra.mxu0 %v9260
      %v10686 = vpop.f32.mrf.mxu0
      %v10687 = vadd.f32 0.0, %v10686
      %v10688 = vpop.f32.mrf.mxu0
      %v10689 = vadd.f32 0.0, %v10688
      %10690 = vdwg.mxu0
      %10691 = vmatpush.bf16.msra.mxu0 %v10554
      %10692 = vmatpush.bf16.msra.mxu0 %v10551
      %10693 = vmatpush.bf16.msra.mxu0 %v10548
      %10694 = vmatpush.bf16.msra.mxu0 %v10545
      %10695 = vmatpush.bf16.msra.mxu0 %v10542
      %10696 = vmatpush.bf16.msra.mxu0 %v10539
      %10697 = vmatpush.bf16.msra.mxu0 %v10536
      %10698 = vmatpush.bf16.msra.mxu0 %v10533
      %10699 = vmatmul.bf16.gmra.mxu0 %v9255
      %v10700 = vpop.f32.mrf.mxu0
      %v10701 = vadd.f32 %v10672, %v10700
      %v10702 = vpop.f32.mrf.mxu0
      %v10703 = vadd.f32 %v10674, %v10702
      %10704 = vmatmul.bf16.gmra.mxu0 %v9257
      %v10705 = vpop.f32.mrf.mxu0
      %v10706 = vadd.f32 %v10677, %v10705
      %v10707 = vpop.f32.mrf.mxu0
      %v10708 = vadd.f32 %v10679, %v10707
      %10709 = vmatmul.bf16.gmra.mxu0 %v9259
      %v10710 = vpop.f32.mrf.mxu0
      %v10711 = vadd.f32 %v10682, %v10710
      %v10712 = vpop.f32.mrf.mxu0
      %v10713 = vadd.f32 %v10684, %v10712
      %10714 = vmatmul.bf16.gmra.mxu0 %v9261
      %v10715 = vpop.f32.mrf.mxu0
      %v10716 = vadd.f32 %v10687, %v10715
      %v10717 = vpop.f32.mrf.mxu0
      %v10718 = vadd.f32 %v10689, %v10717
      %10719 = vdwg.mxu0
      %10720 = vmatpush.bf16.msra.mxu0 %v10531
      %10721 = vmatpush.bf16.msra.mxu0 %v10528
      %10722 = vmatpush.bf16.msra.mxu0 %v10525
      %10723 = vmatpush.bf16.msra.mxu0 %v10522
      %10724 = vmatpush.bf16.msra.mxu0 %v10519
      %10725 = vmatpush.bf16.msra.mxu0 %v10516
      %10726 = vmatpush.bf16.msra.mxu0 %v10513
      %10727 = vmatpush.bf16.msra.mxu0 %v10510
      %10728 = vmatmul.bf16.gmra.mxu0 %v9254
      %v10729 = vpop.f32.mrf.mxu0
      %v10730 = vadd.f32 0.0, %v10729
      %v10731 = vpop.f32.mrf.mxu0
      %v10732 = vadd.f32 0.0, %v10731
      %10733 = vmatmul.bf16.gmra.mxu0 %v9256
      %v10734 = vpop.f32.mrf.mxu0
      %v10735 = vadd.f32 0.0, %v10734
      %v10736 = vpop.f32.mrf.mxu0
      %v10737 = vadd.f32 0.0, %v10736
      %10738 = vmatmul.bf16.gmra.mxu0 %v9258
      %v10739 = vpop.f32.mrf.mxu0
      %v10740 = vadd.f32 0.0, %v10739
      %v10741 = vpop.f32.mrf.mxu0
      %v10742 = vadd.f32 0.0, %v10741
      %10743 = vmatmul.bf16.gmra.mxu0 %v9260
      %v10744 = vpop.f32.mrf.mxu0
      %v10745 = vadd.f32 0.0, %v10744
      %v10746 = vpop.f32.mrf.mxu0
      %v10747 = vadd.f32 0.0, %v10746
      %10748 = vdwg.mxu0
      %10749 = vmatpush.bf16.msra.mxu0 %v10555
      %10750 = vmatpush.bf16.msra.mxu0 %v10552
      %10751 = vmatpush.bf16.msra.mxu0 %v10549
      %10752 = vmatpush.bf16.msra.mxu0 %v10546
      %10753 = vmatpush.bf16.msra.mxu0 %v10543
      %10754 = vmatpush.bf16.msra.mxu0 %v10540
      %10755 = vmatpush.bf16.msra.mxu0 %v10537
      %10756 = vmatpush.bf16.msra.mxu0 %v10534
      %10757 = vmatmul.bf16.gmra.mxu0 %v9255
      %v10758 = vpop.f32.mrf.mxu0
      %v10759 = vadd.f32 %v10730, %v10758
      %v10760 = vpop.f32.mrf.mxu0
      %v10761 = vadd.f32 %v10732, %v10760
      %10762 = vmatmul.bf16.gmra.mxu0 %v9257
      %v10763 = vpop.f32.mrf.mxu0
      %v10764 = vadd.f32 %v10735, %v10763
      %v10765 = vpop.f32.mrf.mxu0
      %v10766 = vadd.f32 %v10737, %v10765
      %10767 = vmatmul.bf16.gmra.mxu0 %v9259
      %v10768 = vpop.f32.mrf.mxu0
      %v10769 = vadd.f32 %v10740, %v10768
      %v10770 = vpop.f32.mrf.mxu0
      %v10771 = vadd.f32 %v10742, %v10770
      %10772 = vmatmul.bf16.gmra.mxu0 %v9261
      %v10773 = vpop.f32.mrf.mxu0
      %v10774 = vadd.f32 %v10745, %v10773
      %v10775 = vpop.f32.mrf.mxu0
      %v10776 = vadd.f32 %v10747, %v10775
      %10777 = vdwg.mxu0
      %v10778 = vpack.c.bf16 %v10701, %v10643
      %v10779 = vpack.c.bf16 %v10759, %v10759
      %v10780 = vpack.c.bf16 %v10703, %v10645
      %v10781 = vpack.c.bf16 %v10761, %v10761
      %v10782 = vpack.c.bf16 %v10706, %v10648
      %v10783 = vpack.c.bf16 %v10764, %v10764
      %v10784 = vpack.c.bf16 %v10708, %v10650
      %v10785 = vpack.c.bf16 %v10766, %v10766
      %v10786 = vpack.c.bf16 %v10711, %v10653
      %v10787 = vpack.c.bf16 %v10769, %v10769
      %v10788 = vpack.c.bf16 %v10713, %v10655
      %v10789 = vpack.c.bf16 %v10771, %v10771
      %v10790 = vpack.c.bf16 %v10716, %v10658
      %v10791 = vpack.c.bf16 %v10774, %v10774
      %v10792 = vpack.c.bf16 %v10718, %v10660
      %v10793 = vpack.c.bf16 %v10776, %v10776
      %s10794 = scalar_lea.vmem %s20, 1152
      %v10795 = vld [vmem:[%s10794] sm:$0xff]
      %v10796 = vld [vmem:[%s10794 + $0x8] sm:$0xf]
      %v10797 = vld [vmem:[%s10794 + $0xc] sm:$0xff]
      %v10798 = vld [vmem:[%s10794 + $0x14] sm:$0xf]
      %v10799 = vld [vmem:[%s10794 + $0x18] sm:$0xff]
      %v10800 = vld [vmem:[%s10794 + $0x20] sm:$0xf]
      %v10801 = vld [vmem:[%s10794 + $0x24] sm:$0xff]
      %v10802 = vld [vmem:[%s10794 + $0x2c] sm:$0xf]
      %v10803 = vld [vmem:[%s10794 + $0x30] sm:$0xff]
      %v10804 = vld [vmem:[%s10794 + $0x38] sm:$0xf]
      %v10805 = vld [vmem:[%s10794 + $0x3c] sm:$0xff]
      %v10806 = vld [vmem:[%s10794 + $0x44] sm:$0xf]
      %v10807 = vld [vmem:[%s10794 + $0x48] sm:$0xff]
      %v10808 = vld [vmem:[%s10794 + $0x50] sm:$0xf]
      %v10809 = vld [vmem:[%s10794 + $0x54] sm:$0xff]
      %v10810 = vld [vmem:[%s10794 + $0x5c] sm:$0xf]
      %v10811 = vld [vmem:[%s10794 + $0x60] sm:$0xff]
      %v10812 = vld [vmem:[%s10794 + $0x68] sm:$0xf]
      %v10813 = vld [vmem:[%s10794 + $0x6c] sm:$0xff]
      %v10814 = vld [vmem:[%s10794 + $0x74] sm:$0xf]
      %v10815 = vld [vmem:[%s10794 + $0x78] sm:$0xff]
      %v10816 = vld [vmem:[%s10794 + $0x80] sm:$0xf]
      %v10817 = vld [vmem:[%s10794 + $0x84] sm:$0xff]
      %v10818 = vld [vmem:[%s10794 + $0x8c] sm:$0xf]
      %v10819 = vld [vmem:[%s10794 + $0x90] sm:$0xff]
      %v10820 = vld [vmem:[%s10794 + $0x98] sm:$0xf]
      %v10821 = vld [vmem:[%s10794 + $0x9c] sm:$0xff]
      %v10822 = vld [vmem:[%s10794 + $0xa4] sm:$0xf]
      %v10823 = vld [vmem:[%s10794 + $0xa8] sm:$0xff]
      %v10824 = vld [vmem:[%s10794 + $0xb0] sm:$0xf]
      %v10825 = vld [vmem:[%s10794 + $0xb4] sm:$0xff]
      %v10826 = vld [vmem:[%s10794 + $0xbc] sm:$0xf]
      %v10827 = vld [vmem:[%s10794 + $0xc0] sm:$0xff]
      %v10828 = vld [vmem:[%s10794 + $0xc8] sm:$0xf]
      %v10829 = vld [vmem:[%s10794 + $0xcc] sm:$0xff]
      %v10830 = vld [vmem:[%s10794 + $0xd4] sm:$0xf]
      %v10831 = vld [vmem:[%s10794 + $0xd8] sm:$0xff]
      %v10832 = vld [vmem:[%s10794 + $0xe0] sm:$0xf]
      %v10833 = vld [vmem:[%s10794 + $0xe4] sm:$0xff]
      %v10834 = vld [vmem:[%s10794 + $0xec] sm:$0xf]
      %v10835 = vld [vmem:[%s10794 + $0xf0] sm:$0xff]
      %v10836 = vld [vmem:[%s10794 + $0xf8] sm:$0xf]
      %v10837 = vld [vmem:[%s10794 + $0xfc] sm:$0xff]
      %v10838 = vld [vmem:[%s10794 + $0x104] sm:$0xf]
      %v10839 = vld [vmem:[%s10794 + $0x108] sm:$0xff]
      %v10840 = vld [vmem:[%s10794 + $0x110] sm:$0xf]
      %v10841 = vld [vmem:[%s10794 + $0x114] sm:$0xff]
      %v10842 = vld [vmem:[%s10794 + $0x11c] sm:$0xf]
      %v10843 = vld [vmem:[%s10794 + $0x120] sm:$0xff]
      %v10844 = vld [vmem:[%s10794 + $0x128] sm:$0xf]
      %v10845 = vld [vmem:[%s10794 + $0x12c] sm:$0xff]
      %v10846 = vld [vmem:[%s10794 + $0x134] sm:$0xf]
      %v10847 = vld [vmem:[%s10794 + $0x138] sm:$0xff]
      %v10848 = vld [vmem:[%s10794 + $0x140] sm:$0xf]
      %v10849 = vld [vmem:[%s10794 + $0x144] sm:$0xff]
      %v10850 = vld [vmem:[%s10794 + $0x14c] sm:$0xf]
      %v10851 = vld [vmem:[%s10794 + $0x150] sm:$0xff]
      %v10852 = vld [vmem:[%s10794 + $0x158] sm:$0xf]
      %v10853 = vld [vmem:[%s10794 + $0x15c] sm:$0xff]
      %v10854 = vld [vmem:[%s10794 + $0x164] sm:$0xf]
      %v10855 = vld [vmem:[%s10794 + $0x168] sm:$0xff]
      %v10856 = vld [vmem:[%s10794 + $0x170] sm:$0xf]
      %v10857 = vld [vmem:[%s10794 + $0x174] sm:$0xff]
      %v10858 = vld [vmem:[%s10794 + $0x17c] sm:$0xf]
      %v10923 = vunpack.c.l.b16 %v10795
      %v10924 = vunpack.c.h.b16 %v10795
      %v10925 = vunpack.c.l.b16 %v10796
      %v10926 = vunpack.c.l.b16 %v10797
      %v10927 = vunpack.c.h.b16 %v10797
      %v10928 = vunpack.c.l.b16 %v10798
      %v10929 = vunpack.c.l.b16 %v10799
      %v10930 = vunpack.c.h.b16 %v10799
      %v10931 = vunpack.c.l.b16 %v10800
      %v10932 = vunpack.c.l.b16 %v10801
      %v10933 = vunpack.c.h.b16 %v10801
      %v10934 = vunpack.c.l.b16 %v10802
      %v10935 = vunpack.c.l.b16 %v10803
      %v10936 = vunpack.c.h.b16 %v10803
      %v10937 = vunpack.c.l.b16 %v10804
      %v10938 = vunpack.c.l.b16 %v10805
      %v10939 = vunpack.c.h.b16 %v10805
      %v10940 = vunpack.c.l.b16 %v10806
      %v10941 = vunpack.c.l.b16 %v10807
      %v10942 = vunpack.c.h.b16 %v10807
      %v10943 = vunpack.c.l.b16 %v10808
      %v10944 = vunpack.c.l.b16 %v10809
      %v10945 = vunpack.c.h.b16 %v10809
      %v10946 = vunpack.c.l.b16 %v10810
      %v10947 = vunpack.c.l.b16 %v10811
      %v10948 = vunpack.c.h.b16 %v10811
      %v10949 = vunpack.c.l.b16 %v10812
      %v10950 = vunpack.c.l.b16 %v10813
      %v10951 = vunpack.c.h.b16 %v10813
      %v10952 = vunpack.c.l.b16 %v10814
      %v10953 = vunpack.c.l.b16 %v10815
      %v10954 = vunpack.c.h.b16 %v10815
      %v10955 = vunpack.c.l.b16 %v10816
      %v10956 = vunpack.c.l.b16 %v10817
      %v10957 = vunpack.c.h.b16 %v10817
      %v10958 = vunpack.c.l.b16 %v10818
      %v10959 = vunpack.c.l.b16 %v10819
      %v10960 = vunpack.c.h.b16 %v10819
      %v10961 = vunpack.c.l.b16 %v10820
      %v10962 = vunpack.c.l.b16 %v10821
      %v10963 = vunpack.c.h.b16 %v10821
      %v10964 = vunpack.c.l.b16 %v10822
      %v10965 = vunpack.c.l.b16 %v10823
      %v10966 = vunpack.c.h.b16 %v10823
      %v10967 = vunpack.c.l.b16 %v10824
      %v10968 = vunpack.c.l.b16 %v10825
      %v10969 = vunpack.c.h.b16 %v10825
      %v10970 = vunpack.c.l.b16 %v10826
      %v10971 = vunpack.c.l.b16 %v10827
      %v10972 = vunpack.c.h.b16 %v10827
      %v10973 = vunpack.c.l.b16 %v10828
      %v10974 = vunpack.c.l.b16 %v10829
      %v10975 = vunpack.c.h.b16 %v10829
      %v10976 = vunpack.c.l.b16 %v10830
      %v10977 = vunpack.c.l.b16 %v10831
      %v10978 = vunpack.c.h.b16 %v10831
      %v10979 = vunpack.c.l.b16 %v10832
      %v10980 = vunpack.c.l.b16 %v10833
      %v10981 = vunpack.c.h.b16 %v10833
      %v10982 = vunpack.c.l.b16 %v10834
      %v10983 = vunpack.c.l.b16 %v10835
      %v10984 = vunpack.c.h.b16 %v10835
      %v10985 = vunpack.c.l.b16 %v10836
      %v10986 = vunpack.c.l.b16 %v10837
      %v10987 = vunpack.c.h.b16 %v10837
      %v10988 = vunpack.c.l.b16 %v10838
      %v10989 = vunpack.c.l.b16 %v10839
      %v10990 = vunpack.c.h.b16 %v10839
      %v10991 = vunpack.c.l.b16 %v10840
      %v10992 = vunpack.c.l.b16 %v10841
      %v10993 = vunpack.c.h.b16 %v10841
      %v10994 = vunpack.c.l.b16 %v10842
      %v10995 = vunpack.c.l.b16 %v10843
      %v10996 = vunpack.c.h.b16 %v10843
      %v10997 = vunpack.c.l.b16 %v10844
      %v10998 = vunpack.c.l.b16 %v10845
      %v10999 = vunpack.c.h.b16 %v10845
      %v11000 = vunpack.c.l.b16 %v10846
      %v11001 = vunpack.c.l.b16 %v10847
      %v11002 = vunpack.c.h.b16 %v10847
      %v11003 = vunpack.c.l.b16 %v10848
      %v11004 = vunpack.c.l.b16 %v10849
      %v11005 = vunpack.c.h.b16 %v10849
      %v11006 = vunpack.c.l.b16 %v10850
      %v11007 = vunpack.c.l.b16 %v10851
      %v11008 = vunpack.c.h.b16 %v10851
      %v11009 = vunpack.c.l.b16 %v10852
      %v11010 = vunpack.c.l.b16 %v10853
      %v11011 = vunpack.c.h.b16 %v10853
      %v11012 = vunpack.c.l.b16 %v10854
      %v11013 = vunpack.c.l.b16 %v10855
      %v11014 = vunpack.c.h.b16 %v10855
      %v11015 = vunpack.c.l.b16 %v10856
      %v11016 = vunpack.c.l.b16 %v10857
      %v11017 = vunpack.c.h.b16 %v10857
      %v11018 = vunpack.c.l.b16 %v10858
      %v11019 = vpack.c.b16 %v10926, %v10923
      %v11020 = vpack.c.b16 %v10927, %v10924
      %v11021 = vpack.c.b16 %v10928, %v10925
      %v11022 = vpack.c.b16 %v10932, %v10929
      %v11023 = vpack.c.b16 %v10933, %v10930
      %v11024 = vpack.c.b16 %v10934, %v10931
      %v11025 = vpack.c.b16 %v10938, %v10935
      %v11026 = vpack.c.b16 %v10939, %v10936
      %v11027 = vpack.c.b16 %v10940, %v10937
      %v11028 = vpack.c.b16 %v10944, %v10941
      %v11029 = vpack.c.b16 %v10945, %v10942
      %v11030 = vpack.c.b16 %v10946, %v10943
      %v11031 = vpack.c.b16 %v10950, %v10947
      %v11032 = vpack.c.b16 %v10951, %v10948
      %v11033 = vpack.c.b16 %v10952, %v10949
      %v11034 = vpack.c.b16 %v10956, %v10953
      %v11035 = vpack.c.b16 %v10957, %v10954
      %v11036 = vpack.c.b16 %v10958, %v10955
      %v11037 = vpack.c.b16 %v10962, %v10959
      %v11038 = vpack.c.b16 %v10963, %v10960
      %v11039 = vpack.c.b16 %v10964, %v10961
      %v11040 = vpack.c.b16 %v10968, %v10965
      %v11041 = vpack.c.b16 %v10969, %v10966
      %v11042 = vpack.c.b16 %v10970, %v10967
      %v11043 = vpack.c.b16 %v10974, %v10971
      %v11044 = vpack.c.b16 %v10975, %v10972
      %v11045 = vpack.c.b16 %v10976, %v10973
      %v11046 = vpack.c.b16 %v10980, %v10977
      %v11047 = vpack.c.b16 %v10981, %v10978
      %v11048 = vpack.c.b16 %v10982, %v10979
      %v11049 = vpack.c.b16 %v10986, %v10983
      %v11050 = vpack.c.b16 %v10987, %v10984
      %v11051 = vpack.c.b16 %v10988, %v10985
      %v11052 = vpack.c.b16 %v10992, %v10989
      %v11053 = vpack.c.b16 %v10993, %v10990
      %v11054 = vpack.c.b16 %v10994, %v10991
      %v11055 = vpack.c.b16 %v10998, %v10995
      %v11056 = vpack.c.b16 %v10999, %v10996
      %v11057 = vpack.c.b16 %v11000, %v10997
      %v11058 = vpack.c.b16 %v11004, %v11001
      %v11059 = vpack.c.b16 %v11005, %v11002
      %v11060 = vpack.c.b16 %v11006, %v11003
      %v11061 = vpack.c.b16 %v11010, %v11007
      %v11062 = vpack.c.b16 %v11011, %v11008
      %v11063 = vpack.c.b16 %v11012, %v11009
      %v11064 = vpack.c.b16 %v11016, %v11013
      %v11065 = vpack.c.b16 %v11017, %v11014
      %v11066 = vpack.c.b16 %v11018, %v11015
      %11115 = vmatpush.bf16.msra.mxu0 %v11040
      %11116 = vmatpush.bf16.msra.mxu0 %v11037
      %11117 = vmatpush.bf16.msra.mxu0 %v11034
      %11118 = vmatpush.bf16.msra.mxu0 %v11031
      %11119 = vmatpush.bf16.msra.mxu0 %v11028
      %11120 = vmatpush.bf16.msra.mxu0 %v11025
      %11121 = vmatpush.bf16.msra.mxu0 %v11022
      %11122 = vmatpush.bf16.msra.mxu0 %v11019
      %11123 = vmatmul.bf16.gmra.mxu0 %v9254
      %v11124 = vpop.f32.mrf.mxu0
      %v11125 = vadd.f32 0.0, %v11124
      %v11126 = vpop.f32.mrf.mxu0
      %v11127 = vadd.f32 0.0, %v11126
      %11128 = vmatmul.bf16.gmra.mxu0 %v9256
      %v11129 = vpop.f32.mrf.mxu0
      %v11130 = vadd.f32 0.0, %v11129
      %v11131 = vpop.f32.mrf.mxu0
      %v11132 = vadd.f32 0.0, %v11131
      %11133 = vmatmul.bf16.gmra.mxu0 %v9258
      %v11134 = vpop.f32.mrf.mxu0
      %v11135 = vadd.f32 0.0, %v11134
      %v11136 = vpop.f32.mrf.mxu0
      %v11137 = vadd.f32 0.0, %v11136
      %11138 = vmatmul.bf16.gmra.mxu0 %v9260
      %v11139 = vpop.f32.mrf.mxu0
      %v11140 = vadd.f32 0.0, %v11139
      %v11141 = vpop.f32.mrf.mxu0
      %v11142 = vadd.f32 0.0, %v11141
      %11143 = vdwg.mxu0
      %11144 = vmatpush.bf16.msra.mxu0 %v11064
      %11145 = vmatpush.bf16.msra.mxu0 %v11061
      %11146 = vmatpush.bf16.msra.mxu0 %v11058
      %11147 = vmatpush.bf16.msra.mxu0 %v11055
      %11148 = vmatpush.bf16.msra.mxu0 %v11052
      %11149 = vmatpush.bf16.msra.mxu0 %v11049
      %11150 = vmatpush.bf16.msra.mxu0 %v11046
      %11151 = vmatpush.bf16.msra.mxu0 %v11043
      %11152 = vmatmul.bf16.gmra.mxu0 %v9255
      %v11153 = vpop.f32.mrf.mxu0
      %v11154 = vadd.f32 %v11125, %v11153
      %v11155 = vpop.f32.mrf.mxu0
      %v11156 = vadd.f32 %v11127, %v11155
      %11157 = vmatmul.bf16.gmra.mxu0 %v9257
      %v11158 = vpop.f32.mrf.mxu0
      %v11159 = vadd.f32 %v11130, %v11158
      %v11160 = vpop.f32.mrf.mxu0
      %v11161 = vadd.f32 %v11132, %v11160
      %11162 = vmatmul.bf16.gmra.mxu0 %v9259
      %v11163 = vpop.f32.mrf.mxu0
      %v11164 = vadd.f32 %v11135, %v11163
      %v11165 = vpop.f32.mrf.mxu0
      %v11166 = vadd.f32 %v11137, %v11165
      %11167 = vmatmul.bf16.gmra.mxu0 %v9261
      %v11168 = vpop.f32.mrf.mxu0
      %v11169 = vadd.f32 %v11140, %v11168
      %v11170 = vpop.f32.mrf.mxu0
      %v11171 = vadd.f32 %v11142, %v11170
      %11172 = vdwg.mxu0
      %11173 = vmatpush.bf16.msra.mxu0 %v11041
      %11174 = vmatpush.bf16.msra.mxu0 %v11038
      %11175 = vmatpush.bf16.msra.mxu0 %v11035
      %11176 = vmatpush.bf16.msra.mxu0 %v11032
      %11177 = vmatpush.bf16.msra.mxu0 %v11029
      %11178 = vmatpush.bf16.msra.mxu0 %v11026
      %11179 = vmatpush.bf16.msra.mxu0 %v11023
      %11180 = vmatpush.bf16.msra.mxu0 %v11020
      %11181 = vmatmul.bf16.gmra.mxu0 %v9254
      %v11182 = vpop.f32.mrf.mxu0
      %v11183 = vadd.f32 0.0, %v11182
      %v11184 = vpop.f32.mrf.mxu0
      %v11185 = vadd.f32 0.0, %v11184
      %11186 = vmatmul.bf16.gmra.mxu0 %v9256
      %v11187 = vpop.f32.mrf.mxu0
      %v11188 = vadd.f32 0.0, %v11187
      %v11189 = vpop.f32.mrf.mxu0
      %v11190 = vadd.f32 0.0, %v11189
      %11191 = vmatmul.bf16.gmra.mxu0 %v9258
      %v11192 = vpop.f32.mrf.mxu0
      %v11193 = vadd.f32 0.0, %v11192
      %v11194 = vpop.f32.mrf.mxu0
      %v11195 = vadd.f32 0.0, %v11194
      %11196 = vmatmul.bf16.gmra.mxu0 %v9260
      %v11197 = vpop.f32.mrf.mxu0
      %v11198 = vadd.f32 0.0, %v11197
      %v11199 = vpop.f32.mrf.mxu0
      %v11200 = vadd.f32 0.0, %v11199
      %11201 = vdwg.mxu0
      %11202 = vmatpush.bf16.msra.mxu0 %v11065
      %11203 = vmatpush.bf16.msra.mxu0 %v11062
      %11204 = vmatpush.bf16.msra.mxu0 %v11059
      %11205 = vmatpush.bf16.msra.mxu0 %v11056
      %11206 = vmatpush.bf16.msra.mxu0 %v11053
      %11207 = vmatpush.bf16.msra.mxu0 %v11050
      %11208 = vmatpush.bf16.msra.mxu0 %v11047
      %11209 = vmatpush.bf16.msra.mxu0 %v11044
      %11210 = vmatmul.bf16.gmra.mxu0 %v9255
      %v11211 = vpop.f32.mrf.mxu0
      %v11212 = vadd.f32 %v11183, %v11211
      %v11213 = vpop.f32.mrf.mxu0
      %v11214 = vadd.f32 %v11185, %v11213
      %11215 = vmatmul.bf16.gmra.mxu0 %v9257
      %v11216 = vpop.f32.mrf.mxu0
      %v11217 = vadd.f32 %v11188, %v11216
      %v11218 = vpop.f32.mrf.mxu0
      %v11219 = vadd.f32 %v11190, %v11218
      %11220 = vmatmul.bf16.gmra.mxu0 %v9259
      %v11221 = vpop.f32.mrf.mxu0
      %v11222 = vadd.f32 %v11193, %v11221
      %v11223 = vpop.f32.mrf.mxu0
      %v11224 = vadd.f32 %v11195, %v11223
      %11225 = vmatmul.bf16.gmra.mxu0 %v9261
      %v11226 = vpop.f32.mrf.mxu0
      %v11227 = vadd.f32 %v11198, %v11226
      %v11228 = vpop.f32.mrf.mxu0
      %v11229 = vadd.f32 %v11200, %v11228
      %11230 = vdwg.mxu0
      %11231 = vmatpush.bf16.msra.mxu0 %v11042
      %11232 = vmatpush.bf16.msra.mxu0 %v11039
      %11233 = vmatpush.bf16.msra.mxu0 %v11036
      %11234 = vmatpush.bf16.msra.mxu0 %v11033
      %11235 = vmatpush.bf16.msra.mxu0 %v11030
      %11236 = vmatpush.bf16.msra.mxu0 %v11027
      %11237 = vmatpush.bf16.msra.mxu0 %v11024
      %11238 = vmatpush.bf16.msra.mxu0 %v11021
      %11239 = vmatmul.bf16.gmra.mxu0 %v9254
      %v11240 = vpop.f32.mrf.mxu0
      %v11241 = vadd.f32 0.0, %v11240
      %v11242 = vpop.f32.mrf.mxu0
      %v11243 = vadd.f32 0.0, %v11242
      %11244 = vmatmul.bf16.gmra.mxu0 %v9256
      %v11245 = vpop.f32.mrf.mxu0
      %v11246 = vadd.f32 0.0, %v11245
      %v11247 = vpop.f32.mrf.mxu0
      %v11248 = vadd.f32 0.0, %v11247
      %11249 = vmatmul.bf16.gmra.mxu0 %v9258
      %v11250 = vpop.f32.mrf.mxu0
      %v11251 = vadd.f32 0.0, %v11250
      %v11252 = vpop.f32.mrf.mxu0
      %v11253 = vadd.f32 0.0, %v11252
      %11254 = vmatmul.bf16.gmra.mxu0 %v9260
      %v11255 = vpop.f32.mrf.mxu0
      %v11256 = vadd.f32 0.0, %v11255
      %v11257 = vpop.f32.mrf.mxu0
      %v11258 = vadd.f32 0.0, %v11257
      %11259 = vdwg.mxu0
      %11260 = vmatpush.bf16.msra.mxu0 %v11066
      %11261 = vmatpush.bf16.msra.mxu0 %v11063
      %11262 = vmatpush.bf16.msra.mxu0 %v11060
      %11263 = vmatpush.bf16.msra.mxu0 %v11057
      %11264 = vmatpush.bf16.msra.mxu0 %v11054
      %11265 = vmatpush.bf16.msra.mxu0 %v11051
      %11266 = vmatpush.bf16.msra.mxu0 %v11048
      %11267 = vmatpush.bf16.msra.mxu0 %v11045
      %11268 = vmatmul.bf16.gmra.mxu0 %v9255
      %v11269 = vpop.f32.mrf.mxu0
      %v11270 = vadd.f32 %v11241, %v11269
      %v11271 = vpop.f32.mrf.mxu0
      %v11272 = vadd.f32 %v11243, %v11271
      %11273 = vmatmul.bf16.gmra.mxu0 %v9257
      %v11274 = vpop.f32.mrf.mxu0
      %v11275 = vadd.f32 %v11246, %v11274
      %v11276 = vpop.f32.mrf.mxu0
      %v11277 = vadd.f32 %v11248, %v11276
      %11278 = vmatmul.bf16.gmra.mxu0 %v9259
      %v11279 = vpop.f32.mrf.mxu0
      %v11280 = vadd.f32 %v11251, %v11279
      %v11281 = vpop.f32.mrf.mxu0
      %v11282 = vadd.f32 %v11253, %v11281
      %11283 = vmatmul.bf16.gmra.mxu0 %v9261
      %v11284 = vpop.f32.mrf.mxu0
      %v11285 = vadd.f32 %v11256, %v11284
      %v11286 = vpop.f32.mrf.mxu0
      %v11287 = vadd.f32 %v11258, %v11286
      %11288 = vdwg.mxu0
      %v11289 = vpack.c.bf16 %v11212, %v11154
      %v11290 = vpack.c.bf16 %v11270, %v11270
      %v11291 = vpack.c.bf16 %v11214, %v11156
      %v11292 = vpack.c.bf16 %v11272, %v11272
      %v11293 = vpack.c.bf16 %v11217, %v11159
      %v11294 = vpack.c.bf16 %v11275, %v11275
      %v11295 = vpack.c.bf16 %v11219, %v11161
      %v11296 = vpack.c.bf16 %v11277, %v11277
      %v11297 = vpack.c.bf16 %v11222, %v11164
      %v11298 = vpack.c.bf16 %v11280, %v11280
      %v11299 = vpack.c.bf16 %v11224, %v11166
      %v11300 = vpack.c.bf16 %v11282, %v11282
      %v11301 = vpack.c.bf16 %v11227, %v11169
      %v11302 = vpack.c.bf16 %v11285, %v11285
      %v11303 = vpack.c.bf16 %v11229, %v11171
      %v11304 = vpack.c.bf16 %v11287, %v11287
      %v11321 = vunpack.c.l.b16 %v9756
      %v11322 = vunpack.c.h.b16 %v9756
      %v11323 = vunpack.c.l.b16 %v9757
      %v11324 = vunpack.c.l.b16 %v9758
      %v11325 = vunpack.c.h.b16 %v9758
      %v11326 = vunpack.c.l.b16 %v9759
      %v11327 = vunpack.c.l.b16 %v9760
      %v11328 = vunpack.c.h.b16 %v9760
      %v11329 = vunpack.c.l.b16 %v9761
      %v11330 = vunpack.c.l.b16 %v9762
      %v11331 = vunpack.c.h.b16 %v9762
      %v11332 = vunpack.c.l.b16 %v9763
      %v11333 = vunpack.c.l.b16 %v9764
      %v11334 = vunpack.c.h.b16 %v9764
      %v11335 = vunpack.c.l.b16 %v9765
      %v11336 = vunpack.c.l.b16 %v9766
      %v11337 = vunpack.c.h.b16 %v9766
      %v11338 = vunpack.c.l.b16 %v9767
      %v11339 = vunpack.c.l.b16 %v9768
      %v11340 = vunpack.c.h.b16 %v9768
      %v11341 = vunpack.c.l.b16 %v9769
      %v11342 = vunpack.c.l.b16 %v9770
      %v11343 = vunpack.c.h.b16 %v9770
      %v11344 = vunpack.c.l.b16 %v9771
      %v11345 = vpack.c.b16 %v11324, %v11321
      %v11346 = vpack.c.b16 %v11325, %v11322
      %v11347 = vpack.c.b16 %v11326, %v11323
      %v11348 = vpack.c.b16 %v11330, %v11327
      %v11349 = vpack.c.b16 %v11331, %v11328
      %v11350 = vpack.c.b16 %v11332, %v11329
      %v11351 = vpack.c.b16 %v11336, %v11333
      %v11352 = vpack.c.b16 %v11337, %v11334
      %v11353 = vpack.c.b16 %v11338, %v11335
      %v11354 = vpack.c.b16 %v11342, %v11339
      %v11355 = vpack.c.b16 %v11343, %v11340
      %v11356 = vpack.c.b16 %v11344, %v11341
      %v11385 = vunpack.c.l.b16 %v10267
      %v11386 = vunpack.c.h.b16 %v10267
      %v11387 = vunpack.c.l.b16 %v10268
      %v11388 = vunpack.c.l.b16 %v10269
      %v11389 = vunpack.c.h.b16 %v10269
      %v11390 = vunpack.c.l.b16 %v10270
      %v11391 = vunpack.c.l.b16 %v10271
      %v11392 = vunpack.c.h.b16 %v10271
      %v11393 = vunpack.c.l.b16 %v10272
      %v11394 = vunpack.c.l.b16 %v10273
      %v11395 = vunpack.c.h.b16 %v10273
      %v11396 = vunpack.c.l.b16 %v10274
      %v11397 = vunpack.c.l.b16 %v10275
      %v11398 = vunpack.c.h.b16 %v10275
      %v11399 = vunpack.c.l.b16 %v10276
      %v11400 = vunpack.c.l.b16 %v10277
      %v11401 = vunpack.c.h.b16 %v10277
      %v11402 = vunpack.c.l.b16 %v10278
      %v11403 = vunpack.c.l.b16 %v10279
      %v11404 = vunpack.c.h.b16 %v10279
      %v11405 = vunpack.c.l.b16 %v10280
      %v11406 = vunpack.c.l.b16 %v10281
      %v11407 = vunpack.c.h.b16 %v10281
      %v11408 = vunpack.c.l.b16 %v10282
      %v11409 = vpack.c.b16 %v11388, %v11385
      %v11410 = vpack.c.b16 %v11389, %v11386
      %v11411 = vpack.c.b16 %v11390, %v11387
      %v11412 = vpack.c.b16 %v11394, %v11391
      %v11413 = vpack.c.b16 %v11395, %v11392
      %v11414 = vpack.c.b16 %v11396, %v11393
      %v11415 = vpack.c.b16 %v11400, %v11397
      %v11416 = vpack.c.b16 %v11401, %v11398
      %v11417 = vpack.c.b16 %v11402, %v11399
      %v11418 = vpack.c.b16 %v11406, %v11403
      %v11419 = vpack.c.b16 %v11407, %v11404
      %v11420 = vpack.c.b16 %v11408, %v11405
      %v11449 = vunpack.c.l.b16 %v10778
      %v11450 = vunpack.c.h.b16 %v10778
      %v11451 = vunpack.c.l.b16 %v10779
      %v11452 = vunpack.c.l.b16 %v10780
      %v11453 = vunpack.c.h.b16 %v10780
      %v11454 = vunpack.c.l.b16 %v10781
      %v11455 = vunpack.c.l.b16 %v10782
      %v11456 = vunpack.c.h.b16 %v10782
      %v11457 = vunpack.c.l.b16 %v10783
      %v11458 = vunpack.c.l.b16 %v10784
      %v11459 = vunpack.c.h.b16 %v10784
      %v11460 = vunpack.c.l.b16 %v10785
      %v11461 = vunpack.c.l.b16 %v10786
      %v11462 = vunpack.c.h.b16 %v10786
      %v11463 = vunpack.c.l.b16 %v10787
      %v11464 = vunpack.c.l.b16 %v10788
      %v11465 = vunpack.c.h.b16 %v10788
      %v11466 = vunpack.c.l.b16 %v10789
      %v11467 = vunpack.c.l.b16 %v10790
      %v11468 = vunpack.c.h.b16 %v10790
      %v11469 = vunpack.c.l.b16 %v10791
      %v11470 = vunpack.c.l.b16 %v10792
      %v11471 = vunpack.c.h.b16 %v10792
      %v11472 = vunpack.c.l.b16 %v10793
      %v11473 = vpack.c.b16 %v11452, %v11449
      %v11474 = vpack.c.b16 %v11453, %v11450
      %v11475 = vpack.c.b16 %v11454, %v11451
      %v11476 = vpack.c.b16 %v11458, %v11455
      %v11477 = vpack.c.b16 %v11459, %v11456
      %v11478 = vpack.c.b16 %v11460, %v11457
      %v11479 = vpack.c.b16 %v11464, %v11461
      %v11480 = vpack.c.b16 %v11465, %v11462
      %v11481 = vpack.c.b16 %v11466, %v11463
      %v11482 = vpack.c.b16 %v11470, %v11467
      %v11483 = vpack.c.b16 %v11471, %v11468
      %v11484 = vpack.c.b16 %v11472, %v11469
      %v11513 = vunpack.c.l.b16 %v11289
      %v11514 = vunpack.c.h.b16 %v11289
      %v11515 = vunpack.c.l.b16 %v11290
      %v11516 = vunpack.c.l.b16 %v11291
      %v11517 = vunpack.c.h.b16 %v11291
      %v11518 = vunpack.c.l.b16 %v11292
      %v11519 = vunpack.c.l.b16 %v11293
      %v11520 = vunpack.c.h.b16 %v11293
      %v11521 = vunpack.c.l.b16 %v11294
      %v11522 = vunpack.c.l.b16 %v11295
      %v11523 = vunpack.c.h.b16 %v11295
      %v11524 = vunpack.c.l.b16 %v11296
      %v11525 = vunpack.c.l.b16 %v11297
      %v11526 = vunpack.c.h.b16 %v11297
      %v11527 = vunpack.c.l.b16 %v11298
      %v11528 = vunpack.c.l.b16 %v11299
      %v11529 = vunpack.c.h.b16 %v11299
      %v11530 = vunpack.c.l.b16 %v11300
      %v11531 = vunpack.c.l.b16 %v11301
      %v11532 = vunpack.c.h.b16 %v11301
      %v11533 = vunpack.c.l.b16 %v11302
      %v11534 = vunpack.c.l.b16 %v11303
      %v11535 = vunpack.c.h.b16 %v11303
      %v11536 = vunpack.c.l.b16 %v11304
      %v11537 = vpack.c.b16 %v11516, %v11513
      %v11538 = vpack.c.b16 %v11517, %v11514
      %v11539 = vpack.c.b16 %v11518, %v11515
      %v11540 = vpack.c.b16 %v11522, %v11519
      %v11541 = vpack.c.b16 %v11523, %v11520
      %v11542 = vpack.c.b16 %v11524, %v11521
      %v11543 = vpack.c.b16 %v11528, %v11525
      %v11544 = vpack.c.b16 %v11529, %v11526
      %v11545 = vpack.c.b16 %v11530, %v11527
      %v11546 = vpack.c.b16 %v11534, %v11531
      %v11547 = vpack.c.b16 %v11535, %v11532
      %v11548 = vpack.c.b16 %v11536, %v11533
      %v11561 = vld [vmem:[%s18] sm:$0xf]
      %v11562 = vld [vmem:[%s19] sm:$0xf]
      %11564 = vset.pattern.permute.xlu0 0
      %11565 = vperm.xlu0 %11564, %v11562
      %v11566 = vpop.permute.xlu0 %11565
      %11569 = vst [vmem:[#allocation1] ss:$4 sm:$0xff] %v11561
      %v11570 = vld.sshfl [vmem:[#allocation1] sm:$0xff pattern:$0x73625140]
      %v11571 = vld.sshfl [vmem:[#allocation1 + $0x8] sm:$0xff pattern:$0x73625140]
      %11574 = vmatpush.bf16.msra.mxu0 %v11418
      %11575 = vmatpush.bf16.msra.mxu0 %v11415
      %11576 = vmatpush.bf16.msra.mxu0 %v11412
      %11577 = vmatpush.bf16.msra.mxu0 %v11409
      %11578 = vmatpush.bf16.msra.mxu0 %v11354
      %11579 = vmatpush.bf16.msra.mxu0 %v11351
      %11580 = vmatpush.bf16.msra.mxu0 %v11348
      %11581 = vmatpush.bf16.msra.mxu0 %v11345
      %11582 = vmatmul.bf16.gmra.mxu0 %v11570
      %v11583 = vpop.f32.mrf.mxu0
      %v11584 = vadd.f32 %v11566, %v11583
      %v11585 = vpop.f32.mrf.mxu0
      %11586 = vdwg.mxu0
      %11587 = vmatpush.bf16.msra.mxu0 %v11546
      %11588 = vmatpush.bf16.msra.mxu0 %v11543
      %11589 = vmatpush.bf16.msra.mxu0 %v11540
      %11590 = vmatpush.bf16.msra.mxu0 %v11537
      %11591 = vmatpush.bf16.msra.mxu0 %v11482
      %11592 = vmatpush.bf16.msra.mxu0 %v11479
      %11593 = vmatpush.bf16.msra.mxu0 %v11476
      %11594 = vmatpush.bf16.msra.mxu0 %v11473
      %11595 = vmatmul.bf16.gmra.mxu0 %v11571
      %v11596 = vpop.f32.mrf.mxu0
      %v11597 = vadd.f32 %v11584, %v11596
      %v11598 = vpop.f32.mrf.mxu0
      %11599 = vdwg.mxu0
      %11600 = vmatpush.bf16.msra.mxu0 %v11419
      %11601 = vmatpush.bf16.msra.mxu0 %v11416
      %11602 = vmatpush.bf16.msra.mxu0 %v11413
      %11603 = vmatpush.bf16.msra.mxu0 %v11410
      %11604 = vmatpush.bf16.msra.mxu0 %v11355
      %11605 = vmatpush.bf16.msra.mxu0 %v11352
      %11606 = vmatpush.bf16.msra.mxu0 %v11349
      %11607 = vmatpush.bf16.msra.mxu0 %v11346
      %11608 = vmatmul.bf16.gmra.mxu0 %v11570
      %v11609 = vpop.f32.mrf.mxu0
      %v11610 = vadd.f32 %v11566, %v11609
      %v11611 = vpop.f32.mrf.mxu0
      %11612 = vdwg.mxu0
      %11613 = vmatpush.bf16.msra.mxu0 %v11547
      %11614 = vmatpush.bf16.msra.mxu0 %v11544
      %11615 = vmatpush.bf16.msra.mxu0 %v11541
      %11616 = vmatpush.bf16.msra.mxu0 %v11538
      %11617 = vmatpush.bf16.msra.mxu0 %v11483
      %11618 = vmatpush.bf16.msra.mxu0 %v11480
      %11619 = vmatpush.bf16.msra.mxu0 %v11477
      %11620 = vmatpush.bf16.msra.mxu0 %v11474
      %11621 = vmatmul.bf16.gmra.mxu0 %v11571
      %v11622 = vpop.f32.mrf.mxu0
      %v11623 = vadd.f32 %v11610, %v11622
      %v11624 = vpop.f32.mrf.mxu0
      %11625 = vdwg.mxu0
      %11626 = vmatpush.bf16.msra.mxu0 %v11420
      %11627 = vmatpush.bf16.msra.mxu0 %v11417
      %11628 = vmatpush.bf16.msra.mxu0 %v11414
      %11629 = vmatpush.bf16.msra.mxu0 %v11411
      %11630 = vmatpush.bf16.msra.mxu0 %v11356
      %11631 = vmatpush.bf16.msra.mxu0 %v11353
      %11632 = vmatpush.bf16.msra.mxu0 %v11350
      %11633 = vmatpush.bf16.msra.mxu0 %v11347
      %11634 = vmatmul.bf16.gmra.mxu0 %v11570
      %v11635 = vpop.f32.mrf.mxu0
      %v11636 = vadd.f32 %v11566, %v11635
      %v11637 = vpop.f32.mrf.mxu0
      %11638 = vdwg.mxu0
      %11639 = vmatpush.bf16.msra.mxu0 %v11548
      %11640 = vmatpush.bf16.msra.mxu0 %v11545
      %11641 = vmatpush.bf16.msra.mxu0 %v11542
      %11642 = vmatpush.bf16.msra.mxu0 %v11539
      %11643 = vmatpush.bf16.msra.mxu0 %v11484
      %11644 = vmatpush.bf16.msra.mxu0 %v11481
      %11645 = vmatpush.bf16.msra.mxu0 %v11478
      %11646 = vmatpush.bf16.msra.mxu0 %v11475
      %11647 = vmatmul.bf16.gmra.mxu0 %v11571
      %v11648 = vpop.f32.mrf.mxu0
      %v11649 = vadd.f32 %v11636, %v11648
      %v11650 = vpop.f32.mrf.mxu0
      %11651 = vdwg.mxu0
      %v11652 = vxor.u32 %v11597, 2147483648
      %v11653 = vxor.u32 %v11623, 2147483648
      %v11654 = vxor.u32 %v11649, 2147483648
      %v11655 = vmul.f32 %v11652, 1.442695
      %v11656 = vpow.pop %v11655
      %v11657 = vmul.f32 %v11653, 1.442695
      %v11658 = vpow.pop %v11657
      %v11659 = vmul.f32 %v11654, 1.442695
      %v11660 = vpow.pop %v11659
      %v11661 = vadd.f32 %v11656, 1.0
      %v11662 = vadd.f32 %v11658, 1.0
      %v11663 = vadd.f32 %v11660, 1.0
      %v11664 = vrcp.pop %v11661
      %v11665 = vmul.f32 %v11661, %v11664
      %v11666 = vsub.f32 1.0, %v11665
      %v11667 = vmul.f32 %v11664, %v11666
      %v11668 = vadd.f32 %v11664, %v11667
      %vm11669 = vweird.f32 %v11661
      %vm11670 = vweird.f32 %v11664
      %vm11671 = vmor %vm11669, %vm11670
      %v11672 = vsel %vm11671, %v11664, %v11668
      %v11673 = vand.u32 2147483647, %v11661
      %vm11674 = vcmp.eq.f32.partialorder %v11673, 8.507059e+37
      %v11675 = vand.u32 %v11661, 2147483648
      %v11676 = vor.u32 1.1754944e-38, %v11675
      %v11677 = vsel %vm11674, %v11676, %v11672
      %v11678 = vmul.f32 1.0, %v11677
      %v11679 = vrcp.pop %v11662
      %v11680 = vmul.f32 %v11662, %v11679
      %v11681 = vsub.f32 1.0, %v11680
      %v11682 = vmul.f32 %v11679, %v11681
      %v11683 = vadd.f32 %v11679, %v11682
      %vm11684 = vweird.f32 %v11662
      %vm11685 = vweird.f32 %v11679
      %vm11686 = vmor %vm11684, %vm11685
      %v11687 = vsel %vm11686, %v11679, %v11683
      %v11688 = vand.u32 2147483647, %v11662
      %vm11689 = vcmp.eq.f32.partialorder %v11688, 8.507059e+37
      %v11690 = vand.u32 %v11662, 2147483648
      %v11691 = vor.u32 1.1754944e-38, %v11690
      %v11692 = vsel %vm11689, %v11691, %v11687
      %v11693 = vmul.f32 1.0, %v11692
      %v11694 = vrcp.pop %v11663
      %v11695 = vmul.f32 %v11663, %v11694
      %v11696 = vsub.f32 1.0, %v11695
      %v11697 = vmul.f32 %v11694, %v11696
      %v11698 = vadd.f32 %v11694, %v11697
      %vm11699 = vweird.f32 %v11663
      %vm11700 = vweird.f32 %v11694
      %vm11701 = vmor %vm11699, %vm11700
      %v11702 = vsel %vm11701, %v11694, %v11698
      %v11703 = vand.u32 2147483647, %v11663
      %vm11704 = vcmp.eq.f32.partialorder %v11703, 8.507059e+37
      %v11705 = vand.u32 %v11663, 2147483648
      %v11706 = vor.u32 1.1754944e-38, %v11705
      %v11707 = vsel %vm11704, %v11706, %v11702
      %v11708 = vmul.f32 1.0, %v11707
      %v11711 = vrot.slane %v11693, 4
      %v11712 = vsel %vm5770, %v11678, %v11711
      %11714 = vst [vmem:[%s748] sm:$0xff] %v11712
      %vm11715 = vcmask 265216
      %11716 = vst.msk [vmem:[%s748 + $0x8] sm:$0xf] %vm11715, %v11708
      %p11717 = scmp.lt.s32.totalorder %s35, 1
      %s11718 = scalar_select %p11717, %s35, 1
      %s11719 = smul.addr %s11718, 4
      %s11720 = scalar_lea.vmem %s21, %s11719
      %p11721 = scmp.lt.s32.totalorder %s35, 1
      %s11722 = scalar_select %p11721, %s35, 1
      %s11723 = smul.addr %s11722, 4
      %s11724 = scalar_lea.vmem %s22, %s11723
      %p11725 = scmp.lt.s32.totalorder %s35, 1
      %s11726 = scalar_select %p11725, %s35, 1
      %s11727 = smul.addr %s11726, 3
      %s11728 = smul.addr %s11727, 4
      %s11729 = scalar_lea.vmem %s23, %s11728
      // Predicated region
      $region105: #{vae_forward.1} parent=103 // pred_check
        %p11730 = pneg %p504
      $region106: #{vae_forward.1} parent=103 // pred_check_branch
        %11732 = sbr.rel (%p11730) target = $region108
      $region107: #{vae_forward.1} parent=103 // pred_region
        _
      $region108: #{vae_forward.1} parent=103 // pred_fallthru
        _
      // Predicated region
      $region109: #{vae_forward.1} parent=103 // pred_check
        %p11733 = pneg %p530
      $region110: #{vae_forward.1} parent=103 // pred_check_branch
        %11735 = sbr.rel (%p11733) target = $region112
      $region111: #{vae_forward.1} parent=103 // pred_region
        _
      $region112: #{vae_forward.1} parent=103 // pred_fallthru
        _
      // Predicated region
      $region113: #{vae_forward.1} parent=103 // pred_check
        %p11736 = pneg %p556
      $region114: #{vae_forward.1} parent=103 // pred_check_branch
        %11738 = sbr.rel (%p11736) target = $region116
      $region115: #{vae_forward.1} parent=103 // pred_region
        _
      $region116: #{vae_forward.1} parent=103 // pred_fallthru
        _
    $region104: #{vae_forward.1} parent=5 // pred_fallthru
      _
    %p11739 = scmp.le.s32.totalorder 2, %s30
    // Predicated region
    $region117: #{vae_forward.1} parent=5 // pred_check
      %p11740 = pneg %p11739
    $region118: #{vae_forward.1} parent=5 // pred_check_branch
      %11742 = sbr.rel (%p11740) target = $region120
    $region119: #{vae_forward.1} parent=5 // pred_region
      %s11743 = ssub.s32 %s30, 2
      // Predicated region
      $region121: #{vae_forward.1} parent=119 // pred_check
        %p11744 = pneg %p510
      $region122: #{vae_forward.1} parent=119 // pred_check_branch
        %11746 = sbr.rel (%p11744) target = $region124
      $region123: #{vae_forward.1} parent=119 // pred_region
        %p11747 = scmp.lt.s32.totalorder %s36, 1
        %s11748 = scalar_select %p11747, %s36, 1
        %s11749 = smul.addr %s11748, 4
        %s11750 = scalar_lea.vmem %s21, %s11749
      $region124: #{vae_forward.1} parent=119 // pred_fallthru
        _
      // Predicated region
      $region125: #{vae_forward.1} parent=119 // pred_check
        %p11751 = pneg %p536
      $region126: #{vae_forward.1} parent=119 // pred_check_branch
        %11753 = sbr.rel (%p11751) target = $region128
      $region127: #{vae_forward.1} parent=119 // pred_region
        %p11754 = scmp.lt.s32.totalorder %s36, 1
        %s11755 = scalar_select %p11754, %s36, 1
        %s11756 = smul.addr %s11755, 4
        %s11757 = scalar_lea.vmem %s22, %s11756
      $region128: #{vae_forward.1} parent=119 // pred_fallthru
        _
      // Predicated region
      $region129: #{vae_forward.1} parent=119 // pred_check
        %p11758 = pneg %p562
      $region130: #{vae_forward.1} parent=119 // pred_check_branch
        %11760 = sbr.rel (%p11758) target = $region132
      $region131: #{vae_forward.1} parent=119 // pred_region
        %p11761 = scmp.lt.s32.totalorder %s36, 1
        %s11762 = scalar_select %p11761, %s36, 1
        %s11763 = smul.addr %s11762, 3
        %s11764 = smul.addr %s11763, 4
        %s11765 = scalar_lea.vmem %s23, %s11764
      $region132: #{vae_forward.1} parent=119 // pred_fallthru
        _
    $region120: #{vae_forward.1} parent=5 // pred_fallthru
      _
  $region6: #{vae_forward.1} parent=0 // loop_footer
    %s34 = sadd.s32 1, %s30
  $region7: #{vae_forward.1} parent=0 // loop_footer_branch
    %29 = sbr.rel target = $region3
  $region8: #{vae_forward.1} parent=0 // loop_exit
    _

</llo_original>
